<compile_context>
chip_gen: v5e
topology: v5e:2x2
jax: 0.10.0
libtpu: 0.0.40
codegen_flags: <defaults>
</compile_context>

<pallas_src>
import functools

import jax
import jax.numpy as jnp
from jax.experimental import pallas as pl
from jax.experimental.pallas import tpu as pltpu

LANE = 128

# (kernel, stride, out_channels) for conv1..conv3 — fixed by the DQNbn spec.
_CONV_ARCH = ((8, 4, 32), (4, 2, 64), (3, 1, 64))


def _round_up(x, m):
    return (x + m - 1) // m * m


def _choose_tm(M):
    """8-aligned M tile: cover M with few tiles, but keep >=2 tiles for larger M
    so the 'parallel' grid axis can shard across v7x's two TensorCores."""
    if M <= 128:
        return _round_up(M, 8)
    n_tiles = max(2, (M + 511) // 512)
    return _round_up((M + n_tiles - 1) // n_tiles, 8)


# ----------------------------------------------------------------------------
# Pallas kernel 1: fused matmul (bf16 operands, f32 accumulation) + bias + ReLU
# ----------------------------------------------------------------------------
def _mm_bias_kernel(x_ref, w_ref, b_ref, o_ref, *, relu):
    y = jnp.dot(x_ref[...].astype(jnp.bfloat16), w_ref[...],
                preferred_element_type=jnp.float32)
    y = y + b_ref[...]
    if relu:
        y = jnp.maximum(y, 0.0)
    o_ref[...] = y.astype(o_ref.dtype)


def matmul_bias(x, w_bf16, bias_row, *, relu):
    """relu_opt(x @ w + b).  x: (M,K) f32, w: (K,N) bf16 (N multiple of 128),
    bias_row: (1,N) f32.  Returns (M,N) f32."""
    x = x.astype(jnp.float32)
    M, K = x.shape
    N = w_bf16.shape[1]

    tm = _choose_tm(M)
    M_pad = _round_up(M, tm)
    if M_pad != M:
        x = jnp.pad(x, ((0, M_pad - M), (0, 0)))
    tn = 256 if N % 256 == 0 else 128           # N is always a multiple of 128

    grid = (M_pad // tm, N // tn)
    out = pl.pallas_call(
        functools.partial(_mm_bias_kernel, relu=relu),
        out_shape=jax.ShapeDtypeStruct((M_pad, N), jnp.float32),
        grid_spec=pltpu.PrefetchScalarGridSpec(
            num_scalar_prefetch=0,
            grid=grid,
            in_specs=[
                pl.BlockSpec((tm, K), lambda i, j: (i, 0)),   # activations (f32)
                pl.BlockSpec((K, tn), lambda i, j: (0, j)),   # weights (bf16, BN folded)
                pl.BlockSpec((1, tn), lambda i, j: (0, j)),   # folded bias (f32)
            ],
            out_specs=pl.BlockSpec((tm, tn), lambda i, j: (i, j)),
        ),
        compiler_params=pltpu.CompilerParams(
            dimension_semantics=("parallel", "parallel"),
            vmem_limit_bytes=32 << 20,
        ),
    )(x, w_bf16, bias_row)
    return out[:M]


# ----------------------------------------------------------------------------
# Pallas kernel 2: fused fc4 (+ReLU) and head in a single call
# ----------------------------------------------------------------------------
def _mlp_head_kernel(x_ref, w4_ref, b4_ref, w5_ref, b5_ref, o_ref):
    h = jnp.dot(x_ref[...].astype(jnp.bfloat16), w4_ref[...],
                preferred_element_type=jnp.float32)
    h = jnp.maximum(h + b4_ref[...], 0.0)
    y = jnp.dot(h.astype(jnp.bfloat16), w5_ref[...],
                preferred_element_type=jnp.float32)
    o_ref[...] = (y + b5_ref[...]).astype(o_ref.dtype)


def mlp_head(x, w4, b4_row, w5, b5_row):
    """head(relu(x @ w4 + b4)) fused in one kernel.
    x: (B,K) f32, w4: (K,H) bf16, w5: (H,Npad) bf16, biases (1,·) f32."""
    x = x.astype(jnp.float32)
    M, K = x.shape
    H = w4.shape[1]
    N = w5.shape[1]
    M_pad = _round_up(M, 8)
    if M_pad != M:
        x = jnp.pad(x, ((0, M_pad - M), (0, 0)))

    out = pl.pallas_call(
        _mlp_head_kernel,
        out_shape=jax.ShapeDtypeStruct((M_pad, N), jnp.float32),
        grid_spec=pltpu.PrefetchScalarGridSpec(
            num_scalar_prefetch=0,
            grid=(1,),
            in_specs=[
                pl.BlockSpec((M_pad, K), lambda i: (0, 0)),
                pl.BlockSpec((K, H), lambda i: (0, 0)),
                pl.BlockSpec((1, H), lambda i: (0, 0)),
                pl.BlockSpec((H, N), lambda i: (0, 0)),
                pl.BlockSpec((1, N), lambda i: (0, 0)),
            ],
            out_specs=pl.BlockSpec((M_pad, N), lambda i: (0, 0)),
        ),
        compiler_params=pltpu.CompilerParams(
            dimension_semantics=("arbitrary",),
            vmem_limit_bytes=32 << 20,
        ),
    )(x, w4, b4_row, w5, b5_row)
    return out[:M]


# ----------------------------------------------------------------------------
# Glue: NHWC im2col (static kernel/stride), channel-slicing padded inputs
# ----------------------------------------------------------------------------
def im2col_nhwc(x, kh, kw, stride, c_real):
    """x: (B,H,W,Cstored) NHWC; only the first c_real channels are real.
    Returns ((B*OH*OW, kh*kw*c_real) patches with feature order (kh,kw,C), OH, OW)."""
    B, H, W, _ = x.shape
    OH = (H - kh) // stride + 1
    OW = (W - kw) // stride + 1
    cols = []
    for i in range(kh):
        for j in range(kw):
            cols.append(
                x[:, i:i + stride * OH:stride, j:j + stride * OW:stride, :c_real])
    p = jnp.concatenate(cols, axis=-1)                 # (B, OH, OW, kh*kw*c_real)
    return p.reshape(B * OH * OW, kh * kw * c_real), OH, OW


# ----------------------------------------------------------------------------
# One-time parameter packing (BN fold, layout permutes, lane padding, bf16)
# ----------------------------------------------------------------------------
def prepare_params(p, eps=1e-5):
    q = {}
    convs = (("w1", "b1", "bn1"), ("w2", "b2", "bn2"), ("w3", "b3", "bn3"))
    for idx, (wn, bn_, bnn) in enumerate(convs, start=1):
        w, b = p[wn], p[bn_]
        gamma, beta, mean, var = p[bnn]
        oc, c, kh, kw = w.shape
        inv_std = gamma / jnp.sqrt(var + eps)
        # (OC,C,kh,kw) -> (kh,kw,C,OC) -> (kh*kw*C, OC); BN scale folded into columns.
        wmat = w.transpose(2, 3, 1, 0).reshape(kh * kw * c, oc) * inv_std[None, :]
        bias = beta + inv_std * (b - mean)
        n_pad = _round_up(oc, LANE)
        q[f"cw{idx}"] = jnp.pad(wmat, ((0, 0), (0, n_pad - oc))).astype(jnp.bfloat16)
        q[f"cb{idx}"] = jnp.pad(bias, (0, n_pad - oc)).reshape(1, n_pad).astype(jnp.float32)

    # fc4: PyTorch weight (512, C*H*W) with columns in (C,H,W) order; permute rows
    # to our NHWC (H,W,C) flatten order and pre-transpose to (K, 512), bf16.
    oc3 = p["w3"].shape[0]
    nh, kin = p["w4"].shape
    s = int(round((kin // oc3) ** 0.5))                 # 7 for 84x84 inputs
    q["w4"] = (p["w4"].reshape(nh, oc3, s, s)
                      .transpose(2, 3, 1, 0)
                      .reshape(kin, nh)).astype(jnp.bfloat16)
    q["b4"] = p["b4"].reshape(1, nh).astype(jnp.float32)

    # head: pre-transpose to (512, n_actions) and pad columns to 128 lanes, bf16.
    na = p["w5"].shape[0]
    na_pad = _round_up(na, LANE)
    q["w5"] = jnp.pad(p["w5"].T, ((0, 0), (0, na_pad - na))).astype(jnp.bfloat16)
    q["b5"] = jnp.pad(p["b5"], (0, na_pad - na)).reshape(1, na_pad).astype(jnp.float32)
    return q


# ----------------------------------------------------------------------------
# DQNbn forward (NHWC internally, matches PyTorch NCHW semantics)
# ----------------------------------------------------------------------------
def dqn_forward(prep, x_nchw, *, n_actions=14):
    x = x_nchw.astype(jnp.float32) / 255.0
    x = jnp.transpose(x, (0, 2, 3, 1))                  # NCHW -> NHWC, once
    B = x.shape[0]
    c_real = x.shape[-1]
    for idx, (k, stride, oc) in enumerate(_CONV_ARCH, start=1):
        patches, OH, OW = im2col_nhwc(x, k, k, stride, c_real)
        y = matmul_bias(patches, prep[f"cw{idx}"], prep[f"cb{idx}"], relu=True)
        x = y.reshape(B, OH, OW, y.shape[-1])           # channels padded to 128
        c_real = oc
    x = x[..., :c_real].reshape(B, -1)                  # (H,W,C) flatten; w4 rows match
    q = mlp_head(x, prep["w4"], prep["b4"], prep["w5"], prep["b5"])
    return q[:, :n_actions]


# ----------------------------------------------------------------------------
# Pure-JAX f32 reference of the PyTorch forward (eval-mode BN) for sanity check
# ----------------------------------------------------------------------------
def reference_forward(params, x, eps=1e-5):
    hi = jax.lax.Precision.HIGHEST
    x = x.astype(jnp.float32) / 255.0

    def conv_bn_relu(x, w, b, bn, stride):
        gamma, beta, mean, var = bn
        y = jax.lax.conv_general_dilated(
            x, w, window_strides=(stride, stride), padding="VALID",
            dimension_numbers=("NCHW", "OIHW", "NCHW"), precision=hi)
        y = y + b[None, :, None, None]
        y = (y - mean[None, :, None, None]) * (
            gamma[None, :, None, None] / jnp.sqrt(var[None, :, None, None] + eps)
        ) + beta[None, :, None, None]
        return jnp.maximum(y, 0.0)

    x = conv_bn_relu(x, params["w1"], params["b1"], params["bn1"], 4)
    x = conv_bn_relu(x, params["w2"], params["b2"], params["bn2"], 2)
    x = conv_bn_relu(x, params["w3"], params["b3"], params["bn3"], 1)
    x = x.reshape(x.shape[0], -1)
    x = jnp.maximum(jnp.dot(x, params["w4"].T, precision=hi) + params["b4"], 0.0)
    return jnp.dot(x, params["w5"].T, precision=hi) + params["b5"]


def init_params(key, in_channels=4, n_actions=14):
    ks = jax.random.split(key, 16)

    def conv_w(k, oc, ic, kh, kw):
        return jax.random.normal(k, (oc, ic, kh, kw), jnp.float32) * 0.05

    def bn(k, c):
        k1, k2, k3, k4 = jax.random.split(k, 4)
        gamma = 1.0 + 0.1 * jax.random.normal(k1, (c,), jnp.float32)
        beta = 0.1 * jax.random.normal(k2, (c,), jnp.float32)
        mean = 0.01 * jax.random.normal(k3, (c,), jnp.float32)
        var = 1.0 + 0.1 * jnp.abs(jax.random.normal(k4, (c,), jnp.float32))
        return (gamma, beta, mean, var)

    p = {}
    p["w1"] = conv_w(ks[0], 32, in_channels, 8, 8)
    p["b1"] = 0.01 * jax.random.normal(ks[1], (32,), jnp.float32)
    p["bn1"] = bn(ks[2], 32)
    p["w2"] = conv_w(ks[3], 64, 32, 4, 4)
    p["b2"] = 0.01 * jax.random.normal(ks[4], (64,), jnp.float32)
    p["bn2"] = bn(ks[5], 64)
    p["w3"] = conv_w(ks[6], 64, 64, 3, 3)
    p["b3"] = 0.01 * jax.random.normal(ks[7], (64,), jnp.float32)
    p["bn3"] = bn(ks[8], 64)
    p["w4"] = 0.02 * jax.random.normal(ks[9], (512, 7 * 7 * 64), jnp.float32)
    p["b4"] = 0.01 * jax.random.normal(ks[10], (512,), jnp.float32)
    p["w5"] = 0.02 * jax.random.normal(ks[11], (n_actions, 512), jnp.float32)
    p["b5"] = 0.01 * jax.random.normal(ks[12], (n_actions,), jnp.float32)
    return p


if __name__ == "__main__":
    key = jax.random.PRNGKey(0)
    pkey, xkey = jax.random.split(key)
    params = init_params(pkey, in_channels=4, n_actions=14)
    prep = prepare_params(params)            # one-time packing, outside the hot path

    # Atari-style input: batch=2, 4 stacked 84x84 frames (required by fc4 = 7*7*64).
    x = jax.random.randint(xkey, (2, 4, 84, 84), 0, 256, dtype=jnp.int32).astype(
        jnp.uint8)

    fwd = jax.jit(dqn_forward, static_argnames=("n_actions",))
    q_values = jax.block_until_ready(fwd(prep, x, n_actions=14))
    assert q_values.shape == (2, 14), q_values.shape
    assert q_values.dtype == jnp.float32

    # Sanity check against a pure-JAX f32 reference (loose tol for bf16 matmuls).
    ref = jax.block_until_ready(jax.jit(reference_forward)(params, x))
    err = float(jnp.max(jnp.abs(q_values - ref)))
    assert err < 5e-2, f"max |pallas - reference| too large: {err}"
    print("KERNEL_OK")
</pallas_src>

<mosaic_0001>
module attributes {stable_mosaic.version = 11 : i64} {
  func.func @_mm_bias_kernel(%arg0: i32, %arg1: i32, %arg2: memref<400x256xf32, #tpu.memory_space<vmem>>, %arg3: memref<256x128xbf16, #tpu.memory_space<vmem>>, %arg4: memref<1x128xf32, #tpu.memory_space<vmem>>, %arg5: memref<400x128xf32, #tpu.memory_space<vmem>>) attributes {dimension_semantics = [#tpu.dimension_semantics<parallel>, #tpu.dimension_semantics<parallel>], iteration_bounds = array<i64: 2, 1>, scalar_prefetch = 0 : i64, scratch_operands = 0 : i64, tpu.core_type = #tpu.core_type<tc>, window_params = [{transform_indices = @transform_0, window_bounds = array<i64: 400, 256>}, {transform_indices = @transform_1, window_bounds = array<i64: 256, 128>}, {transform_indices = @transform_2, window_bounds = array<i64: 1, 128>}, {transform_indices = @transform_3, window_bounds = array<i64: 400, 128>}]} {
    %c0 = arith.constant 0 : index
    %c0_0 = arith.constant 0 : index
    %0 = vector.load %arg2[%c0, %c0_0] : memref<400x256xf32, #tpu.memory_space<vmem>>, vector<400x256xf32>
    %1 = arith.truncf %0 : vector<400x256xf32> to vector<400x256xbf16>
    %c0_1 = arith.constant 0 : index
    %c0_2 = arith.constant 0 : index
    %2 = vector.load %arg3[%c0_1, %c0_2] : memref<256x128xbf16, #tpu.memory_space<vmem>>, vector<256x128xbf16>
    %cst = arith.constant dense<0.000000e+00> : vector<400x128xf32>
    %3 = tpu.matmul %1, %2, %cst {dimension_numbers = #tpu.dot_dimension_numbers<[1], [0], [0], [1], [0, 0, 1, 1], [], []>} : vector<400x256xbf16>, vector<256x128xbf16>, vector<400x128xf32> -> vector<400x128xf32>
    %c0_3 = arith.constant 0 : index
    %c0_4 = arith.constant 0 : index
    %4 = vector.load %arg4[%c0_3, %c0_4] : memref<1x128xf32, #tpu.memory_space<vmem>>, vector<1x128xf32>
    %5 = vector.broadcast %4 : vector<1x128xf32> to vector<400x128xf32>
    %6 = arith.addf %3, %5 : vector<400x128xf32>
    %cst_5 = arith.constant 0.000000e+00 : f32
    %7 = vector.broadcast %cst_5 : f32 to vector<400x128xf32>
    %8 = arith.maximumf %6, %7 : vector<400x128xf32>
    %c0_6 = arith.constant 0 : index
    %c0_7 = arith.constant 0 : index
    %9 = vector.load %arg5[%c0_6, %c0_7] : memref<400x128xf32, #tpu.memory_space<vmem>>, vector<400x128xf32>
    tpu.vector_store %arg5[%c0_6, %c0_7], %8 {strides = array<i32>} : memref<400x128xf32, #tpu.memory_space<vmem>>, vector<400x128xf32>,
    return
  }
  func.func @transform_0(%arg0: i32, %arg1: i32) -> (i32, i32) {
    %c0_i32 = arith.constant 0 : i32
    %c0_i32_0 = arith.constant 0 : i32
    return %arg0, %c0_i32 : i32, i32
  }
  func.func @transform_1(%arg0: i32, %arg1: i32) -> (i32, i32) {
    %c0_i32 = arith.constant 0 : i32
    %c0_i32_0 = arith.constant 0 : i32
    return %c0_i32, %arg1 : i32, i32
  }
  func.func @transform_2(%arg0: i32, %arg1: i32) -> (i32, i32) {
    %c0_i32 = arith.constant 0 : i32
    %c0_i32_0 = arith.constant 0 : i32
    return %c0_i32, %arg1 : i32, i32
  }
  func.func @transform_3(%arg0: i32, %arg1: i32) -> (i32, i32) {
    %c0_i32 = arith.constant 0 : i32
    return %arg0, %arg1 : i32, i32
  }
}

module attributes {stable_mosaic.version = 11 : i64} {
  func.func @_mm_bias_kernel(%arg0: i32, %arg1: i32, %arg2: memref<88x512xf32, #tpu.memory_space<vmem>>, %arg3: memref<512x128xbf16, #tpu.memory_space<vmem>>, %arg4: memref<1x128xf32, #tpu.memory_space<vmem>>, %arg5: memref<88x128xf32, #tpu.memory_space<vmem>>) attributes {dimension_semantics = [#tpu.dimension_semantics<parallel>, #tpu.dimension_semantics<parallel>], iteration_bounds = array<i64: 2, 1>, scalar_prefetch = 0 : i64, scratch_operands = 0 : i64, tpu.core_type = #tpu.core_type<tc>, window_params = [{transform_indices = @transform_0, window_bounds = array<i64: 88, 512>}, {transform_indices = @transform_1, window_bounds = array<i64: 512, 128>}, {transform_indices = @transform_2, window_bounds = array<i64: 1, 128>}, {transform_indices = @transform_3, window_bounds = array<i64: 88, 128>}]} {
    %c0 = arith.constant 0 : index
    %c0_0 = arith.constant 0 : index
    %0 = vector.load %arg2[%c0, %c0_0] : memref<88x512xf32, #tpu.memory_space<vmem>>, vector<88x512xf32>
    %1 = arith.truncf %0 : vector<88x512xf32> to vector<88x512xbf16>
    %c0_1 = arith.constant 0 : index
    %c0_2 = arith.constant 0 : index
    %2 = vector.load %arg3[%c0_1, %c0_2] : memref<512x128xbf16, #tpu.memory_space<vmem>>, vector<512x128xbf16>
    %cst = arith.constant dense<0.000000e+00> : vector<88x128xf32>
    %3 = tpu.matmul %1, %2, %cst {dimension_numbers = #tpu.dot_dimension_numbers<[1], [0], [0], [1], [0, 0, 1, 1], [], []>} : vector<88x512xbf16>, vector<512x128xbf16>, vector<88x128xf32> -> vector<88x128xf32>
    %c0_3 = arith.constant 0 : index
    %c0_4 = arith.constant 0 : index
    %4 = vector.load %arg4[%c0_3, %c0_4] : memref<1x128xf32, #tpu.memory_space<vmem>>, vector<1x128xf32>
    %5 = vector.broadcast %4 : vector<1x128xf32> to vector<88x128xf32>
    %6 = arith.addf %3, %5 : vector<88x128xf32>
    %cst_5 = arith.constant 0.000000e+00 : f32
    %7 = vector.broadcast %cst_5 : f32 to vector<88x128xf32>
    %8 = arith.maximumf %6, %7 : vector<88x128xf32>
    %c0_6 = arith.constant 0 : index
    %c0_7 = arith.constant 0 : index
    %9 = vector.load %arg5[%c0_6, %c0_7] : memref<88x128xf32, #tpu.memory_space<vmem>>, vector<88x128xf32>
    tpu.vector_store %arg5[%c0_6, %c0_7], %8 {strides = array<i32>} : memref<88x128xf32, #tpu.memory_space<vmem>>, vector<88x128xf32>,
    return
  }
  func.func @transform_0(%arg0: i32, %arg1: i32) -> (i32, i32) {
    %c0_i32 = arith.constant 0 : i32
    %c0_i32_0 = arith.constant 0 : i32
    return %arg0, %c0_i32 : i32, i32
  }
  func.func @transform_1(%arg0: i32, %arg1: i32) -> (i32, i32) {
    %c0_i32 = arith.constant 0 : i32
    %c0_i32_0 = arith.constant 0 : i32
    return %c0_i32, %arg1 : i32, i32
  }
  func.func @transform_2(%arg0: i32, %arg1: i32) -> (i32, i32) {
    %c0_i32 = arith.constant 0 : i32
    %c0_i32_0 = arith.constant 0 : i32
    return %c0_i32, %arg1 : i32, i32
  }
  func.func @transform_3(%arg0: i32, %arg1: i32) -> (i32, i32) {
    %c0_i32 = arith.constant 0 : i32
    return %arg0, %arg1 : i32, i32
  }
}

module attributes {stable_mosaic.version = 11 : i64} {
  func.func @_mm_bias_kernel(%arg0: i32, %arg1: i32, %arg2: memref<104x576xf32, #tpu.memory_space<vmem>>, %arg3: memref<576x128xbf16, #tpu.memory_space<vmem>>, %arg4: memref<1x128xf32, #tpu.memory_space<vmem>>, %arg5: memref<104x128xf32, #tpu.memory_space<vmem>>) attributes {dimension_semantics = [#tpu.dimension_semantics<parallel>, #tpu.dimension_semantics<parallel>], iteration_bounds = array<i64: 1, 1>, scalar_prefetch = 0 : i64, scratch_operands = 0 : i64, tpu.core_type = #tpu.core_type<tc>, window_params = [{transform_indices = @transform_0, window_bounds = array<i64: 104, 576>}, {transform_indices = @transform_1, window_bounds = array<i64: 576, 128>}, {transform_indices = @transform_2, window_bounds = array<i64: 1, 128>}, {transform_indices = @transform_3, window_bounds = array<i64: 104, 128>}]} {
    %c0 = arith.constant 0 : index
    %c0_0 = arith.constant 0 : index
    %0 = vector.load %arg2[%c0, %c0_0] : memref<104x576xf32, #tpu.memory_space<vmem>>, vector<104x576xf32>
    %1 = arith.truncf %0 : vector<104x576xf32> to vector<104x576xbf16>
    %c0_1 = arith.constant 0 : index
    %c0_2 = arith.constant 0 : index
    %2 = vector.load %arg3[%c0_1, %c0_2] : memref<576x128xbf16, #tpu.memory_space<vmem>>, vector<576x128xbf16>
    %cst = arith.constant dense<0.000000e+00> : vector<104x128xf32>
    %3 = tpu.matmul %1, %2, %cst {dimension_numbers = #tpu.dot_dimension_numbers<[1], [0], [0], [1], [0, 0, 1, 1], [], []>} : vector<104x576xbf16>, vector<576x128xbf16>, vector<104x128xf32> -> vector<104x128xf32>
    %c0_3 = arith.constant 0 : index
    %c0_4 = arith.constant 0 : index
    %4 = vector.load %arg4[%c0_3, %c0_4] : memref<1x128xf32, #tpu.memory_space<vmem>>, vector<1x128xf32>
    %5 = vector.broadcast %4 : vector<1x128xf32> to vector<104x128xf32>
    %6 = arith.addf %3, %5 : vector<104x128xf32>
    %cst_5 = arith.constant 0.000000e+00 : f32
    %7 = vector.broadcast %cst_5 : f32 to vector<104x128xf32>
    %8 = arith.maximumf %6, %7 : vector<104x128xf32>
    %c0_6 = arith.constant 0 : index
    %c0_7 = arith.constant 0 : index
    %9 = vector.load %arg5[%c0_6, %c0_7] : memref<104x128xf32, #tpu.memory_space<vmem>>, vector<104x128xf32>
    tpu.vector_store %arg5[%c0_6, %c0_7], %8 {strides = array<i32>} : memref<104x128xf32, #tpu.memory_space<vmem>>, vector<104x128xf32>,
    return
  }
  func.func @transform_0(%arg0: i32, %arg1: i32) -> (i32, i32) {
    %c0_i32 = arith.constant 0 : i32
    %c0_i32_0 = arith.constant 0 : i32
    return %arg0, %c0_i32 : i32, i32
  }
  func.func @transform_1(%arg0: i32, %arg1: i32) -> (i32, i32) {
    %c0_i32 = arith.constant 0 : i32
    %c0_i32_0 = arith.constant 0 : i32
    return %c0_i32, %arg1 : i32, i32
  }
  func.func @transform_2(%arg0: i32, %arg1: i32) -> (i32, i32) {
    %c0_i32 = arith.constant 0 : i32
    %c0_i32_0 = arith.constant 0 : i32
    return %c0_i32, %arg1 : i32, i32
  }
  func.func @transform_3(%arg0: i32, %arg1: i32) -> (i32, i32) {
    %c0_i32 = arith.constant 0 : i32
    return %arg0, %arg1 : i32, i32
  }
}

module attributes {stable_mosaic.version = 11 : i64} {
  func.func @_mlp_head_kernel(%arg0: i32, %arg1: memref<8x3136xf32, #tpu.memory_space<vmem>>, %arg2: memref<3136x512xbf16, #tpu.memory_space<vmem>>, %arg3: memref<1x512xf32, #tpu.memory_space<vmem>>, %arg4: memref<512x128xbf16, #tpu.memory_space<vmem>>, %arg5: memref<1x128xf32, #tpu.memory_space<vmem>>, %arg6: memref<8x128xf32, #tpu.memory_space<vmem>>) attributes {dimension_semantics = [#tpu.dimension_semantics<arbitrary>], iteration_bounds = array<i64: 1>, scalar_prefetch = 0 : i64, scratch_operands = 0 : i64, tpu.core_type = #tpu.core_type<tc>, window_params = [{pipeline_mode = #tpu.pipeline_mode<synchronous>, transform_indices = @transform_0, window_bounds = array<i64: 8, 3136>}, {pipeline_mode = #tpu.pipeline_mode<synchronous>, transform_indices = @transform_1, window_bounds = array<i64: 3136, 512>}, {pipeline_mode = #tpu.pipeline_mode<synchronous>, transform_indices = @transform_2, window_bounds = array<i64: 1, 512>}, {pipeline_mode = #tpu.pipeline_mode<synchronous>, transform_indices = @transform_3, window_bounds = array<i64: 512, 128>}, {pipeline_mode = #tpu.pipeline_mode<synchronous>, transform_indices = @transform_4, window_bounds = array<i64: 1, 128>}, {pipeline_mode = #tpu.pipeline_mode<synchronous>, transform_indices = @transform_5, window_bounds = array<i64: 8, 128>}]} {
    %c0 = arith.constant 0 : index
    %c0_0 = arith.constant 0 : index
    %0 = vector.load %arg1[%c0, %c0_0] : memref<8x3136xf32, #tpu.memory_space<vmem>>, vector<8x3136xf32>
    %1 = arith.truncf %0 : vector<8x3136xf32> to vector<8x3136xbf16>
    %c0_1 = arith.constant 0 : index
    %c0_2 = arith.constant 0 : index
    %2 = vector.load %arg2[%c0_1, %c0_2] : memref<3136x512xbf16, #tpu.memory_space<vmem>>, vector<3136x512xbf16>
    %cst = arith.constant dense<0.000000e+00> : vector<8x512xf32>
    %3 = tpu.matmul %1, %2, %cst {dimension_numbers = #tpu.dot_dimension_numbers<[1], [0], [0], [1], [0, 0, 1, 1], [], []>} : vector<8x3136xbf16>, vector<3136x512xbf16>, vector<8x512xf32> -> vector<8x512xf32>
    %c0_3 = arith.constant 0 : index
    %c0_4 = arith.constant 0 : index
    %4 = vector.load %arg3[%c0_3, %c0_4] : memref<1x512xf32, #tpu.memory_space<vmem>>, vector<1x512xf32>
    %5 = vector.broadcast %4 : vector<1x512xf32> to vector<8x512xf32>
    %6 = arith.addf %3, %5 : vector<8x512xf32>
    %cst_5 = arith.constant 0.000000e+00 : f32
    %7 = vector.broadcast %cst_5 : f32 to vector<8x512xf32>
    %8 = arith.maximumf %6, %7 : vector<8x512xf32>
    %9 = arith.truncf %8 : vector<8x512xf32> to vector<8x512xbf16>
    %c0_6 = arith.constant 0 : index
    %c0_7 = arith.constant 0 : index
    %10 = vector.load %arg4[%c0_6, %c0_7] : memref<512x128xbf16, #tpu.memory_space<vmem>>, vector<512x128xbf16>
    %cst_8 = arith.constant dense<0.000000e+00> : vector<8x128xf32>
    %11 = tpu.matmul %9, %10, %cst_8 {dimension_numbers = #tpu.dot_dimension_numbers<[1], [0], [0], [1], [0, 0, 1, 1], [], []>} : vector<8x512xbf16>, vector<512x128xbf16>, vector<8x128xf32> -> vector<8x128xf32>
    %c0_9 = arith.constant 0 : index
    %c0_10 = arith.constant 0 : index
    %12 = vector.load %arg5[%c0_9, %c0_10] : memref<1x128xf32, #tpu.memory_space<vmem>>, vector<1x128xf32>
    %13 = vector.broadcast %12 : vector<1x128xf32> to vector<8x128xf32>
    %14 = arith.addf %11, %13 : vector<8x128xf32>
    %c0_11 = arith.constant 0 : index
    %c0_12 = arith.constant 0 : index
    %15 = vector.load %arg6[%c0_11, %c0_12] : memref<8x128xf32, #tpu.memory_space<vmem>>, vector<8x128xf32>
    tpu.vector_store %arg6[%c0_11, %c0_12], %14 {strides = array<i32>} : memref<8x128xf32, #tpu.memory_space<vmem>>, vector<8x128xf32>,
    return
  }
  func.func @transform_0(%arg0: i32) -> (i32, i32) {
    %c0_i32 = arith.constant 0 : i32
    %c0_i32_0 = arith.constant 0 : i32
    %c0_i32_1 = arith.constant 0 : i32
    return %c0_i32, %c0_i32_0 : i32, i32
  }
  func.func @transform_1(%arg0: i32) -> (i32, i32) {
    %c0_i32 = arith.constant 0 : i32
    %c0_i32_0 = arith.constant 0 : i32
    %c0_i32_1 = arith.constant 0 : i32
    return %c0_i32, %c0_i32_0 : i32, i32
  }
  func.func @transform_2(%arg0: i32) -> (i32, i32) {
    %c0_i32 = arith.constant 0 : i32
    %c0_i32_0 = arith.constant 0 : i32
    %c0_i32_1 = arith.constant 0 : i32
    return %c0_i32, %c0_i32_0 : i32, i32
  }
  func.func @transform_3(%arg0: i32) -> (i32, i32) {
    %c0_i32 = arith.constant 0 : i32
    %c0_i32_0 = arith.constant 0 : i32
    %c0_i32_1 = arith.constant 0 : i32
    return %c0_i32, %c0_i32_0 : i32, i32
  }
  func.func @transform_4(%arg0: i32) -> (i32, i32) {
    %c0_i32 = arith.constant 0 : i32
    %c0_i32_0 = arith.constant 0 : i32
    %c0_i32_1 = arith.constant 0 : i32
    return %c0_i32, %c0_i32_0 : i32, i32
  }
  func.func @transform_5(%arg0: i32) -> (i32, i32) {
    %c0_i32 = arith.constant 0 : i32
    %c0_i32_0 = arith.constant 0 : i32
    %c0_i32_1 = arith.constant 0 : i32
    return %c0_i32, %c0_i32_0 : i32, i32
  }
}

</mosaic_0001>

<llo_original>
// kernel: dqn_forward.4
$region0: #{dqn_forward.4}
  #allocation0 [shape = 'u32[]', space=smem, size = 0x4, offset = 0x4, fixed_abs, tag = 'smem constant byte address 0x4 - core index']
  #allocation1 [shape = 'u32[72,128]{1,0:T(1,128)}', space=vmem, size = 0x9000, scoped, tag = 'internal scratch']
  %s0 = inlined_call_operand.vmem [shape: f32[800,256], index: 0, kind: input, shape index: {}]
  %s1 = inlined_call_operand.vmem [shape: bf16[256,128], index: 1, kind: input, shape index: {}]
  %s2 = inlined_call_operand.vmem [shape: f32[1,128], index: 2, kind: input, shape index: {}]
  %s3 = inlined_call_operand.vmem [shape: f32[800,128], index: 3, kind: output, shape index: {}]
  %s4 = sld [smem:[#allocation0]]
  $region45: #{dqn_forward.4} parent=0
    _
  %s6 = ssub.s32 1, %s4
  %s7 = scalar_select 0, %s6, %s4
  loop: start=0, step=1, limit=4
  $region2: #{dqn_forward.4} parent=0 // loop_pre_header
    _
  $region3: #{dqn_forward.4} parent=0 // loop_header
    %s9 = sphi 0, %s13
    %p10 = scmp.ge.s32.totalorder %s9, 4
    %s16 = sphi 0, %s28
    %s17 = sphi 0, %s24
    %s18 = sphi 0, %s16
    %s19 = sphi 0, %s17
    %s20 = sphi 0, %s18
    %s21 = sphi 0, %s19
    %s31 = sphi 0, %s33
    %s34 = sphi 0, %s31
    %s35 = sphi 0, %s34
    %s51 = sphi 0, %s35
    %s57 = sphi 0, %s59
    %s60 = sphi 0, %s57
    %s61 = sphi 0, %s60
    %s77 = sphi 0, %s61
    %s83 = sphi 0, %s85
    %s86 = sphi 0, %s83
    %s87 = sphi 0, %s86
    %s103 = sphi 0, %s87
    %s111 = sphi 0, %s113
    %s114 = sphi 0, %s111
    %s115 = sphi 0, %s114
    %s131 = sphi 0, %s115
  $region4: #{dqn_forward.4} parent=0 // loop_header_branch
    %12 = sbr.rel (%p10) target = $region8
  $region5: #{dqn_forward.4} parent=0 // loop_body
    %s14 = ssub.s32 %s9, 1
    %s15 = ssub.s32 %s9, 2
    %s22 = sadd.s32 1, %s17
    %p23 = scmp.ge.s32.totalorder %s22, 1
    %s24 = scalar_select %p23, 0, %s22
    %s25 = sadd.s32 1, %s16
    %s26 = scalar_select %p23, %s25, %s16
    %p27 = scmp.ge.s32.totalorder %s26, 2
    %s28 = scalar_select %p27, 0, %s26
    %s29 = ssub.s32 %s16, %s28
    %p30 = scmp.eq.s32.totalorder %s29, 0
    %s32 = sadd.s32 %s31, 1
    %s33 = scalar_select %p30, %s31, %s32
    %p36 = pneg %p30
    %p37 = scmp.eq.s32.totalorder %s9, 1
    %p38 = por %p36, %p37
    %p39 = scmp.ne.s32.totalorder %s31, %s34
    %p40 = scmp.eq.s32.totalorder %s9, 0
    %p41 = por %p39, %p40
    %p42 = scmp.ne.s32.totalorder %s31, %s34
    %p43 = scmp.eq.s32.totalorder %s14, 1
    %p44 = por %p42, %p43
    %p45 = scmp.ne.s32.totalorder %s34, %s35
    %p46 = scmp.eq.s32.totalorder %s14, 0
    %p47 = por %p45, %p46
    %p48 = scmp.ne.s32.totalorder %s34, %s35
    %p49 = scmp.eq.s32.totalorder %s15, 1
    %p50 = por %p48, %p49
    %p52 = scmp.ne.s32.totalorder %s35, %s51
    %p53 = scmp.eq.s32.totalorder %s15, 0
    %p54 = por %p52, %p53
    %s55 = ssub.s32 %s17, %s24
    %p56 = scmp.eq.s32.totalorder %s55, 0
    %s58 = sadd.s32 %s57, 1
    %s59 = scalar_select %p56, %s57, %s58
    %p62 = pneg %p56
    %p63 = scmp.eq.s32.totalorder %s9, 1
    %p64 = por %p62, %p63
    %p65 = scmp.ne.s32.totalorder %s57, %s60
    %p66 = scmp.eq.s32.totalorder %s9, 0
    %p67 = por %p65, %p66
    %p68 = scmp.ne.s32.totalorder %s57, %s60
    %p69 = scmp.eq.s32.totalorder %s14, 1
    %p70 = por %p68, %p69
    %p71 = scmp.ne.s32.totalorder %s60, %s61
    %p72 = scmp.eq.s32.totalorder %s14, 0
    %p73 = por %p71, %p72
    %p74 = scmp.ne.s32.totalorder %s60, %s61
    %p75 = scmp.eq.s32.totalorder %s15, 1
    %p76 = por %p74, %p75
    %p78 = scmp.ne.s32.totalorder %s61, %s77
    %p79 = scmp.eq.s32.totalorder %s15, 0
    %p80 = por %p78, %p79
    %s81 = ssub.s32 %s17, %s24
    %p82 = scmp.eq.s32.totalorder %s81, 0
    %s84 = sadd.s32 %s83, 1
    %s85 = scalar_select %p82, %s83, %s84
    %p88 = pneg %p82
    %p89 = scmp.eq.s32.totalorder %s9, 1
    %p90 = por %p88, %p89
    %p91 = scmp.ne.s32.totalorder %s83, %s86
    %p92 = scmp.eq.s32.totalorder %s9, 0
    %p93 = por %p91, %p92
    %p94 = scmp.ne.s32.totalorder %s83, %s86
    %p95 = scmp.eq.s32.totalorder %s14, 1
    %p96 = por %p94, %p95
    %p97 = scmp.ne.s32.totalorder %s86, %s87
    %p98 = scmp.eq.s32.totalorder %s14, 0
    %p99 = por %p97, %p98
    %p100 = scmp.ne.s32.totalorder %s86, %s87
    %p101 = scmp.eq.s32.totalorder %s15, 1
    %p102 = por %p100, %p101
    %p104 = scmp.ne.s32.totalorder %s87, %s103
    %p105 = scmp.eq.s32.totalorder %s15, 0
    %p106 = por %p104, %p105
    %s107 = ssub.s32 %s16, %s28
    %s108 = ssub.s32 %s17, %s24
    %s109 = sor.u32 %s107, %s108
    %p110 = scmp.eq.s32.totalorder %s109, 0
    %s112 = sadd.s32 %s111, 1
    %s113 = scalar_select %p110, %s111, %s112
    %p116 = pneg %p110
    %p117 = scmp.eq.s32.totalorder %s9, 1
    %p118 = por %p116, %p117
    %p119 = scmp.ne.s32.totalorder %s111, %s114
    %p120 = scmp.eq.s32.totalorder %s9, 0
    %p121 = por %p119, %p120
    %p122 = scmp.ne.s32.totalorder %s111, %s114
    %p123 = scmp.eq.s32.totalorder %s14, 1
    %p124 = por %p122, %p123
    %p125 = scmp.ne.s32.totalorder %s114, %s115
    %p126 = scmp.eq.s32.totalorder %s14, 0
    %p127 = por %p125, %p126
    %p128 = scmp.ne.s32.totalorder %s114, %s115
    %p129 = scmp.eq.s32.totalorder %s15, 1
    %p130 = por %p128, %p129
    %p132 = scmp.ne.s32.totalorder %s115, %s131
    %p133 = scmp.eq.s32.totalorder %s15, 0
    %p134 = por %p132, %p133
    %p135 = scmp.le.s32.totalorder 1, %s9
    %p136 = scmp.lt.s32.totalorder %s9, 3
    %p137 = pnand %p135, %p136
    %p138 = pneg %p137
    // Predicated region
    $region9: #{dqn_forward.4} parent=5 // pred_check
      _
    $region10: #{dqn_forward.4} parent=5 // pred_check_branch
      %140 = sbr.rel (%p137) target = $region12
    $region11: #{dqn_forward.4} parent=5 // pred_region
      %s141 = ssub.s32 %s9, 1
      // Predicated region
      $region13: #{dqn_forward.4} parent=11 // pred_check
        %p142 = pneg %p73
      $region14: #{dqn_forward.4} parent=11 // pred_check_branch
        %144 = sbr.rel (%p142) target = $region16
      $region15: #{dqn_forward.4} parent=11 // pred_region
        %p145 = scmp.lt.s32.totalorder %s19, 0
        %s146 = scalar_select %p145, %s19, 0
        %s147 = smul.addr %s146, 4
        %s148 = scalar_lea.vmem %s1, %s147
      $region16: #{dqn_forward.4} parent=11 // pred_fallthru
        _
      // Predicated region
      $region17: #{dqn_forward.4} parent=11 // pred_check
        %p149 = pneg %p99
      $region18: #{dqn_forward.4} parent=11 // pred_check_branch
        %151 = sbr.rel (%p149) target = $region20
      $region19: #{dqn_forward.4} parent=11 // pred_region
        %p152 = scmp.lt.s32.totalorder %s19, 0
        %s153 = scalar_select %p152, %s19, 0
        %s154 = scalar_lea.vmem %s2, %s153
      $region20: #{dqn_forward.4} parent=11 // pred_fallthru
        _
    $region12: #{dqn_forward.4} parent=5 // pred_fallthru
      _
    %p155 = scmp.lt.s32.totalorder %s9, 2
    // Predicated region
    $region21: #{dqn_forward.4} parent=5 // pred_check
      %p156 = pneg %p155
    $region22: #{dqn_forward.4} parent=5 // pred_check_branch
      %158 = sbr.rel (%p156) target = $region24
    $region23: #{dqn_forward.4} parent=5 // pred_region
      // Predicated region
      $region25: #{dqn_forward.4} parent=23 // pred_check
        %p159 = pneg %p41
      $region26: #{dqn_forward.4} parent=23 // pred_check_branch
        %161 = sbr.rel (%p159) target = $region28
      $region27: #{dqn_forward.4} parent=23 // pred_region
        %s162 = smul.u32 50, %s16
        %p163 = scmp.lt.s32.totalorder %s162, 99
        %s164 = scalar_select %p163, %s162, 99
        %s165 = smul.addr %s164, 2
        %s166 = smul.addr %s165, 8
        %s167 = scalar_lea.vmem %s0, %s166
        %s168 = smul.u32 50, %s16
      $region28: #{dqn_forward.4} parent=23 // pred_fallthru
        _
    $region24: #{dqn_forward.4} parent=5 // pred_fallthru
      _
    %p169 = scmp.le.s32.totalorder 1, %s9
    %p170 = scmp.lt.s32.totalorder %s9, 3
    %p171 = pnand %p169, %p170
    %p172 = pneg %p171
    // Predicated region
    $region29: #{dqn_forward.4} parent=5 // pred_check
      _
    $region30: #{dqn_forward.4} parent=5 // pred_check_branch
      %174 = sbr.rel (%p171) target = $region32
    $region31: #{dqn_forward.4} parent=5 // pred_region
      %s175 = ssub.s32 %s9, 1
      %s176 = smul.u32 50, %s18
      %p177 = scmp.lt.s32.totalorder %s176, 99
      %s178 = scalar_select %p177, %s176, 99
      %s179 = smul.addr %s178, 2
      %s180 = smul.addr %s179, 8
      %s181 = scalar_lea.vmem %s0, %s180
      %p182 = pneg %p47
      %p183 = pneg %p44
      %p184 = scmp.lt.s32.totalorder %s19, 0
      %s185 = scalar_select %p184, %s19, 0
      %s186 = smul.addr %s185, 4
      %s187 = scalar_lea.vmem %s1, %s186
      %p188 = pneg %p73
      %p189 = pneg %p70
      %p190 = scmp.lt.s32.totalorder %s19, 0
      %s191 = scalar_select %p190, %s19, 0
      %s192 = scalar_lea.vmem %s2, %s191
      %p193 = pneg %p99
      %p194 = pneg %p96
      %p195 = pneg %p127
      %p196 = pneg %p124
      %s197 = smul.u32 50, %s18
      %p198 = scmp.lt.s32.totalorder %s197, 99
      %s199 = scalar_select %p198, %s197, 99
      %p200 = scmp.lt.s32.totalorder %s19, 0
      %s201 = scalar_select %p200, %s19, 0
      %s202 = sadd.s32 %s201, %s199
      %s203 = smul.addr %s202, 8
      %s204 = scalar_lea.vmem %s3, %s203
      %s205 = smul.u32 50, %s18
      %p206 = scmp.lt.s32.totalorder %s205, 99
      %s207 = scalar_select %p206, %s205, 99
      %s208 = smul.addr %s207, 2
      %s209 = smul.addr %s208, 8
      %s210 = scalar_lea.vmem %s0, %s209
      %s211 = smul.u32 50, %s18
      %p212 = scmp.lt.s32.totalorder %s19, 0
      %s213 = scalar_select %p212, %s19, 0
      %s214 = smul.addr %s213, 4
      %s215 = scalar_lea.vmem %s1, %s214
      %p216 = scmp.lt.s32.totalorder %s19, 0
      %s217 = scalar_select %p216, %s19, 0
      %s218 = scalar_lea.vmem %s2, %s217
      %s219 = smul.u32 50, %s18
      %p220 = scmp.lt.s32.totalorder %s219, 99
      %s221 = scalar_select %p220, %s219, 99
      %p222 = scmp.lt.s32.totalorder %s19, 0
      %s223 = scalar_select %p222, %s19, 0
      %s224 = sadd.s32 %s223, %s221
      %s225 = smul.addr %s224, 8
      %s226 = scalar_lea.vmem %s3, %s225
      %s227 = smul.u32 50, %s18
      %v228 = vld [vmem:[%s210] sm:$0xff]
      %v229 = vld [vmem:[%s210 + $0x8] sm:$0xff]
      %v230 = vld [vmem:[%s210 + $0x10] sm:$0xff]
      %v231 = vld [vmem:[%s210 + $0x18] sm:$0xff]
      %v232 = vld [vmem:[%s210 + $0x20] sm:$0xff]
      %v233 = vld [vmem:[%s210 + $0x28] sm:$0xff]
      %v234 = vld [vmem:[%s210 + $0x30] sm:$0xff]
      %v235 = vld [vmem:[%s210 + $0x38] sm:$0xff]
      %v236 = vld [vmem:[%s210 + $0x40] sm:$0xff]
      %v237 = vld [vmem:[%s210 + $0x48] sm:$0xff]
      %v238 = vld [vmem:[%s210 + $0x50] sm:$0xff]
      %v239 = vld [vmem:[%s210 + $0x58] sm:$0xff]
      %v240 = vld [vmem:[%s210 + $0x60] sm:$0xff]
      %v241 = vld [vmem:[%s210 + $0x68] sm:$0xff]
      %v242 = vld [vmem:[%s210 + $0x70] sm:$0xff]
      %v243 = vld [vmem:[%s210 + $0x78] sm:$0xff]
      %v244 = vld [vmem:[%s210 + $0x80] sm:$0xff]
      %v245 = vld [vmem:[%s210 + $0x88] sm:$0xff]
      %v246 = vld [vmem:[%s210 + $0x90] sm:$0xff]
      %v247 = vld [vmem:[%s210 + $0x98] sm:$0xff]
      %v248 = vld [vmem:[%s210 + $0xa0] sm:$0xff]
      %v249 = vld [vmem:[%s210 + $0xa8] sm:$0xff]
      %v250 = vld [vmem:[%s210 + $0xb0] sm:$0xff]
      %v251 = vld [vmem:[%s210 + $0xb8] sm:$0xff]
      %v252 = vld [vmem:[%s210 + $0xc0] sm:$0xff]
      %v253 = vld [vmem:[%s210 + $0xc8] sm:$0xff]
      %v254 = vld [vmem:[%s210 + $0xd0] sm:$0xff]
      %v255 = vld [vmem:[%s210 + $0xd8] sm:$0xff]
      %v256 = vld [vmem:[%s210 + $0xe0] sm:$0xff]
      %v257 = vld [vmem:[%s210 + $0xe8] sm:$0xff]
      %v258 = vld [vmem:[%s210 + $0xf0] sm:$0xff]
      %v259 = vld [vmem:[%s210 + $0xf8] sm:$0xff]
      %v260 = vld [vmem:[%s210 + $0x100] sm:$0xff]
      %v261 = vld [vmem:[%s210 + $0x108] sm:$0xff]
      %v262 = vld [vmem:[%s210 + $0x110] sm:$0xff]
      %v263 = vld [vmem:[%s210 + $0x118] sm:$0xff]
      %v264 = vld [vmem:[%s210 + $0x120] sm:$0xff]
      %v265 = vld [vmem:[%s210 + $0x128] sm:$0xff]
      %v266 = vld [vmem:[%s210 + $0x130] sm:$0xff]
      %v267 = vld [vmem:[%s210 + $0x138] sm:$0xff]
      %v268 = vld [vmem:[%s210 + $0x140] sm:$0xff]
      %v269 = vld [vmem:[%s210 + $0x148] sm:$0xff]
      %v270 = vld [vmem:[%s210 + $0x150] sm:$0xff]
      %v271 = vld [vmem:[%s210 + $0x158] sm:$0xff]
      %v272 = vld [vmem:[%s210 + $0x160] sm:$0xff]
      %v273 = vld [vmem:[%s210 + $0x168] sm:$0xff]
      %v274 = vld [vmem:[%s210 + $0x170] sm:$0xff]
      %v275 = vld [vmem:[%s210 + $0x178] sm:$0xff]
      %v276 = vld [vmem:[%s210 + $0x180] sm:$0xff]
      %v277 = vld [vmem:[%s210 + $0x188] sm:$0xff]
      %v278 = vld [vmem:[%s210 + $0x190] sm:$0xff]
      %v279 = vld [vmem:[%s210 + $0x198] sm:$0xff]
      %v280 = vld [vmem:[%s210 + $0x1a0] sm:$0xff]
      %v281 = vld [vmem:[%s210 + $0x1a8] sm:$0xff]
      %v282 = vld [vmem:[%s210 + $0x1b0] sm:$0xff]
      %v283 = vld [vmem:[%s210 + $0x1b8] sm:$0xff]
      %v284 = vld [vmem:[%s210 + $0x1c0] sm:$0xff]
      %v285 = vld [vmem:[%s210 + $0x1c8] sm:$0xff]
      %v286 = vld [vmem:[%s210 + $0x1d0] sm:$0xff]
      %v287 = vld [vmem:[%s210 + $0x1d8] sm:$0xff]
      %v288 = vld [vmem:[%s210 + $0x1e0] sm:$0xff]
      %v289 = vld [vmem:[%s210 + $0x1e8] sm:$0xff]
      %v290 = vld [vmem:[%s210 + $0x1f0] sm:$0xff]
      %v291 = vld [vmem:[%s210 + $0x1f8] sm:$0xff]
      %v292 = vld [vmem:[%s210 + $0x200] sm:$0xff]
      %v293 = vld [vmem:[%s210 + $0x208] sm:$0xff]
      %v294 = vld [vmem:[%s210 + $0x210] sm:$0xff]
      %v295 = vld [vmem:[%s210 + $0x218] sm:$0xff]
      %v296 = vld [vmem:[%s210 + $0x220] sm:$0xff]
      %v297 = vld [vmem:[%s210 + $0x228] sm:$0xff]
      %v298 = vld [vmem:[%s210 + $0x230] sm:$0xff]
      %v299 = vld [vmem:[%s210 + $0x238] sm:$0xff]
      %v300 = vld [vmem:[%s210 + $0x240] sm:$0xff]
      %v301 = vld [vmem:[%s210 + $0x248] sm:$0xff]
      %v302 = vld [vmem:[%s210 + $0x250] sm:$0xff]
      %v303 = vld [vmem:[%s210 + $0x258] sm:$0xff]
      %v304 = vld [vmem:[%s210 + $0x260] sm:$0xff]
      %v305 = vld [vmem:[%s210 + $0x268] sm:$0xff]
      %v306 = vld [vmem:[%s210 + $0x270] sm:$0xff]
      %v307 = vld [vmem:[%s210 + $0x278] sm:$0xff]
      %v308 = vld [vmem:[%s210 + $0x280] sm:$0xff]
      %v309 = vld [vmem:[%s210 + $0x288] sm:$0xff]
      %v310 = vld [vmem:[%s210 + $0x290] sm:$0xff]
      %v311 = vld [vmem:[%s210 + $0x298] sm:$0xff]
      %v312 = vld [vmem:[%s210 + $0x2a0] sm:$0xff]
      %v313 = vld [vmem:[%s210 + $0x2a8] sm:$0xff]
      %v314 = vld [vmem:[%s210 + $0x2b0] sm:$0xff]
      %v315 = vld [vmem:[%s210 + $0x2b8] sm:$0xff]
      %v316 = vld [vmem:[%s210 + $0x2c0] sm:$0xff]
      %v317 = vld [vmem:[%s210 + $0x2c8] sm:$0xff]
      %v318 = vld [vmem:[%s210 + $0x2d0] sm:$0xff]
      %v319 = vld [vmem:[%s210 + $0x2d8] sm:$0xff]
      %v320 = vld [vmem:[%s210 + $0x2e0] sm:$0xff]
      %v321 = vld [vmem:[%s210 + $0x2e8] sm:$0xff]
      %v322 = vld [vmem:[%s210 + $0x2f0] sm:$0xff]
      %v323 = vld [vmem:[%s210 + $0x2f8] sm:$0xff]
      %v324 = vld [vmem:[%s210 + $0x300] sm:$0xff]
      %v325 = vld [vmem:[%s210 + $0x308] sm:$0xff]
      %v326 = vld [vmem:[%s210 + $0x310] sm:$0xff]
      %v327 = vld [vmem:[%s210 + $0x318] sm:$0xff]
      %v328 = vpack.c.bf16 %v230, %v228
      %v329 = vpack.c.bf16 %v231, %v229
      %v330 = vpack.c.bf16 %v234, %v232
      %v331 = vpack.c.bf16 %v235, %v233
      %v332 = vpack.c.bf16 %v238, %v236
      %v333 = vpack.c.bf16 %v239, %v237
      %v334 = vpack.c.bf16 %v242, %v240
      %v335 = vpack.c.bf16 %v243, %v241
      %v336 = vpack.c.bf16 %v246, %v244
      %v337 = vpack.c.bf16 %v247, %v245
      %v338 = vpack.c.bf16 %v250, %v248
      %v339 = vpack.c.bf16 %v251, %v249
      %v340 = vpack.c.bf16 %v254, %v252
      %v341 = vpack.c.bf16 %v255, %v253
      %v342 = vpack.c.bf16 %v258, %v256
      %v343 = vpack.c.bf16 %v259, %v257
      %v344 = vpack.c.bf16 %v262, %v260
      %v345 = vpack.c.bf16 %v263, %v261
      %v346 = vpack.c.bf16 %v266, %v264
      %v347 = vpack.c.bf16 %v267, %v265
      %v348 = vpack.c.bf16 %v270, %v268
      %v349 = vpack.c.bf16 %v271, %v269
      %v350 = vpack.c.bf16 %v274, %v272
      %v351 = vpack.c.bf16 %v275, %v273
      %v352 = vpack.c.bf16 %v278, %v276
      %v353 = vpack.c.bf16 %v279, %v277
      %v354 = vpack.c.bf16 %v282, %v280
      %v355 = vpack.c.bf16 %v283, %v281
      %v356 = vpack.c.bf16 %v286, %v284
      %v357 = vpack.c.bf16 %v287, %v285
      %v358 = vpack.c.bf16 %v290, %v288
      %v359 = vpack.c.bf16 %v291, %v289
      %v360 = vpack.c.bf16 %v294, %v292
      %v361 = vpack.c.bf16 %v295, %v293
      %v362 = vpack.c.bf16 %v298, %v296
      %v363 = vpack.c.bf16 %v299, %v297
      %v364 = vpack.c.bf16 %v302, %v300
      %v365 = vpack.c.bf16 %v303, %v301
      %v366 = vpack.c.bf16 %v306, %v304
      %v367 = vpack.c.bf16 %v307, %v305
      %v368 = vpack.c.bf16 %v310, %v308
      %v369 = vpack.c.bf16 %v311, %v309
      %v370 = vpack.c.bf16 %v314, %v312
      %v371 = vpack.c.bf16 %v315, %v313
      %v372 = vpack.c.bf16 %v318, %v316
      %v373 = vpack.c.bf16 %v319, %v317
      %v374 = vpack.c.bf16 %v322, %v320
      %v375 = vpack.c.bf16 %v323, %v321
      %v376 = vpack.c.bf16 %v326, %v324
      %v377 = vpack.c.bf16 %v327, %v325
      %v378 = vld [vmem:[%s215] sm:$0xf]
      %v379 = vld [vmem:[%s215 + $0x4] sm:$0xf]
      %v380 = vld [vmem:[%s215 + $0x8] sm:$0xf]
      %v381 = vld [vmem:[%s215 + $0xc] sm:$0xf]
      %v382 = vld [vmem:[%s215 + $0x10] sm:$0xf]
      %v383 = vld [vmem:[%s215 + $0x14] sm:$0xf]
      %v384 = vld [vmem:[%s215 + $0x18] sm:$0xf]
      %v385 = vld [vmem:[%s215 + $0x1c] sm:$0xf]
      %v386 = vld [vmem:[%s215 + $0x20] sm:$0xf]
      %v387 = vld [vmem:[%s215 + $0x24] sm:$0xf]
      %v388 = vld [vmem:[%s215 + $0x28] sm:$0xf]
      %v389 = vld [vmem:[%s215 + $0x2c] sm:$0xf]
      %v390 = vld [vmem:[%s215 + $0x30] sm:$0xf]
      %v391 = vld [vmem:[%s215 + $0x34] sm:$0xf]
      %v392 = vld [vmem:[%s215 + $0x38] sm:$0xf]
      %v393 = vld [vmem:[%s215 + $0x3c] sm:$0xf]
      %v394 = vld [vmem:[%s215 + $0x40] sm:$0xf]
      %v395 = vld [vmem:[%s215 + $0x44] sm:$0xf]
      %v396 = vld [vmem:[%s215 + $0x48] sm:$0xf]
      %v397 = vld [vmem:[%s215 + $0x4c] sm:$0xf]
      %v398 = vld [vmem:[%s215 + $0x50] sm:$0xf]
      %v399 = vld [vmem:[%s215 + $0x54] sm:$0xf]
      %v400 = vld [vmem:[%s215 + $0x58] sm:$0xf]
      %v401 = vld [vmem:[%s215 + $0x5c] sm:$0xf]
      %v402 = vld [vmem:[%s215 + $0x60] sm:$0xf]
      %v403 = vld [vmem:[%s215 + $0x64] sm:$0xf]
      %v404 = vld [vmem:[%s215 + $0x68] sm:$0xf]
      %v405 = vld [vmem:[%s215 + $0x6c] sm:$0xf]
      %v406 = vld [vmem:[%s215 + $0x70] sm:$0xf]
      %v407 = vld [vmem:[%s215 + $0x74] sm:$0xf]
      %v408 = vld [vmem:[%s215 + $0x78] sm:$0xf]
      %v409 = vld [vmem:[%s215 + $0x7c] sm:$0xf]
      %v410 = vld [vmem:[%s218] sm:$0x1]
      %v412 = vperm.slane %v410, 0
      %v446 = vunpack.c.l.b16 %v378
      %v447 = vunpack.c.l.b16 %v379
      %v448 = vunpack.c.l.b16 %v380
      %v449 = vunpack.c.l.b16 %v381
      %v450 = vunpack.c.l.b16 %v382
      %v451 = vunpack.c.l.b16 %v383
      %v452 = vunpack.c.l.b16 %v384
      %v453 = vunpack.c.l.b16 %v385
      %v454 = vunpack.c.l.b16 %v386
      %v455 = vunpack.c.l.b16 %v387
      %v456 = vunpack.c.l.b16 %v388
      %v457 = vunpack.c.l.b16 %v389
      %v458 = vunpack.c.l.b16 %v390
      %v459 = vunpack.c.l.b16 %v391
      %v460 = vunpack.c.l.b16 %v392
      %v461 = vunpack.c.l.b16 %v393
      %v462 = vunpack.c.l.b16 %v394
      %v463 = vunpack.c.l.b16 %v395
      %v464 = vunpack.c.l.b16 %v396
      %v465 = vunpack.c.l.b16 %v397
      %v466 = vunpack.c.l.b16 %v398
      %v467 = vunpack.c.l.b16 %v399
      %v468 = vunpack.c.l.b16 %v400
      %v469 = vunpack.c.l.b16 %v401
      %v470 = vunpack.c.l.b16 %v402
      %v471 = vunpack.c.l.b16 %v403
      %v472 = vunpack.c.l.b16 %v404
      %v473 = vunpack.c.l.b16 %v405
      %v474 = vunpack.c.l.b16 %v406
      %v475 = vunpack.c.l.b16 %v407
      %v476 = vunpack.c.l.b16 %v408
      %v477 = vunpack.c.l.b16 %v409
      %v478 = vpack.c.b16 %v447, %v446
      %v479 = vpack.c.b16 %v449, %v448
      %v480 = vpack.c.b16 %v451, %v450
      %v481 = vpack.c.b16 %v453, %v452
      %v482 = vpack.c.b16 %v455, %v454
      %v483 = vpack.c.b16 %v457, %v456
      %v484 = vpack.c.b16 %v459, %v458
      %v485 = vpack.c.b16 %v461, %v460
      %v486 = vpack.c.b16 %v463, %v462
      %v487 = vpack.c.b16 %v465, %v464
      %v488 = vpack.c.b16 %v467, %v466
      %v489 = vpack.c.b16 %v469, %v468
      %v490 = vpack.c.b16 %v471, %v470
      %v491 = vpack.c.b16 %v473, %v472
      %v492 = vpack.c.b16 %v475, %v474
      %v493 = vpack.c.b16 %v477, %v476
      %510 = vmatpush.bf16.msra.mxu0 %v485
      %511 = vmatpush.bf16.msra.mxu0 %v484
      %512 = vmatpush.bf16.msra.mxu0 %v483
      %513 = vmatpush.bf16.msra.mxu0 %v482
      %514 = vmatpush.bf16.msra.mxu0 %v481
      %515 = vmatpush.bf16.msra.mxu0 %v480
      %516 = vmatpush.bf16.msra.mxu0 %v479
      %517 = vmatpush.bf16.msra.mxu0 %v478
      %518 = vmatmul.bf16.gmra.mxu0 %v328
      %v519 = vpop.f32.mrf.mxu0
      %v520 = vadd.f32 %v412, %v519
      %v521 = vpop.f32.mrf.mxu0
      %v522 = vadd.f32 %v412, %v521
      %523 = vmatmul.bf16.gmra.mxu0 %v330
      %v524 = vpop.f32.mrf.mxu0
      %v525 = vadd.f32 %v412, %v524
      %v526 = vpop.f32.mrf.mxu0
      %v527 = vadd.f32 %v412, %v526
      %528 = vmatmul.bf16.gmra.mxu0 %v332
      %v529 = vpop.f32.mrf.mxu0
      %v530 = vadd.f32 %v412, %v529
      %v531 = vpop.f32.mrf.mxu0
      %v532 = vadd.f32 %v412, %v531
      %533 = vmatmul.bf16.gmra.mxu0 %v334
      %v534 = vpop.f32.mrf.mxu0
      %v535 = vadd.f32 %v412, %v534
      %v536 = vpop.f32.mrf.mxu0
      %v537 = vadd.f32 %v412, %v536
      %538 = vmatmul.bf16.gmra.mxu0 %v336
      %v539 = vpop.f32.mrf.mxu0
      %v540 = vadd.f32 %v412, %v539
      %v541 = vpop.f32.mrf.mxu0
      %v542 = vadd.f32 %v412, %v541
      %543 = vmatmul.bf16.gmra.mxu0 %v338
      %v544 = vpop.f32.mrf.mxu0
      %v545 = vadd.f32 %v412, %v544
      %v546 = vpop.f32.mrf.mxu0
      %v547 = vadd.f32 %v412, %v546
      %548 = vmatmul.bf16.gmra.mxu0 %v340
      %v549 = vpop.f32.mrf.mxu0
      %v550 = vadd.f32 %v412, %v549
      %v551 = vpop.f32.mrf.mxu0
      %v552 = vadd.f32 %v412, %v551
      %553 = vmatmul.bf16.gmra.mxu0 %v342
      %v554 = vpop.f32.mrf.mxu0
      %v555 = vadd.f32 %v412, %v554
      %v556 = vpop.f32.mrf.mxu0
      %v557 = vadd.f32 %v412, %v556
      %558 = vmatmul.bf16.gmra.mxu0 %v344
      %v559 = vpop.f32.mrf.mxu0
      %v560 = vadd.f32 %v412, %v559
      %v561 = vpop.f32.mrf.mxu0
      %v562 = vadd.f32 %v412, %v561
      %563 = vmatmul.bf16.gmra.mxu0 %v346
      %v564 = vpop.f32.mrf.mxu0
      %v565 = vadd.f32 %v412, %v564
      %v566 = vpop.f32.mrf.mxu0
      %v567 = vadd.f32 %v412, %v566
      %568 = vmatmul.bf16.gmra.mxu0 %v348
      %v569 = vpop.f32.mrf.mxu0
      %v570 = vadd.f32 %v412, %v569
      %v571 = vpop.f32.mrf.mxu0
      %v572 = vadd.f32 %v412, %v571
      %573 = vmatmul.bf16.gmra.mxu0 %v350
      %v574 = vpop.f32.mrf.mxu0
      %v575 = vadd.f32 %v412, %v574
      %v576 = vpop.f32.mrf.mxu0
      %v577 = vadd.f32 %v412, %v576
      %578 = vmatmul.bf16.gmra.mxu0 %v352
      %v579 = vpop.f32.mrf.mxu0
      %v580 = vadd.f32 %v412, %v579
      %v581 = vpop.f32.mrf.mxu0
      %v582 = vadd.f32 %v412, %v581
      %583 = vmatmul.bf16.gmra.mxu0 %v354
      %v584 = vpop.f32.mrf.mxu0
      %v585 = vadd.f32 %v412, %v584
      %v586 = vpop.f32.mrf.mxu0
      %v587 = vadd.f32 %v412, %v586
      %588 = vmatmul.bf16.gmra.mxu0 %v356
      %v589 = vpop.f32.mrf.mxu0
      %v590 = vadd.f32 %v412, %v589
      %v591 = vpop.f32.mrf.mxu0
      %v592 = vadd.f32 %v412, %v591
      %593 = vmatmul.bf16.gmra.mxu0 %v358
      %v594 = vpop.f32.mrf.mxu0
      %v595 = vadd.f32 %v412, %v594
      %v596 = vpop.f32.mrf.mxu0
      %v597 = vadd.f32 %v412, %v596
      %598 = vmatmul.bf16.gmra.mxu0 %v360
      %v599 = vpop.f32.mrf.mxu0
      %v600 = vadd.f32 %v412, %v599
      %v601 = vpop.f32.mrf.mxu0
      %v602 = vadd.f32 %v412, %v601
      %603 = vmatmul.bf16.gmra.mxu0 %v362
      %v604 = vpop.f32.mrf.mxu0
      %v605 = vadd.f32 %v412, %v604
      %v606 = vpop.f32.mrf.mxu0
      %v607 = vadd.f32 %v412, %v606
      %608 = vmatmul.bf16.gmra.mxu0 %v364
      %v609 = vpop.f32.mrf.mxu0
      %v610 = vadd.f32 %v412, %v609
      %v611 = vpop.f32.mrf.mxu0
      %v612 = vadd.f32 %v412, %v611
      %613 = vmatmul.bf16.gmra.mxu0 %v366
      %v614 = vpop.f32.mrf.mxu0
      %v615 = vadd.f32 %v412, %v614
      %v616 = vpop.f32.mrf.mxu0
      %v617 = vadd.f32 %v412, %v616
      %618 = vmatmul.bf16.gmra.mxu0 %v368
      %v619 = vpop.f32.mrf.mxu0
      %v620 = vadd.f32 %v412, %v619
      %v621 = vpop.f32.mrf.mxu0
      %v622 = vadd.f32 %v412, %v621
      %623 = vmatmul.bf16.gmra.mxu0 %v370
      %v624 = vpop.f32.mrf.mxu0
      %v625 = vadd.f32 %v412, %v624
      %v626 = vpop.f32.mrf.mxu0
      %v627 = vadd.f32 %v412, %v626
      %628 = vmatmul.bf16.gmra.mxu0 %v372
      %v629 = vpop.f32.mrf.mxu0
      %v630 = vadd.f32 %v412, %v629
      %v631 = vpop.f32.mrf.mxu0
      %v632 = vadd.f32 %v412, %v631
      %633 = vmatmul.bf16.gmra.mxu0 %v374
      %v634 = vpop.f32.mrf.mxu0
      %v635 = vadd.f32 %v412, %v634
      %v636 = vpop.f32.mrf.mxu0
      %v637 = vadd.f32 %v412, %v636
      %638 = vmatmul.bf16.gmra.mxu0 %v376
      %v639 = vpop.f32.mrf.mxu0
      %v640 = vadd.f32 %v412, %v639
      %v641 = vpop.f32.mrf.mxu0
      %v642 = vadd.f32 %v412, %v641
      %643 = vdwg.mxu0
      %644 = vmatpush.bf16.msra.mxu0 %v493
      %645 = vmatpush.bf16.msra.mxu0 %v492
      %646 = vmatpush.bf16.msra.mxu0 %v491
      %647 = vmatpush.bf16.msra.mxu0 %v490
      %648 = vmatpush.bf16.msra.mxu0 %v489
      %649 = vmatpush.bf16.msra.mxu0 %v488
      %650 = vmatpush.bf16.msra.mxu0 %v487
      %651 = vmatpush.bf16.msra.mxu0 %v486
      %652 = vmatmul.bf16.gmra.mxu0 %v329
      %v653 = vpop.f32.mrf.mxu0
      %v654 = vadd.f32 %v520, %v653
      %v655 = vpop.f32.mrf.mxu0
      %v656 = vadd.f32 %v522, %v655
      %657 = vmatmul.bf16.gmra.mxu0 %v331
      %v658 = vpop.f32.mrf.mxu0
      %v659 = vadd.f32 %v525, %v658
      %v660 = vpop.f32.mrf.mxu0
      %v661 = vadd.f32 %v527, %v660
      %662 = vmatmul.bf16.gmra.mxu0 %v333
      %v663 = vpop.f32.mrf.mxu0
      %v664 = vadd.f32 %v530, %v663
      %v665 = vpop.f32.mrf.mxu0
      %v666 = vadd.f32 %v532, %v665
      %667 = vmatmul.bf16.gmra.mxu0 %v335
      %v668 = vpop.f32.mrf.mxu0
      %v669 = vadd.f32 %v535, %v668
      %v670 = vpop.f32.mrf.mxu0
      %v671 = vadd.f32 %v537, %v670
      %672 = vmatmul.bf16.gmra.mxu0 %v337
      %v673 = vpop.f32.mrf.mxu0
      %v674 = vadd.f32 %v540, %v673
      %v675 = vpop.f32.mrf.mxu0
      %v676 = vadd.f32 %v542, %v675
      %677 = vmatmul.bf16.gmra.mxu0 %v339
      %v678 = vpop.f32.mrf.mxu0
      %v679 = vadd.f32 %v545, %v678
      %v680 = vpop.f32.mrf.mxu0
      %v681 = vadd.f32 %v547, %v680
      %682 = vmatmul.bf16.gmra.mxu0 %v341
      %v683 = vpop.f32.mrf.mxu0
      %v684 = vadd.f32 %v550, %v683
      %v685 = vpop.f32.mrf.mxu0
      %v686 = vadd.f32 %v552, %v685
      %687 = vmatmul.bf16.gmra.mxu0 %v343
      %v688 = vpop.f32.mrf.mxu0
      %v689 = vadd.f32 %v555, %v688
      %v690 = vpop.f32.mrf.mxu0
      %v691 = vadd.f32 %v557, %v690
      %692 = vmatmul.bf16.gmra.mxu0 %v345
      %v693 = vpop.f32.mrf.mxu0
      %v694 = vadd.f32 %v560, %v693
      %v695 = vpop.f32.mrf.mxu0
      %v696 = vadd.f32 %v562, %v695
      %697 = vmatmul.bf16.gmra.mxu0 %v347
      %v698 = vpop.f32.mrf.mxu0
      %v699 = vadd.f32 %v565, %v698
      %v700 = vpop.f32.mrf.mxu0
      %v701 = vadd.f32 %v567, %v700
      %702 = vmatmul.bf16.gmra.mxu0 %v349
      %v703 = vpop.f32.mrf.mxu0
      %v704 = vadd.f32 %v570, %v703
      %v705 = vpop.f32.mrf.mxu0
      %v706 = vadd.f32 %v572, %v705
      %707 = vmatmul.bf16.gmra.mxu0 %v351
      %v708 = vpop.f32.mrf.mxu0
      %v709 = vadd.f32 %v575, %v708
      %v710 = vpop.f32.mrf.mxu0
      %v711 = vadd.f32 %v577, %v710
      %712 = vmatmul.bf16.gmra.mxu0 %v353
      %v713 = vpop.f32.mrf.mxu0
      %v714 = vadd.f32 %v580, %v713
      %v715 = vpop.f32.mrf.mxu0
      %v716 = vadd.f32 %v582, %v715
      %717 = vmatmul.bf16.gmra.mxu0 %v355
      %v718 = vpop.f32.mrf.mxu0
      %v719 = vadd.f32 %v585, %v718
      %v720 = vpop.f32.mrf.mxu0
      %v721 = vadd.f32 %v587, %v720
      %722 = vmatmul.bf16.gmra.mxu0 %v357
      %v723 = vpop.f32.mrf.mxu0
      %v724 = vadd.f32 %v590, %v723
      %v725 = vpop.f32.mrf.mxu0
      %v726 = vadd.f32 %v592, %v725
      %727 = vmatmul.bf16.gmra.mxu0 %v359
      %v728 = vpop.f32.mrf.mxu0
      %v729 = vadd.f32 %v595, %v728
      %v730 = vpop.f32.mrf.mxu0
      %v731 = vadd.f32 %v597, %v730
      %732 = vmatmul.bf16.gmra.mxu0 %v361
      %v733 = vpop.f32.mrf.mxu0
      %v734 = vadd.f32 %v600, %v733
      %v735 = vpop.f32.mrf.mxu0
      %v736 = vadd.f32 %v602, %v735
      %737 = vmatmul.bf16.gmra.mxu0 %v363
      %v738 = vpop.f32.mrf.mxu0
      %v739 = vadd.f32 %v605, %v738
      %v740 = vpop.f32.mrf.mxu0
      %v741 = vadd.f32 %v607, %v740
      %742 = vmatmul.bf16.gmra.mxu0 %v365
      %v743 = vpop.f32.mrf.mxu0
      %v744 = vadd.f32 %v610, %v743
      %v745 = vpop.f32.mrf.mxu0
      %v746 = vadd.f32 %v612, %v745
      %747 = vmatmul.bf16.gmra.mxu0 %v367
      %v748 = vpop.f32.mrf.mxu0
      %v749 = vadd.f32 %v615, %v748
      %v750 = vpop.f32.mrf.mxu0
      %v751 = vadd.f32 %v617, %v750
      %752 = vmatmul.bf16.gmra.mxu0 %v369
      %v753 = vpop.f32.mrf.mxu0
      %v754 = vadd.f32 %v620, %v753
      %v755 = vpop.f32.mrf.mxu0
      %v756 = vadd.f32 %v622, %v755
      %757 = vmatmul.bf16.gmra.mxu0 %v371
      %v758 = vpop.f32.mrf.mxu0
      %v759 = vadd.f32 %v625, %v758
      %v760 = vpop.f32.mrf.mxu0
      %v761 = vadd.f32 %v627, %v760
      %762 = vmatmul.bf16.gmra.mxu0 %v373
      %v763 = vpop.f32.mrf.mxu0
      %v764 = vadd.f32 %v630, %v763
      %v765 = vpop.f32.mrf.mxu0
      %v766 = vadd.f32 %v632, %v765
      %767 = vmatmul.bf16.gmra.mxu0 %v375
      %v768 = vpop.f32.mrf.mxu0
      %v769 = vadd.f32 %v635, %v768
      %v770 = vpop.f32.mrf.mxu0
      %v771 = vadd.f32 %v637, %v770
      %772 = vmatmul.bf16.gmra.mxu0 %v377
      %v773 = vpop.f32.mrf.mxu0
      %v774 = vadd.f32 %v640, %v773
      %v775 = vpop.f32.mrf.mxu0
      %v776 = vadd.f32 %v642, %v775
      %777 = vdwg.mxu0
      %v778 = vmax.f32 %v654, 0.0
      %v779 = vmax.f32 %v656, 0.0
      %v780 = vmax.f32 %v659, 0.0
      %v781 = vmax.f32 %v661, 0.0
      %v782 = vmax.f32 %v664, 0.0
      %v783 = vmax.f32 %v666, 0.0
      %v784 = vmax.f32 %v669, 0.0
      %v785 = vmax.f32 %v671, 0.0
      %v786 = vmax.f32 %v674, 0.0
      %v787 = vmax.f32 %v676, 0.0
      %v788 = vmax.f32 %v679, 0.0
      %v789 = vmax.f32 %v681, 0.0
      %v790 = vmax.f32 %v684, 0.0
      %v791 = vmax.f32 %v686, 0.0
      %v792 = vmax.f32 %v689, 0.0
      %v793 = vmax.f32 %v691, 0.0
      %v794 = vmax.f32 %v694, 0.0
      %v795 = vmax.f32 %v696, 0.0
      %v796 = vmax.f32 %v699, 0.0
      %v797 = vmax.f32 %v701, 0.0
      %v798 = vmax.f32 %v704, 0.0
      %v799 = vmax.f32 %v706, 0.0
      %v800 = vmax.f32 %v709, 0.0
      %v801 = vmax.f32 %v711, 0.0
      %v802 = vmax.f32 %v714, 0.0
      %v803 = vmax.f32 %v716, 0.0
      %v804 = vmax.f32 %v719, 0.0
      %v805 = vmax.f32 %v721, 0.0
      %v806 = vmax.f32 %v724, 0.0
      %v807 = vmax.f32 %v726, 0.0
      %v808 = vmax.f32 %v729, 0.0
      %v809 = vmax.f32 %v731, 0.0
      %v810 = vmax.f32 %v734, 0.0
      %v811 = vmax.f32 %v736, 0.0
      %v812 = vmax.f32 %v739, 0.0
      %v813 = vmax.f32 %v741, 0.0
      %v814 = vmax.f32 %v744, 0.0
      %v815 = vmax.f32 %v746, 0.0
      %v816 = vmax.f32 %v749, 0.0
      %v817 = vmax.f32 %v751, 0.0
      %v818 = vmax.f32 %v754, 0.0
      %v819 = vmax.f32 %v756, 0.0
      %v820 = vmax.f32 %v759, 0.0
      %v821 = vmax.f32 %v761, 0.0
      %v822 = vmax.f32 %v764, 0.0
      %v823 = vmax.f32 %v766, 0.0
      %v824 = vmax.f32 %v769, 0.0
      %v825 = vmax.f32 %v771, 0.0
      %v826 = vmax.f32 %v774, 0.0
      %v827 = vmax.f32 %v776, 0.0
      %828 = vst [vmem:[%s226] sm:$0xff] %v778
      %829 = vst [vmem:[%s226 + $0x8] sm:$0xff] %v779
      %830 = vst [vmem:[%s226 + $0x10] sm:$0xff] %v780
      %831 = vst [vmem:[%s226 + $0x18] sm:$0xff] %v781
      %832 = vst [vmem:[%s226 + $0x20] sm:$0xff] %v782
      %833 = vst [vmem:[%s226 + $0x28] sm:$0xff] %v783
      %834 = vst [vmem:[%s226 + $0x30] sm:$0xff] %v784
      %835 = vst [vmem:[%s226 + $0x38] sm:$0xff] %v785
      %836 = vst [vmem:[%s226 + $0x40] sm:$0xff] %v786
      %837 = vst [vmem:[%s226 + $0x48] sm:$0xff] %v787
      %838 = vst [vmem:[%s226 + $0x50] sm:$0xff] %v788
      %839 = vst [vmem:[%s226 + $0x58] sm:$0xff] %v789
      %840 = vst [vmem:[%s226 + $0x60] sm:$0xff] %v790
      %841 = vst [vmem:[%s226 + $0x68] sm:$0xff] %v791
      %842 = vst [vmem:[%s226 + $0x70] sm:$0xff] %v792
      %843 = vst [vmem:[%s226 + $0x78] sm:$0xff] %v793
      %844 = vst [vmem:[%s226 + $0x80] sm:$0xff] %v794
      %845 = vst [vmem:[%s226 + $0x88] sm:$0xff] %v795
      %846 = vst [vmem:[%s226 + $0x90] sm:$0xff] %v796
      %847 = vst [vmem:[%s226 + $0x98] sm:$0xff] %v797
      %848 = vst [vmem:[%s226 + $0xa0] sm:$0xff] %v798
      %849 = vst [vmem:[%s226 + $0xa8] sm:$0xff] %v799
      %850 = vst [vmem:[%s226 + $0xb0] sm:$0xff] %v800
      %851 = vst [vmem:[%s226 + $0xb8] sm:$0xff] %v801
      %852 = vst [vmem:[%s226 + $0xc0] sm:$0xff] %v802
      %853 = vst [vmem:[%s226 + $0xc8] sm:$0xff] %v803
      %854 = vst [vmem:[%s226 + $0xd0] sm:$0xff] %v804
      %855 = vst [vmem:[%s226 + $0xd8] sm:$0xff] %v805
      %856 = vst [vmem:[%s226 + $0xe0] sm:$0xff] %v806
      %857 = vst [vmem:[%s226 + $0xe8] sm:$0xff] %v807
      %858 = vst [vmem:[%s226 + $0xf0] sm:$0xff] %v808
      %859 = vst [vmem:[%s226 + $0xf8] sm:$0xff] %v809
      %860 = vst [vmem:[%s226 + $0x100] sm:$0xff] %v810
      %861 = vst [vmem:[%s226 + $0x108] sm:$0xff] %v811
      %862 = vst [vmem:[%s226 + $0x110] sm:$0xff] %v812
      %863 = vst [vmem:[%s226 + $0x118] sm:$0xff] %v813
      %864 = vst [vmem:[%s226 + $0x120] sm:$0xff] %v814
      %865 = vst [vmem:[%s226 + $0x128] sm:$0xff] %v815
      %866 = vst [vmem:[%s226 + $0x130] sm:$0xff] %v816
      %867 = vst [vmem:[%s226 + $0x138] sm:$0xff] %v817
      %868 = vst [vmem:[%s226 + $0x140] sm:$0xff] %v818
      %869 = vst [vmem:[%s226 + $0x148] sm:$0xff] %v819
      %870 = vst [vmem:[%s226 + $0x150] sm:$0xff] %v820
      %871 = vst [vmem:[%s226 + $0x158] sm:$0xff] %v821
      %872 = vst [vmem:[%s226 + $0x160] sm:$0xff] %v822
      %873 = vst [vmem:[%s226 + $0x168] sm:$0xff] %v823
      %874 = vst [vmem:[%s226 + $0x170] sm:$0xff] %v824
      %875 = vst [vmem:[%s226 + $0x178] sm:$0xff] %v825
      %876 = vst [vmem:[%s226 + $0x180] sm:$0xff] %v826
      %877 = vst [vmem:[%s226 + $0x188] sm:$0xff] %v827
      %s878 = smul.u32 50, %s18
      %p879 = scmp.lt.s32.totalorder %s878, 99
      %s880 = scalar_select %p879, %s878, 99
      %p881 = scmp.lt.s32.totalorder %s19, 0
      %s882 = scalar_select %p881, %s19, 0
      %s883 = sadd.s32 %s882, %s880
      %s884 = smul.addr %s883, 8
      %s885 = scalar_lea.vmem %s3, %s884
      // Predicated region
      $region33: #{dqn_forward.4} parent=31 // pred_check
        %p886 = pneg %p124
      $region34: #{dqn_forward.4} parent=31 // pred_check_branch
        %888 = sbr.rel (%p886) target = $region36
      $region35: #{dqn_forward.4} parent=31 // pred_region
        %s889 = smul.u32 50, %s18
      $region36: #{dqn_forward.4} parent=31 // pred_fallthru
        _
    $region32: #{dqn_forward.4} parent=5 // pred_fallthru
      _
    %p890 = scmp.le.s32.totalorder 2, %s9
    // Predicated region
    $region37: #{dqn_forward.4} parent=5 // pred_check
      %p891 = pneg %p890
    $region38: #{dqn_forward.4} parent=5 // pred_check_branch
      %893 = sbr.rel (%p891) target = $region40
    $region39: #{dqn_forward.4} parent=5 // pred_region
      %s894 = ssub.s32 %s9, 2
      // Predicated region
      $region41: #{dqn_forward.4} parent=39 // pred_check
        %p895 = pneg %p130
      $region42: #{dqn_forward.4} parent=39 // pred_check_branch
        %897 = sbr.rel (%p895) target = $region44
      $region43: #{dqn_forward.4} parent=39 // pred_region
        %s898 = smul.u32 50, %s20
        %p899 = scmp.lt.s32.totalorder %s898, 99
        %s900 = scalar_select %p899, %s898, 99
        %p901 = scmp.lt.s32.totalorder %s21, 0
        %s902 = scalar_select %p901, %s21, 0
        %s903 = sadd.s32 %s902, %s900
        %s904 = smul.addr %s903, 8
        %s905 = scalar_lea.vmem %s3, %s904
      $region44: #{dqn_forward.4} parent=39 // pred_fallthru
        _
    $region40: #{dqn_forward.4} parent=5 // pred_fallthru
      _
  $region6: #{dqn_forward.4} parent=0 // loop_footer
    %s13 = sadd.s32 1, %s9
  $region7: #{dqn_forward.4} parent=0 // loop_footer_branch
    %8 = sbr.rel target = $region3
  $region8: #{dqn_forward.4} parent=0 // loop_exit
    _

// kernel: dqn_forward.5
$region0: #{dqn_forward.5}
  #allocation0 [shape = 'u32[]', space=smem, size = 0x4, offset = 0x4, fixed_abs, tag = 'smem constant byte address 0x4 - core index']
  #allocation1 [shape = 'u32[72,128]{1,0:T(1,128)}', space=vmem, size = 0x9000, scoped, tag = 'internal scratch']
  %s0 = inlined_call_operand.vmem [shape: f32[176,512], index: 0, kind: input, shape index: {}]
  %s1 = inlined_call_operand.vmem [shape: bf16[512,128], index: 1, kind: input, shape index: {}]
  %s2 = inlined_call_operand.vmem [shape: f32[1,128], index: 2, kind: input, shape index: {}]
  %s3 = inlined_call_operand.vmem [shape: f32[176,128], index: 3, kind: output, shape index: {}]
  %s4 = sld [smem:[#allocation0]]
  $region45: #{dqn_forward.5} parent=0
    _
  %s6 = ssub.s32 1, %s4
  %s7 = scalar_select 0, %s6, %s4
  loop: start=0, step=1, limit=4
  $region2: #{dqn_forward.5} parent=0 // loop_pre_header
    _
  $region3: #{dqn_forward.5} parent=0 // loop_header
    %s9 = sphi 0, %s13
    %p10 = scmp.ge.s32.totalorder %s9, 4
    %s16 = sphi 0, %s28
    %s17 = sphi 0, %s24
    %s18 = sphi 0, %s16
    %s19 = sphi 0, %s17
    %s20 = sphi 0, %s18
    %s21 = sphi 0, %s19
    %s31 = sphi 0, %s33
    %s34 = sphi 0, %s31
    %s35 = sphi 0, %s34
    %s51 = sphi 0, %s35
    %s57 = sphi 0, %s59
    %s60 = sphi 0, %s57
    %s61 = sphi 0, %s60
    %s77 = sphi 0, %s61
    %s83 = sphi 0, %s85
    %s86 = sphi 0, %s83
    %s87 = sphi 0, %s86
    %s103 = sphi 0, %s87
    %s111 = sphi 0, %s113
    %s114 = sphi 0, %s111
    %s115 = sphi 0, %s114
    %s131 = sphi 0, %s115
  $region4: #{dqn_forward.5} parent=0 // loop_header_branch
    %12 = sbr.rel (%p10) target = $region8
  $region5: #{dqn_forward.5} parent=0 // loop_body
    %s14 = ssub.s32 %s9, 1
    %s15 = ssub.s32 %s9, 2
    %s22 = sadd.s32 1, %s17
    %p23 = scmp.ge.s32.totalorder %s22, 1
    %s24 = scalar_select %p23, 0, %s22
    %s25 = sadd.s32 1, %s16
    %s26 = scalar_select %p23, %s25, %s16
    %p27 = scmp.ge.s32.totalorder %s26, 2
    %s28 = scalar_select %p27, 0, %s26
    %s29 = ssub.s32 %s16, %s28
    %p30 = scmp.eq.s32.totalorder %s29, 0
    %s32 = sadd.s32 %s31, 1
    %s33 = scalar_select %p30, %s31, %s32
    %p36 = pneg %p30
    %p37 = scmp.eq.s32.totalorder %s9, 1
    %p38 = por %p36, %p37
    %p39 = scmp.ne.s32.totalorder %s31, %s34
    %p40 = scmp.eq.s32.totalorder %s9, 0
    %p41 = por %p39, %p40
    %p42 = scmp.ne.s32.totalorder %s31, %s34
    %p43 = scmp.eq.s32.totalorder %s14, 1
    %p44 = por %p42, %p43
    %p45 = scmp.ne.s32.totalorder %s34, %s35
    %p46 = scmp.eq.s32.totalorder %s14, 0
    %p47 = por %p45, %p46
    %p48 = scmp.ne.s32.totalorder %s34, %s35
    %p49 = scmp.eq.s32.totalorder %s15, 1
    %p50 = por %p48, %p49
    %p52 = scmp.ne.s32.totalorder %s35, %s51
    %p53 = scmp.eq.s32.totalorder %s15, 0
    %p54 = por %p52, %p53
    %s55 = ssub.s32 %s17, %s24
    %p56 = scmp.eq.s32.totalorder %s55, 0
    %s58 = sadd.s32 %s57, 1
    %s59 = scalar_select %p56, %s57, %s58
    %p62 = pneg %p56
    %p63 = scmp.eq.s32.totalorder %s9, 1
    %p64 = por %p62, %p63
    %p65 = scmp.ne.s32.totalorder %s57, %s60
    %p66 = scmp.eq.s32.totalorder %s9, 0
    %p67 = por %p65, %p66
    %p68 = scmp.ne.s32.totalorder %s57, %s60
    %p69 = scmp.eq.s32.totalorder %s14, 1
    %p70 = por %p68, %p69
    %p71 = scmp.ne.s32.totalorder %s60, %s61
    %p72 = scmp.eq.s32.totalorder %s14, 0
    %p73 = por %p71, %p72
    %p74 = scmp.ne.s32.totalorder %s60, %s61
    %p75 = scmp.eq.s32.totalorder %s15, 1
    %p76 = por %p74, %p75
    %p78 = scmp.ne.s32.totalorder %s61, %s77
    %p79 = scmp.eq.s32.totalorder %s15, 0
    %p80 = por %p78, %p79
    %s81 = ssub.s32 %s17, %s24
    %p82 = scmp.eq.s32.totalorder %s81, 0
    %s84 = sadd.s32 %s83, 1
    %s85 = scalar_select %p82, %s83, %s84
    %p88 = pneg %p82
    %p89 = scmp.eq.s32.totalorder %s9, 1
    %p90 = por %p88, %p89
    %p91 = scmp.ne.s32.totalorder %s83, %s86
    %p92 = scmp.eq.s32.totalorder %s9, 0
    %p93 = por %p91, %p92
    %p94 = scmp.ne.s32.totalorder %s83, %s86
    %p95 = scmp.eq.s32.totalorder %s14, 1
    %p96 = por %p94, %p95
    %p97 = scmp.ne.s32.totalorder %s86, %s87
    %p98 = scmp.eq.s32.totalorder %s14, 0
    %p99 = por %p97, %p98
    %p100 = scmp.ne.s32.totalorder %s86, %s87
    %p101 = scmp.eq.s32.totalorder %s15, 1
    %p102 = por %p100, %p101
    %p104 = scmp.ne.s32.totalorder %s87, %s103
    %p105 = scmp.eq.s32.totalorder %s15, 0
    %p106 = por %p104, %p105
    %s107 = ssub.s32 %s16, %s28
    %s108 = ssub.s32 %s17, %s24
    %s109 = sor.u32 %s107, %s108
    %p110 = scmp.eq.s32.totalorder %s109, 0
    %s112 = sadd.s32 %s111, 1
    %s113 = scalar_select %p110, %s111, %s112
    %p116 = pneg %p110
    %p117 = scmp.eq.s32.totalorder %s9, 1
    %p118 = por %p116, %p117
    %p119 = scmp.ne.s32.totalorder %s111, %s114
    %p120 = scmp.eq.s32.totalorder %s9, 0
    %p121 = por %p119, %p120
    %p122 = scmp.ne.s32.totalorder %s111, %s114
    %p123 = scmp.eq.s32.totalorder %s14, 1
    %p124 = por %p122, %p123
    %p125 = scmp.ne.s32.totalorder %s114, %s115
    %p126 = scmp.eq.s32.totalorder %s14, 0
    %p127 = por %p125, %p126
    %p128 = scmp.ne.s32.totalorder %s114, %s115
    %p129 = scmp.eq.s32.totalorder %s15, 1
    %p130 = por %p128, %p129
    %p132 = scmp.ne.s32.totalorder %s115, %s131
    %p133 = scmp.eq.s32.totalorder %s15, 0
    %p134 = por %p132, %p133
    %p135 = scmp.le.s32.totalorder 1, %s9
    %p136 = scmp.lt.s32.totalorder %s9, 3
    %p137 = pnand %p135, %p136
    %p138 = pneg %p137
    // Predicated region
    $region9: #{dqn_forward.5} parent=5 // pred_check
      _
    $region10: #{dqn_forward.5} parent=5 // pred_check_branch
      %140 = sbr.rel (%p137) target = $region12
    $region11: #{dqn_forward.5} parent=5 // pred_region
      %s141 = ssub.s32 %s9, 1
      // Predicated region
      $region13: #{dqn_forward.5} parent=11 // pred_check
        %p142 = pneg %p73
      $region14: #{dqn_forward.5} parent=11 // pred_check_branch
        %144 = sbr.rel (%p142) target = $region16
      $region15: #{dqn_forward.5} parent=11 // pred_region
        %p145 = scmp.lt.s32.totalorder %s19, 0
        %s146 = scalar_select %p145, %s19, 0
        %s147 = smul.addr %s146, 4
        %s148 = scalar_lea.vmem %s1, %s147
      $region16: #{dqn_forward.5} parent=11 // pred_fallthru
        _
      // Predicated region
      $region17: #{dqn_forward.5} parent=11 // pred_check
        %p149 = pneg %p99
      $region18: #{dqn_forward.5} parent=11 // pred_check_branch
        %151 = sbr.rel (%p149) target = $region20
      $region19: #{dqn_forward.5} parent=11 // pred_region
        %p152 = scmp.lt.s32.totalorder %s19, 0
        %s153 = scalar_select %p152, %s19, 0
        %s154 = scalar_lea.vmem %s2, %s153
      $region20: #{dqn_forward.5} parent=11 // pred_fallthru
        _
    $region12: #{dqn_forward.5} parent=5 // pred_fallthru
      _
    %p155 = scmp.lt.s32.totalorder %s9, 2
    // Predicated region
    $region21: #{dqn_forward.5} parent=5 // pred_check
      %p156 = pneg %p155
    $region22: #{dqn_forward.5} parent=5 // pred_check_branch
      %158 = sbr.rel (%p156) target = $region24
    $region23: #{dqn_forward.5} parent=5 // pred_region
      // Predicated region
      $region25: #{dqn_forward.5} parent=23 // pred_check
        %p159 = pneg %p41
      $region26: #{dqn_forward.5} parent=23 // pred_check_branch
        %161 = sbr.rel (%p159) target = $region28
      $region27: #{dqn_forward.5} parent=23 // pred_region
        %s162 = smul.u32 11, %s16
        %p163 = scmp.lt.s32.totalorder %s162, 21
        %s164 = scalar_select %p163, %s162, 21
        %s165 = smul.addr %s164, 4
        %s166 = smul.addr %s165, 8
        %s167 = scalar_lea.vmem %s0, %s166
        %s168 = smul.u32 11, %s16
      $region28: #{dqn_forward.5} parent=23 // pred_fallthru
        _
    $region24: #{dqn_forward.5} parent=5 // pred_fallthru
      _
    %p169 = scmp.le.s32.totalorder 1, %s9
    %p170 = scmp.lt.s32.totalorder %s9, 3
    %p171 = pnand %p169, %p170
    %p172 = pneg %p171
    // Predicated region
    $region29: #{dqn_forward.5} parent=5 // pred_check
      _
    $region30: #{dqn_forward.5} parent=5 // pred_check_branch
      %174 = sbr.rel (%p171) target = $region32
    $region31: #{dqn_forward.5} parent=5 // pred_region
      %s175 = ssub.s32 %s9, 1
      %s176 = smul.u32 11, %s18
      %p177 = scmp.lt.s32.totalorder %s176, 21
      %s178 = scalar_select %p177, %s176, 21
      %s179 = smul.addr %s178, 4
      %s180 = smul.addr %s179, 8
      %s181 = scalar_lea.vmem %s0, %s180
      %p182 = pneg %p47
      %p183 = pneg %p44
      %p184 = scmp.lt.s32.totalorder %s19, 0
      %s185 = scalar_select %p184, %s19, 0
      %s186 = smul.addr %s185, 4
      %s187 = scalar_lea.vmem %s1, %s186
      %p188 = pneg %p73
      %p189 = pneg %p70
      %p190 = scmp.lt.s32.totalorder %s19, 0
      %s191 = scalar_select %p190, %s19, 0
      %s192 = scalar_lea.vmem %s2, %s191
      %p193 = pneg %p99
      %p194 = pneg %p96
      %p195 = pneg %p127
      %p196 = pneg %p124
      %s197 = smul.u32 11, %s18
      %p198 = scmp.lt.s32.totalorder %s197, 21
      %s199 = scalar_select %p198, %s197, 21
      %p200 = scmp.lt.s32.totalorder %s19, 0
      %s201 = scalar_select %p200, %s19, 0
      %s202 = sadd.s32 %s201, %s199
      %s203 = smul.addr %s202, 8
      %s204 = scalar_lea.vmem %s3, %s203
      %s205 = smul.u32 11, %s18
      %p206 = scmp.lt.s32.totalorder %s205, 21
      %s207 = scalar_select %p206, %s205, 21
      %s208 = smul.addr %s207, 4
      %s209 = smul.addr %s208, 8
      %s210 = scalar_lea.vmem %s0, %s209
      %s211 = smul.u32 11, %s18
      %p212 = scmp.lt.s32.totalorder %s19, 0
      %s213 = scalar_select %p212, %s19, 0
      %s214 = smul.addr %s213, 4
      %s215 = scalar_lea.vmem %s1, %s214
      %p216 = scmp.lt.s32.totalorder %s19, 0
      %s217 = scalar_select %p216, %s19, 0
      %s218 = scalar_lea.vmem %s2, %s217
      %s219 = smul.u32 11, %s18
      %p220 = scmp.lt.s32.totalorder %s219, 21
      %s221 = scalar_select %p220, %s219, 21
      %p222 = scmp.lt.s32.totalorder %s19, 0
      %s223 = scalar_select %p222, %s19, 0
      %s224 = sadd.s32 %s223, %s221
      %s225 = smul.addr %s224, 8
      %s226 = scalar_lea.vmem %s3, %s225
      %s227 = smul.u32 11, %s18
      %v228 = vld [vmem:[%s210] sm:$0xff]
      %v229 = vld [vmem:[%s210 + $0x8] sm:$0xff]
      %v230 = vld [vmem:[%s210 + $0x10] sm:$0xff]
      %v231 = vld [vmem:[%s210 + $0x18] sm:$0xff]
      %v232 = vld [vmem:[%s210 + $0x20] sm:$0xff]
      %v233 = vld [vmem:[%s210 + $0x28] sm:$0xff]
      %v234 = vld [vmem:[%s210 + $0x30] sm:$0xff]
      %v235 = vld [vmem:[%s210 + $0x38] sm:$0xff]
      %v236 = vld [vmem:[%s210 + $0x40] sm:$0xff]
      %v237 = vld [vmem:[%s210 + $0x48] sm:$0xff]
      %v238 = vld [vmem:[%s210 + $0x50] sm:$0xff]
      %v239 = vld [vmem:[%s210 + $0x58] sm:$0xff]
      %v240 = vld [vmem:[%s210 + $0x60] sm:$0xff]
      %v241 = vld [vmem:[%s210 + $0x68] sm:$0xff]
      %v242 = vld [vmem:[%s210 + $0x70] sm:$0xff]
      %v243 = vld [vmem:[%s210 + $0x78] sm:$0xff]
      %v244 = vld [vmem:[%s210 + $0x80] sm:$0xff]
      %v245 = vld [vmem:[%s210 + $0x88] sm:$0xff]
      %v246 = vld [vmem:[%s210 + $0x90] sm:$0xff]
      %v247 = vld [vmem:[%s210 + $0x98] sm:$0xff]
      %v248 = vld [vmem:[%s210 + $0xa0] sm:$0xff]
      %v249 = vld [vmem:[%s210 + $0xa8] sm:$0xff]
      %v250 = vld [vmem:[%s210 + $0xb0] sm:$0xff]
      %v251 = vld [vmem:[%s210 + $0xb8] sm:$0xff]
      %v252 = vld [vmem:[%s210 + $0xc0] sm:$0xff]
      %v253 = vld [vmem:[%s210 + $0xc8] sm:$0xff]
      %v254 = vld [vmem:[%s210 + $0xd0] sm:$0xff]
      %v255 = vld [vmem:[%s210 + $0xd8] sm:$0xff]
      %v256 = vld [vmem:[%s210 + $0xe0] sm:$0xff]
      %v257 = vld [vmem:[%s210 + $0xe8] sm:$0xff]
      %v258 = vld [vmem:[%s210 + $0xf0] sm:$0xff]
      %v259 = vld [vmem:[%s210 + $0xf8] sm:$0xff]
      %v260 = vld [vmem:[%s210 + $0x100] sm:$0xff]
      %v261 = vld [vmem:[%s210 + $0x108] sm:$0xff]
      %v262 = vld [vmem:[%s210 + $0x110] sm:$0xff]
      %v263 = vld [vmem:[%s210 + $0x118] sm:$0xff]
      %v264 = vld [vmem:[%s210 + $0x120] sm:$0xff]
      %v265 = vld [vmem:[%s210 + $0x128] sm:$0xff]
      %v266 = vld [vmem:[%s210 + $0x130] sm:$0xff]
      %v267 = vld [vmem:[%s210 + $0x138] sm:$0xff]
      %v268 = vld [vmem:[%s210 + $0x140] sm:$0xff]
      %v269 = vld [vmem:[%s210 + $0x148] sm:$0xff]
      %v270 = vld [vmem:[%s210 + $0x150] sm:$0xff]
      %v271 = vld [vmem:[%s210 + $0x158] sm:$0xff]
      %v272 = vpack.c.bf16 %v232, %v228
      %v273 = vpack.c.bf16 %v233, %v229
      %v274 = vpack.c.bf16 %v234, %v230
      %v275 = vpack.c.bf16 %v235, %v231
      %v276 = vpack.c.bf16 %v240, %v236
      %v277 = vpack.c.bf16 %v241, %v237
      %v278 = vpack.c.bf16 %v242, %v238
      %v279 = vpack.c.bf16 %v243, %v239
      %v280 = vpack.c.bf16 %v248, %v244
      %v281 = vpack.c.bf16 %v249, %v245
      %v282 = vpack.c.bf16 %v250, %v246
      %v283 = vpack.c.bf16 %v251, %v247
      %v284 = vpack.c.bf16 %v256, %v252
      %v285 = vpack.c.bf16 %v257, %v253
      %v286 = vpack.c.bf16 %v258, %v254
      %v287 = vpack.c.bf16 %v259, %v255
      %v288 = vpack.c.bf16 %v264, %v260
      %v289 = vpack.c.bf16 %v265, %v261
      %v290 = vpack.c.bf16 %v266, %v262
      %v291 = vpack.c.bf16 %v267, %v263
      %v292 = vpack.c.bf16 %v268, %v268
      %v293 = vpack.c.bf16 %v269, %v269
      %v294 = vpack.c.bf16 %v270, %v270
      %v295 = vpack.c.bf16 %v271, %v271
      %v296 = vld [vmem:[%s215] sm:$0xf]
      %v297 = vld [vmem:[%s215 + $0x4] sm:$0xf]
      %v298 = vld [vmem:[%s215 + $0x8] sm:$0xf]
      %v299 = vld [vmem:[%s215 + $0xc] sm:$0xf]
      %v300 = vld [vmem:[%s215 + $0x10] sm:$0xf]
      %v301 = vld [vmem:[%s215 + $0x14] sm:$0xf]
      %v302 = vld [vmem:[%s215 + $0x18] sm:$0xf]
      %v303 = vld [vmem:[%s215 + $0x1c] sm:$0xf]
      %v304 = vld [vmem:[%s215 + $0x20] sm:$0xf]
      %v305 = vld [vmem:[%s215 + $0x24] sm:$0xf]
      %v306 = vld [vmem:[%s215 + $0x28] sm:$0xf]
      %v307 = vld [vmem:[%s215 + $0x2c] sm:$0xf]
      %v308 = vld [vmem:[%s215 + $0x30] sm:$0xf]
      %v309 = vld [vmem:[%s215 + $0x34] sm:$0xf]
      %v310 = vld [vmem:[%s215 + $0x38] sm:$0xf]
      %v311 = vld [vmem:[%s215 + $0x3c] sm:$0xf]
      %v312 = vld [vmem:[%s215 + $0x40] sm:$0xf]
      %v313 = vld [vmem:[%s215 + $0x44] sm:$0xf]
      %v314 = vld [vmem:[%s215 + $0x48] sm:$0xf]
      %v315 = vld [vmem:[%s215 + $0x4c] sm:$0xf]
      %v316 = vld [vmem:[%s215 + $0x50] sm:$0xf]
      %v317 = vld [vmem:[%s215 + $0x54] sm:$0xf]
      %v318 = vld [vmem:[%s215 + $0x58] sm:$0xf]
      %v319 = vld [vmem:[%s215 + $0x5c] sm:$0xf]
      %v320 = vld [vmem:[%s215 + $0x60] sm:$0xf]
      %v321 = vld [vmem:[%s215 + $0x64] sm:$0xf]
      %v322 = vld [vmem:[%s215 + $0x68] sm:$0xf]
      %v323 = vld [vmem:[%s215 + $0x6c] sm:$0xf]
      %v324 = vld [vmem:[%s215 + $0x70] sm:$0xf]
      %v325 = vld [vmem:[%s215 + $0x74] sm:$0xf]
      %v326 = vld [vmem:[%s215 + $0x78] sm:$0xf]
      %v327 = vld [vmem:[%s215 + $0x7c] sm:$0xf]
      %v328 = vld [vmem:[%s215 + $0x80] sm:$0xf]
      %v329 = vld [vmem:[%s215 + $0x84] sm:$0xf]
      %v330 = vld [vmem:[%s215 + $0x88] sm:$0xf]
      %v331 = vld [vmem:[%s215 + $0x8c] sm:$0xf]
      %v332 = vld [vmem:[%s215 + $0x90] sm:$0xf]
      %v333 = vld [vmem:[%s215 + $0x94] sm:$0xf]
      %v334 = vld [vmem:[%s215 + $0x98] sm:$0xf]
      %v335 = vld [vmem:[%s215 + $0x9c] sm:$0xf]
      %v336 = vld [vmem:[%s215 + $0xa0] sm:$0xf]
      %v337 = vld [vmem:[%s215 + $0xa4] sm:$0xf]
      %v338 = vld [vmem:[%s215 + $0xa8] sm:$0xf]
      %v339 = vld [vmem:[%s215 + $0xac] sm:$0xf]
      %v340 = vld [vmem:[%s215 + $0xb0] sm:$0xf]
      %v341 = vld [vmem:[%s215 + $0xb4] sm:$0xf]
      %v342 = vld [vmem:[%s215 + $0xb8] sm:$0xf]
      %v343 = vld [vmem:[%s215 + $0xbc] sm:$0xf]
      %v344 = vld [vmem:[%s215 + $0xc0] sm:$0xf]
      %v345 = vld [vmem:[%s215 + $0xc4] sm:$0xf]
      %v346 = vld [vmem:[%s215 + $0xc8] sm:$0xf]
      %v347 = vld [vmem:[%s215 + $0xcc] sm:$0xf]
      %v348 = vld [vmem:[%s215 + $0xd0] sm:$0xf]
      %v349 = vld [vmem:[%s215 + $0xd4] sm:$0xf]
      %v350 = vld [vmem:[%s215 + $0xd8] sm:$0xf]
      %v351 = vld [vmem:[%s215 + $0xdc] sm:$0xf]
      %v352 = vld [vmem:[%s215 + $0xe0] sm:$0xf]
      %v353 = vld [vmem:[%s215 + $0xe4] sm:$0xf]
      %v354 = vld [vmem:[%s215 + $0xe8] sm:$0xf]
      %v355 = vld [vmem:[%s215 + $0xec] sm:$0xf]
      %v356 = vld [vmem:[%s215 + $0xf0] sm:$0xf]
      %v357 = vld [vmem:[%s215 + $0xf4] sm:$0xf]
      %v358 = vld [vmem:[%s215 + $0xf8] sm:$0xf]
      %v359 = vld [vmem:[%s215 + $0xfc] sm:$0xf]
      %v360 = vld [vmem:[%s218] sm:$0x1]
      %v362 = vperm.slane %v360, 0
      %v428 = vunpack.c.l.b16 %v296
      %v429 = vunpack.c.l.b16 %v297
      %v430 = vunpack.c.l.b16 %v298
      %v431 = vunpack.c.l.b16 %v299
      %v432 = vunpack.c.l.b16 %v300
      %v433 = vunpack.c.l.b16 %v301
      %v434 = vunpack.c.l.b16 %v302
      %v435 = vunpack.c.l.b16 %v303
      %v436 = vunpack.c.l.b16 %v304
      %v437 = vunpack.c.l.b16 %v305
      %v438 = vunpack.c.l.b16 %v306
      %v439 = vunpack.c.l.b16 %v307
      %v440 = vunpack.c.l.b16 %v308
      %v441 = vunpack.c.l.b16 %v309
      %v442 = vunpack.c.l.b16 %v310
      %v443 = vunpack.c.l.b16 %v311
      %v444 = vunpack.c.l.b16 %v312
      %v445 = vunpack.c.l.b16 %v313
      %v446 = vunpack.c.l.b16 %v314
      %v447 = vunpack.c.l.b16 %v315
      %v448 = vunpack.c.l.b16 %v316
      %v449 = vunpack.c.l.b16 %v317
      %v450 = vunpack.c.l.b16 %v318
      %v451 = vunpack.c.l.b16 %v319
      %v452 = vunpack.c.l.b16 %v320
      %v453 = vunpack.c.l.b16 %v321
      %v454 = vunpack.c.l.b16 %v322
      %v455 = vunpack.c.l.b16 %v323
      %v456 = vunpack.c.l.b16 %v324
      %v457 = vunpack.c.l.b16 %v325
      %v458 = vunpack.c.l.b16 %v326
      %v459 = vunpack.c.l.b16 %v327
      %v460 = vunpack.c.l.b16 %v328
      %v461 = vunpack.c.l.b16 %v329
      %v462 = vunpack.c.l.b16 %v330
      %v463 = vunpack.c.l.b16 %v331
      %v464 = vunpack.c.l.b16 %v332
      %v465 = vunpack.c.l.b16 %v333
      %v466 = vunpack.c.l.b16 %v334
      %v467 = vunpack.c.l.b16 %v335
      %v468 = vunpack.c.l.b16 %v336
      %v469 = vunpack.c.l.b16 %v337
      %v470 = vunpack.c.l.b16 %v338
      %v471 = vunpack.c.l.b16 %v339
      %v472 = vunpack.c.l.b16 %v340
      %v473 = vunpack.c.l.b16 %v341
      %v474 = vunpack.c.l.b16 %v342
      %v475 = vunpack.c.l.b16 %v343
      %v476 = vunpack.c.l.b16 %v344
      %v477 = vunpack.c.l.b16 %v345
      %v478 = vunpack.c.l.b16 %v346
      %v479 = vunpack.c.l.b16 %v347
      %v480 = vunpack.c.l.b16 %v348
      %v481 = vunpack.c.l.b16 %v349
      %v482 = vunpack.c.l.b16 %v350
      %v483 = vunpack.c.l.b16 %v351
      %v484 = vunpack.c.l.b16 %v352
      %v485 = vunpack.c.l.b16 %v353
      %v486 = vunpack.c.l.b16 %v354
      %v487 = vunpack.c.l.b16 %v355
      %v488 = vunpack.c.l.b16 %v356
      %v489 = vunpack.c.l.b16 %v357
      %v490 = vunpack.c.l.b16 %v358
      %v491 = vunpack.c.l.b16 %v359
      %v492 = vpack.c.b16 %v429, %v428
      %v493 = vpack.c.b16 %v431, %v430
      %v494 = vpack.c.b16 %v433, %v432
      %v495 = vpack.c.b16 %v435, %v434
      %v496 = vpack.c.b16 %v437, %v436
      %v497 = vpack.c.b16 %v439, %v438
      %v498 = vpack.c.b16 %v441, %v440
      %v499 = vpack.c.b16 %v443, %v442
      %v500 = vpack.c.b16 %v445, %v444
      %v501 = vpack.c.b16 %v447, %v446
      %v502 = vpack.c.b16 %v449, %v448
      %v503 = vpack.c.b16 %v451, %v450
      %v504 = vpack.c.b16 %v453, %v452
      %v505 = vpack.c.b16 %v455, %v454
      %v506 = vpack.c.b16 %v457, %v456
      %v507 = vpack.c.b16 %v459, %v458
      %v508 = vpack.c.b16 %v461, %v460
      %v509 = vpack.c.b16 %v463, %v462
      %v510 = vpack.c.b16 %v465, %v464
      %v511 = vpack.c.b16 %v467, %v466
      %v512 = vpack.c.b16 %v469, %v468
      %v513 = vpack.c.b16 %v471, %v470
      %v514 = vpack.c.b16 %v473, %v472
      %v515 = vpack.c.b16 %v475, %v474
      %v516 = vpack.c.b16 %v477, %v476
      %v517 = vpack.c.b16 %v479, %v478
      %v518 = vpack.c.b16 %v481, %v480
      %v519 = vpack.c.b16 %v483, %v482
      %v520 = vpack.c.b16 %v485, %v484
      %v521 = vpack.c.b16 %v487, %v486
      %v522 = vpack.c.b16 %v489, %v488
      %v523 = vpack.c.b16 %v491, %v490
      %556 = vmatpush.bf16.msra.mxu0 %v499
      %557 = vmatpush.bf16.msra.mxu0 %v498
      %558 = vmatpush.bf16.msra.mxu0 %v497
      %559 = vmatpush.bf16.msra.mxu0 %v496
      %560 = vmatpush.bf16.msra.mxu0 %v495
      %561 = vmatpush.bf16.msra.mxu0 %v494
      %562 = vmatpush.bf16.msra.mxu0 %v493
      %563 = vmatpush.bf16.msra.mxu0 %v492
      %564 = vmatmul.bf16.gmra.mxu0 %v272
      %v565 = vpop.f32.mrf.mxu0
      %v566 = vadd.f32 %v362, %v565
      %v567 = vpop.f32.mrf.mxu0
      %v568 = vadd.f32 %v362, %v567
      %569 = vmatmul.bf16.gmra.mxu0 %v276
      %v570 = vpop.f32.mrf.mxu0
      %v571 = vadd.f32 %v362, %v570
      %v572 = vpop.f32.mrf.mxu0
      %v573 = vadd.f32 %v362, %v572
      %574 = vmatmul.bf16.gmra.mxu0 %v280
      %v575 = vpop.f32.mrf.mxu0
      %v576 = vadd.f32 %v362, %v575
      %v577 = vpop.f32.mrf.mxu0
      %v578 = vadd.f32 %v362, %v577
      %579 = vmatmul.bf16.gmra.mxu0 %v284
      %v580 = vpop.f32.mrf.mxu0
      %v581 = vadd.f32 %v362, %v580
      %v582 = vpop.f32.mrf.mxu0
      %v583 = vadd.f32 %v362, %v582
      %584 = vmatmul.bf16.gmra.mxu0 %v288
      %v585 = vpop.f32.mrf.mxu0
      %v586 = vadd.f32 %v362, %v585
      %v587 = vpop.f32.mrf.mxu0
      %v588 = vadd.f32 %v362, %v587
      %589 = vmatmul.bf16.gmra.mxu0 %v292
      %v590 = vpop.f32.mrf.mxu0
      %v591 = vadd.f32 %v362, %v590
      %v592 = vpop.f32.mrf.mxu0
      %593 = vdwg.mxu0
      %594 = vmatpush.bf16.msra.mxu0 %v507
      %595 = vmatpush.bf16.msra.mxu0 %v506
      %596 = vmatpush.bf16.msra.mxu0 %v505
      %597 = vmatpush.bf16.msra.mxu0 %v504
      %598 = vmatpush.bf16.msra.mxu0 %v503
      %599 = vmatpush.bf16.msra.mxu0 %v502
      %600 = vmatpush.bf16.msra.mxu0 %v501
      %601 = vmatpush.bf16.msra.mxu0 %v500
      %602 = vmatmul.bf16.gmra.mxu0 %v273
      %v603 = vpop.f32.mrf.mxu0
      %v604 = vadd.f32 %v566, %v603
      %v605 = vpop.f32.mrf.mxu0
      %v606 = vadd.f32 %v568, %v605
      %607 = vmatmul.bf16.gmra.mxu0 %v277
      %v608 = vpop.f32.mrf.mxu0
      %v609 = vadd.f32 %v571, %v608
      %v610 = vpop.f32.mrf.mxu0
      %v611 = vadd.f32 %v573, %v610
      %612 = vmatmul.bf16.gmra.mxu0 %v281
      %v613 = vpop.f32.mrf.mxu0
      %v614 = vadd.f32 %v576, %v613
      %v615 = vpop.f32.mrf.mxu0
      %v616 = vadd.f32 %v578, %v615
      %617 = vmatmul.bf16.gmra.mxu0 %v285
      %v618 = vpop.f32.mrf.mxu0
      %v619 = vadd.f32 %v581, %v618
      %v620 = vpop.f32.mrf.mxu0
      %v621 = vadd.f32 %v583, %v620
      %622 = vmatmul.bf16.gmra.mxu0 %v289
      %v623 = vpop.f32.mrf.mxu0
      %v624 = vadd.f32 %v586, %v623
      %v625 = vpop.f32.mrf.mxu0
      %v626 = vadd.f32 %v588, %v625
      %627 = vmatmul.bf16.gmra.mxu0 %v293
      %v628 = vpop.f32.mrf.mxu0
      %v629 = vadd.f32 %v591, %v628
      %v630 = vpop.f32.mrf.mxu0
      %631 = vdwg.mxu0
      %632 = vmatpush.bf16.msra.mxu0 %v515
      %633 = vmatpush.bf16.msra.mxu0 %v514
      %634 = vmatpush.bf16.msra.mxu0 %v513
      %635 = vmatpush.bf16.msra.mxu0 %v512
      %636 = vmatpush.bf16.msra.mxu0 %v511
      %637 = vmatpush.bf16.msra.mxu0 %v510
      %638 = vmatpush.bf16.msra.mxu0 %v509
      %639 = vmatpush.bf16.msra.mxu0 %v508
      %640 = vmatmul.bf16.gmra.mxu0 %v274
      %v641 = vpop.f32.mrf.mxu0
      %v642 = vadd.f32 %v604, %v641
      %v643 = vpop.f32.mrf.mxu0
      %v644 = vadd.f32 %v606, %v643
      %645 = vmatmul.bf16.gmra.mxu0 %v278
      %v646 = vpop.f32.mrf.mxu0
      %v647 = vadd.f32 %v609, %v646
      %v648 = vpop.f32.mrf.mxu0
      %v649 = vadd.f32 %v611, %v648
      %650 = vmatmul.bf16.gmra.mxu0 %v282
      %v651 = vpop.f32.mrf.mxu0
      %v652 = vadd.f32 %v614, %v651
      %v653 = vpop.f32.mrf.mxu0
      %v654 = vadd.f32 %v616, %v653
      %655 = vmatmul.bf16.gmra.mxu0 %v286
      %v656 = vpop.f32.mrf.mxu0
      %v657 = vadd.f32 %v619, %v656
      %v658 = vpop.f32.mrf.mxu0
      %v659 = vadd.f32 %v621, %v658
      %660 = vmatmul.bf16.gmra.mxu0 %v290
      %v661 = vpop.f32.mrf.mxu0
      %v662 = vadd.f32 %v624, %v661
      %v663 = vpop.f32.mrf.mxu0
      %v664 = vadd.f32 %v626, %v663
      %665 = vmatmul.bf16.gmra.mxu0 %v294
      %v666 = vpop.f32.mrf.mxu0
      %v667 = vadd.f32 %v629, %v666
      %v668 = vpop.f32.mrf.mxu0
      %669 = vdwg.mxu0
      %670 = vmatpush.bf16.msra.mxu0 %v523
      %671 = vmatpush.bf16.msra.mxu0 %v522
      %672 = vmatpush.bf16.msra.mxu0 %v521
      %673 = vmatpush.bf16.msra.mxu0 %v520
      %674 = vmatpush.bf16.msra.mxu0 %v519
      %675 = vmatpush.bf16.msra.mxu0 %v518
      %676 = vmatpush.bf16.msra.mxu0 %v517
      %677 = vmatpush.bf16.msra.mxu0 %v516
      %678 = vmatmul.bf16.gmra.mxu0 %v275
      %v679 = vpop.f32.mrf.mxu0
      %v680 = vadd.f32 %v642, %v679
      %v681 = vpop.f32.mrf.mxu0
      %v682 = vadd.f32 %v644, %v681
      %683 = vmatmul.bf16.gmra.mxu0 %v279
      %v684 = vpop.f32.mrf.mxu0
      %v685 = vadd.f32 %v647, %v684
      %v686 = vpop.f32.mrf.mxu0
      %v687 = vadd.f32 %v649, %v686
      %688 = vmatmul.bf16.gmra.mxu0 %v283
      %v689 = vpop.f32.mrf.mxu0
      %v690 = vadd.f32 %v652, %v689
      %v691 = vpop.f32.mrf.mxu0
      %v692 = vadd.f32 %v654, %v691
      %693 = vmatmul.bf16.gmra.mxu0 %v287
      %v694 = vpop.f32.mrf.mxu0
      %v695 = vadd.f32 %v657, %v694
      %v696 = vpop.f32.mrf.mxu0
      %v697 = vadd.f32 %v659, %v696
      %698 = vmatmul.bf16.gmra.mxu0 %v291
      %v699 = vpop.f32.mrf.mxu0
      %v700 = vadd.f32 %v662, %v699
      %v701 = vpop.f32.mrf.mxu0
      %v702 = vadd.f32 %v664, %v701
      %703 = vmatmul.bf16.gmra.mxu0 %v295
      %v704 = vpop.f32.mrf.mxu0
      %v705 = vadd.f32 %v667, %v704
      %v706 = vpop.f32.mrf.mxu0
      %707 = vdwg.mxu0
      %v708 = vmax.f32 %v680, 0.0
      %v709 = vmax.f32 %v682, 0.0
      %v710 = vmax.f32 %v685, 0.0
      %v711 = vmax.f32 %v687, 0.0
      %v712 = vmax.f32 %v690, 0.0
      %v713 = vmax.f32 %v692, 0.0
      %v714 = vmax.f32 %v695, 0.0
      %v715 = vmax.f32 %v697, 0.0
      %v716 = vmax.f32 %v700, 0.0
      %v717 = vmax.f32 %v702, 0.0
      %v718 = vmax.f32 %v705, 0.0
      %719 = vst [vmem:[%s226] sm:$0xff] %v708
      %720 = vst [vmem:[%s226 + $0x8] sm:$0xff] %v709
      %721 = vst [vmem:[%s226 + $0x10] sm:$0xff] %v710
      %722 = vst [vmem:[%s226 + $0x18] sm:$0xff] %v711
      %723 = vst [vmem:[%s226 + $0x20] sm:$0xff] %v712
      %724 = vst [vmem:[%s226 + $0x28] sm:$0xff] %v713
      %725 = vst [vmem:[%s226 + $0x30] sm:$0xff] %v714
      %726 = vst [vmem:[%s226 + $0x38] sm:$0xff] %v715
      %727 = vst [vmem:[%s226 + $0x40] sm:$0xff] %v716
      %728 = vst [vmem:[%s226 + $0x48] sm:$0xff] %v717
      %729 = vst [vmem:[%s226 + $0x50] sm:$0xff] %v718
      %s730 = smul.u32 11, %s18
      %p731 = scmp.lt.s32.totalorder %s730, 21
      %s732 = scalar_select %p731, %s730, 21
      %p733 = scmp.lt.s32.totalorder %s19, 0
      %s734 = scalar_select %p733, %s19, 0
      %s735 = sadd.s32 %s734, %s732
      %s736 = smul.addr %s735, 8
      %s737 = scalar_lea.vmem %s3, %s736
      // Predicated region
      $region33: #{dqn_forward.5} parent=31 // pred_check
        %p738 = pneg %p124
      $region34: #{dqn_forward.5} parent=31 // pred_check_branch
        %740 = sbr.rel (%p738) target = $region36
      $region35: #{dqn_forward.5} parent=31 // pred_region
        %s741 = smul.u32 11, %s18
      $region36: #{dqn_forward.5} parent=31 // pred_fallthru
        _
    $region32: #{dqn_forward.5} parent=5 // pred_fallthru
      _
    %p742 = scmp.le.s32.totalorder 2, %s9
    // Predicated region
    $region37: #{dqn_forward.5} parent=5 // pred_check
      %p743 = pneg %p742
    $region38: #{dqn_forward.5} parent=5 // pred_check_branch
      %745 = sbr.rel (%p743) target = $region40
    $region39: #{dqn_forward.5} parent=5 // pred_region
      %s746 = ssub.s32 %s9, 2
      // Predicated region
      $region41: #{dqn_forward.5} parent=39 // pred_check
        %p747 = pneg %p130
      $region42: #{dqn_forward.5} parent=39 // pred_check_branch
        %749 = sbr.rel (%p747) target = $region44
      $region43: #{dqn_forward.5} parent=39 // pred_region
        %s750 = smul.u32 11, %s20
        %p751 = scmp.lt.s32.totalorder %s750, 21
        %s752 = scalar_select %p751, %s750, 21
        %p753 = scmp.lt.s32.totalorder %s21, 0
        %s754 = scalar_select %p753, %s21, 0
        %s755 = sadd.s32 %s754, %s752
        %s756 = smul.addr %s755, 8
        %s757 = scalar_lea.vmem %s3, %s756
      $region44: #{dqn_forward.5} parent=39 // pred_fallthru
        _
    $region40: #{dqn_forward.5} parent=5 // pred_fallthru
      _
  $region6: #{dqn_forward.5} parent=0 // loop_footer
    %s13 = sadd.s32 1, %s9
  $region7: #{dqn_forward.5} parent=0 // loop_footer_branch
    %8 = sbr.rel target = $region3
  $region8: #{dqn_forward.5} parent=0 // loop_exit
    _

// kernel: dqn_forward.6
$region0: #{dqn_forward.6}
  #allocation0 [shape = 'u32[]', space=smem, size = 0x4, offset = 0x4, fixed_abs, tag = 'smem constant byte address 0x4 - core index']
  #allocation1 [shape = 'u32[72,128]{1,0:T(1,128)}', space=vmem, size = 0x9000, scoped, tag = 'internal scratch']
  %s0 = inlined_call_operand.vmem [shape: f32[104,576], index: 0, kind: input, shape index: {}]
  %s1 = inlined_call_operand.vmem [shape: bf16[576,128], index: 1, kind: input, shape index: {}]
  %s2 = inlined_call_operand.vmem [shape: f32[1,128], index: 2, kind: input, shape index: {}]
  %s3 = inlined_call_operand.vmem [shape: f32[104,128], index: 3, kind: output, shape index: {}]
  %s4 = sld [smem:[#allocation0]]
  $region22: #{dqn_forward.6} parent=0
    _
  %s6 = ssub.s32 1, %s4
  %s7 = scalar_select 0, %s6, %s4
  // Predicated region
  $region2: #{dqn_forward.6} parent=0 // pred_check
    _
  $region3: #{dqn_forward.6} parent=0 // pred_check_branch
    %9 = sbr.rel (0) target = $region5
  $region4: #{dqn_forward.6} parent=0 // pred_region
    _
  $region5: #{dqn_forward.6} parent=0 // pred_fallthru
    _
  // Predicated region
  $region6: #{dqn_forward.6} parent=0 // pred_check
    _
  $region7: #{dqn_forward.6} parent=0 // pred_check_branch
    %11 = sbr.rel (0) target = $region9
  $region8: #{dqn_forward.6} parent=0 // pred_region
    _
  $region9: #{dqn_forward.6} parent=0 // pred_fallthru
    _
  // Predicated region
  $region10: #{dqn_forward.6} parent=0 // pred_check
    _
  $region11: #{dqn_forward.6} parent=0 // pred_check_branch
    %13 = sbr.rel (0) target = $region13
  $region12: #{dqn_forward.6} parent=0 // pred_region
    _
  $region13: #{dqn_forward.6} parent=0 // pred_fallthru
    _
  %v15 = vld [vmem:[%s0] sm:$0xff]
  %v16 = vld [vmem:[%s0 + $0x8] sm:$0xff]
  %v17 = vld [vmem:[%s0 + $0x10] sm:$0xff]
  %v18 = vld [vmem:[%s0 + $0x18] sm:$0xff]
  %v19 = vld [vmem:[%s0 + $0x20] sm:$0xff]
  %v20 = vld [vmem:[%s0 + $0x28] sm:$0xff]
  %v21 = vld [vmem:[%s0 + $0x30] sm:$0xff]
  %v22 = vld [vmem:[%s0 + $0x38] sm:$0xff]
  %v23 = vld [vmem:[%s0 + $0x40] sm:$0xff]
  %v24 = vld [vmem:[%s0 + $0x48] sm:$0xff]
  %v25 = vld [vmem:[%s0 + $0x50] sm:$0xff]
  %v26 = vld [vmem:[%s0 + $0x58] sm:$0xff]
  %v27 = vld [vmem:[%s0 + $0x60] sm:$0xff]
  %v28 = vld [vmem:[%s0 + $0x68] sm:$0xff]
  %v29 = vld [vmem:[%s0 + $0x70] sm:$0xff]
  %v30 = vld [vmem:[%s0 + $0x78] sm:$0xff]
  %v31 = vld [vmem:[%s0 + $0x80] sm:$0xff]
  %v32 = vld [vmem:[%s0 + $0x88] sm:$0xff]
  %v33 = vld [vmem:[%s0 + $0x90] sm:$0xff]
  %v34 = vld [vmem:[%s0 + $0x98] sm:$0xff]
  %v35 = vld [vmem:[%s0 + $0xa0] sm:$0xff]
  %v36 = vld [vmem:[%s0 + $0xa8] sm:$0xff]
  %v37 = vld [vmem:[%s0 + $0xb0] sm:$0xff]
  %v38 = vld [vmem:[%s0 + $0xb8] sm:$0xff]
  %v39 = vld [vmem:[%s0 + $0xc0] sm:$0xff]
  %v40 = vld [vmem:[%s0 + $0xc8] sm:$0xff]
  %v41 = vld [vmem:[%s0 + $0xd0] sm:$0xff]
  %v42 = vld [vmem:[%s0 + $0xd8] sm:$0xff]
  %v43 = vld [vmem:[%s0 + $0xe0] sm:$0xff]
  %v44 = vld [vmem:[%s0 + $0xe8] sm:$0xff]
  %v45 = vld [vmem:[%s0 + $0xf0] sm:$0xff]
  %v46 = vld [vmem:[%s0 + $0xf8] sm:$0xff]
  %v47 = vld [vmem:[%s0 + $0x100] sm:$0xff]
  %v48 = vld [vmem:[%s0 + $0x108] sm:$0xff]
  %v49 = vld [vmem:[%s0 + $0x110] sm:$0xff]
  %v50 = vld [vmem:[%s0 + $0x118] sm:$0xff]
  %v51 = vld [vmem:[%s0 + $0x120] sm:$0xff]
  %v52 = vld [vmem:[%s0 + $0x128] sm:$0xff]
  %v53 = vld [vmem:[%s0 + $0x130] sm:$0xff]
  %v54 = vld [vmem:[%s0 + $0x138] sm:$0xff]
  %v55 = vld [vmem:[%s0 + $0x140] sm:$0xff]
  %v56 = vld [vmem:[%s0 + $0x148] sm:$0xff]
  %v57 = vld [vmem:[%s0 + $0x150] sm:$0xff]
  %v58 = vld [vmem:[%s0 + $0x158] sm:$0xff]
  %v59 = vld [vmem:[%s0 + $0x160] sm:$0xff]
  %v60 = vld [vmem:[%s0 + $0x168] sm:$0xff]
  %v61 = vld [vmem:[%s0 + $0x170] sm:$0xff]
  %v62 = vld [vmem:[%s0 + $0x178] sm:$0xff]
  %v63 = vld [vmem:[%s0 + $0x180] sm:$0xff]
  %v64 = vld [vmem:[%s0 + $0x188] sm:$0xff]
  %v65 = vld [vmem:[%s0 + $0x190] sm:$0xff]
  %v66 = vld [vmem:[%s0 + $0x198] sm:$0xff]
  %v67 = vld [vmem:[%s0 + $0x1a0] sm:$0xff]
  %v68 = vld [vmem:[%s0 + $0x1a8] sm:$0xff]
  %v69 = vld [vmem:[%s0 + $0x1b0] sm:$0xff]
  %v70 = vld [vmem:[%s0 + $0x1b8] sm:$0xff]
  %v71 = vld [vmem:[%s0 + $0x1c0] sm:$0xff]
  %v72 = vld [vmem:[%s0 + $0x1c8] sm:$0xff]
  %v73 = vld [vmem:[%s0 + $0x1d0] sm:$0xff]
  %v74 = vld [vmem:[%s0 + $0x1d8] sm:$0xff]
  %v75 = vld [vmem:[%s0 + $0x1e0] sm:$0xff]
  %v76 = vld [vmem:[%s0 + $0x1e8] sm:$0xff]
  %v77 = vld [vmem:[%s0 + $0x1f0] sm:$0xff]
  %v78 = vld [vmem:[%s0 + $0x1f8] sm:$0xff]
  %v79 = vld [vmem:[%s0 + $0x200] sm:$0xff]
  %v80 = vpack.c.bf16 %v20, %v15
  %v81 = vpack.c.bf16 %v21, %v16
  %v82 = vpack.c.bf16 %v22, %v17
  %v83 = vpack.c.bf16 %v23, %v18
  %v84 = vpack.c.bf16 %v24, %v19
  %v85 = vpack.c.bf16 %v30, %v25
  %v86 = vpack.c.bf16 %v31, %v26
  %v87 = vpack.c.bf16 %v32, %v27
  %v88 = vpack.c.bf16 %v33, %v28
  %v89 = vpack.c.bf16 %v34, %v29
  %v90 = vpack.c.bf16 %v40, %v35
  %v91 = vpack.c.bf16 %v41, %v36
  %v92 = vpack.c.bf16 %v42, %v37
  %v93 = vpack.c.bf16 %v43, %v38
  %v94 = vpack.c.bf16 %v44, %v39
  %v95 = vpack.c.bf16 %v50, %v45
  %v96 = vpack.c.bf16 %v51, %v46
  %v97 = vpack.c.bf16 %v52, %v47
  %v98 = vpack.c.bf16 %v53, %v48
  %v99 = vpack.c.bf16 %v54, %v49
  %v100 = vpack.c.bf16 %v60, %v55
  %v101 = vpack.c.bf16 %v61, %v56
  %v102 = vpack.c.bf16 %v62, %v57
  %v103 = vpack.c.bf16 %v63, %v58
  %v104 = vpack.c.bf16 %v64, %v59
  %v105 = vpack.c.bf16 %v70, %v65
  %v106 = vpack.c.bf16 %v71, %v66
  %v107 = vpack.c.bf16 %v72, %v67
  %v108 = vpack.c.bf16 %v73, %v68
  %v109 = vpack.c.bf16 %v74, %v69
  %v110 = vpack.c.bf16 %v75, %v75
  %v111 = vpack.c.bf16 %v76, %v76
  %v112 = vpack.c.bf16 %v77, %v77
  %v113 = vpack.c.bf16 %v78, %v78
  %v114 = vpack.c.bf16 %v79, %v79
  %v115 = vld [vmem:[%s1] sm:$0xf]
  %v116 = vld [vmem:[%s1 + $0x4] sm:$0xf]
  %v117 = vld [vmem:[%s1 + $0x8] sm:$0xf]
  %v118 = vld [vmem:[%s1 + $0xc] sm:$0xf]
  %v119 = vld [vmem:[%s1 + $0x10] sm:$0xf]
  %v120 = vld [vmem:[%s1 + $0x14] sm:$0xf]
  %v121 = vld [vmem:[%s1 + $0x18] sm:$0xf]
  %v122 = vld [vmem:[%s1 + $0x1c] sm:$0xf]
  %v123 = vld [vmem:[%s1 + $0x20] sm:$0xf]
  %v124 = vld [vmem:[%s1 + $0x24] sm:$0xf]
  %v125 = vld [vmem:[%s1 + $0x28] sm:$0xf]
  %v126 = vld [vmem:[%s1 + $0x2c] sm:$0xf]
  %v127 = vld [vmem:[%s1 + $0x30] sm:$0xf]
  %v128 = vld [vmem:[%s1 + $0x34] sm:$0xf]
  %v129 = vld [vmem:[%s1 + $0x38] sm:$0xf]
  %v130 = vld [vmem:[%s1 + $0x3c] sm:$0xf]
  %v131 = vld [vmem:[%s1 + $0x40] sm:$0xf]
  %v132 = vld [vmem:[%s1 + $0x44] sm:$0xf]
  %v133 = vld [vmem:[%s1 + $0x48] sm:$0xf]
  %v134 = vld [vmem:[%s1 + $0x4c] sm:$0xf]
  %v135 = vld [vmem:[%s1 + $0x50] sm:$0xf]
  %v136 = vld [vmem:[%s1 + $0x54] sm:$0xf]
  %v137 = vld [vmem:[%s1 + $0x58] sm:$0xf]
  %v138 = vld [vmem:[%s1 + $0x5c] sm:$0xf]
  %v139 = vld [vmem:[%s1 + $0x60] sm:$0xf]
  %v140 = vld [vmem:[%s1 + $0x64] sm:$0xf]
  %v141 = vld [vmem:[%s1 + $0x68] sm:$0xf]
  %v142 = vld [vmem:[%s1 + $0x6c] sm:$0xf]
  %v143 = vld [vmem:[%s1 + $0x70] sm:$0xf]
  %v144 = vld [vmem:[%s1 + $0x74] sm:$0xf]
  %v145 = vld [vmem:[%s1 + $0x78] sm:$0xf]
  %v146 = vld [vmem:[%s1 + $0x7c] sm:$0xf]
  %v147 = vld [vmem:[%s1 + $0x80] sm:$0xf]
  %v148 = vld [vmem:[%s1 + $0x84] sm:$0xf]
  %v149 = vld [vmem:[%s1 + $0x88] sm:$0xf]
  %v150 = vld [vmem:[%s1 + $0x8c] sm:$0xf]
  %v151 = vld [vmem:[%s1 + $0x90] sm:$0xf]
  %v152 = vld [vmem:[%s1 + $0x94] sm:$0xf]
  %v153 = vld [vmem:[%s1 + $0x98] sm:$0xf]
  %v154 = vld [vmem:[%s1 + $0x9c] sm:$0xf]
  %v155 = vld [vmem:[%s1 + $0xa0] sm:$0xf]
  %v156 = vld [vmem:[%s1 + $0xa4] sm:$0xf]
  %v157 = vld [vmem:[%s1 + $0xa8] sm:$0xf]
  %v158 = vld [vmem:[%s1 + $0xac] sm:$0xf]
  %v159 = vld [vmem:[%s1 + $0xb0] sm:$0xf]
  %v160 = vld [vmem:[%s1 + $0xb4] sm:$0xf]
  %v161 = vld [vmem:[%s1 + $0xb8] sm:$0xf]
  %v162 = vld [vmem:[%s1 + $0xbc] sm:$0xf]
  %v163 = vld [vmem:[%s1 + $0xc0] sm:$0xf]
  %v164 = vld [vmem:[%s1 + $0xc4] sm:$0xf]
  %v165 = vld [vmem:[%s1 + $0xc8] sm:$0xf]
  %v166 = vld [vmem:[%s1 + $0xcc] sm:$0xf]
  %v167 = vld [vmem:[%s1 + $0xd0] sm:$0xf]
  %v168 = vld [vmem:[%s1 + $0xd4] sm:$0xf]
  %v169 = vld [vmem:[%s1 + $0xd8] sm:$0xf]
  %v170 = vld [vmem:[%s1 + $0xdc] sm:$0xf]
  %v171 = vld [vmem:[%s1 + $0xe0] sm:$0xf]
  %v172 = vld [vmem:[%s1 + $0xe4] sm:$0xf]
  %v173 = vld [vmem:[%s1 + $0xe8] sm:$0xf]
  %v174 = vld [vmem:[%s1 + $0xec] sm:$0xf]
  %v175 = vld [vmem:[%s1 + $0xf0] sm:$0xf]
  %v176 = vld [vmem:[%s1 + $0xf4] sm:$0xf]
  %v177 = vld [vmem:[%s1 + $0xf8] sm:$0xf]
  %v178 = vld [vmem:[%s1 + $0xfc] sm:$0xf]
  %v179 = vld [vmem:[%s1 + $0x100] sm:$0xf]
  %v180 = vld [vmem:[%s1 + $0x104] sm:$0xf]
  %v181 = vld [vmem:[%s1 + $0x108] sm:$0xf]
  %v182 = vld [vmem:[%s1 + $0x10c] sm:$0xf]
  %v183 = vld [vmem:[%s1 + $0x110] sm:$0xf]
  %v184 = vld [vmem:[%s1 + $0x114] sm:$0xf]
  %v185 = vld [vmem:[%s1 + $0x118] sm:$0xf]
  %v186 = vld [vmem:[%s1 + $0x11c] sm:$0xf]
  %v187 = vld [vmem:[%s2] sm:$0x1]
  %v189 = vperm.slane %v187, 0
  %v263 = vunpack.c.l.b16 %v115
  %v264 = vunpack.c.l.b16 %v116
  %v265 = vunpack.c.l.b16 %v117
  %v266 = vunpack.c.l.b16 %v118
  %v267 = vunpack.c.l.b16 %v119
  %v268 = vunpack.c.l.b16 %v120
  %v269 = vunpack.c.l.b16 %v121
  %v270 = vunpack.c.l.b16 %v122
  %v271 = vunpack.c.l.b16 %v123
  %v272 = vunpack.c.l.b16 %v124
  %v273 = vunpack.c.l.b16 %v125
  %v274 = vunpack.c.l.b16 %v126
  %v275 = vunpack.c.l.b16 %v127
  %v276 = vunpack.c.l.b16 %v128
  %v277 = vunpack.c.l.b16 %v129
  %v278 = vunpack.c.l.b16 %v130
  %v279 = vunpack.c.l.b16 %v131
  %v280 = vunpack.c.l.b16 %v132
  %v281 = vunpack.c.l.b16 %v133
  %v282 = vunpack.c.l.b16 %v134
  %v283 = vunpack.c.l.b16 %v135
  %v284 = vunpack.c.l.b16 %v136
  %v285 = vunpack.c.l.b16 %v137
  %v286 = vunpack.c.l.b16 %v138
  %v287 = vunpack.c.l.b16 %v139
  %v288 = vunpack.c.l.b16 %v140
  %v289 = vunpack.c.l.b16 %v141
  %v290 = vunpack.c.l.b16 %v142
  %v291 = vunpack.c.l.b16 %v143
  %v292 = vunpack.c.l.b16 %v144
  %v293 = vunpack.c.l.b16 %v145
  %v294 = vunpack.c.l.b16 %v146
  %v295 = vunpack.c.l.b16 %v147
  %v296 = vunpack.c.l.b16 %v148
  %v297 = vunpack.c.l.b16 %v149
  %v298 = vunpack.c.l.b16 %v150
  %v299 = vunpack.c.l.b16 %v151
  %v300 = vunpack.c.l.b16 %v152
  %v301 = vunpack.c.l.b16 %v153
  %v302 = vunpack.c.l.b16 %v154
  %v303 = vunpack.c.l.b16 %v155
  %v304 = vunpack.c.l.b16 %v156
  %v305 = vunpack.c.l.b16 %v157
  %v306 = vunpack.c.l.b16 %v158
  %v307 = vunpack.c.l.b16 %v159
  %v308 = vunpack.c.l.b16 %v160
  %v309 = vunpack.c.l.b16 %v161
  %v310 = vunpack.c.l.b16 %v162
  %v311 = vunpack.c.l.b16 %v163
  %v312 = vunpack.c.l.b16 %v164
  %v313 = vunpack.c.l.b16 %v165
  %v314 = vunpack.c.l.b16 %v166
  %v315 = vunpack.c.l.b16 %v167
  %v316 = vunpack.c.l.b16 %v168
  %v317 = vunpack.c.l.b16 %v169
  %v318 = vunpack.c.l.b16 %v170
  %v319 = vunpack.c.l.b16 %v171
  %v320 = vunpack.c.l.b16 %v172
  %v321 = vunpack.c.l.b16 %v173
  %v322 = vunpack.c.l.b16 %v174
  %v323 = vunpack.c.l.b16 %v175
  %v324 = vunpack.c.l.b16 %v176
  %v325 = vunpack.c.l.b16 %v177
  %v326 = vunpack.c.l.b16 %v178
  %v327 = vunpack.c.l.b16 %v179
  %v328 = vunpack.c.l.b16 %v180
  %v329 = vunpack.c.l.b16 %v181
  %v330 = vunpack.c.l.b16 %v182
  %v331 = vunpack.c.l.b16 %v183
  %v332 = vunpack.c.l.b16 %v184
  %v333 = vunpack.c.l.b16 %v185
  %v334 = vunpack.c.l.b16 %v186
  %v335 = vpack.c.b16 %v264, %v263
  %v336 = vpack.c.b16 %v266, %v265
  %v337 = vpack.c.b16 %v268, %v267
  %v338 = vpack.c.b16 %v270, %v269
  %v339 = vpack.c.b16 %v272, %v271
  %v340 = vpack.c.b16 %v274, %v273
  %v341 = vpack.c.b16 %v276, %v275
  %v342 = vpack.c.b16 %v278, %v277
  %v343 = vpack.c.b16 %v280, %v279
  %v344 = vpack.c.b16 %v282, %v281
  %v345 = vpack.c.b16 %v284, %v283
  %v346 = vpack.c.b16 %v286, %v285
  %v347 = vpack.c.b16 %v288, %v287
  %v348 = vpack.c.b16 %v290, %v289
  %v349 = vpack.c.b16 %v292, %v291
  %v350 = vpack.c.b16 %v294, %v293
  %v351 = vpack.c.b16 %v296, %v295
  %v352 = vpack.c.b16 %v298, %v297
  %v353 = vpack.c.b16 %v300, %v299
  %v354 = vpack.c.b16 %v302, %v301
  %v355 = vpack.c.b16 %v304, %v303
  %v356 = vpack.c.b16 %v306, %v305
  %v357 = vpack.c.b16 %v308, %v307
  %v358 = vpack.c.b16 %v310, %v309
  %v359 = vpack.c.b16 %v312, %v311
  %v360 = vpack.c.b16 %v314, %v313
  %v361 = vpack.c.b16 %v316, %v315
  %v362 = vpack.c.b16 %v318, %v317
  %v363 = vpack.c.b16 %v320, %v319
  %v364 = vpack.c.b16 %v322, %v321
  %v365 = vpack.c.b16 %v324, %v323
  %v366 = vpack.c.b16 %v326, %v325
  %v367 = vpack.c.b16 %v328, %v327
  %v368 = vpack.c.b16 %v330, %v329
  %v369 = vpack.c.b16 %v332, %v331
  %v370 = vpack.c.b16 %v334, %v333
  %vm407 = vcmask 523264
  %v409 = vsel %vm407, %v84, 0
  %v412 = vsel %vm407, %v89, 0
  %v415 = vsel %vm407, %v94, 0
  %v418 = vsel %vm407, %v99, 0
  %v421 = vsel %vm407, %v104, 0
  %v424 = vsel %vm407, %v109, 0
  %v427 = vsel %vm407, %v114, 0
  %429 = vmatpush.bf16.msra.mxu0 %v342
  %430 = vmatpush.bf16.msra.mxu0 %v341
  %431 = vmatpush.bf16.msra.mxu0 %v340
  %432 = vmatpush.bf16.msra.mxu0 %v339
  %433 = vmatpush.bf16.msra.mxu0 %v338
  %434 = vmatpush.bf16.msra.mxu0 %v337
  %435 = vmatpush.bf16.msra.mxu0 %v336
  %436 = vmatpush.bf16.msra.mxu0 %v335
  %437 = vmatmul.bf16.gmra.mxu0 %v80
  %v438 = vpop.f32.mrf.mxu0
  %v439 = vadd.f32 %v189, %v438
  %v440 = vpop.f32.mrf.mxu0
  %v441 = vadd.f32 %v189, %v440
  %442 = vmatmul.bf16.gmra.mxu0 %v85
  %v443 = vpop.f32.mrf.mxu0
  %v444 = vadd.f32 %v189, %v443
  %v445 = vpop.f32.mrf.mxu0
  %v446 = vadd.f32 %v189, %v445
  %447 = vmatmul.bf16.gmra.mxu0 %v90
  %v448 = vpop.f32.mrf.mxu0
  %v449 = vadd.f32 %v189, %v448
  %v450 = vpop.f32.mrf.mxu0
  %v451 = vadd.f32 %v189, %v450
  %452 = vmatmul.bf16.gmra.mxu0 %v95
  %v453 = vpop.f32.mrf.mxu0
  %v454 = vadd.f32 %v189, %v453
  %v455 = vpop.f32.mrf.mxu0
  %v456 = vadd.f32 %v189, %v455
  %457 = vmatmul.bf16.gmra.mxu0 %v100
  %v458 = vpop.f32.mrf.mxu0
  %v459 = vadd.f32 %v189, %v458
  %v460 = vpop.f32.mrf.mxu0
  %v461 = vadd.f32 %v189, %v460
  %462 = vmatmul.bf16.gmra.mxu0 %v105
  %v463 = vpop.f32.mrf.mxu0
  %v464 = vadd.f32 %v189, %v463
  %v465 = vpop.f32.mrf.mxu0
  %v466 = vadd.f32 %v189, %v465
  %467 = vmatmul.bf16.gmra.mxu0 %v110
  %v468 = vpop.f32.mrf.mxu0
  %v469 = vadd.f32 %v189, %v468
  %v470 = vpop.f32.mrf.mxu0
  %471 = vdwg.mxu0
  %472 = vmatpush.bf16.msra.mxu0 %v350
  %473 = vmatpush.bf16.msra.mxu0 %v349
  %474 = vmatpush.bf16.msra.mxu0 %v348
  %475 = vmatpush.bf16.msra.mxu0 %v347
  %476 = vmatpush.bf16.msra.mxu0 %v346
  %477 = vmatpush.bf16.msra.mxu0 %v345
  %478 = vmatpush.bf16.msra.mxu0 %v344
  %479 = vmatpush.bf16.msra.mxu0 %v343
  %480 = vmatmul.bf16.gmra.mxu0 %v81
  %v481 = vpop.f32.mrf.mxu0
  %v482 = vadd.f32 %v439, %v481
  %v483 = vpop.f32.mrf.mxu0
  %v484 = vadd.f32 %v441, %v483
  %485 = vmatmul.bf16.gmra.mxu0 %v86
  %v486 = vpop.f32.mrf.mxu0
  %v487 = vadd.f32 %v444, %v486
  %v488 = vpop.f32.mrf.mxu0
  %v489 = vadd.f32 %v446, %v488
  %490 = vmatmul.bf16.gmra.mxu0 %v91
  %v491 = vpop.f32.mrf.mxu0
  %v492 = vadd.f32 %v449, %v491
  %v493 = vpop.f32.mrf.mxu0
  %v494 = vadd.f32 %v451, %v493
  %495 = vmatmul.bf16.gmra.mxu0 %v96
  %v496 = vpop.f32.mrf.mxu0
  %v497 = vadd.f32 %v454, %v496
  %v498 = vpop.f32.mrf.mxu0
  %v499 = vadd.f32 %v456, %v498
  %500 = vmatmul.bf16.gmra.mxu0 %v101
  %v501 = vpop.f32.mrf.mxu0
  %v502 = vadd.f32 %v459, %v501
  %v503 = vpop.f32.mrf.mxu0
  %v504 = vadd.f32 %v461, %v503
  %505 = vmatmul.bf16.gmra.mxu0 %v106
  %v506 = vpop.f32.mrf.mxu0
  %v507 = vadd.f32 %v464, %v506
  %v508 = vpop.f32.mrf.mxu0
  %v509 = vadd.f32 %v466, %v508
  %510 = vmatmul.bf16.gmra.mxu0 %v111
  %v511 = vpop.f32.mrf.mxu0
  %v512 = vadd.f32 %v469, %v511
  %v513 = vpop.f32.mrf.mxu0
  %514 = vdwg.mxu0
  %515 = vmatpush.bf16.msra.mxu0 %v358
  %516 = vmatpush.bf16.msra.mxu0 %v357
  %517 = vmatpush.bf16.msra.mxu0 %v356
  %518 = vmatpush.bf16.msra.mxu0 %v355
  %519 = vmatpush.bf16.msra.mxu0 %v354
  %520 = vmatpush.bf16.msra.mxu0 %v353
  %521 = vmatpush.bf16.msra.mxu0 %v352
  %522 = vmatpush.bf16.msra.mxu0 %v351
  %523 = vmatmul.bf16.gmra.mxu0 %v82
  %v524 = vpop.f32.mrf.mxu0
  %v525 = vadd.f32 %v482, %v524
  %v526 = vpop.f32.mrf.mxu0
  %v527 = vadd.f32 %v484, %v526
  %528 = vmatmul.bf16.gmra.mxu0 %v87
  %v529 = vpop.f32.mrf.mxu0
  %v530 = vadd.f32 %v487, %v529
  %v531 = vpop.f32.mrf.mxu0
  %v532 = vadd.f32 %v489, %v531
  %533 = vmatmul.bf16.gmra.mxu0 %v92
  %v534 = vpop.f32.mrf.mxu0
  %v535 = vadd.f32 %v492, %v534
  %v536 = vpop.f32.mrf.mxu0
  %v537 = vadd.f32 %v494, %v536
  %538 = vmatmul.bf16.gmra.mxu0 %v97
  %v539 = vpop.f32.mrf.mxu0
  %v540 = vadd.f32 %v497, %v539
  %v541 = vpop.f32.mrf.mxu0
  %v542 = vadd.f32 %v499, %v541
  %543 = vmatmul.bf16.gmra.mxu0 %v102
  %v544 = vpop.f32.mrf.mxu0
  %v545 = vadd.f32 %v502, %v544
  %v546 = vpop.f32.mrf.mxu0
  %v547 = vadd.f32 %v504, %v546
  %548 = vmatmul.bf16.gmra.mxu0 %v107
  %v549 = vpop.f32.mrf.mxu0
  %v550 = vadd.f32 %v507, %v549
  %v551 = vpop.f32.mrf.mxu0
  %v552 = vadd.f32 %v509, %v551
  %553 = vmatmul.bf16.gmra.mxu0 %v112
  %v554 = vpop.f32.mrf.mxu0
  %v555 = vadd.f32 %v512, %v554
  %v556 = vpop.f32.mrf.mxu0
  %557 = vdwg.mxu0
  %558 = vmatpush.bf16.msra.mxu0 %v366
  %559 = vmatpush.bf16.msra.mxu0 %v365
  %560 = vmatpush.bf16.msra.mxu0 %v364
  %561 = vmatpush.bf16.msra.mxu0 %v363
  %562 = vmatpush.bf16.msra.mxu0 %v362
  %563 = vmatpush.bf16.msra.mxu0 %v361
  %564 = vmatpush.bf16.msra.mxu0 %v360
  %565 = vmatpush.bf16.msra.mxu0 %v359
  %566 = vmatmul.bf16.gmra.mxu0 %v83
  %v567 = vpop.f32.mrf.mxu0
  %v568 = vadd.f32 %v525, %v567
  %v569 = vpop.f32.mrf.mxu0
  %v570 = vadd.f32 %v527, %v569
  %571 = vmatmul.bf16.gmra.mxu0 %v88
  %v572 = vpop.f32.mrf.mxu0
  %v573 = vadd.f32 %v530, %v572
  %v574 = vpop.f32.mrf.mxu0
  %v575 = vadd.f32 %v532, %v574
  %576 = vmatmul.bf16.gmra.mxu0 %v93
  %v577 = vpop.f32.mrf.mxu0
  %v578 = vadd.f32 %v535, %v577
  %v579 = vpop.f32.mrf.mxu0
  %v580 = vadd.f32 %v537, %v579
  %581 = vmatmul.bf16.gmra.mxu0 %v98
  %v582 = vpop.f32.mrf.mxu0
  %v583 = vadd.f32 %v540, %v582
  %v584 = vpop.f32.mrf.mxu0
  %v585 = vadd.f32 %v542, %v584
  %586 = vmatmul.bf16.gmra.mxu0 %v103
  %v587 = vpop.f32.mrf.mxu0
  %v588 = vadd.f32 %v545, %v587
  %v589 = vpop.f32.mrf.mxu0
  %v590 = vadd.f32 %v547, %v589
  %591 = vmatmul.bf16.gmra.mxu0 %v108
  %v592 = vpop.f32.mrf.mxu0
  %v593 = vadd.f32 %v550, %v592
  %v594 = vpop.f32.mrf.mxu0
  %v595 = vadd.f32 %v552, %v594
  %596 = vmatmul.bf16.gmra.mxu0 %v113
  %v597 = vpop.f32.mrf.mxu0
  %v598 = vadd.f32 %v555, %v597
  %v599 = vpop.f32.mrf.mxu0
  %600 = vdwg.mxu0
  %601 = vmatpush.bf16.msra.mxu0 0
  %602 = vmatpush.bf16.msra.mxu0 0
  %603 = vmatpush.bf16.msra.mxu0 0
  %604 = vmatpush.bf16.msra.mxu0 0
  %605 = vmatpush.bf16.msra.mxu0 %v370
  %606 = vmatpush.bf16.msra.mxu0 %v369
  %607 = vmatpush.bf16.msra.mxu0 %v368
  %608 = vmatpush.bf16.msra.mxu0 %v367
  %609 = vmatmul.bf16.gmra.mxu0 %v409
  %v610 = vpop.f32.mrf.mxu0
  %v611 = vadd.f32 %v568, %v610
  %v612 = vpop.f32.mrf.mxu0
  %v613 = vadd.f32 %v570, %v612
  %614 = vmatmul.bf16.gmra.mxu0 %v412
  %v615 = vpop.f32.mrf.mxu0
  %v616 = vadd.f32 %v573, %v615
  %v617 = vpop.f32.mrf.mxu0
  %v618 = vadd.f32 %v575, %v617
  %619 = vmatmul.bf16.gmra.mxu0 %v415
  %v620 = vpop.f32.mrf.mxu0
  %v621 = vadd.f32 %v578, %v620
  %v622 = vpop.f32.mrf.mxu0
  %v623 = vadd.f32 %v580, %v622
  %624 = vmatmul.bf16.gmra.mxu0 %v418
  %v625 = vpop.f32.mrf.mxu0
  %v626 = vadd.f32 %v583, %v625
  %v627 = vpop.f32.mrf.mxu0
  %v628 = vadd.f32 %v585, %v627
  %629 = vmatmul.bf16.gmra.mxu0 %v421
  %v630 = vpop.f32.mrf.mxu0
  %v631 = vadd.f32 %v588, %v630
  %v632 = vpop.f32.mrf.mxu0
  %v633 = vadd.f32 %v590, %v632
  %634 = vmatmul.bf16.gmra.mxu0 %v424
  %v635 = vpop.f32.mrf.mxu0
  %v636 = vadd.f32 %v593, %v635
  %v637 = vpop.f32.mrf.mxu0
  %v638 = vadd.f32 %v595, %v637
  %639 = vmatmul.bf16.gmra.mxu0 %v427
  %v640 = vpop.f32.mrf.mxu0
  %v641 = vadd.f32 %v598, %v640
  %v642 = vpop.f32.mrf.mxu0
  %643 = vdwg.mxu0
  %v644 = vmax.f32 %v611, 0.0
  %v645 = vmax.f32 %v613, 0.0
  %v646 = vmax.f32 %v616, 0.0
  %v647 = vmax.f32 %v618, 0.0
  %v648 = vmax.f32 %v621, 0.0
  %v649 = vmax.f32 %v623, 0.0
  %v650 = vmax.f32 %v626, 0.0
  %v651 = vmax.f32 %v628, 0.0
  %v652 = vmax.f32 %v631, 0.0
  %v653 = vmax.f32 %v633, 0.0
  %v654 = vmax.f32 %v636, 0.0
  %v655 = vmax.f32 %v638, 0.0
  %v656 = vmax.f32 %v641, 0.0
  %657 = vst [vmem:[%s3] sm:$0xff] %v644
  %658 = vst [vmem:[%s3 + $0x8] sm:$0xff] %v645
  %659 = vst [vmem:[%s3 + $0x10] sm:$0xff] %v646
  %660 = vst [vmem:[%s3 + $0x18] sm:$0xff] %v647
  %661 = vst [vmem:[%s3 + $0x20] sm:$0xff] %v648
  %662 = vst [vmem:[%s3 + $0x28] sm:$0xff] %v649
  %663 = vst [vmem:[%s3 + $0x30] sm:$0xff] %v650
  %664 = vst [vmem:[%s3 + $0x38] sm:$0xff] %v651
  %665 = vst [vmem:[%s3 + $0x40] sm:$0xff] %v652
  %666 = vst [vmem:[%s3 + $0x48] sm:$0xff] %v653
  %667 = vst [vmem:[%s3 + $0x50] sm:$0xff] %v654
  %668 = vst [vmem:[%s3 + $0x58] sm:$0xff] %v655
  %669 = vst [vmem:[%s3 + $0x60] sm:$0xff] %v656
  // Predicated region
  $region14: #{dqn_forward.6} parent=0 // pred_check
    _
  $region15: #{dqn_forward.6} parent=0 // pred_check_branch
    %671 = sbr.rel (0) target = $region17
  $region16: #{dqn_forward.6} parent=0 // pred_region
    _
  $region17: #{dqn_forward.6} parent=0 // pred_fallthru
    _
  // Predicated region
  $region18: #{dqn_forward.6} parent=0 // pred_check
    _
  $region19: #{dqn_forward.6} parent=0 // pred_check_branch
    %673 = sbr.rel (0) target = $region21
  $region20: #{dqn_forward.6} parent=0 // pred_region
    _
  $region21: #{dqn_forward.6} parent=0 // pred_fallthru
    _

// kernel: dqn_forward.7
$region0: #{dqn_forward.7}
  #allocation0 [shape = 'u32[]', space=smem, size = 0x4, offset = 0x4, fixed_abs, tag = 'smem constant byte address 0x4 - core index']
  #allocation1 [shape = 'u32[72,128]{1,0:T(1,128)}', space=vmem, size = 0x9000, scoped, tag = 'internal scratch']
  %s0 = inlined_call_operand.vmem [shape: f32[8,3136], index: 0, kind: input, shape index: {}]
  %s1 = inlined_call_operand.vmem [shape: bf16[3136,512], index: 1, kind: input, shape index: {}]
  %s2 = inlined_call_operand.vmem [shape: f32[1,512], index: 2, kind: input, shape index: {}]
  %s3 = inlined_call_operand.vmem [shape: bf16[512,128], index: 3, kind: input, shape index: {}]
  %s4 = inlined_call_operand.vmem [shape: f32[1,128], index: 4, kind: input, shape index: {}]
  %s5 = inlined_call_operand.vmem [shape: f32[8,128], index: 5, kind: output, shape index: {}]
  %s6 = sld [smem:[#allocation0]]
  $region30: #{dqn_forward.7} parent=0
    _
  %s8 = ssub.s32 1, %s6
  %s9 = scalar_select 0, %s8, %s6
  // Predicated region
  $region2: #{dqn_forward.7} parent=0 // pred_check
    _
  $region3: #{dqn_forward.7} parent=0 // pred_check_branch
    %11 = sbr.rel (0) target = $region5
  $region4: #{dqn_forward.7} parent=0 // pred_region
    _
  $region5: #{dqn_forward.7} parent=0 // pred_fallthru
    _
  // Predicated region
  $region6: #{dqn_forward.7} parent=0 // pred_check
    _
  $region7: #{dqn_forward.7} parent=0 // pred_check_branch
    %13 = sbr.rel (0) target = $region9
  $region8: #{dqn_forward.7} parent=0 // pred_region
    _
  $region9: #{dqn_forward.7} parent=0 // pred_fallthru
    _
  // Predicated region
  $region10: #{dqn_forward.7} parent=0 // pred_check
    _
  $region11: #{dqn_forward.7} parent=0 // pred_check_branch
    %15 = sbr.rel (0) target = $region13
  $region12: #{dqn_forward.7} parent=0 // pred_region
    _
  $region13: #{dqn_forward.7} parent=0 // pred_fallthru
    _
  // Predicated region
  $region14: #{dqn_forward.7} parent=0 // pred_check
    _
  $region15: #{dqn_forward.7} parent=0 // pred_check_branch
    %17 = sbr.rel (0) target = $region17
  $region16: #{dqn_forward.7} parent=0 // pred_region
    _
  $region17: #{dqn_forward.7} parent=0 // pred_fallthru
    _
  // Predicated region
  $region18: #{dqn_forward.7} parent=0 // pred_check
    _
  $region19: #{dqn_forward.7} parent=0 // pred_check_branch
    %19 = sbr.rel (0) target = $region21
  $region20: #{dqn_forward.7} parent=0 // pred_region
    _
  $region21: #{dqn_forward.7} parent=0 // pred_fallthru
    _
  %v21 = vld [vmem:[%s0] sm:$0xff]
  %v22 = vld [vmem:[%s0 + $0x8] sm:$0xff]
  %v23 = vld [vmem:[%s0 + $0x10] sm:$0xff]
  %v24 = vld [vmem:[%s0 + $0x18] sm:$0xff]
  %v25 = vld [vmem:[%s0 + $0x20] sm:$0xff]
  %v26 = vld [vmem:[%s0 + $0x28] sm:$0xff]
  %v27 = vld [vmem:[%s0 + $0x30] sm:$0xff]
  %v28 = vld [vmem:[%s0 + $0x38] sm:$0xff]
  %v29 = vld [vmem:[%s0 + $0x40] sm:$0xff]
  %v30 = vld [vmem:[%s0 + $0x48] sm:$0xff]
  %v31 = vld [vmem:[%s0 + $0x50] sm:$0xff]
  %v32 = vld [vmem:[%s0 + $0x58] sm:$0xff]
  %v33 = vld [vmem:[%s0 + $0x60] sm:$0xff]
  %v34 = vld [vmem:[%s0 + $0x68] sm:$0xff]
  %v35 = vld [vmem:[%s0 + $0x70] sm:$0xff]
  %v36 = vld [vmem:[%s0 + $0x78] sm:$0xff]
  %v37 = vld [vmem:[%s0 + $0x80] sm:$0xff]
  %v38 = vld [vmem:[%s0 + $0x88] sm:$0xff]
  %v39 = vld [vmem:[%s0 + $0x90] sm:$0xff]
  %v40 = vld [vmem:[%s0 + $0x98] sm:$0xff]
  %v41 = vld [vmem:[%s0 + $0xa0] sm:$0xff]
  %v42 = vld [vmem:[%s0 + $0xa8] sm:$0xff]
  %v43 = vld [vmem:[%s0 + $0xb0] sm:$0xff]
  %v44 = vld [vmem:[%s0 + $0xb8] sm:$0xff]
  %v45 = vld [vmem:[%s0 + $0xc0] sm:$0xff]
  %v46 = vpack.c.bf16 %v21, %v21
  %v47 = vpack.c.bf16 %v22, %v22
  %v48 = vpack.c.bf16 %v23, %v23
  %v49 = vpack.c.bf16 %v24, %v24
  %v50 = vpack.c.bf16 %v25, %v25
  %v51 = vpack.c.bf16 %v26, %v26
  %v52 = vpack.c.bf16 %v27, %v27
  %v53 = vpack.c.bf16 %v28, %v28
  %v54 = vpack.c.bf16 %v29, %v29
  %v55 = vpack.c.bf16 %v30, %v30
  %v56 = vpack.c.bf16 %v31, %v31
  %v57 = vpack.c.bf16 %v32, %v32
  %v58 = vpack.c.bf16 %v33, %v33
  %v59 = vpack.c.bf16 %v34, %v34
  %v60 = vpack.c.bf16 %v35, %v35
  %v61 = vpack.c.bf16 %v36, %v36
  %v62 = vpack.c.bf16 %v37, %v37
  %v63 = vpack.c.bf16 %v38, %v38
  %v64 = vpack.c.bf16 %v39, %v39
  %v65 = vpack.c.bf16 %v40, %v40
  %v66 = vpack.c.bf16 %v41, %v41
  %v67 = vpack.c.bf16 %v42, %v42
  %v68 = vpack.c.bf16 %v43, %v43
  %v69 = vpack.c.bf16 %v44, %v44
  %v70 = vpack.c.bf16 %v45, %v45
  %v71 = vld [vmem:[%s1] sm:$0xff]
  %v72 = vld [vmem:[%s1 + $0x8] sm:$0xff]
  %v73 = vld [vmem:[%s1 + $0x10] sm:$0xff]
  %v74 = vld [vmem:[%s1 + $0x18] sm:$0xff]
  %v75 = vld [vmem:[%s1 + $0x20] sm:$0xff]
  %v76 = vld [vmem:[%s1 + $0x28] sm:$0xff]
  %v77 = vld [vmem:[%s1 + $0x30] sm:$0xff]
  %v78 = vld [vmem:[%s1 + $0x38] sm:$0xff]
  %v79 = vld [vmem:[%s1 + $0x40] sm:$0xff]
  %v80 = vld [vmem:[%s1 + $0x48] sm:$0xff]
  %v81 = vld [vmem:[%s1 + $0x50] sm:$0xff]
  %v82 = vld [vmem:[%s1 + $0x58] sm:$0xff]
  %v83 = vld [vmem:[%s1 + $0x60] sm:$0xff]
  %v84 = vld [vmem:[%s1 + $0x68] sm:$0xff]
  %v85 = vld [vmem:[%s1 + $0x70] sm:$0xff]
  %v86 = vld [vmem:[%s1 + $0x78] sm:$0xff]
  %v87 = vld [vmem:[%s1 + $0x80] sm:$0xff]
  %v88 = vld [vmem:[%s1 + $0x88] sm:$0xff]
  %v89 = vld [vmem:[%s1 + $0x90] sm:$0xff]
  %v90 = vld [vmem:[%s1 + $0x98] sm:$0xff]
  %v91 = vld [vmem:[%s1 + $0xa0] sm:$0xff]
  %v92 = vld [vmem:[%s1 + $0xa8] sm:$0xff]
  %v93 = vld [vmem:[%s1 + $0xb0] sm:$0xff]
  %v94 = vld [vmem:[%s1 + $0xb8] sm:$0xff]
  %v95 = vld [vmem:[%s1 + $0xc0] sm:$0xff]
  %v96 = vld [vmem:[%s1 + $0xc8] sm:$0xff]
  %v97 = vld [vmem:[%s1 + $0xd0] sm:$0xff]
  %v98 = vld [vmem:[%s1 + $0xd8] sm:$0xff]
  %v99 = vld [vmem:[%s1 + $0xe0] sm:$0xff]
  %v100 = vld [vmem:[%s1 + $0xe8] sm:$0xff]
  %v101 = vld [vmem:[%s1 + $0xf0] sm:$0xff]
  %v102 = vld [vmem:[%s1 + $0xf8] sm:$0xff]
  %v103 = vld [vmem:[%s1 + $0x100] sm:$0xff]
  %v104 = vld [vmem:[%s1 + $0x108] sm:$0xff]
  %v105 = vld [vmem:[%s1 + $0x110] sm:$0xff]
  %v106 = vld [vmem:[%s1 + $0x118] sm:$0xff]
  %v107 = vld [vmem:[%s1 + $0x120] sm:$0xff]
  %v108 = vld [vmem:[%s1 + $0x128] sm:$0xff]
  %v109 = vld [vmem:[%s1 + $0x130] sm:$0xff]
  %v110 = vld [vmem:[%s1 + $0x138] sm:$0xff]
  %v111 = vld [vmem:[%s1 + $0x140] sm:$0xff]
  %v112 = vld [vmem:[%s1 + $0x148] sm:$0xff]
  %v113 = vld [vmem:[%s1 + $0x150] sm:$0xff]
  %v114 = vld [vmem:[%s1 + $0x158] sm:$0xff]
  %v115 = vld [vmem:[%s1 + $0x160] sm:$0xff]
  %v116 = vld [vmem:[%s1 + $0x168] sm:$0xff]
  %v117 = vld [vmem:[%s1 + $0x170] sm:$0xff]
  %v118 = vld [vmem:[%s1 + $0x178] sm:$0xff]
  %v119 = vld [vmem:[%s1 + $0x180] sm:$0xff]
  %v120 = vld [vmem:[%s1 + $0x188] sm:$0xff]
  %v121 = vld [vmem:[%s1 + $0x190] sm:$0xff]
  %v122 = vld [vmem:[%s1 + $0x198] sm:$0xff]
  %v123 = vld [vmem:[%s1 + $0x1a0] sm:$0xff]
  %v124 = vld [vmem:[%s1 + $0x1a8] sm:$0xff]
  %v125 = vld [vmem:[%s1 + $0x1b0] sm:$0xff]
  %v126 = vld [vmem:[%s1 + $0x1b8] sm:$0xff]
  %v127 = vld [vmem:[%s1 + $0x1c0] sm:$0xff]
  %v128 = vld [vmem:[%s1 + $0x1c8] sm:$0xff]
  %v129 = vld [vmem:[%s1 + $0x1d0] sm:$0xff]
  %v130 = vld [vmem:[%s1 + $0x1d8] sm:$0xff]
  %v131 = vld [vmem:[%s1 + $0x1e0] sm:$0xff]
  %v132 = vld [vmem:[%s1 + $0x1e8] sm:$0xff]
  %v133 = vld [vmem:[%s1 + $0x1f0] sm:$0xff]
  %v134 = vld [vmem:[%s1 + $0x1f8] sm:$0xff]
  %v135 = vld [vmem:[%s1 + $0x200] sm:$0xff]
  %v136 = vld [vmem:[%s1 + $0x208] sm:$0xff]
  %v137 = vld [vmem:[%s1 + $0x210] sm:$0xff]
  %v138 = vld [vmem:[%s1 + $0x218] sm:$0xff]
  %v139 = vld [vmem:[%s1 + $0x220] sm:$0xff]
  %v140 = vld [vmem:[%s1 + $0x228] sm:$0xff]
  %v141 = vld [vmem:[%s1 + $0x230] sm:$0xff]
  %v142 = vld [vmem:[%s1 + $0x238] sm:$0xff]
  %v143 = vld [vmem:[%s1 + $0x240] sm:$0xff]
  %v144 = vld [vmem:[%s1 + $0x248] sm:$0xff]
  %v145 = vld [vmem:[%s1 + $0x250] sm:$0xff]
  %v146 = vld [vmem:[%s1 + $0x258] sm:$0xff]
  %v147 = vld [vmem:[%s1 + $0x260] sm:$0xff]
  %v148 = vld [vmem:[%s1 + $0x268] sm:$0xff]
  %v149 = vld [vmem:[%s1 + $0x270] sm:$0xff]
  %v150 = vld [vmem:[%s1 + $0x278] sm:$0xff]
  %v151 = vld [vmem:[%s1 + $0x280] sm:$0xff]
  %v152 = vld [vmem:[%s1 + $0x288] sm:$0xff]
  %v153 = vld [vmem:[%s1 + $0x290] sm:$0xff]
  %v154 = vld [vmem:[%s1 + $0x298] sm:$0xff]
  %v155 = vld [vmem:[%s1 + $0x2a0] sm:$0xff]
  %v156 = vld [vmem:[%s1 + $0x2a8] sm:$0xff]
  %v157 = vld [vmem:[%s1 + $0x2b0] sm:$0xff]
  %v158 = vld [vmem:[%s1 + $0x2b8] sm:$0xff]
  %v159 = vld [vmem:[%s1 + $0x2c0] sm:$0xff]
  %v160 = vld [vmem:[%s1 + $0x2c8] sm:$0xff]
  %v161 = vld [vmem:[%s1 + $0x2d0] sm:$0xff]
  %v162 = vld [vmem:[%s1 + $0x2d8] sm:$0xff]
  %v163 = vld [vmem:[%s1 + $0x2e0] sm:$0xff]
  %v164 = vld [vmem:[%s1 + $0x2e8] sm:$0xff]
  %v165 = vld [vmem:[%s1 + $0x2f0] sm:$0xff]
  %v166 = vld [vmem:[%s1 + $0x2f8] sm:$0xff]
  %v167 = vld [vmem:[%s1 + $0x300] sm:$0xff]
  %v168 = vld [vmem:[%s1 + $0x308] sm:$0xff]
  %v169 = vld [vmem:[%s1 + $0x310] sm:$0xff]
  %v170 = vld [vmem:[%s1 + $0x318] sm:$0xff]
  %v171 = vld [vmem:[%s1 + $0x320] sm:$0xff]
  %v172 = vld [vmem:[%s1 + $0x328] sm:$0xff]
  %v173 = vld [vmem:[%s1 + $0x330] sm:$0xff]
  %v174 = vld [vmem:[%s1 + $0x338] sm:$0xff]
  %v175 = vld [vmem:[%s1 + $0x340] sm:$0xff]
  %v176 = vld [vmem:[%s1 + $0x348] sm:$0xff]
  %v177 = vld [vmem:[%s1 + $0x350] sm:$0xff]
  %v178 = vld [vmem:[%s1 + $0x358] sm:$0xff]
  %v179 = vld [vmem:[%s1 + $0x360] sm:$0xff]
  %v180 = vld [vmem:[%s1 + $0x368] sm:$0xff]
  %v181 = vld [vmem:[%s1 + $0x370] sm:$0xff]
  %v182 = vld [vmem:[%s1 + $0x378] sm:$0xff]
  %v183 = vld [vmem:[%s1 + $0x380] sm:$0xff]
  %v184 = vld [vmem:[%s1 + $0x388] sm:$0xff]
  %v185 = vld [vmem:[%s1 + $0x390] sm:$0xff]
  %v186 = vld [vmem:[%s1 + $0x398] sm:$0xff]
  %v187 = vld [vmem:[%s1 + $0x3a0] sm:$0xff]
  %v188 = vld [vmem:[%s1 + $0x3a8] sm:$0xff]
  %v189 = vld [vmem:[%s1 + $0x3b0] sm:$0xff]
  %v190 = vld [vmem:[%s1 + $0x3b8] sm:$0xff]
  %v191 = vld [vmem:[%s1 + $0x3c0] sm:$0xff]
  %v192 = vld [vmem:[%s1 + $0x3c8] sm:$0xff]
  %v193 = vld [vmem:[%s1 + $0x3d0] sm:$0xff]
  %v194 = vld [vmem:[%s1 + $0x3d8] sm:$0xff]
  %v195 = vld [vmem:[%s1 + $0x3e0] sm:$0xff]
  %v196 = vld [vmem:[%s1 + $0x3e8] sm:$0xff]
  %v197 = vld [vmem:[%s1 + $0x3f0] sm:$0xff]
  %v198 = vld [vmem:[%s1 + $0x3f8] sm:$0xff]
  %v199 = vld [vmem:[%s1 + $0x400] sm:$0xff]
  %v200 = vld [vmem:[%s1 + $0x408] sm:$0xff]
  %v201 = vld [vmem:[%s1 + $0x410] sm:$0xff]
  %v202 = vld [vmem:[%s1 + $0x418] sm:$0xff]
  %v203 = vld [vmem:[%s1 + $0x420] sm:$0xff]
  %v204 = vld [vmem:[%s1 + $0x428] sm:$0xff]
  %v205 = vld [vmem:[%s1 + $0x430] sm:$0xff]
  %v206 = vld [vmem:[%s1 + $0x438] sm:$0xff]
  %v207 = vld [vmem:[%s1 + $0x440] sm:$0xff]
  %v208 = vld [vmem:[%s1 + $0x448] sm:$0xff]
  %v209 = vld [vmem:[%s1 + $0x450] sm:$0xff]
  %v210 = vld [vmem:[%s1 + $0x458] sm:$0xff]
  %v211 = vld [vmem:[%s1 + $0x460] sm:$0xff]
  %v212 = vld [vmem:[%s1 + $0x468] sm:$0xff]
  %v213 = vld [vmem:[%s1 + $0x470] sm:$0xff]
  %v214 = vld [vmem:[%s1 + $0x478] sm:$0xff]
  %v215 = vld [vmem:[%s1 + $0x480] sm:$0xff]
  %v216 = vld [vmem:[%s1 + $0x488] sm:$0xff]
  %v217 = vld [vmem:[%s1 + $0x490] sm:$0xff]
  %v218 = vld [vmem:[%s1 + $0x498] sm:$0xff]
  %v219 = vld [vmem:[%s1 + $0x4a0] sm:$0xff]
  %v220 = vld [vmem:[%s1 + $0x4a8] sm:$0xff]
  %v221 = vld [vmem:[%s1 + $0x4b0] sm:$0xff]
  %v222 = vld [vmem:[%s1 + $0x4b8] sm:$0xff]
  %v223 = vld [vmem:[%s1 + $0x4c0] sm:$0xff]
  %v224 = vld [vmem:[%s1 + $0x4c8] sm:$0xff]
  %v225 = vld [vmem:[%s1 + $0x4d0] sm:$0xff]
  %v226 = vld [vmem:[%s1 + $0x4d8] sm:$0xff]
  %v227 = vld [vmem:[%s1 + $0x4e0] sm:$0xff]
  %v228 = vld [vmem:[%s1 + $0x4e8] sm:$0xff]
  %v229 = vld [vmem:[%s1 + $0x4f0] sm:$0xff]
  %v230 = vld [vmem:[%s1 + $0x4f8] sm:$0xff]
  %v231 = vld [vmem:[%s1 + $0x500] sm:$0xff]
  %v232 = vld [vmem:[%s1 + $0x508] sm:$0xff]
  %v233 = vld [vmem:[%s1 + $0x510] sm:$0xff]
  %v234 = vld [vmem:[%s1 + $0x518] sm:$0xff]
  %v235 = vld [vmem:[%s1 + $0x520] sm:$0xff]
  %v236 = vld [vmem:[%s1 + $0x528] sm:$0xff]
  %v237 = vld [vmem:[%s1 + $0x530] sm:$0xff]
  %v238 = vld [vmem:[%s1 + $0x538] sm:$0xff]
  %v239 = vld [vmem:[%s1 + $0x540] sm:$0xff]
  %v240 = vld [vmem:[%s1 + $0x548] sm:$0xff]
  %v241 = vld [vmem:[%s1 + $0x550] sm:$0xff]
  %v242 = vld [vmem:[%s1 + $0x558] sm:$0xff]
  %v243 = vld [vmem:[%s1 + $0x560] sm:$0xff]
  %v244 = vld [vmem:[%s1 + $0x568] sm:$0xff]
  %v245 = vld [vmem:[%s1 + $0x570] sm:$0xff]
  %v246 = vld [vmem:[%s1 + $0x578] sm:$0xff]
  %v247 = vld [vmem:[%s1 + $0x580] sm:$0xff]
  %v248 = vld [vmem:[%s1 + $0x588] sm:$0xff]
  %v249 = vld [vmem:[%s1 + $0x590] sm:$0xff]
  %v250 = vld [vmem:[%s1 + $0x598] sm:$0xff]
  %v251 = vld [vmem:[%s1 + $0x5a0] sm:$0xff]
  %v252 = vld [vmem:[%s1 + $0x5a8] sm:$0xff]
  %v253 = vld [vmem:[%s1 + $0x5b0] sm:$0xff]
  %v254 = vld [vmem:[%s1 + $0x5b8] sm:$0xff]
  %v255 = vld [vmem:[%s1 + $0x5c0] sm:$0xff]
  %v256 = vld [vmem:[%s1 + $0x5c8] sm:$0xff]
  %v257 = vld [vmem:[%s1 + $0x5d0] sm:$0xff]
  %v258 = vld [vmem:[%s1 + $0x5d8] sm:$0xff]
  %v259 = vld [vmem:[%s1 + $0x5e0] sm:$0xff]
  %v260 = vld [vmem:[%s1 + $0x5e8] sm:$0xff]
  %v261 = vld [vmem:[%s1 + $0x5f0] sm:$0xff]
  %v262 = vld [vmem:[%s1 + $0x5f8] sm:$0xff]
  %v263 = vld [vmem:[%s1 + $0x600] sm:$0xff]
  %v264 = vld [vmem:[%s1 + $0x608] sm:$0xff]
  %v265 = vld [vmem:[%s1 + $0x610] sm:$0xff]
  %v266 = vld [vmem:[%s1 + $0x618] sm:$0xff]
  %v267 = vld [vmem:[%s1 + $0x620] sm:$0xff]
  %v268 = vld [vmem:[%s1 + $0x628] sm:$0xff]
  %v269 = vld [vmem:[%s1 + $0x630] sm:$0xff]
  %v270 = vld [vmem:[%s1 + $0x638] sm:$0xff]
  %v271 = vld [vmem:[%s1 + $0x640] sm:$0xff]
  %v272 = vld [vmem:[%s1 + $0x648] sm:$0xff]
  %v273 = vld [vmem:[%s1 + $0x650] sm:$0xff]
  %v274 = vld [vmem:[%s1 + $0x658] sm:$0xff]
  %v275 = vld [vmem:[%s1 + $0x660] sm:$0xff]
  %v276 = vld [vmem:[%s1 + $0x668] sm:$0xff]
  %v277 = vld [vmem:[%s1 + $0x670] sm:$0xff]
  %v278 = vld [vmem:[%s1 + $0x678] sm:$0xff]
  %v279 = vld [vmem:[%s1 + $0x680] sm:$0xff]
  %v280 = vld [vmem:[%s1 + $0x688] sm:$0xff]
  %v281 = vld [vmem:[%s1 + $0x690] sm:$0xff]
  %v282 = vld [vmem:[%s1 + $0x698] sm:$0xff]
  %v283 = vld [vmem:[%s1 + $0x6a0] sm:$0xff]
  %v284 = vld [vmem:[%s1 + $0x6a8] sm:$0xff]
  %v285 = vld [vmem:[%s1 + $0x6b0] sm:$0xff]
  %v286 = vld [vmem:[%s1 + $0x6b8] sm:$0xff]
  %v287 = vld [vmem:[%s1 + $0x6c0] sm:$0xff]
  %v288 = vld [vmem:[%s1 + $0x6c8] sm:$0xff]
  %v289 = vld [vmem:[%s1 + $0x6d0] sm:$0xff]
  %v290 = vld [vmem:[%s1 + $0x6d8] sm:$0xff]
  %v291 = vld [vmem:[%s1 + $0x6e0] sm:$0xff]
  %v292 = vld [vmem:[%s1 + $0x6e8] sm:$0xff]
  %v293 = vld [vmem:[%s1 + $0x6f0] sm:$0xff]
  %v294 = vld [vmem:[%s1 + $0x6f8] sm:$0xff]
  %v295 = vld [vmem:[%s1 + $0x700] sm:$0xff]
  %v296 = vld [vmem:[%s1 + $0x708] sm:$0xff]
  %v297 = vld [vmem:[%s1 + $0x710] sm:$0xff]
  %v298 = vld [vmem:[%s1 + $0x718] sm:$0xff]
  %v299 = vld [vmem:[%s1 + $0x720] sm:$0xff]
  %v300 = vld [vmem:[%s1 + $0x728] sm:$0xff]
  %v301 = vld [vmem:[%s1 + $0x730] sm:$0xff]
  %v302 = vld [vmem:[%s1 + $0x738] sm:$0xff]
  %v303 = vld [vmem:[%s1 + $0x740] sm:$0xff]
  %v304 = vld [vmem:[%s1 + $0x748] sm:$0xff]
  %v305 = vld [vmem:[%s1 + $0x750] sm:$0xff]
  %v306 = vld [vmem:[%s1 + $0x758] sm:$0xff]
  %v307 = vld [vmem:[%s1 + $0x760] sm:$0xff]
  %v308 = vld [vmem:[%s1 + $0x768] sm:$0xff]
  %v309 = vld [vmem:[%s1 + $0x770] sm:$0xff]
  %v310 = vld [vmem:[%s1 + $0x778] sm:$0xff]
  %v311 = vld [vmem:[%s1 + $0x780] sm:$0xff]
  %v312 = vld [vmem:[%s1 + $0x788] sm:$0xff]
  %v313 = vld [vmem:[%s1 + $0x790] sm:$0xff]
  %v314 = vld [vmem:[%s1 + $0x798] sm:$0xff]
  %v315 = vld [vmem:[%s1 + $0x7a0] sm:$0xff]
  %v316 = vld [vmem:[%s1 + $0x7a8] sm:$0xff]
  %v317 = vld [vmem:[%s1 + $0x7b0] sm:$0xff]
  %v318 = vld [vmem:[%s1 + $0x7b8] sm:$0xff]
  %v319 = vld [vmem:[%s1 + $0x7c0] sm:$0xff]
  %v320 = vld [vmem:[%s1 + $0x7c8] sm:$0xff]
  %v321 = vld [vmem:[%s1 + $0x7d0] sm:$0xff]
  %v322 = vld [vmem:[%s1 + $0x7d8] sm:$0xff]
  %v323 = vld [vmem:[%s1 + $0x7e0] sm:$0xff]
  %v324 = vld [vmem:[%s1 + $0x7e8] sm:$0xff]
  %v325 = vld [vmem:[%s1 + $0x7f0] sm:$0xff]
  %v326 = vld [vmem:[%s1 + $0x7f8] sm:$0xff]
  %v327 = vld [vmem:[%s1 + $0x800] sm:$0xff]
  %v328 = vld [vmem:[%s1 + $0x808] sm:$0xff]
  %v329 = vld [vmem:[%s1 + $0x810] sm:$0xff]
  %v330 = vld [vmem:[%s1 + $0x818] sm:$0xff]
  %v331 = vld [vmem:[%s1 + $0x820] sm:$0xff]
  %v332 = vld [vmem:[%s1 + $0x828] sm:$0xff]
  %v333 = vld [vmem:[%s1 + $0x830] sm:$0xff]
  %v334 = vld [vmem:[%s1 + $0x838] sm:$0xff]
  %v335 = vld [vmem:[%s1 + $0x840] sm:$0xff]
  %v336 = vld [vmem:[%s1 + $0x848] sm:$0xff]
  %v337 = vld [vmem:[%s1 + $0x850] sm:$0xff]
  %v338 = vld [vmem:[%s1 + $0x858] sm:$0xff]
  %v339 = vld [vmem:[%s1 + $0x860] sm:$0xff]
  %v340 = vld [vmem:[%s1 + $0x868] sm:$0xff]
  %v341 = vld [vmem:[%s1 + $0x870] sm:$0xff]
  %v342 = vld [vmem:[%s1 + $0x878] sm:$0xff]
  %v343 = vld [vmem:[%s1 + $0x880] sm:$0xff]
  %v344 = vld [vmem:[%s1 + $0x888] sm:$0xff]
  %v345 = vld [vmem:[%s1 + $0x890] sm:$0xff]
  %v346 = vld [vmem:[%s1 + $0x898] sm:$0xff]
  %v347 = vld [vmem:[%s1 + $0x8a0] sm:$0xff]
  %v348 = vld [vmem:[%s1 + $0x8a8] sm:$0xff]
  %v349 = vld [vmem:[%s1 + $0x8b0] sm:$0xff]
  %v350 = vld [vmem:[%s1 + $0x8b8] sm:$0xff]
  %v351 = vld [vmem:[%s1 + $0x8c0] sm:$0xff]
  %v352 = vld [vmem:[%s1 + $0x8c8] sm:$0xff]
  %v353 = vld [vmem:[%s1 + $0x8d0] sm:$0xff]
  %v354 = vld [vmem:[%s1 + $0x8d8] sm:$0xff]
  %v355 = vld [vmem:[%s1 + $0x8e0] sm:$0xff]
  %v356 = vld [vmem:[%s1 + $0x8e8] sm:$0xff]
  %v357 = vld [vmem:[%s1 + $0x8f0] sm:$0xff]
  %v358 = vld [vmem:[%s1 + $0x8f8] sm:$0xff]
  %v359 = vld [vmem:[%s1 + $0x900] sm:$0xff]
  %v360 = vld [vmem:[%s1 + $0x908] sm:$0xff]
  %v361 = vld [vmem:[%s1 + $0x910] sm:$0xff]
  %v362 = vld [vmem:[%s1 + $0x918] sm:$0xff]
  %v363 = vld [vmem:[%s1 + $0x920] sm:$0xff]
  %v364 = vld [vmem:[%s1 + $0x928] sm:$0xff]
  %v365 = vld [vmem:[%s1 + $0x930] sm:$0xff]
  %v366 = vld [vmem:[%s1 + $0x938] sm:$0xff]
  %v367 = vld [vmem:[%s1 + $0x940] sm:$0xff]
  %v368 = vld [vmem:[%s1 + $0x948] sm:$0xff]
  %v369 = vld [vmem:[%s1 + $0x950] sm:$0xff]
  %v370 = vld [vmem:[%s1 + $0x958] sm:$0xff]
  %v371 = vld [vmem:[%s1 + $0x960] sm:$0xff]
  %v372 = vld [vmem:[%s1 + $0x968] sm:$0xff]
  %v373 = vld [vmem:[%s1 + $0x970] sm:$0xff]
  %v374 = vld [vmem:[%s1 + $0x978] sm:$0xff]
  %v375 = vld [vmem:[%s1 + $0x980] sm:$0xff]
  %v376 = vld [vmem:[%s1 + $0x988] sm:$0xff]
  %v377 = vld [vmem:[%s1 + $0x990] sm:$0xff]
  %v378 = vld [vmem:[%s1 + $0x998] sm:$0xff]
  %v379 = vld [vmem:[%s1 + $0x9a0] sm:$0xff]
  %v380 = vld [vmem:[%s1 + $0x9a8] sm:$0xff]
  %v381 = vld [vmem:[%s1 + $0x9b0] sm:$0xff]
  %v382 = vld [vmem:[%s1 + $0x9b8] sm:$0xff]
  %v383 = vld [vmem:[%s1 + $0x9c0] sm:$0xff]
  %v384 = vld [vmem:[%s1 + $0x9c8] sm:$0xff]
  %v385 = vld [vmem:[%s1 + $0x9d0] sm:$0xff]
  %v386 = vld [vmem:[%s1 + $0x9d8] sm:$0xff]
  %v387 = vld [vmem:[%s1 + $0x9e0] sm:$0xff]
  %v388 = vld [vmem:[%s1 + $0x9e8] sm:$0xff]
  %v389 = vld [vmem:[%s1 + $0x9f0] sm:$0xff]
  %v390 = vld [vmem:[%s1 + $0x9f8] sm:$0xff]
  %v391 = vld [vmem:[%s1 + $0xa00] sm:$0xff]
  %v392 = vld [vmem:[%s1 + $0xa08] sm:$0xff]
  %v393 = vld [vmem:[%s1 + $0xa10] sm:$0xff]
  %v394 = vld [vmem:[%s1 + $0xa18] sm:$0xff]
  %v395 = vld [vmem:[%s1 + $0xa20] sm:$0xff]
  %v396 = vld [vmem:[%s1 + $0xa28] sm:$0xff]
  %v397 = vld [vmem:[%s1 + $0xa30] sm:$0xff]
  %v398 = vld [vmem:[%s1 + $0xa38] sm:$0xff]
  %v399 = vld [vmem:[%s1 + $0xa40] sm:$0xff]
  %v400 = vld [vmem:[%s1 + $0xa48] sm:$0xff]
  %v401 = vld [vmem:[%s1 + $0xa50] sm:$0xff]
  %v402 = vld [vmem:[%s1 + $0xa58] sm:$0xff]
  %v403 = vld [vmem:[%s1 + $0xa60] sm:$0xff]
  %v404 = vld [vmem:[%s1 + $0xa68] sm:$0xff]
  %v405 = vld [vmem:[%s1 + $0xa70] sm:$0xff]
  %v406 = vld [vmem:[%s1 + $0xa78] sm:$0xff]
  %v407 = vld [vmem:[%s1 + $0xa80] sm:$0xff]
  %v408 = vld [vmem:[%s1 + $0xa88] sm:$0xff]
  %v409 = vld [vmem:[%s1 + $0xa90] sm:$0xff]
  %v410 = vld [vmem:[%s1 + $0xa98] sm:$0xff]
  %v411 = vld [vmem:[%s1 + $0xaa0] sm:$0xff]
  %v412 = vld [vmem:[%s1 + $0xaa8] sm:$0xff]
  %v413 = vld [vmem:[%s1 + $0xab0] sm:$0xff]
  %v414 = vld [vmem:[%s1 + $0xab8] sm:$0xff]
  %v415 = vld [vmem:[%s1 + $0xac0] sm:$0xff]
  %v416 = vld [vmem:[%s1 + $0xac8] sm:$0xff]
  %v417 = vld [vmem:[%s1 + $0xad0] sm:$0xff]
  %v418 = vld [vmem:[%s1 + $0xad8] sm:$0xff]
  %v419 = vld [vmem:[%s1 + $0xae0] sm:$0xff]
  %v420 = vld [vmem:[%s1 + $0xae8] sm:$0xff]
  %v421 = vld [vmem:[%s1 + $0xaf0] sm:$0xff]
  %v422 = vld [vmem:[%s1 + $0xaf8] sm:$0xff]
  %v423 = vld [vmem:[%s1 + $0xb00] sm:$0xff]
  %v424 = vld [vmem:[%s1 + $0xb08] sm:$0xff]
  %v425 = vld [vmem:[%s1 + $0xb10] sm:$0xff]
  %v426 = vld [vmem:[%s1 + $0xb18] sm:$0xff]
  %v427 = vld [vmem:[%s1 + $0xb20] sm:$0xff]
  %v428 = vld [vmem:[%s1 + $0xb28] sm:$0xff]
  %v429 = vld [vmem:[%s1 + $0xb30] sm:$0xff]
  %v430 = vld [vmem:[%s1 + $0xb38] sm:$0xff]
  %v431 = vld [vmem:[%s1 + $0xb40] sm:$0xff]
  %v432 = vld [vmem:[%s1 + $0xb48] sm:$0xff]
  %v433 = vld [vmem:[%s1 + $0xb50] sm:$0xff]
  %v434 = vld [vmem:[%s1 + $0xb58] sm:$0xff]
  %v435 = vld [vmem:[%s1 + $0xb60] sm:$0xff]
  %v436 = vld [vmem:[%s1 + $0xb68] sm:$0xff]
  %v437 = vld [vmem:[%s1 + $0xb70] sm:$0xff]
  %v438 = vld [vmem:[%s1 + $0xb78] sm:$0xff]
  %v439 = vld [vmem:[%s1 + $0xb80] sm:$0xff]
  %v440 = vld [vmem:[%s1 + $0xb88] sm:$0xff]
  %v441 = vld [vmem:[%s1 + $0xb90] sm:$0xff]
  %v442 = vld [vmem:[%s1 + $0xb98] sm:$0xff]
  %v443 = vld [vmem:[%s1 + $0xba0] sm:$0xff]
  %v444 = vld [vmem:[%s1 + $0xba8] sm:$0xff]
  %v445 = vld [vmem:[%s1 + $0xbb0] sm:$0xff]
  %v446 = vld [vmem:[%s1 + $0xbb8] sm:$0xff]
  %v447 = vld [vmem:[%s1 + $0xbc0] sm:$0xff]
  %v448 = vld [vmem:[%s1 + $0xbc8] sm:$0xff]
  %v449 = vld [vmem:[%s1 + $0xbd0] sm:$0xff]
  %v450 = vld [vmem:[%s1 + $0xbd8] sm:$0xff]
  %v451 = vld [vmem:[%s1 + $0xbe0] sm:$0xff]
  %v452 = vld [vmem:[%s1 + $0xbe8] sm:$0xff]
  %v453 = vld [vmem:[%s1 + $0xbf0] sm:$0xff]
  %v454 = vld [vmem:[%s1 + $0xbf8] sm:$0xff]
  %v455 = vld [vmem:[%s1 + $0xc00] sm:$0xff]
  %v456 = vld [vmem:[%s1 + $0xc08] sm:$0xff]
  %v457 = vld [vmem:[%s1 + $0xc10] sm:$0xff]
  %v458 = vld [vmem:[%s1 + $0xc18] sm:$0xff]
  %v459 = vld [vmem:[%s1 + $0xc20] sm:$0xff]
  %v460 = vld [vmem:[%s1 + $0xc28] sm:$0xff]
  %v461 = vld [vmem:[%s1 + $0xc30] sm:$0xff]
  %v462 = vld [vmem:[%s1 + $0xc38] sm:$0xff]
  %v463 = vld [vmem:[%s1 + $0xc40] sm:$0xff]
  %v464 = vld [vmem:[%s1 + $0xc48] sm:$0xff]
  %v465 = vld [vmem:[%s1 + $0xc50] sm:$0xff]
  %v466 = vld [vmem:[%s1 + $0xc58] sm:$0xff]
  %v467 = vld [vmem:[%s1 + $0xc60] sm:$0xff]
  %v468 = vld [vmem:[%s1 + $0xc68] sm:$0xff]
  %v469 = vld [vmem:[%s1 + $0xc70] sm:$0xff]
  %v470 = vld [vmem:[%s1 + $0xc78] sm:$0xff]
  %v471 = vld [vmem:[%s1 + $0xc80] sm:$0xff]
  %v472 = vld [vmem:[%s1 + $0xc88] sm:$0xff]
  %v473 = vld [vmem:[%s1 + $0xc90] sm:$0xff]
  %v474 = vld [vmem:[%s1 + $0xc98] sm:$0xff]
  %v475 = vld [vmem:[%s1 + $0xca0] sm:$0xff]
  %v476 = vld [vmem:[%s1 + $0xca8] sm:$0xff]
  %v477 = vld [vmem:[%s1 + $0xcb0] sm:$0xff]
  %v478 = vld [vmem:[%s1 + $0xcb8] sm:$0xff]
  %v479 = vld [vmem:[%s1 + $0xcc0] sm:$0xff]
  %v480 = vld [vmem:[%s1 + $0xcc8] sm:$0xff]
  %v481 = vld [vmem:[%s1 + $0xcd0] sm:$0xff]
  %v482 = vld [vmem:[%s1 + $0xcd8] sm:$0xff]
  %v483 = vld [vmem:[%s1 + $0xce0] sm:$0xff]
  %v484 = vld [vmem:[%s1 + $0xce8] sm:$0xff]
  %v485 = vld [vmem:[%s1 + $0xcf0] sm:$0xff]
  %v486 = vld [vmem:[%s1 + $0xcf8] sm:$0xff]
  %v487 = vld [vmem:[%s1 + $0xd00] sm:$0xff]
  %v488 = vld [vmem:[%s1 + $0xd08] sm:$0xff]
  %v489 = vld [vmem:[%s1 + $0xd10] sm:$0xff]
  %v490 = vld [vmem:[%s1 + $0xd18] sm:$0xff]
  %v491 = vld [vmem:[%s1 + $0xd20] sm:$0xff]
  %v492 = vld [vmem:[%s1 + $0xd28] sm:$0xff]
  %v493 = vld [vmem:[%s1 + $0xd30] sm:$0xff]
  %v494 = vld [vmem:[%s1 + $0xd38] sm:$0xff]
  %v495 = vld [vmem:[%s1 + $0xd40] sm:$0xff]
  %v496 = vld [vmem:[%s1 + $0xd48] sm:$0xff]
  %v497 = vld [vmem:[%s1 + $0xd50] sm:$0xff]
  %v498 = vld [vmem:[%s1 + $0xd58] sm:$0xff]
  %v499 = vld [vmem:[%s1 + $0xd60] sm:$0xff]
  %v500 = vld [vmem:[%s1 + $0xd68] sm:$0xff]
  %v501 = vld [vmem:[%s1 + $0xd70] sm:$0xff]
  %v502 = vld [vmem:[%s1 + $0xd78] sm:$0xff]
  %v503 = vld [vmem:[%s1 + $0xd80] sm:$0xff]
  %v504 = vld [vmem:[%s1 + $0xd88] sm:$0xff]
  %v505 = vld [vmem:[%s1 + $0xd90] sm:$0xff]
  %v506 = vld [vmem:[%s1 + $0xd98] sm:$0xff]
  %v507 = vld [vmem:[%s1 + $0xda0] sm:$0xff]
  %v508 = vld [vmem:[%s1 + $0xda8] sm:$0xff]
  %v509 = vld [vmem:[%s1 + $0xdb0] sm:$0xff]
  %v510 = vld [vmem:[%s1 + $0xdb8] sm:$0xff]
  %v511 = vld [vmem:[%s1 + $0xdc0] sm:$0xff]
  %v512 = vld [vmem:[%s1 + $0xdc8] sm:$0xff]
  %v513 = vld [vmem:[%s1 + $0xdd0] sm:$0xff]
  %v514 = vld [vmem:[%s1 + $0xdd8] sm:$0xff]
  %v515 = vld [vmem:[%s1 + $0xde0] sm:$0xff]
  %v516 = vld [vmem:[%s1 + $0xde8] sm:$0xff]
  %v517 = vld [vmem:[%s1 + $0xdf0] sm:$0xff]
  %v518 = vld [vmem:[%s1 + $0xdf8] sm:$0xff]
  %v519 = vld [vmem:[%s1 + $0xe00] sm:$0xff]
  %v520 = vld [vmem:[%s1 + $0xe08] sm:$0xff]
  %v521 = vld [vmem:[%s1 + $0xe10] sm:$0xff]
  %v522 = vld [vmem:[%s1 + $0xe18] sm:$0xff]
  %v523 = vld [vmem:[%s1 + $0xe20] sm:$0xff]
  %v524 = vld [vmem:[%s1 + $0xe28] sm:$0xff]
  %v525 = vld [vmem:[%s1 + $0xe30] sm:$0xff]
  %v526 = vld [vmem:[%s1 + $0xe38] sm:$0xff]
  %v527 = vld [vmem:[%s1 + $0xe40] sm:$0xff]
  %v528 = vld [vmem:[%s1 + $0xe48] sm:$0xff]
  %v529 = vld [vmem:[%s1 + $0xe50] sm:$0xff]
  %v530 = vld [vmem:[%s1 + $0xe58] sm:$0xff]
  %v531 = vld [vmem:[%s1 + $0xe60] sm:$0xff]
  %v532 = vld [vmem:[%s1 + $0xe68] sm:$0xff]
  %v533 = vld [vmem:[%s1 + $0xe70] sm:$0xff]
  %v534 = vld [vmem:[%s1 + $0xe78] sm:$0xff]
  %v535 = vld [vmem:[%s1 + $0xe80] sm:$0xff]
  %v536 = vld [vmem:[%s1 + $0xe88] sm:$0xff]
  %v537 = vld [vmem:[%s1 + $0xe90] sm:$0xff]
  %v538 = vld [vmem:[%s1 + $0xe98] sm:$0xff]
  %v539 = vld [vmem:[%s1 + $0xea0] sm:$0xff]
  %v540 = vld [vmem:[%s1 + $0xea8] sm:$0xff]
  %v541 = vld [vmem:[%s1 + $0xeb0] sm:$0xff]
  %v542 = vld [vmem:[%s1 + $0xeb8] sm:$0xff]
  %v543 = vld [vmem:[%s1 + $0xec0] sm:$0xff]
  %v544 = vld [vmem:[%s1 + $0xec8] sm:$0xff]
  %v545 = vld [vmem:[%s1 + $0xed0] sm:$0xff]
  %v546 = vld [vmem:[%s1 + $0xed8] sm:$0xff]
  %v547 = vld [vmem:[%s1 + $0xee0] sm:$0xff]
  %v548 = vld [vmem:[%s1 + $0xee8] sm:$0xff]
  %v549 = vld [vmem:[%s1 + $0xef0] sm:$0xff]
  %v550 = vld [vmem:[%s1 + $0xef8] sm:$0xff]
  %v551 = vld [vmem:[%s1 + $0xf00] sm:$0xff]
  %v552 = vld [vmem:[%s1 + $0xf08] sm:$0xff]
  %v553 = vld [vmem:[%s1 + $0xf10] sm:$0xff]
  %v554 = vld [vmem:[%s1 + $0xf18] sm:$0xff]
  %v555 = vld [vmem:[%s1 + $0xf20] sm:$0xff]
  %v556 = vld [vmem:[%s1 + $0xf28] sm:$0xff]
  %v557 = vld [vmem:[%s1 + $0xf30] sm:$0xff]
  %v558 = vld [vmem:[%s1 + $0xf38] sm:$0xff]
  %v559 = vld [vmem:[%s1 + $0xf40] sm:$0xff]
  %v560 = vld [vmem:[%s1 + $0xf48] sm:$0xff]
  %v561 = vld [vmem:[%s1 + $0xf50] sm:$0xff]
  %v562 = vld [vmem:[%s1 + $0xf58] sm:$0xff]
  %v563 = vld [vmem:[%s1 + $0xf60] sm:$0xff]
  %v564 = vld [vmem:[%s1 + $0xf68] sm:$0xff]
  %v565 = vld [vmem:[%s1 + $0xf70] sm:$0xff]
  %v566 = vld [vmem:[%s1 + $0xf78] sm:$0xff]
  %v567 = vld [vmem:[%s1 + $0xf80] sm:$0xff]
  %v568 = vld [vmem:[%s1 + $0xf88] sm:$0xff]
  %v569 = vld [vmem:[%s1 + $0xf90] sm:$0xff]
  %v570 = vld [vmem:[%s1 + $0xf98] sm:$0xff]
  %v571 = vld [vmem:[%s1 + $0xfa0] sm:$0xff]
  %v572 = vld [vmem:[%s1 + $0xfa8] sm:$0xff]
  %v573 = vld [vmem:[%s1 + $0xfb0] sm:$0xff]
  %v574 = vld [vmem:[%s1 + $0xfb8] sm:$0xff]
  %v575 = vld [vmem:[%s1 + $0xfc0] sm:$0xff]
  %v576 = vld [vmem:[%s1 + $0xfc8] sm:$0xff]
  %v577 = vld [vmem:[%s1 + $0xfd0] sm:$0xff]
  %v578 = vld [vmem:[%s1 + $0xfd8] sm:$0xff]
  %v579 = vld [vmem:[%s1 + $0xfe0] sm:$0xff]
  %v580 = vld [vmem:[%s1 + $0xfe8] sm:$0xff]
  %v581 = vld [vmem:[%s1 + $0xff0] sm:$0xff]
  %v582 = vld [vmem:[%s1 + $0xff8] sm:$0xff]
  %v583 = vld [vmem:[%s1 + $0x1000] sm:$0xff]
  %v584 = vld [vmem:[%s1 + $0x1008] sm:$0xff]
  %v585 = vld [vmem:[%s1 + $0x1010] sm:$0xff]
  %v586 = vld [vmem:[%s1 + $0x1018] sm:$0xff]
  %v587 = vld [vmem:[%s1 + $0x1020] sm:$0xff]
  %v588 = vld [vmem:[%s1 + $0x1028] sm:$0xff]
  %v589 = vld [vmem:[%s1 + $0x1030] sm:$0xff]
  %v590 = vld [vmem:[%s1 + $0x1038] sm:$0xff]
  %v591 = vld [vmem:[%s1 + $0x1040] sm:$0xff]
  %v592 = vld [vmem:[%s1 + $0x1048] sm:$0xff]
  %v593 = vld [vmem:[%s1 + $0x1050] sm:$0xff]
  %v594 = vld [vmem:[%s1 + $0x1058] sm:$0xff]
  %v595 = vld [vmem:[%s1 + $0x1060] sm:$0xff]
  %v596 = vld [vmem:[%s1 + $0x1068] sm:$0xff]
  %v597 = vld [vmem:[%s1 + $0x1070] sm:$0xff]
  %v598 = vld [vmem:[%s1 + $0x1078] sm:$0xff]
  %v599 = vld [vmem:[%s1 + $0x1080] sm:$0xff]
  %v600 = vld [vmem:[%s1 + $0x1088] sm:$0xff]
  %v601 = vld [vmem:[%s1 + $0x1090] sm:$0xff]
  %v602 = vld [vmem:[%s1 + $0x1098] sm:$0xff]
  %v603 = vld [vmem:[%s1 + $0x10a0] sm:$0xff]
  %v604 = vld [vmem:[%s1 + $0x10a8] sm:$0xff]
  %v605 = vld [vmem:[%s1 + $0x10b0] sm:$0xff]
  %v606 = vld [vmem:[%s1 + $0x10b8] sm:$0xff]
  %v607 = vld [vmem:[%s1 + $0x10c0] sm:$0xff]
  %v608 = vld [vmem:[%s1 + $0x10c8] sm:$0xff]
  %v609 = vld [vmem:[%s1 + $0x10d0] sm:$0xff]
  %v610 = vld [vmem:[%s1 + $0x10d8] sm:$0xff]
  %v611 = vld [vmem:[%s1 + $0x10e0] sm:$0xff]
  %v612 = vld [vmem:[%s1 + $0x10e8] sm:$0xff]
  %v613 = vld [vmem:[%s1 + $0x10f0] sm:$0xff]
  %v614 = vld [vmem:[%s1 + $0x10f8] sm:$0xff]
  %v615 = vld [vmem:[%s1 + $0x1100] sm:$0xff]
  %v616 = vld [vmem:[%s1 + $0x1108] sm:$0xff]
  %v617 = vld [vmem:[%s1 + $0x1110] sm:$0xff]
  %v618 = vld [vmem:[%s1 + $0x1118] sm:$0xff]
  %v619 = vld [vmem:[%s1 + $0x1120] sm:$0xff]
  %v620 = vld [vmem:[%s1 + $0x1128] sm:$0xff]
  %v621 = vld [vmem:[%s1 + $0x1130] sm:$0xff]
  %v622 = vld [vmem:[%s1 + $0x1138] sm:$0xff]
  %v623 = vld [vmem:[%s1 + $0x1140] sm:$0xff]
  %v624 = vld [vmem:[%s1 + $0x1148] sm:$0xff]
  %v625 = vld [vmem:[%s1 + $0x1150] sm:$0xff]
  %v626 = vld [vmem:[%s1 + $0x1158] sm:$0xff]
  %v627 = vld [vmem:[%s1 + $0x1160] sm:$0xff]
  %v628 = vld [vmem:[%s1 + $0x1168] sm:$0xff]
  %v629 = vld [vmem:[%s1 + $0x1170] sm:$0xff]
  %v630 = vld [vmem:[%s1 + $0x1178] sm:$0xff]
  %v631 = vld [vmem:[%s1 + $0x1180] sm:$0xff]
  %v632 = vld [vmem:[%s1 + $0x1188] sm:$0xff]
  %v633 = vld [vmem:[%s1 + $0x1190] sm:$0xff]
  %v634 = vld [vmem:[%s1 + $0x1198] sm:$0xff]
  %v635 = vld [vmem:[%s1 + $0x11a0] sm:$0xff]
  %v636 = vld [vmem:[%s1 + $0x11a8] sm:$0xff]
  %v637 = vld [vmem:[%s1 + $0x11b0] sm:$0xff]
  %v638 = vld [vmem:[%s1 + $0x11b8] sm:$0xff]
  %v639 = vld [vmem:[%s1 + $0x11c0] sm:$0xff]
  %v640 = vld [vmem:[%s1 + $0x11c8] sm:$0xff]
  %v641 = vld [vmem:[%s1 + $0x11d0] sm:$0xff]
  %v642 = vld [vmem:[%s1 + $0x11d8] sm:$0xff]
  %v643 = vld [vmem:[%s1 + $0x11e0] sm:$0xff]
  %v644 = vld [vmem:[%s1 + $0x11e8] sm:$0xff]
  %v645 = vld [vmem:[%s1 + $0x11f0] sm:$0xff]
  %v646 = vld [vmem:[%s1 + $0x11f8] sm:$0xff]
  %v647 = vld [vmem:[%s1 + $0x1200] sm:$0xff]
  %v648 = vld [vmem:[%s1 + $0x1208] sm:$0xff]
  %v649 = vld [vmem:[%s1 + $0x1210] sm:$0xff]
  %v650 = vld [vmem:[%s1 + $0x1218] sm:$0xff]
  %v651 = vld [vmem:[%s1 + $0x1220] sm:$0xff]
  %v652 = vld [vmem:[%s1 + $0x1228] sm:$0xff]
  %v653 = vld [vmem:[%s1 + $0x1230] sm:$0xff]
  %v654 = vld [vmem:[%s1 + $0x1238] sm:$0xff]
  %v655 = vld [vmem:[%s1 + $0x1240] sm:$0xff]
  %v656 = vld [vmem:[%s1 + $0x1248] sm:$0xff]
  %v657 = vld [vmem:[%s1 + $0x1250] sm:$0xff]
  %v658 = vld [vmem:[%s1 + $0x1258] sm:$0xff]
  %v659 = vld [vmem:[%s1 + $0x1260] sm:$0xff]
  %v660 = vld [vmem:[%s1 + $0x1268] sm:$0xff]
  %v661 = vld [vmem:[%s1 + $0x1270] sm:$0xff]
  %v662 = vld [vmem:[%s1 + $0x1278] sm:$0xff]
  %v663 = vld [vmem:[%s1 + $0x1280] sm:$0xff]
  %v664 = vld [vmem:[%s1 + $0x1288] sm:$0xff]
  %v665 = vld [vmem:[%s1 + $0x1290] sm:$0xff]
  %v666 = vld [vmem:[%s1 + $0x1298] sm:$0xff]
  %v667 = vld [vmem:[%s1 + $0x12a0] sm:$0xff]
  %v668 = vld [vmem:[%s1 + $0x12a8] sm:$0xff]
  %v669 = vld [vmem:[%s1 + $0x12b0] sm:$0xff]
  %v670 = vld [vmem:[%s1 + $0x12b8] sm:$0xff]
  %v671 = vld [vmem:[%s1 + $0x12c0] sm:$0xff]
  %v672 = vld [vmem:[%s1 + $0x12c8] sm:$0xff]
  %v673 = vld [vmem:[%s1 + $0x12d0] sm:$0xff]
  %v674 = vld [vmem:[%s1 + $0x12d8] sm:$0xff]
  %v675 = vld [vmem:[%s1 + $0x12e0] sm:$0xff]
  %v676 = vld [vmem:[%s1 + $0x12e8] sm:$0xff]
  %v677 = vld [vmem:[%s1 + $0x12f0] sm:$0xff]
  %v678 = vld [vmem:[%s1 + $0x12f8] sm:$0xff]
  %v679 = vld [vmem:[%s1 + $0x1300] sm:$0xff]
  %v680 = vld [vmem:[%s1 + $0x1308] sm:$0xff]
  %v681 = vld [vmem:[%s1 + $0x1310] sm:$0xff]
  %v682 = vld [vmem:[%s1 + $0x1318] sm:$0xff]
  %v683 = vld [vmem:[%s1 + $0x1320] sm:$0xff]
  %v684 = vld [vmem:[%s1 + $0x1328] sm:$0xff]
  %v685 = vld [vmem:[%s1 + $0x1330] sm:$0xff]
  %v686 = vld [vmem:[%s1 + $0x1338] sm:$0xff]
  %v687 = vld [vmem:[%s1 + $0x1340] sm:$0xff]
  %v688 = vld [vmem:[%s1 + $0x1348] sm:$0xff]
  %v689 = vld [vmem:[%s1 + $0x1350] sm:$0xff]
  %v690 = vld [vmem:[%s1 + $0x1358] sm:$0xff]
  %v691 = vld [vmem:[%s1 + $0x1360] sm:$0xff]
  %v692 = vld [vmem:[%s1 + $0x1368] sm:$0xff]
  %v693 = vld [vmem:[%s1 + $0x1370] sm:$0xff]
  %v694 = vld [vmem:[%s1 + $0x1378] sm:$0xff]
  %v695 = vld [vmem:[%s1 + $0x1380] sm:$0xff]
  %v696 = vld [vmem:[%s1 + $0x1388] sm:$0xff]
  %v697 = vld [vmem:[%s1 + $0x1390] sm:$0xff]
  %v698 = vld [vmem:[%s1 + $0x1398] sm:$0xff]
  %v699 = vld [vmem:[%s1 + $0x13a0] sm:$0xff]
  %v700 = vld [vmem:[%s1 + $0x13a8] sm:$0xff]
  %v701 = vld [vmem:[%s1 + $0x13b0] sm:$0xff]
  %v702 = vld [vmem:[%s1 + $0x13b8] sm:$0xff]
  %v703 = vld [vmem:[%s1 + $0x13c0] sm:$0xff]
  %v704 = vld [vmem:[%s1 + $0x13c8] sm:$0xff]
  %v705 = vld [vmem:[%s1 + $0x13d0] sm:$0xff]
  %v706 = vld [vmem:[%s1 + $0x13d8] sm:$0xff]
  %v707 = vld [vmem:[%s1 + $0x13e0] sm:$0xff]
  %v708 = vld [vmem:[%s1 + $0x13e8] sm:$0xff]
  %v709 = vld [vmem:[%s1 + $0x13f0] sm:$0xff]
  %v710 = vld [vmem:[%s1 + $0x13f8] sm:$0xff]
  %v711 = vld [vmem:[%s1 + $0x1400] sm:$0xff]
  %v712 = vld [vmem:[%s1 + $0x1408] sm:$0xff]
  %v713 = vld [vmem:[%s1 + $0x1410] sm:$0xff]
  %v714 = vld [vmem:[%s1 + $0x1418] sm:$0xff]
  %v715 = vld [vmem:[%s1 + $0x1420] sm:$0xff]
  %v716 = vld [vmem:[%s1 + $0x1428] sm:$0xff]
  %v717 = vld [vmem:[%s1 + $0x1430] sm:$0xff]
  %v718 = vld [vmem:[%s1 + $0x1438] sm:$0xff]
  %v719 = vld [vmem:[%s1 + $0x1440] sm:$0xff]
  %v720 = vld [vmem:[%s1 + $0x1448] sm:$0xff]
  %v721 = vld [vmem:[%s1 + $0x1450] sm:$0xff]
  %v722 = vld [vmem:[%s1 + $0x1458] sm:$0xff]
  %v723 = vld [vmem:[%s1 + $0x1460] sm:$0xff]
  %v724 = vld [vmem:[%s1 + $0x1468] sm:$0xff]
  %v725 = vld [vmem:[%s1 + $0x1470] sm:$0xff]
  %v726 = vld [vmem:[%s1 + $0x1478] sm:$0xff]
  %v727 = vld [vmem:[%s1 + $0x1480] sm:$0xff]
  %v728 = vld [vmem:[%s1 + $0x1488] sm:$0xff]
  %v729 = vld [vmem:[%s1 + $0x1490] sm:$0xff]
  %v730 = vld [vmem:[%s1 + $0x1498] sm:$0xff]
  %v731 = vld [vmem:[%s1 + $0x14a0] sm:$0xff]
  %v732 = vld [vmem:[%s1 + $0x14a8] sm:$0xff]
  %v733 = vld [vmem:[%s1 + $0x14b0] sm:$0xff]
  %v734 = vld [vmem:[%s1 + $0x14b8] sm:$0xff]
  %v735 = vld [vmem:[%s1 + $0x14c0] sm:$0xff]
  %v736 = vld [vmem:[%s1 + $0x14c8] sm:$0xff]
  %v737 = vld [vmem:[%s1 + $0x14d0] sm:$0xff]
  %v738 = vld [vmem:[%s1 + $0x14d8] sm:$0xff]
  %v739 = vld [vmem:[%s1 + $0x14e0] sm:$0xff]
  %v740 = vld [vmem:[%s1 + $0x14e8] sm:$0xff]
  %v741 = vld [vmem:[%s1 + $0x14f0] sm:$0xff]
  %v742 = vld [vmem:[%s1 + $0x14f8] sm:$0xff]
  %v743 = vld [vmem:[%s1 + $0x1500] sm:$0xff]
  %v744 = vld [vmem:[%s1 + $0x1508] sm:$0xff]
  %v745 = vld [vmem:[%s1 + $0x1510] sm:$0xff]
  %v746 = vld [vmem:[%s1 + $0x1518] sm:$0xff]
  %v747 = vld [vmem:[%s1 + $0x1520] sm:$0xff]
  %v748 = vld [vmem:[%s1 + $0x1528] sm:$0xff]
  %v749 = vld [vmem:[%s1 + $0x1530] sm:$0xff]
  %v750 = vld [vmem:[%s1 + $0x1538] sm:$0xff]
  %v751 = vld [vmem:[%s1 + $0x1540] sm:$0xff]
  %v752 = vld [vmem:[%s1 + $0x1548] sm:$0xff]
  %v753 = vld [vmem:[%s1 + $0x1550] sm:$0xff]
  %v754 = vld [vmem:[%s1 + $0x1558] sm:$0xff]
  %v755 = vld [vmem:[%s1 + $0x1560] sm:$0xff]
  %v756 = vld [vmem:[%s1 + $0x1568] sm:$0xff]
  %v757 = vld [vmem:[%s1 + $0x1570] sm:$0xff]
  %v758 = vld [vmem:[%s1 + $0x1578] sm:$0xff]
  %v759 = vld [vmem:[%s1 + $0x1580] sm:$0xff]
  %v760 = vld [vmem:[%s1 + $0x1588] sm:$0xff]
  %v761 = vld [vmem:[%s1 + $0x1590] sm:$0xff]
  %v762 = vld [vmem:[%s1 + $0x1598] sm:$0xff]
  %v763 = vld [vmem:[%s1 + $0x15a0] sm:$0xff]
  %v764 = vld [vmem:[%s1 + $0x15a8] sm:$0xff]
  %v765 = vld [vmem:[%s1 + $0x15b0] sm:$0xff]
  %v766 = vld [vmem:[%s1 + $0x15b8] sm:$0xff]
  %v767 = vld [vmem:[%s1 + $0x15c0] sm:$0xff]
  %v768 = vld [vmem:[%s1 + $0x15c8] sm:$0xff]
  %v769 = vld [vmem:[%s1 + $0x15d0] sm:$0xff]
  %v770 = vld [vmem:[%s1 + $0x15d8] sm:$0xff]
  %v771 = vld [vmem:[%s1 + $0x15e0] sm:$0xff]
  %v772 = vld [vmem:[%s1 + $0x15e8] sm:$0xff]
  %v773 = vld [vmem:[%s1 + $0x15f0] sm:$0xff]
  %v774 = vld [vmem:[%s1 + $0x15f8] sm:$0xff]
  %v775 = vld [vmem:[%s1 + $0x1600] sm:$0xff]
  %v776 = vld [vmem:[%s1 + $0x1608] sm:$0xff]
  %v777 = vld [vmem:[%s1 + $0x1610] sm:$0xff]
  %v778 = vld [vmem:[%s1 + $0x1618] sm:$0xff]
  %v779 = vld [vmem:[%s1 + $0x1620] sm:$0xff]
  %v780 = vld [vmem:[%s1 + $0x1628] sm:$0xff]
  %v781 = vld [vmem:[%s1 + $0x1630] sm:$0xff]
  %v782 = vld [vmem:[%s1 + $0x1638] sm:$0xff]
  %v783 = vld [vmem:[%s1 + $0x1640] sm:$0xff]
  %v784 = vld [vmem:[%s1 + $0x1648] sm:$0xff]
  %v785 = vld [vmem:[%s1 + $0x1650] sm:$0xff]
  %v786 = vld [vmem:[%s1 + $0x1658] sm:$0xff]
  %v787 = vld [vmem:[%s1 + $0x1660] sm:$0xff]
  %v788 = vld [vmem:[%s1 + $0x1668] sm:$0xff]
  %v789 = vld [vmem:[%s1 + $0x1670] sm:$0xff]
  %v790 = vld [vmem:[%s1 + $0x1678] sm:$0xff]
  %v791 = vld [vmem:[%s1 + $0x1680] sm:$0xff]
  %v792 = vld [vmem:[%s1 + $0x1688] sm:$0xff]
  %v793 = vld [vmem:[%s1 + $0x1690] sm:$0xff]
  %v794 = vld [vmem:[%s1 + $0x1698] sm:$0xff]
  %v795 = vld [vmem:[%s1 + $0x16a0] sm:$0xff]
  %v796 = vld [vmem:[%s1 + $0x16a8] sm:$0xff]
  %v797 = vld [vmem:[%s1 + $0x16b0] sm:$0xff]
  %v798 = vld [vmem:[%s1 + $0x16b8] sm:$0xff]
  %v799 = vld [vmem:[%s1 + $0x16c0] sm:$0xff]
  %v800 = vld [vmem:[%s1 + $0x16c8] sm:$0xff]
  %v801 = vld [vmem:[%s1 + $0x16d0] sm:$0xff]
  %v802 = vld [vmem:[%s1 + $0x16d8] sm:$0xff]
  %v803 = vld [vmem:[%s1 + $0x16e0] sm:$0xff]
  %v804 = vld [vmem:[%s1 + $0x16e8] sm:$0xff]
  %v805 = vld [vmem:[%s1 + $0x16f0] sm:$0xff]
  %v806 = vld [vmem:[%s1 + $0x16f8] sm:$0xff]
  %v807 = vld [vmem:[%s1 + $0x1700] sm:$0xff]
  %v808 = vld [vmem:[%s1 + $0x1708] sm:$0xff]
  %v809 = vld [vmem:[%s1 + $0x1710] sm:$0xff]
  %v810 = vld [vmem:[%s1 + $0x1718] sm:$0xff]
  %v811 = vld [vmem:[%s1 + $0x1720] sm:$0xff]
  %v812 = vld [vmem:[%s1 + $0x1728] sm:$0xff]
  %v813 = vld [vmem:[%s1 + $0x1730] sm:$0xff]
  %v814 = vld [vmem:[%s1 + $0x1738] sm:$0xff]
  %v815 = vld [vmem:[%s1 + $0x1740] sm:$0xff]
  %v816 = vld [vmem:[%s1 + $0x1748] sm:$0xff]
  %v817 = vld [vmem:[%s1 + $0x1750] sm:$0xff]
  %v818 = vld [vmem:[%s1 + $0x1758] sm:$0xff]
  %v819 = vld [vmem:[%s1 + $0x1760] sm:$0xff]
  %v820 = vld [vmem:[%s1 + $0x1768] sm:$0xff]
  %v821 = vld [vmem:[%s1 + $0x1770] sm:$0xff]
  %v822 = vld [vmem:[%s1 + $0x1778] sm:$0xff]
  %v823 = vld [vmem:[%s1 + $0x1780] sm:$0xff]
  %v824 = vld [vmem:[%s1 + $0x1788] sm:$0xff]
  %v825 = vld [vmem:[%s1 + $0x1790] sm:$0xff]
  %v826 = vld [vmem:[%s1 + $0x1798] sm:$0xff]
  %v827 = vld [vmem:[%s1 + $0x17a0] sm:$0xff]
  %v828 = vld [vmem:[%s1 + $0x17a8] sm:$0xff]
  %v829 = vld [vmem:[%s1 + $0x17b0] sm:$0xff]
  %v830 = vld [vmem:[%s1 + $0x17b8] sm:$0xff]
  %v831 = vld [vmem:[%s1 + $0x17c0] sm:$0xff]
  %v832 = vld [vmem:[%s1 + $0x17c8] sm:$0xff]
  %v833 = vld [vmem:[%s1 + $0x17d0] sm:$0xff]
  %v834 = vld [vmem:[%s1 + $0x17d8] sm:$0xff]
  %v835 = vld [vmem:[%s1 + $0x17e0] sm:$0xff]
  %v836 = vld [vmem:[%s1 + $0x17e8] sm:$0xff]
  %v837 = vld [vmem:[%s1 + $0x17f0] sm:$0xff]
  %v838 = vld [vmem:[%s1 + $0x17f8] sm:$0xff]
  %v839 = vld [vmem:[%s1 + $0x1800] sm:$0xff]
  %v840 = vld [vmem:[%s1 + $0x1808] sm:$0xff]
  %v841 = vld [vmem:[%s1 + $0x1810] sm:$0xff]
  %v842 = vld [vmem:[%s1 + $0x1818] sm:$0xff]
  %v843 = vld [vmem:[%s1 + $0x1820] sm:$0xff]
  %v844 = vld [vmem:[%s1 + $0x1828] sm:$0xff]
  %v845 = vld [vmem:[%s1 + $0x1830] sm:$0xff]
  %v846 = vld [vmem:[%s1 + $0x1838] sm:$0xff]
  %v847 = vld [vmem:[%s1 + $0x1840] sm:$0xff]
  %v848 = vld [vmem:[%s1 + $0x1848] sm:$0xff]
  %v849 = vld [vmem:[%s1 + $0x1850] sm:$0xff]
  %v850 = vld [vmem:[%s1 + $0x1858] sm:$0xff]
  %v851 = vld [vmem:[%s1 + $0x1860] sm:$0xff]
  %v852 = vld [vmem:[%s1 + $0x1868] sm:$0xff]
  %v853 = vld [vmem:[%s1 + $0x1870] sm:$0xff]
  %v854 = vld [vmem:[%s1 + $0x1878] sm:$0xff]
  %v855 = vld [vmem:[%s2] sm:$0xf]
  %v857 = vperm.slane %v855, 0
  %v858 = vperm.slane %v855, 1
  %v859 = vperm.slane %v855, 2
  %v860 = vperm.slane %v855, 3
  %v1649 = vunpack.c.l.b16 %v71
  %v1650 = vunpack.c.h.b16 %v71
  %v1651 = vunpack.c.l.b16 %v72
  %v1652 = vunpack.c.h.b16 %v72
  %v1653 = vunpack.c.l.b16 %v73
  %v1654 = vunpack.c.h.b16 %v73
  %v1655 = vunpack.c.l.b16 %v74
  %v1656 = vunpack.c.h.b16 %v74
  %v1657 = vunpack.c.l.b16 %v75
  %v1658 = vunpack.c.h.b16 %v75
  %v1659 = vunpack.c.l.b16 %v76
  %v1660 = vunpack.c.h.b16 %v76
  %v1661 = vunpack.c.l.b16 %v77
  %v1662 = vunpack.c.h.b16 %v77
  %v1663 = vunpack.c.l.b16 %v78
  %v1664 = vunpack.c.h.b16 %v78
  %v1665 = vunpack.c.l.b16 %v79
  %v1666 = vunpack.c.h.b16 %v79
  %v1667 = vunpack.c.l.b16 %v80
  %v1668 = vunpack.c.h.b16 %v80
  %v1669 = vunpack.c.l.b16 %v81
  %v1670 = vunpack.c.h.b16 %v81
  %v1671 = vunpack.c.l.b16 %v82
  %v1672 = vunpack.c.h.b16 %v82
  %v1673 = vunpack.c.l.b16 %v83
  %v1674 = vunpack.c.h.b16 %v83
  %v1675 = vunpack.c.l.b16 %v84
  %v1676 = vunpack.c.h.b16 %v84
  %v1677 = vunpack.c.l.b16 %v85
  %v1678 = vunpack.c.h.b16 %v85
  %v1679 = vunpack.c.l.b16 %v86
  %v1680 = vunpack.c.h.b16 %v86
  %v1681 = vunpack.c.l.b16 %v87
  %v1682 = vunpack.c.h.b16 %v87
  %v1683 = vunpack.c.l.b16 %v88
  %v1684 = vunpack.c.h.b16 %v88
  %v1685 = vunpack.c.l.b16 %v89
  %v1686 = vunpack.c.h.b16 %v89
  %v1687 = vunpack.c.l.b16 %v90
  %v1688 = vunpack.c.h.b16 %v90
  %v1689 = vunpack.c.l.b16 %v91
  %v1690 = vunpack.c.h.b16 %v91
  %v1691 = vunpack.c.l.b16 %v92
  %v1692 = vunpack.c.h.b16 %v92
  %v1693 = vunpack.c.l.b16 %v93
  %v1694 = vunpack.c.h.b16 %v93
  %v1695 = vunpack.c.l.b16 %v94
  %v1696 = vunpack.c.h.b16 %v94
  %v1697 = vunpack.c.l.b16 %v95
  %v1698 = vunpack.c.h.b16 %v95
  %v1699 = vunpack.c.l.b16 %v96
  %v1700 = vunpack.c.h.b16 %v96
  %v1701 = vunpack.c.l.b16 %v97
  %v1702 = vunpack.c.h.b16 %v97
  %v1703 = vunpack.c.l.b16 %v98
  %v1704 = vunpack.c.h.b16 %v98
  %v1705 = vunpack.c.l.b16 %v99
  %v1706 = vunpack.c.h.b16 %v99
  %v1707 = vunpack.c.l.b16 %v100
  %v1708 = vunpack.c.h.b16 %v100
  %v1709 = vunpack.c.l.b16 %v101
  %v1710 = vunpack.c.h.b16 %v101
  %v1711 = vunpack.c.l.b16 %v102
  %v1712 = vunpack.c.h.b16 %v102
  %v1713 = vunpack.c.l.b16 %v103
  %v1714 = vunpack.c.h.b16 %v103
  %v1715 = vunpack.c.l.b16 %v104
  %v1716 = vunpack.c.h.b16 %v104
  %v1717 = vunpack.c.l.b16 %v105
  %v1718 = vunpack.c.h.b16 %v105
  %v1719 = vunpack.c.l.b16 %v106
  %v1720 = vunpack.c.h.b16 %v106
  %v1721 = vunpack.c.l.b16 %v107
  %v1722 = vunpack.c.h.b16 %v107
  %v1723 = vunpack.c.l.b16 %v108
  %v1724 = vunpack.c.h.b16 %v108
  %v1725 = vunpack.c.l.b16 %v109
  %v1726 = vunpack.c.h.b16 %v109
  %v1727 = vunpack.c.l.b16 %v110
  %v1728 = vunpack.c.h.b16 %v110
  %v1729 = vunpack.c.l.b16 %v111
  %v1730 = vunpack.c.h.b16 %v111
  %v1731 = vunpack.c.l.b16 %v112
  %v1732 = vunpack.c.h.b16 %v112
  %v1733 = vunpack.c.l.b16 %v113
  %v1734 = vunpack.c.h.b16 %v113
  %v1735 = vunpack.c.l.b16 %v114
  %v1736 = vunpack.c.h.b16 %v114
  %v1737 = vunpack.c.l.b16 %v115
  %v1738 = vunpack.c.h.b16 %v115
  %v1739 = vunpack.c.l.b16 %v116
  %v1740 = vunpack.c.h.b16 %v116
  %v1741 = vunpack.c.l.b16 %v117
  %v1742 = vunpack.c.h.b16 %v117
  %v1743 = vunpack.c.l.b16 %v118
  %v1744 = vunpack.c.h.b16 %v118
  %v1745 = vunpack.c.l.b16 %v119
  %v1746 = vunpack.c.h.b16 %v119
  %v1747 = vunpack.c.l.b16 %v120
  %v1748 = vunpack.c.h.b16 %v120
  %v1749 = vunpack.c.l.b16 %v121
  %v1750 = vunpack.c.h.b16 %v121
  %v1751 = vunpack.c.l.b16 %v122
  %v1752 = vunpack.c.h.b16 %v122
  %v1753 = vunpack.c.l.b16 %v123
  %v1754 = vunpack.c.h.b16 %v123
  %v1755 = vunpack.c.l.b16 %v124
  %v1756 = vunpack.c.h.b16 %v124
  %v1757 = vunpack.c.l.b16 %v125
  %v1758 = vunpack.c.h.b16 %v125
  %v1759 = vunpack.c.l.b16 %v126
  %v1760 = vunpack.c.h.b16 %v126
  %v1761 = vunpack.c.l.b16 %v127
  %v1762 = vunpack.c.h.b16 %v127
  %v1763 = vunpack.c.l.b16 %v128
  %v1764 = vunpack.c.h.b16 %v128
  %v1765 = vunpack.c.l.b16 %v129
  %v1766 = vunpack.c.h.b16 %v129
  %v1767 = vunpack.c.l.b16 %v130
  %v1768 = vunpack.c.h.b16 %v130
  %v1769 = vunpack.c.l.b16 %v131
  %v1770 = vunpack.c.h.b16 %v131
  %v1771 = vunpack.c.l.b16 %v132
  %v1772 = vunpack.c.h.b16 %v132
  %v1773 = vunpack.c.l.b16 %v133
  %v1774 = vunpack.c.h.b16 %v133
  %v1775 = vunpack.c.l.b16 %v134
  %v1776 = vunpack.c.h.b16 %v134
  %v1777 = vunpack.c.l.b16 %v135
  %v1778 = vunpack.c.h.b16 %v135
  %v1779 = vunpack.c.l.b16 %v136
  %v1780 = vunpack.c.h.b16 %v136
  %v1781 = vunpack.c.l.b16 %v137
  %v1782 = vunpack.c.h.b16 %v137
  %v1783 = vunpack.c.l.b16 %v138
  %v1784 = vunpack.c.h.b16 %v138
  %v1785 = vunpack.c.l.b16 %v139
  %v1786 = vunpack.c.h.b16 %v139
  %v1787 = vunpack.c.l.b16 %v140
  %v1788 = vunpack.c.h.b16 %v140
  %v1789 = vunpack.c.l.b16 %v141
  %v1790 = vunpack.c.h.b16 %v141
  %v1791 = vunpack.c.l.b16 %v142
  %v1792 = vunpack.c.h.b16 %v142
  %v1793 = vunpack.c.l.b16 %v143
  %v1794 = vunpack.c.h.b16 %v143
  %v1795 = vunpack.c.l.b16 %v144
  %v1796 = vunpack.c.h.b16 %v144
  %v1797 = vunpack.c.l.b16 %v145
  %v1798 = vunpack.c.h.b16 %v145
  %v1799 = vunpack.c.l.b16 %v146
  %v1800 = vunpack.c.h.b16 %v146
  %v1801 = vunpack.c.l.b16 %v147
  %v1802 = vunpack.c.h.b16 %v147
  %v1803 = vunpack.c.l.b16 %v148
  %v1804 = vunpack.c.h.b16 %v148
  %v1805 = vunpack.c.l.b16 %v149
  %v1806 = vunpack.c.h.b16 %v149
  %v1807 = vunpack.c.l.b16 %v150
  %v1808 = vunpack.c.h.b16 %v150
  %v1809 = vunpack.c.l.b16 %v151
  %v1810 = vunpack.c.h.b16 %v151
  %v1811 = vunpack.c.l.b16 %v152
  %v1812 = vunpack.c.h.b16 %v152
  %v1813 = vunpack.c.l.b16 %v153
  %v1814 = vunpack.c.h.b16 %v153
  %v1815 = vunpack.c.l.b16 %v154
  %v1816 = vunpack.c.h.b16 %v154
  %v1817 = vunpack.c.l.b16 %v155
  %v1818 = vunpack.c.h.b16 %v155
  %v1819 = vunpack.c.l.b16 %v156
  %v1820 = vunpack.c.h.b16 %v156
  %v1821 = vunpack.c.l.b16 %v157
  %v1822 = vunpack.c.h.b16 %v157
  %v1823 = vunpack.c.l.b16 %v158
  %v1824 = vunpack.c.h.b16 %v158
  %v1825 = vunpack.c.l.b16 %v159
  %v1826 = vunpack.c.h.b16 %v159
  %v1827 = vunpack.c.l.b16 %v160
  %v1828 = vunpack.c.h.b16 %v160
  %v1829 = vunpack.c.l.b16 %v161
  %v1830 = vunpack.c.h.b16 %v161
  %v1831 = vunpack.c.l.b16 %v162
  %v1832 = vunpack.c.h.b16 %v162
  %v1833 = vunpack.c.l.b16 %v163
  %v1834 = vunpack.c.h.b16 %v163
  %v1835 = vunpack.c.l.b16 %v164
  %v1836 = vunpack.c.h.b16 %v164
  %v1837 = vunpack.c.l.b16 %v165
  %v1838 = vunpack.c.h.b16 %v165
  %v1839 = vunpack.c.l.b16 %v166
  %v1840 = vunpack.c.h.b16 %v166
  %v1841 = vunpack.c.l.b16 %v167
  %v1842 = vunpack.c.h.b16 %v167
  %v1843 = vunpack.c.l.b16 %v168
  %v1844 = vunpack.c.h.b16 %v168
  %v1845 = vunpack.c.l.b16 %v169
  %v1846 = vunpack.c.h.b16 %v169
  %v1847 = vunpack.c.l.b16 %v170
  %v1848 = vunpack.c.h.b16 %v170
  %v1849 = vunpack.c.l.b16 %v171
  %v1850 = vunpack.c.h.b16 %v171
  %v1851 = vunpack.c.l.b16 %v172
  %v1852 = vunpack.c.h.b16 %v172
  %v1853 = vunpack.c.l.b16 %v173
  %v1854 = vunpack.c.h.b16 %v173
  %v1855 = vunpack.c.l.b16 %v174
  %v1856 = vunpack.c.h.b16 %v174
  %v1857 = vunpack.c.l.b16 %v175
  %v1858 = vunpack.c.h.b16 %v175
  %v1859 = vunpack.c.l.b16 %v176
  %v1860 = vunpack.c.h.b16 %v176
  %v1861 = vunpack.c.l.b16 %v177
  %v1862 = vunpack.c.h.b16 %v177
  %v1863 = vunpack.c.l.b16 %v178
  %v1864 = vunpack.c.h.b16 %v178
  %v1865 = vunpack.c.l.b16 %v179
  %v1866 = vunpack.c.h.b16 %v179
  %v1867 = vunpack.c.l.b16 %v180
  %v1868 = vunpack.c.h.b16 %v180
  %v1869 = vunpack.c.l.b16 %v181
  %v1870 = vunpack.c.h.b16 %v181
  %v1871 = vunpack.c.l.b16 %v182
  %v1872 = vunpack.c.h.b16 %v182
  %v1873 = vunpack.c.l.b16 %v183
  %v1874 = vunpack.c.h.b16 %v183
  %v1875 = vunpack.c.l.b16 %v184
  %v1876 = vunpack.c.h.b16 %v184
  %v1877 = vunpack.c.l.b16 %v185
  %v1878 = vunpack.c.h.b16 %v185
  %v1879 = vunpack.c.l.b16 %v186
  %v1880 = vunpack.c.h.b16 %v186
  %v1881 = vunpack.c.l.b16 %v187
  %v1882 = vunpack.c.h.b16 %v187
  %v1883 = vunpack.c.l.b16 %v188
  %v1884 = vunpack.c.h.b16 %v188
  %v1885 = vunpack.c.l.b16 %v189
  %v1886 = vunpack.c.h.b16 %v189
  %v1887 = vunpack.c.l.b16 %v190
  %v1888 = vunpack.c.h.b16 %v190
  %v1889 = vunpack.c.l.b16 %v191
  %v1890 = vunpack.c.h.b16 %v191
  %v1891 = vunpack.c.l.b16 %v192
  %v1892 = vunpack.c.h.b16 %v192
  %v1893 = vunpack.c.l.b16 %v193
  %v1894 = vunpack.c.h.b16 %v193
  %v1895 = vunpack.c.l.b16 %v194
  %v1896 = vunpack.c.h.b16 %v194
  %v1897 = vunpack.c.l.b16 %v195
  %v1898 = vunpack.c.h.b16 %v195
  %v1899 = vunpack.c.l.b16 %v196
  %v1900 = vunpack.c.h.b16 %v196
  %v1901 = vunpack.c.l.b16 %v197
  %v1902 = vunpack.c.h.b16 %v197
  %v1903 = vunpack.c.l.b16 %v198
  %v1904 = vunpack.c.h.b16 %v198
  %v1905 = vunpack.c.l.b16 %v199
  %v1906 = vunpack.c.h.b16 %v199
  %v1907 = vunpack.c.l.b16 %v200
  %v1908 = vunpack.c.h.b16 %v200
  %v1909 = vunpack.c.l.b16 %v201
  %v1910 = vunpack.c.h.b16 %v201
  %v1911 = vunpack.c.l.b16 %v202
  %v1912 = vunpack.c.h.b16 %v202
  %v1913 = vunpack.c.l.b16 %v203
  %v1914 = vunpack.c.h.b16 %v203
  %v1915 = vunpack.c.l.b16 %v204
  %v1916 = vunpack.c.h.b16 %v204
  %v1917 = vunpack.c.l.b16 %v205
  %v1918 = vunpack.c.h.b16 %v205
  %v1919 = vunpack.c.l.b16 %v206
  %v1920 = vunpack.c.h.b16 %v206
  %v1921 = vunpack.c.l.b16 %v207
  %v1922 = vunpack.c.h.b16 %v207
  %v1923 = vunpack.c.l.b16 %v208
  %v1924 = vunpack.c.h.b16 %v208
  %v1925 = vunpack.c.l.b16 %v209
  %v1926 = vunpack.c.h.b16 %v209
  %v1927 = vunpack.c.l.b16 %v210
  %v1928 = vunpack.c.h.b16 %v210
  %v1929 = vunpack.c.l.b16 %v211
  %v1930 = vunpack.c.h.b16 %v211
  %v1931 = vunpack.c.l.b16 %v212
  %v1932 = vunpack.c.h.b16 %v212
  %v1933 = vunpack.c.l.b16 %v213
  %v1934 = vunpack.c.h.b16 %v213
  %v1935 = vunpack.c.l.b16 %v214
  %v1936 = vunpack.c.h.b16 %v214
  %v1937 = vunpack.c.l.b16 %v215
  %v1938 = vunpack.c.h.b16 %v215
  %v1939 = vunpack.c.l.b16 %v216
  %v1940 = vunpack.c.h.b16 %v216
  %v1941 = vunpack.c.l.b16 %v217
  %v1942 = vunpack.c.h.b16 %v217
  %v1943 = vunpack.c.l.b16 %v218
  %v1944 = vunpack.c.h.b16 %v218
  %v1945 = vunpack.c.l.b16 %v219
  %v1946 = vunpack.c.h.b16 %v219
  %v1947 = vunpack.c.l.b16 %v220
  %v1948 = vunpack.c.h.b16 %v220
  %v1949 = vunpack.c.l.b16 %v221
  %v1950 = vunpack.c.h.b16 %v221
  %v1951 = vunpack.c.l.b16 %v222
  %v1952 = vunpack.c.h.b16 %v222
  %v1953 = vunpack.c.l.b16 %v223
  %v1954 = vunpack.c.h.b16 %v223
  %v1955 = vunpack.c.l.b16 %v224
  %v1956 = vunpack.c.h.b16 %v224
  %v1957 = vunpack.c.l.b16 %v225
  %v1958 = vunpack.c.h.b16 %v225
  %v1959 = vunpack.c.l.b16 %v226
  %v1960 = vunpack.c.h.b16 %v226
  %v1961 = vunpack.c.l.b16 %v227
  %v1962 = vunpack.c.h.b16 %v227
  %v1963 = vunpack.c.l.b16 %v228
  %v1964 = vunpack.c.h.b16 %v228
  %v1965 = vunpack.c.l.b16 %v229
  %v1966 = vunpack.c.h.b16 %v229
  %v1967 = vunpack.c.l.b16 %v230
  %v1968 = vunpack.c.h.b16 %v230
  %v1969 = vunpack.c.l.b16 %v231
  %v1970 = vunpack.c.h.b16 %v231
  %v1971 = vunpack.c.l.b16 %v232
  %v1972 = vunpack.c.h.b16 %v232
  %v1973 = vunpack.c.l.b16 %v233
  %v1974 = vunpack.c.h.b16 %v233
  %v1975 = vunpack.c.l.b16 %v234
  %v1976 = vunpack.c.h.b16 %v234
  %v1977 = vunpack.c.l.b16 %v235
  %v1978 = vunpack.c.h.b16 %v235
  %v1979 = vunpack.c.l.b16 %v236
  %v1980 = vunpack.c.h.b16 %v236
  %v1981 = vunpack.c.l.b16 %v237
  %v1982 = vunpack.c.h.b16 %v237
  %v1983 = vunpack.c.l.b16 %v238
  %v1984 = vunpack.c.h.b16 %v238
  %v1985 = vunpack.c.l.b16 %v239
  %v1986 = vunpack.c.h.b16 %v239
  %v1987 = vunpack.c.l.b16 %v240
  %v1988 = vunpack.c.h.b16 %v240
  %v1989 = vunpack.c.l.b16 %v241
  %v1990 = vunpack.c.h.b16 %v241
  %v1991 = vunpack.c.l.b16 %v242
  %v1992 = vunpack.c.h.b16 %v242
  %v1993 = vunpack.c.l.b16 %v243
  %v1994 = vunpack.c.h.b16 %v243
  %v1995 = vunpack.c.l.b16 %v244
  %v1996 = vunpack.c.h.b16 %v244
  %v1997 = vunpack.c.l.b16 %v245
  %v1998 = vunpack.c.h.b16 %v245
  %v1999 = vunpack.c.l.b16 %v246
  %v2000 = vunpack.c.h.b16 %v246
  %v2001 = vunpack.c.l.b16 %v247
  %v2002 = vunpack.c.h.b16 %v247
  %v2003 = vunpack.c.l.b16 %v248
  %v2004 = vunpack.c.h.b16 %v248
  %v2005 = vunpack.c.l.b16 %v249
  %v2006 = vunpack.c.h.b16 %v249
  %v2007 = vunpack.c.l.b16 %v250
  %v2008 = vunpack.c.h.b16 %v250
  %v2009 = vunpack.c.l.b16 %v251
  %v2010 = vunpack.c.h.b16 %v251
  %v2011 = vunpack.c.l.b16 %v252
  %v2012 = vunpack.c.h.b16 %v252
  %v2013 = vunpack.c.l.b16 %v253
  %v2014 = vunpack.c.h.b16 %v253
  %v2015 = vunpack.c.l.b16 %v254
  %v2016 = vunpack.c.h.b16 %v254
  %v2017 = vunpack.c.l.b16 %v255
  %v2018 = vunpack.c.h.b16 %v255
  %v2019 = vunpack.c.l.b16 %v256
  %v2020 = vunpack.c.h.b16 %v256
  %v2021 = vunpack.c.l.b16 %v257
  %v2022 = vunpack.c.h.b16 %v257
  %v2023 = vunpack.c.l.b16 %v258
  %v2024 = vunpack.c.h.b16 %v258
  %v2025 = vunpack.c.l.b16 %v259
  %v2026 = vunpack.c.h.b16 %v259
  %v2027 = vunpack.c.l.b16 %v260
  %v2028 = vunpack.c.h.b16 %v260
  %v2029 = vunpack.c.l.b16 %v261
  %v2030 = vunpack.c.h.b16 %v261
  %v2031 = vunpack.c.l.b16 %v262
  %v2032 = vunpack.c.h.b16 %v262
  %v2033 = vunpack.c.l.b16 %v263
  %v2034 = vunpack.c.h.b16 %v263
  %v2035 = vunpack.c.l.b16 %v264
  %v2036 = vunpack.c.h.b16 %v264
  %v2037 = vunpack.c.l.b16 %v265
  %v2038 = vunpack.c.h.b16 %v265
  %v2039 = vunpack.c.l.b16 %v266
  %v2040 = vunpack.c.h.b16 %v266
  %v2041 = vunpack.c.l.b16 %v267
  %v2042 = vunpack.c.h.b16 %v267
  %v2043 = vunpack.c.l.b16 %v268
  %v2044 = vunpack.c.h.b16 %v268
  %v2045 = vunpack.c.l.b16 %v269
  %v2046 = vunpack.c.h.b16 %v269
  %v2047 = vunpack.c.l.b16 %v270
  %v2048 = vunpack.c.h.b16 %v270
  %v2049 = vunpack.c.l.b16 %v271
  %v2050 = vunpack.c.h.b16 %v271
  %v2051 = vunpack.c.l.b16 %v272
  %v2052 = vunpack.c.h.b16 %v272
  %v2053 = vunpack.c.l.b16 %v273
  %v2054 = vunpack.c.h.b16 %v273
  %v2055 = vunpack.c.l.b16 %v274
  %v2056 = vunpack.c.h.b16 %v274
  %v2057 = vunpack.c.l.b16 %v275
  %v2058 = vunpack.c.h.b16 %v275
  %v2059 = vunpack.c.l.b16 %v276
  %v2060 = vunpack.c.h.b16 %v276
  %v2061 = vunpack.c.l.b16 %v277
  %v2062 = vunpack.c.h.b16 %v277
  %v2063 = vunpack.c.l.b16 %v278
  %v2064 = vunpack.c.h.b16 %v278
  %v2065 = vunpack.c.l.b16 %v279
  %v2066 = vunpack.c.h.b16 %v279
  %v2067 = vunpack.c.l.b16 %v280
  %v2068 = vunpack.c.h.b16 %v280
  %v2069 = vunpack.c.l.b16 %v281
  %v2070 = vunpack.c.h.b16 %v281
  %v2071 = vunpack.c.l.b16 %v282
  %v2072 = vunpack.c.h.b16 %v282
  %v2073 = vunpack.c.l.b16 %v283
  %v2074 = vunpack.c.h.b16 %v283
  %v2075 = vunpack.c.l.b16 %v284
  %v2076 = vunpack.c.h.b16 %v284
  %v2077 = vunpack.c.l.b16 %v285
  %v2078 = vunpack.c.h.b16 %v285
  %v2079 = vunpack.c.l.b16 %v286
  %v2080 = vunpack.c.h.b16 %v286
  %v2081 = vunpack.c.l.b16 %v287
  %v2082 = vunpack.c.h.b16 %v287
  %v2083 = vunpack.c.l.b16 %v288
  %v2084 = vunpack.c.h.b16 %v288
  %v2085 = vunpack.c.l.b16 %v289
  %v2086 = vunpack.c.h.b16 %v289
  %v2087 = vunpack.c.l.b16 %v290
  %v2088 = vunpack.c.h.b16 %v290
  %v2089 = vunpack.c.l.b16 %v291
  %v2090 = vunpack.c.h.b16 %v291
  %v2091 = vunpack.c.l.b16 %v292
  %v2092 = vunpack.c.h.b16 %v292
  %v2093 = vunpack.c.l.b16 %v293
  %v2094 = vunpack.c.h.b16 %v293
  %v2095 = vunpack.c.l.b16 %v294
  %v2096 = vunpack.c.h.b16 %v294
  %v2097 = vunpack.c.l.b16 %v295
  %v2098 = vunpack.c.h.b16 %v295
  %v2099 = vunpack.c.l.b16 %v296
  %v2100 = vunpack.c.h.b16 %v296
  %v2101 = vunpack.c.l.b16 %v297
  %v2102 = vunpack.c.h.b16 %v297
  %v2103 = vunpack.c.l.b16 %v298
  %v2104 = vunpack.c.h.b16 %v298
  %v2105 = vunpack.c.l.b16 %v299
  %v2106 = vunpack.c.h.b16 %v299
  %v2107 = vunpack.c.l.b16 %v300
  %v2108 = vunpack.c.h.b16 %v300
  %v2109 = vunpack.c.l.b16 %v301
  %v2110 = vunpack.c.h.b16 %v301
  %v2111 = vunpack.c.l.b16 %v302
  %v2112 = vunpack.c.h.b16 %v302
  %v2113 = vunpack.c.l.b16 %v303
  %v2114 = vunpack.c.h.b16 %v303
  %v2115 = vunpack.c.l.b16 %v304
  %v2116 = vunpack.c.h.b16 %v304
  %v2117 = vunpack.c.l.b16 %v305
  %v2118 = vunpack.c.h.b16 %v305
  %v2119 = vunpack.c.l.b16 %v306
  %v2120 = vunpack.c.h.b16 %v306
  %v2121 = vunpack.c.l.b16 %v307
  %v2122 = vunpack.c.h.b16 %v307
  %v2123 = vunpack.c.l.b16 %v308
  %v2124 = vunpack.c.h.b16 %v308
  %v2125 = vunpack.c.l.b16 %v309
  %v2126 = vunpack.c.h.b16 %v309
  %v2127 = vunpack.c.l.b16 %v310
  %v2128 = vunpack.c.h.b16 %v310
  %v2129 = vunpack.c.l.b16 %v311
  %v2130 = vunpack.c.h.b16 %v311
  %v2131 = vunpack.c.l.b16 %v312
  %v2132 = vunpack.c.h.b16 %v312
  %v2133 = vunpack.c.l.b16 %v313
  %v2134 = vunpack.c.h.b16 %v313
  %v2135 = vunpack.c.l.b16 %v314
  %v2136 = vunpack.c.h.b16 %v314
  %v2137 = vunpack.c.l.b16 %v315
  %v2138 = vunpack.c.h.b16 %v315
  %v2139 = vunpack.c.l.b16 %v316
  %v2140 = vunpack.c.h.b16 %v316
  %v2141 = vunpack.c.l.b16 %v317
  %v2142 = vunpack.c.h.b16 %v317
  %v2143 = vunpack.c.l.b16 %v318
  %v2144 = vunpack.c.h.b16 %v318
  %v2145 = vunpack.c.l.b16 %v319
  %v2146 = vunpack.c.h.b16 %v319
  %v2147 = vunpack.c.l.b16 %v320
  %v2148 = vunpack.c.h.b16 %v320
  %v2149 = vunpack.c.l.b16 %v321
  %v2150 = vunpack.c.h.b16 %v321
  %v2151 = vunpack.c.l.b16 %v322
  %v2152 = vunpack.c.h.b16 %v322
  %v2153 = vunpack.c.l.b16 %v323
  %v2154 = vunpack.c.h.b16 %v323
  %v2155 = vunpack.c.l.b16 %v324
  %v2156 = vunpack.c.h.b16 %v324
  %v2157 = vunpack.c.l.b16 %v325
  %v2158 = vunpack.c.h.b16 %v325
  %v2159 = vunpack.c.l.b16 %v326
  %v2160 = vunpack.c.h.b16 %v326
  %v2161 = vunpack.c.l.b16 %v327
  %v2162 = vunpack.c.h.b16 %v327
  %v2163 = vunpack.c.l.b16 %v328
  %v2164 = vunpack.c.h.b16 %v328
  %v2165 = vunpack.c.l.b16 %v329
  %v2166 = vunpack.c.h.b16 %v329
  %v2167 = vunpack.c.l.b16 %v330
  %v2168 = vunpack.c.h.b16 %v330
  %v2169 = vunpack.c.l.b16 %v331
  %v2170 = vunpack.c.h.b16 %v331
  %v2171 = vunpack.c.l.b16 %v332
  %v2172 = vunpack.c.h.b16 %v332
  %v2173 = vunpack.c.l.b16 %v333
  %v2174 = vunpack.c.h.b16 %v333
  %v2175 = vunpack.c.l.b16 %v334
  %v2176 = vunpack.c.h.b16 %v334
  %v2177 = vunpack.c.l.b16 %v335
  %v2178 = vunpack.c.h.b16 %v335
  %v2179 = vunpack.c.l.b16 %v336
  %v2180 = vunpack.c.h.b16 %v336
  %v2181 = vunpack.c.l.b16 %v337
  %v2182 = vunpack.c.h.b16 %v337
  %v2183 = vunpack.c.l.b16 %v338
  %v2184 = vunpack.c.h.b16 %v338
  %v2185 = vunpack.c.l.b16 %v339
  %v2186 = vunpack.c.h.b16 %v339
  %v2187 = vunpack.c.l.b16 %v340
  %v2188 = vunpack.c.h.b16 %v340
  %v2189 = vunpack.c.l.b16 %v341
  %v2190 = vunpack.c.h.b16 %v341
  %v2191 = vunpack.c.l.b16 %v342
  %v2192 = vunpack.c.h.b16 %v342
  %v2193 = vunpack.c.l.b16 %v343
  %v2194 = vunpack.c.h.b16 %v343
  %v2195 = vunpack.c.l.b16 %v344
  %v2196 = vunpack.c.h.b16 %v344
  %v2197 = vunpack.c.l.b16 %v345
  %v2198 = vunpack.c.h.b16 %v345
  %v2199 = vunpack.c.l.b16 %v346
  %v2200 = vunpack.c.h.b16 %v346
  %v2201 = vunpack.c.l.b16 %v347
  %v2202 = vunpack.c.h.b16 %v347
  %v2203 = vunpack.c.l.b16 %v348
  %v2204 = vunpack.c.h.b16 %v348
  %v2205 = vunpack.c.l.b16 %v349
  %v2206 = vunpack.c.h.b16 %v349
  %v2207 = vunpack.c.l.b16 %v350
  %v2208 = vunpack.c.h.b16 %v350
  %v2209 = vunpack.c.l.b16 %v351
  %v2210 = vunpack.c.h.b16 %v351
  %v2211 = vunpack.c.l.b16 %v352
  %v2212 = vunpack.c.h.b16 %v352
  %v2213 = vunpack.c.l.b16 %v353
  %v2214 = vunpack.c.h.b16 %v353
  %v2215 = vunpack.c.l.b16 %v354
  %v2216 = vunpack.c.h.b16 %v354
  %v2217 = vunpack.c.l.b16 %v355
  %v2218 = vunpack.c.h.b16 %v355
  %v2219 = vunpack.c.l.b16 %v356
  %v2220 = vunpack.c.h.b16 %v356
  %v2221 = vunpack.c.l.b16 %v357
  %v2222 = vunpack.c.h.b16 %v357
  %v2223 = vunpack.c.l.b16 %v358
  %v2224 = vunpack.c.h.b16 %v358
  %v2225 = vunpack.c.l.b16 %v359
  %v2226 = vunpack.c.h.b16 %v359
  %v2227 = vunpack.c.l.b16 %v360
  %v2228 = vunpack.c.h.b16 %v360
  %v2229 = vunpack.c.l.b16 %v361
  %v2230 = vunpack.c.h.b16 %v361
  %v2231 = vunpack.c.l.b16 %v362
  %v2232 = vunpack.c.h.b16 %v362
  %v2233 = vunpack.c.l.b16 %v363
  %v2234 = vunpack.c.h.b16 %v363
  %v2235 = vunpack.c.l.b16 %v364
  %v2236 = vunpack.c.h.b16 %v364
  %v2237 = vunpack.c.l.b16 %v365
  %v2238 = vunpack.c.h.b16 %v365
  %v2239 = vunpack.c.l.b16 %v366
  %v2240 = vunpack.c.h.b16 %v366
  %v2241 = vunpack.c.l.b16 %v367
  %v2242 = vunpack.c.h.b16 %v367
  %v2243 = vunpack.c.l.b16 %v368
  %v2244 = vunpack.c.h.b16 %v368
  %v2245 = vunpack.c.l.b16 %v369
  %v2246 = vunpack.c.h.b16 %v369
  %v2247 = vunpack.c.l.b16 %v370
  %v2248 = vunpack.c.h.b16 %v370
  %v2249 = vunpack.c.l.b16 %v371
  %v2250 = vunpack.c.h.b16 %v371
  %v2251 = vunpack.c.l.b16 %v372
  %v2252 = vunpack.c.h.b16 %v372
  %v2253 = vunpack.c.l.b16 %v373
  %v2254 = vunpack.c.h.b16 %v373
  %v2255 = vunpack.c.l.b16 %v374
  %v2256 = vunpack.c.h.b16 %v374
  %v2257 = vunpack.c.l.b16 %v375
  %v2258 = vunpack.c.h.b16 %v375
  %v2259 = vunpack.c.l.b16 %v376
  %v2260 = vunpack.c.h.b16 %v376
  %v2261 = vunpack.c.l.b16 %v377
  %v2262 = vunpack.c.h.b16 %v377
  %v2263 = vunpack.c.l.b16 %v378
  %v2264 = vunpack.c.h.b16 %v378
  %v2265 = vunpack.c.l.b16 %v379
  %v2266 = vunpack.c.h.b16 %v379
  %v2267 = vunpack.c.l.b16 %v380
  %v2268 = vunpack.c.h.b16 %v380
  %v2269 = vunpack.c.l.b16 %v381
  %v2270 = vunpack.c.h.b16 %v381
  %v2271 = vunpack.c.l.b16 %v382
  %v2272 = vunpack.c.h.b16 %v382
  %v2273 = vunpack.c.l.b16 %v383
  %v2274 = vunpack.c.h.b16 %v383
  %v2275 = vunpack.c.l.b16 %v384
  %v2276 = vunpack.c.h.b16 %v384
  %v2277 = vunpack.c.l.b16 %v385
  %v2278 = vunpack.c.h.b16 %v385
  %v2279 = vunpack.c.l.b16 %v386
  %v2280 = vunpack.c.h.b16 %v386
  %v2281 = vunpack.c.l.b16 %v387
  %v2282 = vunpack.c.h.b16 %v387
  %v2283 = vunpack.c.l.b16 %v388
  %v2284 = vunpack.c.h.b16 %v388
  %v2285 = vunpack.c.l.b16 %v389
  %v2286 = vunpack.c.h.b16 %v389
  %v2287 = vunpack.c.l.b16 %v390
  %v2288 = vunpack.c.h.b16 %v390
  %v2289 = vunpack.c.l.b16 %v391
  %v2290 = vunpack.c.h.b16 %v391
  %v2291 = vunpack.c.l.b16 %v392
  %v2292 = vunpack.c.h.b16 %v392
  %v2293 = vunpack.c.l.b16 %v393
  %v2294 = vunpack.c.h.b16 %v393
  %v2295 = vunpack.c.l.b16 %v394
  %v2296 = vunpack.c.h.b16 %v394
  %v2297 = vunpack.c.l.b16 %v395
  %v2298 = vunpack.c.h.b16 %v395
  %v2299 = vunpack.c.l.b16 %v396
  %v2300 = vunpack.c.h.b16 %v396
  %v2301 = vunpack.c.l.b16 %v397
  %v2302 = vunpack.c.h.b16 %v397
  %v2303 = vunpack.c.l.b16 %v398
  %v2304 = vunpack.c.h.b16 %v398
  %v2305 = vunpack.c.l.b16 %v399
  %v2306 = vunpack.c.h.b16 %v399
  %v2307 = vunpack.c.l.b16 %v400
  %v2308 = vunpack.c.h.b16 %v400
  %v2309 = vunpack.c.l.b16 %v401
  %v2310 = vunpack.c.h.b16 %v401
  %v2311 = vunpack.c.l.b16 %v402
  %v2312 = vunpack.c.h.b16 %v402
  %v2313 = vunpack.c.l.b16 %v403
  %v2314 = vunpack.c.h.b16 %v403
  %v2315 = vunpack.c.l.b16 %v404
  %v2316 = vunpack.c.h.b16 %v404
  %v2317 = vunpack.c.l.b16 %v405
  %v2318 = vunpack.c.h.b16 %v405
  %v2319 = vunpack.c.l.b16 %v406
  %v2320 = vunpack.c.h.b16 %v406
  %v2321 = vunpack.c.l.b16 %v407
  %v2322 = vunpack.c.h.b16 %v407
  %v2323 = vunpack.c.l.b16 %v408
  %v2324 = vunpack.c.h.b16 %v408
  %v2325 = vunpack.c.l.b16 %v409
  %v2326 = vunpack.c.h.b16 %v409
  %v2327 = vunpack.c.l.b16 %v410
  %v2328 = vunpack.c.h.b16 %v410
  %v2329 = vunpack.c.l.b16 %v411
  %v2330 = vunpack.c.h.b16 %v411
  %v2331 = vunpack.c.l.b16 %v412
  %v2332 = vunpack.c.h.b16 %v412
  %v2333 = vunpack.c.l.b16 %v413
  %v2334 = vunpack.c.h.b16 %v413
  %v2335 = vunpack.c.l.b16 %v414
  %v2336 = vunpack.c.h.b16 %v414
  %v2337 = vunpack.c.l.b16 %v415
  %v2338 = vunpack.c.h.b16 %v415
  %v2339 = vunpack.c.l.b16 %v416
  %v2340 = vunpack.c.h.b16 %v416
  %v2341 = vunpack.c.l.b16 %v417
  %v2342 = vunpack.c.h.b16 %v417
  %v2343 = vunpack.c.l.b16 %v418
  %v2344 = vunpack.c.h.b16 %v418
  %v2345 = vunpack.c.l.b16 %v419
  %v2346 = vunpack.c.h.b16 %v419
  %v2347 = vunpack.c.l.b16 %v420
  %v2348 = vunpack.c.h.b16 %v420
  %v2349 = vunpack.c.l.b16 %v421
  %v2350 = vunpack.c.h.b16 %v421
  %v2351 = vunpack.c.l.b16 %v422
  %v2352 = vunpack.c.h.b16 %v422
  %v2353 = vunpack.c.l.b16 %v423
  %v2354 = vunpack.c.h.b16 %v423
  %v2355 = vunpack.c.l.b16 %v424
  %v2356 = vunpack.c.h.b16 %v424
  %v2357 = vunpack.c.l.b16 %v425
  %v2358 = vunpack.c.h.b16 %v425
  %v2359 = vunpack.c.l.b16 %v426
  %v2360 = vunpack.c.h.b16 %v426
  %v2361 = vunpack.c.l.b16 %v427
  %v2362 = vunpack.c.h.b16 %v427
  %v2363 = vunpack.c.l.b16 %v428
  %v2364 = vunpack.c.h.b16 %v428
  %v2365 = vunpack.c.l.b16 %v429
  %v2366 = vunpack.c.h.b16 %v429
  %v2367 = vunpack.c.l.b16 %v430
  %v2368 = vunpack.c.h.b16 %v430
  %v2369 = vunpack.c.l.b16 %v431
  %v2370 = vunpack.c.h.b16 %v431
  %v2371 = vunpack.c.l.b16 %v432
  %v2372 = vunpack.c.h.b16 %v432
  %v2373 = vunpack.c.l.b16 %v433
  %v2374 = vunpack.c.h.b16 %v433
  %v2375 = vunpack.c.l.b16 %v434
  %v2376 = vunpack.c.h.b16 %v434
  %v2377 = vunpack.c.l.b16 %v435
  %v2378 = vunpack.c.h.b16 %v435
  %v2379 = vunpack.c.l.b16 %v436
  %v2380 = vunpack.c.h.b16 %v436
  %v2381 = vunpack.c.l.b16 %v437
  %v2382 = vunpack.c.h.b16 %v437
  %v2383 = vunpack.c.l.b16 %v438
  %v2384 = vunpack.c.h.b16 %v438
  %v2385 = vunpack.c.l.b16 %v439
  %v2386 = vunpack.c.h.b16 %v439
  %v2387 = vunpack.c.l.b16 %v440
  %v2388 = vunpack.c.h.b16 %v440
  %v2389 = vunpack.c.l.b16 %v441
  %v2390 = vunpack.c.h.b16 %v441
  %v2391 = vunpack.c.l.b16 %v442
  %v2392 = vunpack.c.h.b16 %v442
  %v2393 = vunpack.c.l.b16 %v443
  %v2394 = vunpack.c.h.b16 %v443
  %v2395 = vunpack.c.l.b16 %v444
  %v2396 = vunpack.c.h.b16 %v444
  %v2397 = vunpack.c.l.b16 %v445
  %v2398 = vunpack.c.h.b16 %v445
  %v2399 = vunpack.c.l.b16 %v446
  %v2400 = vunpack.c.h.b16 %v446
  %v2401 = vunpack.c.l.b16 %v447
  %v2402 = vunpack.c.h.b16 %v447
  %v2403 = vunpack.c.l.b16 %v448
  %v2404 = vunpack.c.h.b16 %v448
  %v2405 = vunpack.c.l.b16 %v449
  %v2406 = vunpack.c.h.b16 %v449
  %v2407 = vunpack.c.l.b16 %v450
  %v2408 = vunpack.c.h.b16 %v450
  %v2409 = vunpack.c.l.b16 %v451
  %v2410 = vunpack.c.h.b16 %v451
  %v2411 = vunpack.c.l.b16 %v452
  %v2412 = vunpack.c.h.b16 %v452
  %v2413 = vunpack.c.l.b16 %v453
  %v2414 = vunpack.c.h.b16 %v453
  %v2415 = vunpack.c.l.b16 %v454
  %v2416 = vunpack.c.h.b16 %v454
  %v2417 = vunpack.c.l.b16 %v455
  %v2418 = vunpack.c.h.b16 %v455
  %v2419 = vunpack.c.l.b16 %v456
  %v2420 = vunpack.c.h.b16 %v456
  %v2421 = vunpack.c.l.b16 %v457
  %v2422 = vunpack.c.h.b16 %v457
  %v2423 = vunpack.c.l.b16 %v458
  %v2424 = vunpack.c.h.b16 %v458
  %v2425 = vunpack.c.l.b16 %v459
  %v2426 = vunpack.c.h.b16 %v459
  %v2427 = vunpack.c.l.b16 %v460
  %v2428 = vunpack.c.h.b16 %v460
  %v2429 = vunpack.c.l.b16 %v461
  %v2430 = vunpack.c.h.b16 %v461
  %v2431 = vunpack.c.l.b16 %v462
  %v2432 = vunpack.c.h.b16 %v462
  %v2433 = vunpack.c.l.b16 %v463
  %v2434 = vunpack.c.h.b16 %v463
  %v2435 = vunpack.c.l.b16 %v464
  %v2436 = vunpack.c.h.b16 %v464
  %v2437 = vunpack.c.l.b16 %v465
  %v2438 = vunpack.c.h.b16 %v465
  %v2439 = vunpack.c.l.b16 %v466
  %v2440 = vunpack.c.h.b16 %v466
  %v2441 = vunpack.c.l.b16 %v467
  %v2442 = vunpack.c.h.b16 %v467
  %v2443 = vunpack.c.l.b16 %v468
  %v2444 = vunpack.c.h.b16 %v468
  %v2445 = vunpack.c.l.b16 %v469
  %v2446 = vunpack.c.h.b16 %v469
  %v2447 = vunpack.c.l.b16 %v470
  %v2448 = vunpack.c.h.b16 %v470
  %v2449 = vunpack.c.l.b16 %v471
  %v2450 = vunpack.c.h.b16 %v471
  %v2451 = vunpack.c.l.b16 %v472
  %v2452 = vunpack.c.h.b16 %v472
  %v2453 = vunpack.c.l.b16 %v473
  %v2454 = vunpack.c.h.b16 %v473
  %v2455 = vunpack.c.l.b16 %v474
  %v2456 = vunpack.c.h.b16 %v474
  %v2457 = vunpack.c.l.b16 %v475
  %v2458 = vunpack.c.h.b16 %v475
  %v2459 = vunpack.c.l.b16 %v476
  %v2460 = vunpack.c.h.b16 %v476
  %v2461 = vunpack.c.l.b16 %v477
  %v2462 = vunpack.c.h.b16 %v477
  %v2463 = vunpack.c.l.b16 %v478
  %v2464 = vunpack.c.h.b16 %v478
  %v2465 = vunpack.c.l.b16 %v479
  %v2466 = vunpack.c.h.b16 %v479
  %v2467 = vunpack.c.l.b16 %v480
  %v2468 = vunpack.c.h.b16 %v480
  %v2469 = vunpack.c.l.b16 %v481
  %v2470 = vunpack.c.h.b16 %v481
  %v2471 = vunpack.c.l.b16 %v482
  %v2472 = vunpack.c.h.b16 %v482
  %v2473 = vunpack.c.l.b16 %v483
  %v2474 = vunpack.c.h.b16 %v483
  %v2475 = vunpack.c.l.b16 %v484
  %v2476 = vunpack.c.h.b16 %v484
  %v2477 = vunpack.c.l.b16 %v485
  %v2478 = vunpack.c.h.b16 %v485
  %v2479 = vunpack.c.l.b16 %v486
  %v2480 = vunpack.c.h.b16 %v486
  %v2481 = vunpack.c.l.b16 %v487
  %v2482 = vunpack.c.h.b16 %v487
  %v2483 = vunpack.c.l.b16 %v488
  %v2484 = vunpack.c.h.b16 %v488
  %v2485 = vunpack.c.l.b16 %v489
  %v2486 = vunpack.c.h.b16 %v489
  %v2487 = vunpack.c.l.b16 %v490
  %v2488 = vunpack.c.h.b16 %v490
  %v2489 = vunpack.c.l.b16 %v491
  %v2490 = vunpack.c.h.b16 %v491
  %v2491 = vunpack.c.l.b16 %v492
  %v2492 = vunpack.c.h.b16 %v492
  %v2493 = vunpack.c.l.b16 %v493
  %v2494 = vunpack.c.h.b16 %v493
  %v2495 = vunpack.c.l.b16 %v494
  %v2496 = vunpack.c.h.b16 %v494
  %v2497 = vunpack.c.l.b16 %v495
  %v2498 = vunpack.c.h.b16 %v495
  %v2499 = vunpack.c.l.b16 %v496
  %v2500 = vunpack.c.h.b16 %v496
  %v2501 = vunpack.c.l.b16 %v497
  %v2502 = vunpack.c.h.b16 %v497
  %v2503 = vunpack.c.l.b16 %v498
  %v2504 = vunpack.c.h.b16 %v498
  %v2505 = vunpack.c.l.b16 %v499
  %v2506 = vunpack.c.h.b16 %v499
  %v2507 = vunpack.c.l.b16 %v500
  %v2508 = vunpack.c.h.b16 %v500
  %v2509 = vunpack.c.l.b16 %v501
  %v2510 = vunpack.c.h.b16 %v501
  %v2511 = vunpack.c.l.b16 %v502
  %v2512 = vunpack.c.h.b16 %v502
  %v2513 = vunpack.c.l.b16 %v503
  %v2514 = vunpack.c.h.b16 %v503
  %v2515 = vunpack.c.l.b16 %v504
  %v2516 = vunpack.c.h.b16 %v504
  %v2517 = vunpack.c.l.b16 %v505
  %v2518 = vunpack.c.h.b16 %v505
  %v2519 = vunpack.c.l.b16 %v506
  %v2520 = vunpack.c.h.b16 %v506
  %v2521 = vunpack.c.l.b16 %v507
  %v2522 = vunpack.c.h.b16 %v507
  %v2523 = vunpack.c.l.b16 %v508
  %v2524 = vunpack.c.h.b16 %v508
  %v2525 = vunpack.c.l.b16 %v509
  %v2526 = vunpack.c.h.b16 %v509
  %v2527 = vunpack.c.l.b16 %v510
  %v2528 = vunpack.c.h.b16 %v510
  %v2529 = vunpack.c.l.b16 %v511
  %v2530 = vunpack.c.h.b16 %v511
  %v2531 = vunpack.c.l.b16 %v512
  %v2532 = vunpack.c.h.b16 %v512
  %v2533 = vunpack.c.l.b16 %v513
  %v2534 = vunpack.c.h.b16 %v513
  %v2535 = vunpack.c.l.b16 %v514
  %v2536 = vunpack.c.h.b16 %v514
  %v2537 = vunpack.c.l.b16 %v515
  %v2538 = vunpack.c.h.b16 %v515
  %v2539 = vunpack.c.l.b16 %v516
  %v2540 = vunpack.c.h.b16 %v516
  %v2541 = vunpack.c.l.b16 %v517
  %v2542 = vunpack.c.h.b16 %v517
  %v2543 = vunpack.c.l.b16 %v518
  %v2544 = vunpack.c.h.b16 %v518
  %v2545 = vunpack.c.l.b16 %v519
  %v2546 = vunpack.c.h.b16 %v519
  %v2547 = vunpack.c.l.b16 %v520
  %v2548 = vunpack.c.h.b16 %v520
  %v2549 = vunpack.c.l.b16 %v521
  %v2550 = vunpack.c.h.b16 %v521
  %v2551 = vunpack.c.l.b16 %v522
  %v2552 = vunpack.c.h.b16 %v522
  %v2553 = vunpack.c.l.b16 %v523
  %v2554 = vunpack.c.h.b16 %v523
  %v2555 = vunpack.c.l.b16 %v524
  %v2556 = vunpack.c.h.b16 %v524
  %v2557 = vunpack.c.l.b16 %v525
  %v2558 = vunpack.c.h.b16 %v525
  %v2559 = vunpack.c.l.b16 %v526
  %v2560 = vunpack.c.h.b16 %v526
  %v2561 = vunpack.c.l.b16 %v527
  %v2562 = vunpack.c.h.b16 %v527
  %v2563 = vunpack.c.l.b16 %v528
  %v2564 = vunpack.c.h.b16 %v528
  %v2565 = vunpack.c.l.b16 %v529
  %v2566 = vunpack.c.h.b16 %v529
  %v2567 = vunpack.c.l.b16 %v530
  %v2568 = vunpack.c.h.b16 %v530
  %v2569 = vunpack.c.l.b16 %v531
  %v2570 = vunpack.c.h.b16 %v531
  %v2571 = vunpack.c.l.b16 %v532
  %v2572 = vunpack.c.h.b16 %v532
  %v2573 = vunpack.c.l.b16 %v533
  %v2574 = vunpack.c.h.b16 %v533
  %v2575 = vunpack.c.l.b16 %v534
  %v2576 = vunpack.c.h.b16 %v534
  %v2577 = vunpack.c.l.b16 %v535
  %v2578 = vunpack.c.h.b16 %v535
  %v2579 = vunpack.c.l.b16 %v536
  %v2580 = vunpack.c.h.b16 %v536
  %v2581 = vunpack.c.l.b16 %v537
  %v2582 = vunpack.c.h.b16 %v537
  %v2583 = vunpack.c.l.b16 %v538
  %v2584 = vunpack.c.h.b16 %v538
  %v2585 = vunpack.c.l.b16 %v539
  %v2586 = vunpack.c.h.b16 %v539
  %v2587 = vunpack.c.l.b16 %v540
  %v2588 = vunpack.c.h.b16 %v540
  %v2589 = vunpack.c.l.b16 %v541
  %v2590 = vunpack.c.h.b16 %v541
  %v2591 = vunpack.c.l.b16 %v542
  %v2592 = vunpack.c.h.b16 %v542
  %v2593 = vunpack.c.l.b16 %v543
  %v2594 = vunpack.c.h.b16 %v543
  %v2595 = vunpack.c.l.b16 %v544
  %v2596 = vunpack.c.h.b16 %v544
  %v2597 = vunpack.c.l.b16 %v545
  %v2598 = vunpack.c.h.b16 %v545
  %v2599 = vunpack.c.l.b16 %v546
  %v2600 = vunpack.c.h.b16 %v546
  %v2601 = vunpack.c.l.b16 %v547
  %v2602 = vunpack.c.h.b16 %v547
  %v2603 = vunpack.c.l.b16 %v548
  %v2604 = vunpack.c.h.b16 %v548
  %v2605 = vunpack.c.l.b16 %v549
  %v2606 = vunpack.c.h.b16 %v549
  %v2607 = vunpack.c.l.b16 %v550
  %v2608 = vunpack.c.h.b16 %v550
  %v2609 = vunpack.c.l.b16 %v551
  %v2610 = vunpack.c.h.b16 %v551
  %v2611 = vunpack.c.l.b16 %v552
  %v2612 = vunpack.c.h.b16 %v552
  %v2613 = vunpack.c.l.b16 %v553
  %v2614 = vunpack.c.h.b16 %v553
  %v2615 = vunpack.c.l.b16 %v554
  %v2616 = vunpack.c.h.b16 %v554
  %v2617 = vunpack.c.l.b16 %v555
  %v2618 = vunpack.c.h.b16 %v555
  %v2619 = vunpack.c.l.b16 %v556
  %v2620 = vunpack.c.h.b16 %v556
  %v2621 = vunpack.c.l.b16 %v557
  %v2622 = vunpack.c.h.b16 %v557
  %v2623 = vunpack.c.l.b16 %v558
  %v2624 = vunpack.c.h.b16 %v558
  %v2625 = vunpack.c.l.b16 %v559
  %v2626 = vunpack.c.h.b16 %v559
  %v2627 = vunpack.c.l.b16 %v560
  %v2628 = vunpack.c.h.b16 %v560
  %v2629 = vunpack.c.l.b16 %v561
  %v2630 = vunpack.c.h.b16 %v561
  %v2631 = vunpack.c.l.b16 %v562
  %v2632 = vunpack.c.h.b16 %v562
  %v2633 = vunpack.c.l.b16 %v563
  %v2634 = vunpack.c.h.b16 %v563
  %v2635 = vunpack.c.l.b16 %v564
  %v2636 = vunpack.c.h.b16 %v564
  %v2637 = vunpack.c.l.b16 %v565
  %v2638 = vunpack.c.h.b16 %v565
  %v2639 = vunpack.c.l.b16 %v566
  %v2640 = vunpack.c.h.b16 %v566
  %v2641 = vunpack.c.l.b16 %v567
  %v2642 = vunpack.c.h.b16 %v567
  %v2643 = vunpack.c.l.b16 %v568
  %v2644 = vunpack.c.h.b16 %v568
  %v2645 = vunpack.c.l.b16 %v569
  %v2646 = vunpack.c.h.b16 %v569
  %v2647 = vunpack.c.l.b16 %v570
  %v2648 = vunpack.c.h.b16 %v570
  %v2649 = vunpack.c.l.b16 %v571
  %v2650 = vunpack.c.h.b16 %v571
  %v2651 = vunpack.c.l.b16 %v572
  %v2652 = vunpack.c.h.b16 %v572
  %v2653 = vunpack.c.l.b16 %v573
  %v2654 = vunpack.c.h.b16 %v573
  %v2655 = vunpack.c.l.b16 %v574
  %v2656 = vunpack.c.h.b16 %v574
  %v2657 = vunpack.c.l.b16 %v575
  %v2658 = vunpack.c.h.b16 %v575
  %v2659 = vunpack.c.l.b16 %v576
  %v2660 = vunpack.c.h.b16 %v576
  %v2661 = vunpack.c.l.b16 %v577
  %v2662 = vunpack.c.h.b16 %v577
  %v2663 = vunpack.c.l.b16 %v578
  %v2664 = vunpack.c.h.b16 %v578
  %v2665 = vunpack.c.l.b16 %v579
  %v2666 = vunpack.c.h.b16 %v579
  %v2667 = vunpack.c.l.b16 %v580
  %v2668 = vunpack.c.h.b16 %v580
  %v2669 = vunpack.c.l.b16 %v581
  %v2670 = vunpack.c.h.b16 %v581
  %v2671 = vunpack.c.l.b16 %v582
  %v2672 = vunpack.c.h.b16 %v582
  %v2673 = vunpack.c.l.b16 %v583
  %v2674 = vunpack.c.h.b16 %v583
  %v2675 = vunpack.c.l.b16 %v584
  %v2676 = vunpack.c.h.b16 %v584
  %v2677 = vunpack.c.l.b16 %v585
  %v2678 = vunpack.c.h.b16 %v585
  %v2679 = vunpack.c.l.b16 %v586
  %v2680 = vunpack.c.h.b16 %v586
  %v2681 = vunpack.c.l.b16 %v587
  %v2682 = vunpack.c.h.b16 %v587
  %v2683 = vunpack.c.l.b16 %v588
  %v2684 = vunpack.c.h.b16 %v588
  %v2685 = vunpack.c.l.b16 %v589
  %v2686 = vunpack.c.h.b16 %v589
  %v2687 = vunpack.c.l.b16 %v590
  %v2688 = vunpack.c.h.b16 %v590
  %v2689 = vunpack.c.l.b16 %v591
  %v2690 = vunpack.c.h.b16 %v591
  %v2691 = vunpack.c.l.b16 %v592
  %v2692 = vunpack.c.h.b16 %v592
  %v2693 = vunpack.c.l.b16 %v593
  %v2694 = vunpack.c.h.b16 %v593
  %v2695 = vunpack.c.l.b16 %v594
  %v2696 = vunpack.c.h.b16 %v594
  %v2697 = vunpack.c.l.b16 %v595
  %v2698 = vunpack.c.h.b16 %v595
  %v2699 = vunpack.c.l.b16 %v596
  %v2700 = vunpack.c.h.b16 %v596
  %v2701 = vunpack.c.l.b16 %v597
  %v2702 = vunpack.c.h.b16 %v597
  %v2703 = vunpack.c.l.b16 %v598
  %v2704 = vunpack.c.h.b16 %v598
  %v2705 = vunpack.c.l.b16 %v599
  %v2706 = vunpack.c.h.b16 %v599
  %v2707 = vunpack.c.l.b16 %v600
  %v2708 = vunpack.c.h.b16 %v600
  %v2709 = vunpack.c.l.b16 %v601
  %v2710 = vunpack.c.h.b16 %v601
  %v2711 = vunpack.c.l.b16 %v602
  %v2712 = vunpack.c.h.b16 %v602
  %v2713 = vunpack.c.l.b16 %v603
  %v2714 = vunpack.c.h.b16 %v603
  %v2715 = vunpack.c.l.b16 %v604
  %v2716 = vunpack.c.h.b16 %v604
  %v2717 = vunpack.c.l.b16 %v605
  %v2718 = vunpack.c.h.b16 %v605
  %v2719 = vunpack.c.l.b16 %v606
  %v2720 = vunpack.c.h.b16 %v606
  %v2721 = vunpack.c.l.b16 %v607
  %v2722 = vunpack.c.h.b16 %v607
  %v2723 = vunpack.c.l.b16 %v608
  %v2724 = vunpack.c.h.b16 %v608
  %v2725 = vunpack.c.l.b16 %v609
  %v2726 = vunpack.c.h.b16 %v609
  %v2727 = vunpack.c.l.b16 %v610
  %v2728 = vunpack.c.h.b16 %v610
  %v2729 = vunpack.c.l.b16 %v611
  %v2730 = vunpack.c.h.b16 %v611
  %v2731 = vunpack.c.l.b16 %v612
  %v2732 = vunpack.c.h.b16 %v612
  %v2733 = vunpack.c.l.b16 %v613
  %v2734 = vunpack.c.h.b16 %v613
  %v2735 = vunpack.c.l.b16 %v614
  %v2736 = vunpack.c.h.b16 %v614
  %v2737 = vunpack.c.l.b16 %v615
  %v2738 = vunpack.c.h.b16 %v615
  %v2739 = vunpack.c.l.b16 %v616
  %v2740 = vunpack.c.h.b16 %v616
  %v2741 = vunpack.c.l.b16 %v617
  %v2742 = vunpack.c.h.b16 %v617
  %v2743 = vunpack.c.l.b16 %v618
  %v2744 = vunpack.c.h.b16 %v618
  %v2745 = vunpack.c.l.b16 %v619
  %v2746 = vunpack.c.h.b16 %v619
  %v2747 = vunpack.c.l.b16 %v620
  %v2748 = vunpack.c.h.b16 %v620
  %v2749 = vunpack.c.l.b16 %v621
  %v2750 = vunpack.c.h.b16 %v621
  %v2751 = vunpack.c.l.b16 %v622
  %v2752 = vunpack.c.h.b16 %v622
  %v2753 = vunpack.c.l.b16 %v623
  %v2754 = vunpack.c.h.b16 %v623
  %v2755 = vunpack.c.l.b16 %v624
  %v2756 = vunpack.c.h.b16 %v624
  %v2757 = vunpack.c.l.b16 %v625
  %v2758 = vunpack.c.h.b16 %v625
  %v2759 = vunpack.c.l.b16 %v626
  %v2760 = vunpack.c.h.b16 %v626
  %v2761 = vunpack.c.l.b16 %v627
  %v2762 = vunpack.c.h.b16 %v627
  %v2763 = vunpack.c.l.b16 %v628
  %v2764 = vunpack.c.h.b16 %v628
  %v2765 = vunpack.c.l.b16 %v629
  %v2766 = vunpack.c.h.b16 %v629
  %v2767 = vunpack.c.l.b16 %v630
  %v2768 = vunpack.c.h.b16 %v630
  %v2769 = vunpack.c.l.b16 %v631
  %v2770 = vunpack.c.h.b16 %v631
  %v2771 = vunpack.c.l.b16 %v632
  %v2772 = vunpack.c.h.b16 %v632
  %v2773 = vunpack.c.l.b16 %v633
  %v2774 = vunpack.c.h.b16 %v633
  %v2775 = vunpack.c.l.b16 %v634
  %v2776 = vunpack.c.h.b16 %v634
  %v2777 = vunpack.c.l.b16 %v635
  %v2778 = vunpack.c.h.b16 %v635
  %v2779 = vunpack.c.l.b16 %v636
  %v2780 = vunpack.c.h.b16 %v636
  %v2781 = vunpack.c.l.b16 %v637
  %v2782 = vunpack.c.h.b16 %v637
  %v2783 = vunpack.c.l.b16 %v638
  %v2784 = vunpack.c.h.b16 %v638
  %v2785 = vunpack.c.l.b16 %v639
  %v2786 = vunpack.c.h.b16 %v639
  %v2787 = vunpack.c.l.b16 %v640
  %v2788 = vunpack.c.h.b16 %v640
  %v2789 = vunpack.c.l.b16 %v641
  %v2790 = vunpack.c.h.b16 %v641
  %v2791 = vunpack.c.l.b16 %v642
  %v2792 = vunpack.c.h.b16 %v642
  %v2793 = vunpack.c.l.b16 %v643
  %v2794 = vunpack.c.h.b16 %v643
  %v2795 = vunpack.c.l.b16 %v644
  %v2796 = vunpack.c.h.b16 %v644
  %v2797 = vunpack.c.l.b16 %v645
  %v2798 = vunpack.c.h.b16 %v645
  %v2799 = vunpack.c.l.b16 %v646
  %v2800 = vunpack.c.h.b16 %v646
  %v2801 = vunpack.c.l.b16 %v647
  %v2802 = vunpack.c.h.b16 %v647
  %v2803 = vunpack.c.l.b16 %v648
  %v2804 = vunpack.c.h.b16 %v648
  %v2805 = vunpack.c.l.b16 %v649
  %v2806 = vunpack.c.h.b16 %v649
  %v2807 = vunpack.c.l.b16 %v650
  %v2808 = vunpack.c.h.b16 %v650
  %v2809 = vunpack.c.l.b16 %v651
  %v2810 = vunpack.c.h.b16 %v651
  %v2811 = vunpack.c.l.b16 %v652
  %v2812 = vunpack.c.h.b16 %v652
  %v2813 = vunpack.c.l.b16 %v653
  %v2814 = vunpack.c.h.b16 %v653
  %v2815 = vunpack.c.l.b16 %v654
  %v2816 = vunpack.c.h.b16 %v654
  %v2817 = vunpack.c.l.b16 %v655
  %v2818 = vunpack.c.h.b16 %v655
  %v2819 = vunpack.c.l.b16 %v656
  %v2820 = vunpack.c.h.b16 %v656
  %v2821 = vunpack.c.l.b16 %v657
  %v2822 = vunpack.c.h.b16 %v657
  %v2823 = vunpack.c.l.b16 %v658
  %v2824 = vunpack.c.h.b16 %v658
  %v2825 = vunpack.c.l.b16 %v659
  %v2826 = vunpack.c.h.b16 %v659
  %v2827 = vunpack.c.l.b16 %v660
  %v2828 = vunpack.c.h.b16 %v660
  %v2829 = vunpack.c.l.b16 %v661
  %v2830 = vunpack.c.h.b16 %v661
  %v2831 = vunpack.c.l.b16 %v662
  %v2832 = vunpack.c.h.b16 %v662
  %v2833 = vunpack.c.l.b16 %v663
  %v2834 = vunpack.c.h.b16 %v663
  %v2835 = vunpack.c.l.b16 %v664
  %v2836 = vunpack.c.h.b16 %v664
  %v2837 = vunpack.c.l.b16 %v665
  %v2838 = vunpack.c.h.b16 %v665
  %v2839 = vunpack.c.l.b16 %v666
  %v2840 = vunpack.c.h.b16 %v666
  %v2841 = vunpack.c.l.b16 %v667
  %v2842 = vunpack.c.h.b16 %v667
  %v2843 = vunpack.c.l.b16 %v668
  %v2844 = vunpack.c.h.b16 %v668
  %v2845 = vunpack.c.l.b16 %v669
  %v2846 = vunpack.c.h.b16 %v669
  %v2847 = vunpack.c.l.b16 %v670
  %v2848 = vunpack.c.h.b16 %v670
  %v2849 = vunpack.c.l.b16 %v671
  %v2850 = vunpack.c.h.b16 %v671
  %v2851 = vunpack.c.l.b16 %v672
  %v2852 = vunpack.c.h.b16 %v672
  %v2853 = vunpack.c.l.b16 %v673
  %v2854 = vunpack.c.h.b16 %v673
  %v2855 = vunpack.c.l.b16 %v674
  %v2856 = vunpack.c.h.b16 %v674
  %v2857 = vunpack.c.l.b16 %v675
  %v2858 = vunpack.c.h.b16 %v675
  %v2859 = vunpack.c.l.b16 %v676
  %v2860 = vunpack.c.h.b16 %v676
  %v2861 = vunpack.c.l.b16 %v677
  %v2862 = vunpack.c.h.b16 %v677
  %v2863 = vunpack.c.l.b16 %v678
  %v2864 = vunpack.c.h.b16 %v678
  %v2865 = vunpack.c.l.b16 %v679
  %v2866 = vunpack.c.h.b16 %v679
  %v2867 = vunpack.c.l.b16 %v680
  %v2868 = vunpack.c.h.b16 %v680
  %v2869 = vunpack.c.l.b16 %v681
  %v2870 = vunpack.c.h.b16 %v681
  %v2871 = vunpack.c.l.b16 %v682
  %v2872 = vunpack.c.h.b16 %v682
  %v2873 = vunpack.c.l.b16 %v683
  %v2874 = vunpack.c.h.b16 %v683
  %v2875 = vunpack.c.l.b16 %v684
  %v2876 = vunpack.c.h.b16 %v684
  %v2877 = vunpack.c.l.b16 %v685
  %v2878 = vunpack.c.h.b16 %v685
  %v2879 = vunpack.c.l.b16 %v686
  %v2880 = vunpack.c.h.b16 %v686
  %v2881 = vunpack.c.l.b16 %v687
  %v2882 = vunpack.c.h.b16 %v687
  %v2883 = vunpack.c.l.b16 %v688
  %v2884 = vunpack.c.h.b16 %v688
  %v2885 = vunpack.c.l.b16 %v689
  %v2886 = vunpack.c.h.b16 %v689
  %v2887 = vunpack.c.l.b16 %v690
  %v2888 = vunpack.c.h.b16 %v690
  %v2889 = vunpack.c.l.b16 %v691
  %v2890 = vunpack.c.h.b16 %v691
  %v2891 = vunpack.c.l.b16 %v692
  %v2892 = vunpack.c.h.b16 %v692
  %v2893 = vunpack.c.l.b16 %v693
  %v2894 = vunpack.c.h.b16 %v693
  %v2895 = vunpack.c.l.b16 %v694
  %v2896 = vunpack.c.h.b16 %v694
  %v2897 = vunpack.c.l.b16 %v695
  %v2898 = vunpack.c.h.b16 %v695
  %v2899 = vunpack.c.l.b16 %v696
  %v2900 = vunpack.c.h.b16 %v696
  %v2901 = vunpack.c.l.b16 %v697
  %v2902 = vunpack.c.h.b16 %v697
  %v2903 = vunpack.c.l.b16 %v698
  %v2904 = vunpack.c.h.b16 %v698
  %v2905 = vunpack.c.l.b16 %v699
  %v2906 = vunpack.c.h.b16 %v699
  %v2907 = vunpack.c.l.b16 %v700
  %v2908 = vunpack.c.h.b16 %v700
  %v2909 = vunpack.c.l.b16 %v701
  %v2910 = vunpack.c.h.b16 %v701
  %v2911 = vunpack.c.l.b16 %v702
  %v2912 = vunpack.c.h.b16 %v702
  %v2913 = vunpack.c.l.b16 %v703
  %v2914 = vunpack.c.h.b16 %v703
  %v2915 = vunpack.c.l.b16 %v704
  %v2916 = vunpack.c.h.b16 %v704
  %v2917 = vunpack.c.l.b16 %v705
  %v2918 = vunpack.c.h.b16 %v705
  %v2919 = vunpack.c.l.b16 %v706
  %v2920 = vunpack.c.h.b16 %v706
  %v2921 = vunpack.c.l.b16 %v707
  %v2922 = vunpack.c.h.b16 %v707
  %v2923 = vunpack.c.l.b16 %v708
  %v2924 = vunpack.c.h.b16 %v708
  %v2925 = vunpack.c.l.b16 %v709
  %v2926 = vunpack.c.h.b16 %v709
  %v2927 = vunpack.c.l.b16 %v710
  %v2928 = vunpack.c.h.b16 %v710
  %v2929 = vunpack.c.l.b16 %v711
  %v2930 = vunpack.c.h.b16 %v711
  %v2931 = vunpack.c.l.b16 %v712
  %v2932 = vunpack.c.h.b16 %v712
  %v2933 = vunpack.c.l.b16 %v713
  %v2934 = vunpack.c.h.b16 %v713
  %v2935 = vunpack.c.l.b16 %v714
  %v2936 = vunpack.c.h.b16 %v714
  %v2937 = vunpack.c.l.b16 %v715
  %v2938 = vunpack.c.h.b16 %v715
  %v2939 = vunpack.c.l.b16 %v716
  %v2940 = vunpack.c.h.b16 %v716
  %v2941 = vunpack.c.l.b16 %v717
  %v2942 = vunpack.c.h.b16 %v717
  %v2943 = vunpack.c.l.b16 %v718
  %v2944 = vunpack.c.h.b16 %v718
  %v2945 = vunpack.c.l.b16 %v719
  %v2946 = vunpack.c.h.b16 %v719
  %v2947 = vunpack.c.l.b16 %v720
  %v2948 = vunpack.c.h.b16 %v720
  %v2949 = vunpack.c.l.b16 %v721
  %v2950 = vunpack.c.h.b16 %v721
  %v2951 = vunpack.c.l.b16 %v722
  %v2952 = vunpack.c.h.b16 %v722
  %v2953 = vunpack.c.l.b16 %v723
  %v2954 = vunpack.c.h.b16 %v723
  %v2955 = vunpack.c.l.b16 %v724
  %v2956 = vunpack.c.h.b16 %v724
  %v2957 = vunpack.c.l.b16 %v725
  %v2958 = vunpack.c.h.b16 %v725
  %v2959 = vunpack.c.l.b16 %v726
  %v2960 = vunpack.c.h.b16 %v726
  %v2961 = vunpack.c.l.b16 %v727
  %v2962 = vunpack.c.h.b16 %v727
  %v2963 = vunpack.c.l.b16 %v728
  %v2964 = vunpack.c.h.b16 %v728
  %v2965 = vunpack.c.l.b16 %v729
  %v2966 = vunpack.c.h.b16 %v729
  %v2967 = vunpack.c.l.b16 %v730
  %v2968 = vunpack.c.h.b16 %v730
  %v2969 = vunpack.c.l.b16 %v731
  %v2970 = vunpack.c.h.b16 %v731
  %v2971 = vunpack.c.l.b16 %v732
  %v2972 = vunpack.c.h.b16 %v732
  %v2973 = vunpack.c.l.b16 %v733
  %v2974 = vunpack.c.h.b16 %v733
  %v2975 = vunpack.c.l.b16 %v734
  %v2976 = vunpack.c.h.b16 %v734
  %v2977 = vunpack.c.l.b16 %v735
  %v2978 = vunpack.c.h.b16 %v735
  %v2979 = vunpack.c.l.b16 %v736
  %v2980 = vunpack.c.h.b16 %v736
  %v2981 = vunpack.c.l.b16 %v737
  %v2982 = vunpack.c.h.b16 %v737
  %v2983 = vunpack.c.l.b16 %v738
  %v2984 = vunpack.c.h.b16 %v738
  %v2985 = vunpack.c.l.b16 %v739
  %v2986 = vunpack.c.h.b16 %v739
  %v2987 = vunpack.c.l.b16 %v740
  %v2988 = vunpack.c.h.b16 %v740
  %v2989 = vunpack.c.l.b16 %v741
  %v2990 = vunpack.c.h.b16 %v741
  %v2991 = vunpack.c.l.b16 %v742
  %v2992 = vunpack.c.h.b16 %v742
  %v2993 = vunpack.c.l.b16 %v743
  %v2994 = vunpack.c.h.b16 %v743
  %v2995 = vunpack.c.l.b16 %v744
  %v2996 = vunpack.c.h.b16 %v744
  %v2997 = vunpack.c.l.b16 %v745
  %v2998 = vunpack.c.h.b16 %v745
  %v2999 = vunpack.c.l.b16 %v746
  %v3000 = vunpack.c.h.b16 %v746
  %v3001 = vunpack.c.l.b16 %v747
  %v3002 = vunpack.c.h.b16 %v747
  %v3003 = vunpack.c.l.b16 %v748
  %v3004 = vunpack.c.h.b16 %v748
  %v3005 = vunpack.c.l.b16 %v749
  %v3006 = vunpack.c.h.b16 %v749
  %v3007 = vunpack.c.l.b16 %v750
  %v3008 = vunpack.c.h.b16 %v750
  %v3009 = vunpack.c.l.b16 %v751
  %v3010 = vunpack.c.h.b16 %v751
  %v3011 = vunpack.c.l.b16 %v752
  %v3012 = vunpack.c.h.b16 %v752
  %v3013 = vunpack.c.l.b16 %v753
  %v3014 = vunpack.c.h.b16 %v753
  %v3015 = vunpack.c.l.b16 %v754
  %v3016 = vunpack.c.h.b16 %v754
  %v3017 = vunpack.c.l.b16 %v755
  %v3018 = vunpack.c.h.b16 %v755
  %v3019 = vunpack.c.l.b16 %v756
  %v3020 = vunpack.c.h.b16 %v756
  %v3021 = vunpack.c.l.b16 %v757
  %v3022 = vunpack.c.h.b16 %v757
  %v3023 = vunpack.c.l.b16 %v758
  %v3024 = vunpack.c.h.b16 %v758
  %v3025 = vunpack.c.l.b16 %v759
  %v3026 = vunpack.c.h.b16 %v759
  %v3027 = vunpack.c.l.b16 %v760
  %v3028 = vunpack.c.h.b16 %v760
  %v3029 = vunpack.c.l.b16 %v761
  %v3030 = vunpack.c.h.b16 %v761
  %v3031 = vunpack.c.l.b16 %v762
  %v3032 = vunpack.c.h.b16 %v762
  %v3033 = vunpack.c.l.b16 %v763
  %v3034 = vunpack.c.h.b16 %v763
  %v3035 = vunpack.c.l.b16 %v764
  %v3036 = vunpack.c.h.b16 %v764
  %v3037 = vunpack.c.l.b16 %v765
  %v3038 = vunpack.c.h.b16 %v765
  %v3039 = vunpack.c.l.b16 %v766
  %v3040 = vunpack.c.h.b16 %v766
  %v3041 = vunpack.c.l.b16 %v767
  %v3042 = vunpack.c.h.b16 %v767
  %v3043 = vunpack.c.l.b16 %v768
  %v3044 = vunpack.c.h.b16 %v768
  %v3045 = vunpack.c.l.b16 %v769
  %v3046 = vunpack.c.h.b16 %v769
  %v3047 = vunpack.c.l.b16 %v770
  %v3048 = vunpack.c.h.b16 %v770
  %v3049 = vunpack.c.l.b16 %v771
  %v3050 = vunpack.c.h.b16 %v771
  %v3051 = vunpack.c.l.b16 %v772
  %v3052 = vunpack.c.h.b16 %v772
  %v3053 = vunpack.c.l.b16 %v773
  %v3054 = vunpack.c.h.b16 %v773
  %v3055 = vunpack.c.l.b16 %v774
  %v3056 = vunpack.c.h.b16 %v774
  %v3057 = vunpack.c.l.b16 %v775
  %v3058 = vunpack.c.h.b16 %v775
  %v3059 = vunpack.c.l.b16 %v776
  %v3060 = vunpack.c.h.b16 %v776
  %v3061 = vunpack.c.l.b16 %v777
  %v3062 = vunpack.c.h.b16 %v777
  %v3063 = vunpack.c.l.b16 %v778
  %v3064 = vunpack.c.h.b16 %v778
  %v3065 = vunpack.c.l.b16 %v779
  %v3066 = vunpack.c.h.b16 %v779
  %v3067 = vunpack.c.l.b16 %v780
  %v3068 = vunpack.c.h.b16 %v780
  %v3069 = vunpack.c.l.b16 %v781
  %v3070 = vunpack.c.h.b16 %v781
  %v3071 = vunpack.c.l.b16 %v782
  %v3072 = vunpack.c.h.b16 %v782
  %v3073 = vunpack.c.l.b16 %v783
  %v3074 = vunpack.c.h.b16 %v783
  %v3075 = vunpack.c.l.b16 %v784
  %v3076 = vunpack.c.h.b16 %v784
  %v3077 = vunpack.c.l.b16 %v785
  %v3078 = vunpack.c.h.b16 %v785
  %v3079 = vunpack.c.l.b16 %v786
  %v3080 = vunpack.c.h.b16 %v786
  %v3081 = vunpack.c.l.b16 %v787
  %v3082 = vunpack.c.h.b16 %v787
  %v3083 = vunpack.c.l.b16 %v788
  %v3084 = vunpack.c.h.b16 %v788
  %v3085 = vunpack.c.l.b16 %v789
  %v3086 = vunpack.c.h.b16 %v789
  %v3087 = vunpack.c.l.b16 %v790
  %v3088 = vunpack.c.h.b16 %v790
  %v3089 = vunpack.c.l.b16 %v791
  %v3090 = vunpack.c.h.b16 %v791
  %v3091 = vunpack.c.l.b16 %v792
  %v3092 = vunpack.c.h.b16 %v792
  %v3093 = vunpack.c.l.b16 %v793
  %v3094 = vunpack.c.h.b16 %v793
  %v3095 = vunpack.c.l.b16 %v794
  %v3096 = vunpack.c.h.b16 %v794
  %v3097 = vunpack.c.l.b16 %v795
  %v3098 = vunpack.c.h.b16 %v795
  %v3099 = vunpack.c.l.b16 %v796
  %v3100 = vunpack.c.h.b16 %v796
  %v3101 = vunpack.c.l.b16 %v797
  %v3102 = vunpack.c.h.b16 %v797
  %v3103 = vunpack.c.l.b16 %v798
  %v3104 = vunpack.c.h.b16 %v798
  %v3105 = vunpack.c.l.b16 %v799
  %v3106 = vunpack.c.h.b16 %v799
  %v3107 = vunpack.c.l.b16 %v800
  %v3108 = vunpack.c.h.b16 %v800
  %v3109 = vunpack.c.l.b16 %v801
  %v3110 = vunpack.c.h.b16 %v801
  %v3111 = vunpack.c.l.b16 %v802
  %v3112 = vunpack.c.h.b16 %v802
  %v3113 = vunpack.c.l.b16 %v803
  %v3114 = vunpack.c.h.b16 %v803
  %v3115 = vunpack.c.l.b16 %v804
  %v3116 = vunpack.c.h.b16 %v804
  %v3117 = vunpack.c.l.b16 %v805
  %v3118 = vunpack.c.h.b16 %v805
  %v3119 = vunpack.c.l.b16 %v806
  %v3120 = vunpack.c.h.b16 %v806
  %v3121 = vunpack.c.l.b16 %v807
  %v3122 = vunpack.c.h.b16 %v807
  %v3123 = vunpack.c.l.b16 %v808
  %v3124 = vunpack.c.h.b16 %v808
  %v3125 = vunpack.c.l.b16 %v809
  %v3126 = vunpack.c.h.b16 %v809
  %v3127 = vunpack.c.l.b16 %v810
  %v3128 = vunpack.c.h.b16 %v810
  %v3129 = vunpack.c.l.b16 %v811
  %v3130 = vunpack.c.h.b16 %v811
  %v3131 = vunpack.c.l.b16 %v812
  %v3132 = vunpack.c.h.b16 %v812
  %v3133 = vunpack.c.l.b16 %v813
  %v3134 = vunpack.c.h.b16 %v813
  %v3135 = vunpack.c.l.b16 %v814
  %v3136 = vunpack.c.h.b16 %v814
  %v3137 = vunpack.c.l.b16 %v815
  %v3138 = vunpack.c.h.b16 %v815
  %v3139 = vunpack.c.l.b16 %v816
  %v3140 = vunpack.c.h.b16 %v816
  %v3141 = vunpack.c.l.b16 %v817
  %v3142 = vunpack.c.h.b16 %v817
  %v3143 = vunpack.c.l.b16 %v818
  %v3144 = vunpack.c.h.b16 %v818
  %v3145 = vunpack.c.l.b16 %v819
  %v3146 = vunpack.c.h.b16 %v819
  %v3147 = vunpack.c.l.b16 %v820
  %v3148 = vunpack.c.h.b16 %v820
  %v3149 = vunpack.c.l.b16 %v821
  %v3150 = vunpack.c.h.b16 %v821
  %v3151 = vunpack.c.l.b16 %v822
  %v3152 = vunpack.c.h.b16 %v822
  %v3153 = vunpack.c.l.b16 %v823
  %v3154 = vunpack.c.h.b16 %v823
  %v3155 = vunpack.c.l.b16 %v824
  %v3156 = vunpack.c.h.b16 %v824
  %v3157 = vunpack.c.l.b16 %v825
  %v3158 = vunpack.c.h.b16 %v825
  %v3159 = vunpack.c.l.b16 %v826
  %v3160 = vunpack.c.h.b16 %v826
  %v3161 = vunpack.c.l.b16 %v827
  %v3162 = vunpack.c.h.b16 %v827
  %v3163 = vunpack.c.l.b16 %v828
  %v3164 = vunpack.c.h.b16 %v828
  %v3165 = vunpack.c.l.b16 %v829
  %v3166 = vunpack.c.h.b16 %v829
  %v3167 = vunpack.c.l.b16 %v830
  %v3168 = vunpack.c.h.b16 %v830
  %v3169 = vunpack.c.l.b16 %v831
  %v3170 = vunpack.c.h.b16 %v831
  %v3171 = vunpack.c.l.b16 %v832
  %v3172 = vunpack.c.h.b16 %v832
  %v3173 = vunpack.c.l.b16 %v833
  %v3174 = vunpack.c.h.b16 %v833
  %v3175 = vunpack.c.l.b16 %v834
  %v3176 = vunpack.c.h.b16 %v834
  %v3177 = vunpack.c.l.b16 %v835
  %v3178 = vunpack.c.h.b16 %v835
  %v3179 = vunpack.c.l.b16 %v836
  %v3180 = vunpack.c.h.b16 %v836
  %v3181 = vunpack.c.l.b16 %v837
  %v3182 = vunpack.c.h.b16 %v837
  %v3183 = vunpack.c.l.b16 %v838
  %v3184 = vunpack.c.h.b16 %v838
  %v3185 = vunpack.c.l.b16 %v839
  %v3186 = vunpack.c.h.b16 %v839
  %v3187 = vunpack.c.l.b16 %v840
  %v3188 = vunpack.c.h.b16 %v840
  %v3189 = vunpack.c.l.b16 %v841
  %v3190 = vunpack.c.h.b16 %v841
  %v3191 = vunpack.c.l.b16 %v842
  %v3192 = vunpack.c.h.b16 %v842
  %v3193 = vunpack.c.l.b16 %v843
  %v3194 = vunpack.c.h.b16 %v843
  %v3195 = vunpack.c.l.b16 %v844
  %v3196 = vunpack.c.h.b16 %v844
  %v3197 = vunpack.c.l.b16 %v845
  %v3198 = vunpack.c.h.b16 %v845
  %v3199 = vunpack.c.l.b16 %v846
  %v3200 = vunpack.c.h.b16 %v846
  %v3201 = vunpack.c.l.b16 %v847
  %v3202 = vunpack.c.h.b16 %v847
  %v3203 = vunpack.c.l.b16 %v848
  %v3204 = vunpack.c.h.b16 %v848
  %v3205 = vunpack.c.l.b16 %v849
  %v3206 = vunpack.c.h.b16 %v849
  %v3207 = vunpack.c.l.b16 %v850
  %v3208 = vunpack.c.h.b16 %v850
  %v3209 = vunpack.c.l.b16 %v851
  %v3210 = vunpack.c.h.b16 %v851
  %v3211 = vunpack.c.l.b16 %v852
  %v3212 = vunpack.c.h.b16 %v852
  %v3213 = vunpack.c.l.b16 %v853
  %v3214 = vunpack.c.h.b16 %v853
  %v3215 = vunpack.c.l.b16 %v854
  %v3216 = vunpack.c.h.b16 %v854
  %v3217 = vpack.c.b16 %v1653, %v1649
  %v3218 = vpack.c.b16 %v1654, %v1650
  %v3219 = vpack.c.b16 %v1655, %v1651
  %v3220 = vpack.c.b16 %v1656, %v1652
  %v3221 = vpack.c.b16 %v1661, %v1657
  %v3222 = vpack.c.b16 %v1662, %v1658
  %v3223 = vpack.c.b16 %v1663, %v1659
  %v3224 = vpack.c.b16 %v1664, %v1660
  %v3225 = vpack.c.b16 %v1669, %v1665
  %v3226 = vpack.c.b16 %v1670, %v1666
  %v3227 = vpack.c.b16 %v1671, %v1667
  %v3228 = vpack.c.b16 %v1672, %v1668
  %v3229 = vpack.c.b16 %v1677, %v1673
  %v3230 = vpack.c.b16 %v1678, %v1674
  %v3231 = vpack.c.b16 %v1679, %v1675
  %v3232 = vpack.c.b16 %v1680, %v1676
  %v3233 = vpack.c.b16 %v1685, %v1681
  %v3234 = vpack.c.b16 %v1686, %v1682
  %v3235 = vpack.c.b16 %v1687, %v1683
  %v3236 = vpack.c.b16 %v1688, %v1684
  %v3237 = vpack.c.b16 %v1693, %v1689
  %v3238 = vpack.c.b16 %v1694, %v1690
  %v3239 = vpack.c.b16 %v1695, %v1691
  %v3240 = vpack.c.b16 %v1696, %v1692
  %v3241 = vpack.c.b16 %v1701, %v1697
  %v3242 = vpack.c.b16 %v1702, %v1698
  %v3243 = vpack.c.b16 %v1703, %v1699
  %v3244 = vpack.c.b16 %v1704, %v1700
  %v3245 = vpack.c.b16 %v1709, %v1705
  %v3246 = vpack.c.b16 %v1710, %v1706
  %v3247 = vpack.c.b16 %v1711, %v1707
  %v3248 = vpack.c.b16 %v1712, %v1708
  %v3249 = vpack.c.b16 %v1717, %v1713
  %v3250 = vpack.c.b16 %v1718, %v1714
  %v3251 = vpack.c.b16 %v1719, %v1715
  %v3252 = vpack.c.b16 %v1720, %v1716
  %v3253 = vpack.c.b16 %v1725, %v1721
  %v3254 = vpack.c.b16 %v1726, %v1722
  %v3255 = vpack.c.b16 %v1727, %v1723
  %v3256 = vpack.c.b16 %v1728, %v1724
  %v3257 = vpack.c.b16 %v1733, %v1729
  %v3258 = vpack.c.b16 %v1734, %v1730
  %v3259 = vpack.c.b16 %v1735, %v1731
  %v3260 = vpack.c.b16 %v1736, %v1732
  %v3261 = vpack.c.b16 %v1741, %v1737
  %v3262 = vpack.c.b16 %v1742, %v1738
  %v3263 = vpack.c.b16 %v1743, %v1739
  %v3264 = vpack.c.b16 %v1744, %v1740
  %v3265 = vpack.c.b16 %v1749, %v1745
  %v3266 = vpack.c.b16 %v1750, %v1746
  %v3267 = vpack.c.b16 %v1751, %v1747
  %v3268 = vpack.c.b16 %v1752, %v1748
  %v3269 = vpack.c.b16 %v1757, %v1753
  %v3270 = vpack.c.b16 %v1758, %v1754
  %v3271 = vpack.c.b16 %v1759, %v1755
  %v3272 = vpack.c.b16 %v1760, %v1756
  %v3273 = vpack.c.b16 %v1765, %v1761
  %v3274 = vpack.c.b16 %v1766, %v1762
  %v3275 = vpack.c.b16 %v1767, %v1763
  %v3276 = vpack.c.b16 %v1768, %v1764
  %v3277 = vpack.c.b16 %v1773, %v1769
  %v3278 = vpack.c.b16 %v1774, %v1770
  %v3279 = vpack.c.b16 %v1775, %v1771
  %v3280 = vpack.c.b16 %v1776, %v1772
  %v3281 = vpack.c.b16 %v1781, %v1777
  %v3282 = vpack.c.b16 %v1782, %v1778
  %v3283 = vpack.c.b16 %v1783, %v1779
  %v3284 = vpack.c.b16 %v1784, %v1780
  %v3285 = vpack.c.b16 %v1789, %v1785
  %v3286 = vpack.c.b16 %v1790, %v1786
  %v3287 = vpack.c.b16 %v1791, %v1787
  %v3288 = vpack.c.b16 %v1792, %v1788
  %v3289 = vpack.c.b16 %v1797, %v1793
  %v3290 = vpack.c.b16 %v1798, %v1794
  %v3291 = vpack.c.b16 %v1799, %v1795
  %v3292 = vpack.c.b16 %v1800, %v1796
  %v3293 = vpack.c.b16 %v1805, %v1801
  %v3294 = vpack.c.b16 %v1806, %v1802
  %v3295 = vpack.c.b16 %v1807, %v1803
  %v3296 = vpack.c.b16 %v1808, %v1804
  %v3297 = vpack.c.b16 %v1813, %v1809
  %v3298 = vpack.c.b16 %v1814, %v1810
  %v3299 = vpack.c.b16 %v1815, %v1811
  %v3300 = vpack.c.b16 %v1816, %v1812
  %v3301 = vpack.c.b16 %v1821, %v1817
  %v3302 = vpack.c.b16 %v1822, %v1818
  %v3303 = vpack.c.b16 %v1823, %v1819
  %v3304 = vpack.c.b16 %v1824, %v1820
  %v3305 = vpack.c.b16 %v1829, %v1825
  %v3306 = vpack.c.b16 %v1830, %v1826
  %v3307 = vpack.c.b16 %v1831, %v1827
  %v3308 = vpack.c.b16 %v1832, %v1828
  %v3309 = vpack.c.b16 %v1837, %v1833
  %v3310 = vpack.c.b16 %v1838, %v1834
  %v3311 = vpack.c.b16 %v1839, %v1835
  %v3312 = vpack.c.b16 %v1840, %v1836
  %v3313 = vpack.c.b16 %v1845, %v1841
  %v3314 = vpack.c.b16 %v1846, %v1842
  %v3315 = vpack.c.b16 %v1847, %v1843
  %v3316 = vpack.c.b16 %v1848, %v1844
  %v3317 = vpack.c.b16 %v1853, %v1849
  %v3318 = vpack.c.b16 %v1854, %v1850
  %v3319 = vpack.c.b16 %v1855, %v1851
  %v3320 = vpack.c.b16 %v1856, %v1852
  %v3321 = vpack.c.b16 %v1861, %v1857
  %v3322 = vpack.c.b16 %v1862, %v1858
  %v3323 = vpack.c.b16 %v1863, %v1859
  %v3324 = vpack.c.b16 %v1864, %v1860
  %v3325 = vpack.c.b16 %v1869, %v1865
  %v3326 = vpack.c.b16 %v1870, %v1866
  %v3327 = vpack.c.b16 %v1871, %v1867
  %v3328 = vpack.c.b16 %v1872, %v1868
  %v3329 = vpack.c.b16 %v1877, %v1873
  %v3330 = vpack.c.b16 %v1878, %v1874
  %v3331 = vpack.c.b16 %v1879, %v1875
  %v3332 = vpack.c.b16 %v1880, %v1876
  %v3333 = vpack.c.b16 %v1885, %v1881
  %v3334 = vpack.c.b16 %v1886, %v1882
  %v3335 = vpack.c.b16 %v1887, %v1883
  %v3336 = vpack.c.b16 %v1888, %v1884
  %v3337 = vpack.c.b16 %v1893, %v1889
  %v3338 = vpack.c.b16 %v1894, %v1890
  %v3339 = vpack.c.b16 %v1895, %v1891
  %v3340 = vpack.c.b16 %v1896, %v1892
  %v3341 = vpack.c.b16 %v1901, %v1897
  %v3342 = vpack.c.b16 %v1902, %v1898
  %v3343 = vpack.c.b16 %v1903, %v1899
  %v3344 = vpack.c.b16 %v1904, %v1900
  %v3345 = vpack.c.b16 %v1909, %v1905
  %v3346 = vpack.c.b16 %v1910, %v1906
  %v3347 = vpack.c.b16 %v1911, %v1907
  %v3348 = vpack.c.b16 %v1912, %v1908
  %v3349 = vpack.c.b16 %v1917, %v1913
  %v3350 = vpack.c.b16 %v1918, %v1914
  %v3351 = vpack.c.b16 %v1919, %v1915
  %v3352 = vpack.c.b16 %v1920, %v1916
  %v3353 = vpack.c.b16 %v1925, %v1921
  %v3354 = vpack.c.b16 %v1926, %v1922
  %v3355 = vpack.c.b16 %v1927, %v1923
  %v3356 = vpack.c.b16 %v1928, %v1924
  %v3357 = vpack.c.b16 %v1933, %v1929
  %v3358 = vpack.c.b16 %v1934, %v1930
  %v3359 = vpack.c.b16 %v1935, %v1931
  %v3360 = vpack.c.b16 %v1936, %v1932
  %v3361 = vpack.c.b16 %v1941, %v1937
  %v3362 = vpack.c.b16 %v1942, %v1938
  %v3363 = vpack.c.b16 %v1943, %v1939
  %v3364 = vpack.c.b16 %v1944, %v1940
  %v3365 = vpack.c.b16 %v1949, %v1945
  %v3366 = vpack.c.b16 %v1950, %v1946
  %v3367 = vpack.c.b16 %v1951, %v1947
  %v3368 = vpack.c.b16 %v1952, %v1948
  %v3369 = vpack.c.b16 %v1957, %v1953
  %v3370 = vpack.c.b16 %v1958, %v1954
  %v3371 = vpack.c.b16 %v1959, %v1955
  %v3372 = vpack.c.b16 %v1960, %v1956
  %v3373 = vpack.c.b16 %v1965, %v1961
  %v3374 = vpack.c.b16 %v1966, %v1962
  %v3375 = vpack.c.b16 %v1967, %v1963
  %v3376 = vpack.c.b16 %v1968, %v1964
  %v3377 = vpack.c.b16 %v1973, %v1969
  %v3378 = vpack.c.b16 %v1974, %v1970
  %v3379 = vpack.c.b16 %v1975, %v1971
  %v3380 = vpack.c.b16 %v1976, %v1972
  %v3381 = vpack.c.b16 %v1981, %v1977
  %v3382 = vpack.c.b16 %v1982, %v1978
  %v3383 = vpack.c.b16 %v1983, %v1979
  %v3384 = vpack.c.b16 %v1984, %v1980
  %v3385 = vpack.c.b16 %v1989, %v1985
  %v3386 = vpack.c.b16 %v1990, %v1986
  %v3387 = vpack.c.b16 %v1991, %v1987
  %v3388 = vpack.c.b16 %v1992, %v1988
  %v3389 = vpack.c.b16 %v1997, %v1993
  %v3390 = vpack.c.b16 %v1998, %v1994
  %v3391 = vpack.c.b16 %v1999, %v1995
  %v3392 = vpack.c.b16 %v2000, %v1996
  %v3393 = vpack.c.b16 %v2005, %v2001
  %v3394 = vpack.c.b16 %v2006, %v2002
  %v3395 = vpack.c.b16 %v2007, %v2003
  %v3396 = vpack.c.b16 %v2008, %v2004
  %v3397 = vpack.c.b16 %v2013, %v2009
  %v3398 = vpack.c.b16 %v2014, %v2010
  %v3399 = vpack.c.b16 %v2015, %v2011
  %v3400 = vpack.c.b16 %v2016, %v2012
  %v3401 = vpack.c.b16 %v2021, %v2017
  %v3402 = vpack.c.b16 %v2022, %v2018
  %v3403 = vpack.c.b16 %v2023, %v2019
  %v3404 = vpack.c.b16 %v2024, %v2020
  %v3405 = vpack.c.b16 %v2029, %v2025
  %v3406 = vpack.c.b16 %v2030, %v2026
  %v3407 = vpack.c.b16 %v2031, %v2027
  %v3408 = vpack.c.b16 %v2032, %v2028
  %v3409 = vpack.c.b16 %v2037, %v2033
  %v3410 = vpack.c.b16 %v2038, %v2034
  %v3411 = vpack.c.b16 %v2039, %v2035
  %v3412 = vpack.c.b16 %v2040, %v2036
  %v3413 = vpack.c.b16 %v2045, %v2041
  %v3414 = vpack.c.b16 %v2046, %v2042
  %v3415 = vpack.c.b16 %v2047, %v2043
  %v3416 = vpack.c.b16 %v2048, %v2044
  %v3417 = vpack.c.b16 %v2053, %v2049
  %v3418 = vpack.c.b16 %v2054, %v2050
  %v3419 = vpack.c.b16 %v2055, %v2051
  %v3420 = vpack.c.b16 %v2056, %v2052
  %v3421 = vpack.c.b16 %v2061, %v2057
  %v3422 = vpack.c.b16 %v2062, %v2058
  %v3423 = vpack.c.b16 %v2063, %v2059
  %v3424 = vpack.c.b16 %v2064, %v2060
  %v3425 = vpack.c.b16 %v2069, %v2065
  %v3426 = vpack.c.b16 %v2070, %v2066
  %v3427 = vpack.c.b16 %v2071, %v2067
  %v3428 = vpack.c.b16 %v2072, %v2068
  %v3429 = vpack.c.b16 %v2077, %v2073
  %v3430 = vpack.c.b16 %v2078, %v2074
  %v3431 = vpack.c.b16 %v2079, %v2075
  %v3432 = vpack.c.b16 %v2080, %v2076
  %v3433 = vpack.c.b16 %v2085, %v2081
  %v3434 = vpack.c.b16 %v2086, %v2082
  %v3435 = vpack.c.b16 %v2087, %v2083
  %v3436 = vpack.c.b16 %v2088, %v2084
  %v3437 = vpack.c.b16 %v2093, %v2089
  %v3438 = vpack.c.b16 %v2094, %v2090
  %v3439 = vpack.c.b16 %v2095, %v2091
  %v3440 = vpack.c.b16 %v2096, %v2092
  %v3441 = vpack.c.b16 %v2101, %v2097
  %v3442 = vpack.c.b16 %v2102, %v2098
  %v3443 = vpack.c.b16 %v2103, %v2099
  %v3444 = vpack.c.b16 %v2104, %v2100
  %v3445 = vpack.c.b16 %v2109, %v2105
  %v3446 = vpack.c.b16 %v2110, %v2106
  %v3447 = vpack.c.b16 %v2111, %v2107
  %v3448 = vpack.c.b16 %v2112, %v2108
  %v3449 = vpack.c.b16 %v2117, %v2113
  %v3450 = vpack.c.b16 %v2118, %v2114
  %v3451 = vpack.c.b16 %v2119, %v2115
  %v3452 = vpack.c.b16 %v2120, %v2116
  %v3453 = vpack.c.b16 %v2125, %v2121
  %v3454 = vpack.c.b16 %v2126, %v2122
  %v3455 = vpack.c.b16 %v2127, %v2123
  %v3456 = vpack.c.b16 %v2128, %v2124
  %v3457 = vpack.c.b16 %v2133, %v2129
  %v3458 = vpack.c.b16 %v2134, %v2130
  %v3459 = vpack.c.b16 %v2135, %v2131
  %v3460 = vpack.c.b16 %v2136, %v2132
  %v3461 = vpack.c.b16 %v2141, %v2137
  %v3462 = vpack.c.b16 %v2142, %v2138
  %v3463 = vpack.c.b16 %v2143, %v2139
  %v3464 = vpack.c.b16 %v2144, %v2140
  %v3465 = vpack.c.b16 %v2149, %v2145
  %v3466 = vpack.c.b16 %v2150, %v2146
  %v3467 = vpack.c.b16 %v2151, %v2147
  %v3468 = vpack.c.b16 %v2152, %v2148
  %v3469 = vpack.c.b16 %v2157, %v2153
  %v3470 = vpack.c.b16 %v2158, %v2154
  %v3471 = vpack.c.b16 %v2159, %v2155
  %v3472 = vpack.c.b16 %v2160, %v2156
  %v3473 = vpack.c.b16 %v2165, %v2161
  %v3474 = vpack.c.b16 %v2166, %v2162
  %v3475 = vpack.c.b16 %v2167, %v2163
  %v3476 = vpack.c.b16 %v2168, %v2164
  %v3477 = vpack.c.b16 %v2173, %v2169
  %v3478 = vpack.c.b16 %v2174, %v2170
  %v3479 = vpack.c.b16 %v2175, %v2171
  %v3480 = vpack.c.b16 %v2176, %v2172
  %v3481 = vpack.c.b16 %v2181, %v2177
  %v3482 = vpack.c.b16 %v2182, %v2178
  %v3483 = vpack.c.b16 %v2183, %v2179
  %v3484 = vpack.c.b16 %v2184, %v2180
  %v3485 = vpack.c.b16 %v2189, %v2185
  %v3486 = vpack.c.b16 %v2190, %v2186
  %v3487 = vpack.c.b16 %v2191, %v2187
  %v3488 = vpack.c.b16 %v2192, %v2188
  %v3489 = vpack.c.b16 %v2197, %v2193
  %v3490 = vpack.c.b16 %v2198, %v2194
  %v3491 = vpack.c.b16 %v2199, %v2195
  %v3492 = vpack.c.b16 %v2200, %v2196
  %v3493 = vpack.c.b16 %v2205, %v2201
  %v3494 = vpack.c.b16 %v2206, %v2202
  %v3495 = vpack.c.b16 %v2207, %v2203
  %v3496 = vpack.c.b16 %v2208, %v2204
  %v3497 = vpack.c.b16 %v2213, %v2209
  %v3498 = vpack.c.b16 %v2214, %v2210
  %v3499 = vpack.c.b16 %v2215, %v2211
  %v3500 = vpack.c.b16 %v2216, %v2212
  %v3501 = vpack.c.b16 %v2221, %v2217
  %v3502 = vpack.c.b16 %v2222, %v2218
  %v3503 = vpack.c.b16 %v2223, %v2219
  %v3504 = vpack.c.b16 %v2224, %v2220
  %v3505 = vpack.c.b16 %v2229, %v2225
  %v3506 = vpack.c.b16 %v2230, %v2226
  %v3507 = vpack.c.b16 %v2231, %v2227
  %v3508 = vpack.c.b16 %v2232, %v2228
  %v3509 = vpack.c.b16 %v2237, %v2233
  %v3510 = vpack.c.b16 %v2238, %v2234
  %v3511 = vpack.c.b16 %v2239, %v2235
  %v3512 = vpack.c.b16 %v2240, %v2236
  %v3513 = vpack.c.b16 %v2245, %v2241
  %v3514 = vpack.c.b16 %v2246, %v2242
  %v3515 = vpack.c.b16 %v2247, %v2243
  %v3516 = vpack.c.b16 %v2248, %v2244
  %v3517 = vpack.c.b16 %v2253, %v2249
  %v3518 = vpack.c.b16 %v2254, %v2250
  %v3519 = vpack.c.b16 %v2255, %v2251
  %v3520 = vpack.c.b16 %v2256, %v2252
  %v3521 = vpack.c.b16 %v2261, %v2257
  %v3522 = vpack.c.b16 %v2262, %v2258
  %v3523 = vpack.c.b16 %v2263, %v2259
  %v3524 = vpack.c.b16 %v2264, %v2260
  %v3525 = vpack.c.b16 %v2269, %v2265
  %v3526 = vpack.c.b16 %v2270, %v2266
  %v3527 = vpack.c.b16 %v2271, %v2267
  %v3528 = vpack.c.b16 %v2272, %v2268
  %v3529 = vpack.c.b16 %v2277, %v2273
  %v3530 = vpack.c.b16 %v2278, %v2274
  %v3531 = vpack.c.b16 %v2279, %v2275
  %v3532 = vpack.c.b16 %v2280, %v2276
  %v3533 = vpack.c.b16 %v2285, %v2281
  %v3534 = vpack.c.b16 %v2286, %v2282
  %v3535 = vpack.c.b16 %v2287, %v2283
  %v3536 = vpack.c.b16 %v2288, %v2284
  %v3537 = vpack.c.b16 %v2293, %v2289
  %v3538 = vpack.c.b16 %v2294, %v2290
  %v3539 = vpack.c.b16 %v2295, %v2291
  %v3540 = vpack.c.b16 %v2296, %v2292
  %v3541 = vpack.c.b16 %v2301, %v2297
  %v3542 = vpack.c.b16 %v2302, %v2298
  %v3543 = vpack.c.b16 %v2303, %v2299
  %v3544 = vpack.c.b16 %v2304, %v2300
  %v3545 = vpack.c.b16 %v2309, %v2305
  %v3546 = vpack.c.b16 %v2310, %v2306
  %v3547 = vpack.c.b16 %v2311, %v2307
  %v3548 = vpack.c.b16 %v2312, %v2308
  %v3549 = vpack.c.b16 %v2317, %v2313
  %v3550 = vpack.c.b16 %v2318, %v2314
  %v3551 = vpack.c.b16 %v2319, %v2315
  %v3552 = vpack.c.b16 %v2320, %v2316
  %v3553 = vpack.c.b16 %v2325, %v2321
  %v3554 = vpack.c.b16 %v2326, %v2322
  %v3555 = vpack.c.b16 %v2327, %v2323
  %v3556 = vpack.c.b16 %v2328, %v2324
  %v3557 = vpack.c.b16 %v2333, %v2329
  %v3558 = vpack.c.b16 %v2334, %v2330
  %v3559 = vpack.c.b16 %v2335, %v2331
  %v3560 = vpack.c.b16 %v2336, %v2332
  %v3561 = vpack.c.b16 %v2341, %v2337
  %v3562 = vpack.c.b16 %v2342, %v2338
  %v3563 = vpack.c.b16 %v2343, %v2339
  %v3564 = vpack.c.b16 %v2344, %v2340
  %v3565 = vpack.c.b16 %v2349, %v2345
  %v3566 = vpack.c.b16 %v2350, %v2346
  %v3567 = vpack.c.b16 %v2351, %v2347
  %v3568 = vpack.c.b16 %v2352, %v2348
  %v3569 = vpack.c.b16 %v2357, %v2353
  %v3570 = vpack.c.b16 %v2358, %v2354
  %v3571 = vpack.c.b16 %v2359, %v2355
  %v3572 = vpack.c.b16 %v2360, %v2356
  %v3573 = vpack.c.b16 %v2365, %v2361
  %v3574 = vpack.c.b16 %v2366, %v2362
  %v3575 = vpack.c.b16 %v2367, %v2363
  %v3576 = vpack.c.b16 %v2368, %v2364
  %v3577 = vpack.c.b16 %v2373, %v2369
  %v3578 = vpack.c.b16 %v2374, %v2370
  %v3579 = vpack.c.b16 %v2375, %v2371
  %v3580 = vpack.c.b16 %v2376, %v2372
  %v3581 = vpack.c.b16 %v2381, %v2377
  %v3582 = vpack.c.b16 %v2382, %v2378
  %v3583 = vpack.c.b16 %v2383, %v2379
  %v3584 = vpack.c.b16 %v2384, %v2380
  %v3585 = vpack.c.b16 %v2389, %v2385
  %v3586 = vpack.c.b16 %v2390, %v2386
  %v3587 = vpack.c.b16 %v2391, %v2387
  %v3588 = vpack.c.b16 %v2392, %v2388
  %v3589 = vpack.c.b16 %v2397, %v2393
  %v3590 = vpack.c.b16 %v2398, %v2394
  %v3591 = vpack.c.b16 %v2399, %v2395
  %v3592 = vpack.c.b16 %v2400, %v2396
  %v3593 = vpack.c.b16 %v2405, %v2401
  %v3594 = vpack.c.b16 %v2406, %v2402
  %v3595 = vpack.c.b16 %v2407, %v2403
  %v3596 = vpack.c.b16 %v2408, %v2404
  %v3597 = vpack.c.b16 %v2413, %v2409
  %v3598 = vpack.c.b16 %v2414, %v2410
  %v3599 = vpack.c.b16 %v2415, %v2411
  %v3600 = vpack.c.b16 %v2416, %v2412
  %v3601 = vpack.c.b16 %v2421, %v2417
  %v3602 = vpack.c.b16 %v2422, %v2418
  %v3603 = vpack.c.b16 %v2423, %v2419
  %v3604 = vpack.c.b16 %v2424, %v2420
  %v3605 = vpack.c.b16 %v2429, %v2425
  %v3606 = vpack.c.b16 %v2430, %v2426
  %v3607 = vpack.c.b16 %v2431, %v2427
  %v3608 = vpack.c.b16 %v2432, %v2428
  %v3609 = vpack.c.b16 %v2437, %v2433
  %v3610 = vpack.c.b16 %v2438, %v2434
  %v3611 = vpack.c.b16 %v2439, %v2435
  %v3612 = vpack.c.b16 %v2440, %v2436
  %v3613 = vpack.c.b16 %v2445, %v2441
  %v3614 = vpack.c.b16 %v2446, %v2442
  %v3615 = vpack.c.b16 %v2447, %v2443
  %v3616 = vpack.c.b16 %v2448, %v2444
  %v3617 = vpack.c.b16 %v2453, %v2449
  %v3618 = vpack.c.b16 %v2454, %v2450
  %v3619 = vpack.c.b16 %v2455, %v2451
  %v3620 = vpack.c.b16 %v2456, %v2452
  %v3621 = vpack.c.b16 %v2461, %v2457
  %v3622 = vpack.c.b16 %v2462, %v2458
  %v3623 = vpack.c.b16 %v2463, %v2459
  %v3624 = vpack.c.b16 %v2464, %v2460
  %v3625 = vpack.c.b16 %v2469, %v2465
  %v3626 = vpack.c.b16 %v2470, %v2466
  %v3627 = vpack.c.b16 %v2471, %v2467
  %v3628 = vpack.c.b16 %v2472, %v2468
  %v3629 = vpack.c.b16 %v2477, %v2473
  %v3630 = vpack.c.b16 %v2478, %v2474
  %v3631 = vpack.c.b16 %v2479, %v2475
  %v3632 = vpack.c.b16 %v2480, %v2476
  %v3633 = vpack.c.b16 %v2485, %v2481
  %v3634 = vpack.c.b16 %v2486, %v2482
  %v3635 = vpack.c.b16 %v2487, %v2483
  %v3636 = vpack.c.b16 %v2488, %v2484
  %v3637 = vpack.c.b16 %v2493, %v2489
  %v3638 = vpack.c.b16 %v2494, %v2490
  %v3639 = vpack.c.b16 %v2495, %v2491
  %v3640 = vpack.c.b16 %v2496, %v2492
  %v3641 = vpack.c.b16 %v2501, %v2497
  %v3642 = vpack.c.b16 %v2502, %v2498
  %v3643 = vpack.c.b16 %v2503, %v2499
  %v3644 = vpack.c.b16 %v2504, %v2500
  %v3645 = vpack.c.b16 %v2509, %v2505
  %v3646 = vpack.c.b16 %v2510, %v2506
  %v3647 = vpack.c.b16 %v2511, %v2507
  %v3648 = vpack.c.b16 %v2512, %v2508
  %v3649 = vpack.c.b16 %v2517, %v2513
  %v3650 = vpack.c.b16 %v2518, %v2514
  %v3651 = vpack.c.b16 %v2519, %v2515
  %v3652 = vpack.c.b16 %v2520, %v2516
  %v3653 = vpack.c.b16 %v2525, %v2521
  %v3654 = vpack.c.b16 %v2526, %v2522
  %v3655 = vpack.c.b16 %v2527, %v2523
  %v3656 = vpack.c.b16 %v2528, %v2524
  %v3657 = vpack.c.b16 %v2533, %v2529
  %v3658 = vpack.c.b16 %v2534, %v2530
  %v3659 = vpack.c.b16 %v2535, %v2531
  %v3660 = vpack.c.b16 %v2536, %v2532
  %v3661 = vpack.c.b16 %v2541, %v2537
  %v3662 = vpack.c.b16 %v2542, %v2538
  %v3663 = vpack.c.b16 %v2543, %v2539
  %v3664 = vpack.c.b16 %v2544, %v2540
  %v3665 = vpack.c.b16 %v2549, %v2545
  %v3666 = vpack.c.b16 %v2550, %v2546
  %v3667 = vpack.c.b16 %v2551, %v2547
  %v3668 = vpack.c.b16 %v2552, %v2548
  %v3669 = vpack.c.b16 %v2557, %v2553
  %v3670 = vpack.c.b16 %v2558, %v2554
  %v3671 = vpack.c.b16 %v2559, %v2555
  %v3672 = vpack.c.b16 %v2560, %v2556
  %v3673 = vpack.c.b16 %v2565, %v2561
  %v3674 = vpack.c.b16 %v2566, %v2562
  %v3675 = vpack.c.b16 %v2567, %v2563
  %v3676 = vpack.c.b16 %v2568, %v2564
  %v3677 = vpack.c.b16 %v2573, %v2569
  %v3678 = vpack.c.b16 %v2574, %v2570
  %v3679 = vpack.c.b16 %v2575, %v2571
  %v3680 = vpack.c.b16 %v2576, %v2572
  %v3681 = vpack.c.b16 %v2581, %v2577
  %v3682 = vpack.c.b16 %v2582, %v2578
  %v3683 = vpack.c.b16 %v2583, %v2579
  %v3684 = vpack.c.b16 %v2584, %v2580
  %v3685 = vpack.c.b16 %v2589, %v2585
  %v3686 = vpack.c.b16 %v2590, %v2586
  %v3687 = vpack.c.b16 %v2591, %v2587
  %v3688 = vpack.c.b16 %v2592, %v2588
  %v3689 = vpack.c.b16 %v2597, %v2593
  %v3690 = vpack.c.b16 %v2598, %v2594
  %v3691 = vpack.c.b16 %v2599, %v2595
  %v3692 = vpack.c.b16 %v2600, %v2596
  %v3693 = vpack.c.b16 %v2605, %v2601
  %v3694 = vpack.c.b16 %v2606, %v2602
  %v3695 = vpack.c.b16 %v2607, %v2603
  %v3696 = vpack.c.b16 %v2608, %v2604
  %v3697 = vpack.c.b16 %v2613, %v2609
  %v3698 = vpack.c.b16 %v2614, %v2610
  %v3699 = vpack.c.b16 %v2615, %v2611
  %v3700 = vpack.c.b16 %v2616, %v2612
  %v3701 = vpack.c.b16 %v2621, %v2617
  %v3702 = vpack.c.b16 %v2622, %v2618
  %v3703 = vpack.c.b16 %v2623, %v2619
  %v3704 = vpack.c.b16 %v2624, %v2620
  %v3705 = vpack.c.b16 %v2629, %v2625
  %v3706 = vpack.c.b16 %v2630, %v2626
  %v3707 = vpack.c.b16 %v2631, %v2627
  %v3708 = vpack.c.b16 %v2632, %v2628
  %v3709 = vpack.c.b16 %v2637, %v2633
  %v3710 = vpack.c.b16 %v2638, %v2634
  %v3711 = vpack.c.b16 %v2639, %v2635
  %v3712 = vpack.c.b16 %v2640, %v2636
  %v3713 = vpack.c.b16 %v2645, %v2641
  %v3714 = vpack.c.b16 %v2646, %v2642
  %v3715 = vpack.c.b16 %v2647, %v2643
  %v3716 = vpack.c.b16 %v2648, %v2644
  %v3717 = vpack.c.b16 %v2653, %v2649
  %v3718 = vpack.c.b16 %v2654, %v2650
  %v3719 = vpack.c.b16 %v2655, %v2651
  %v3720 = vpack.c.b16 %v2656, %v2652
  %v3721 = vpack.c.b16 %v2661, %v2657
  %v3722 = vpack.c.b16 %v2662, %v2658
  %v3723 = vpack.c.b16 %v2663, %v2659
  %v3724 = vpack.c.b16 %v2664, %v2660
  %v3725 = vpack.c.b16 %v2669, %v2665
  %v3726 = vpack.c.b16 %v2670, %v2666
  %v3727 = vpack.c.b16 %v2671, %v2667
  %v3728 = vpack.c.b16 %v2672, %v2668
  %v3729 = vpack.c.b16 %v2677, %v2673
  %v3730 = vpack.c.b16 %v2678, %v2674
  %v3731 = vpack.c.b16 %v2679, %v2675
  %v3732 = vpack.c.b16 %v2680, %v2676
  %v3733 = vpack.c.b16 %v2685, %v2681
  %v3734 = vpack.c.b16 %v2686, %v2682
  %v3735 = vpack.c.b16 %v2687, %v2683
  %v3736 = vpack.c.b16 %v2688, %v2684
  %v3737 = vpack.c.b16 %v2693, %v2689
  %v3738 = vpack.c.b16 %v2694, %v2690
  %v3739 = vpack.c.b16 %v2695, %v2691
  %v3740 = vpack.c.b16 %v2696, %v2692
  %v3741 = vpack.c.b16 %v2701, %v2697
  %v3742 = vpack.c.b16 %v2702, %v2698
  %v3743 = vpack.c.b16 %v2703, %v2699
  %v3744 = vpack.c.b16 %v2704, %v2700
  %v3745 = vpack.c.b16 %v2709, %v2705
  %v3746 = vpack.c.b16 %v2710, %v2706
  %v3747 = vpack.c.b16 %v2711, %v2707
  %v3748 = vpack.c.b16 %v2712, %v2708
  %v3749 = vpack.c.b16 %v2717, %v2713
  %v3750 = vpack.c.b16 %v2718, %v2714
  %v3751 = vpack.c.b16 %v2719, %v2715
  %v3752 = vpack.c.b16 %v2720, %v2716
  %v3753 = vpack.c.b16 %v2725, %v2721
  %v3754 = vpack.c.b16 %v2726, %v2722
  %v3755 = vpack.c.b16 %v2727, %v2723
  %v3756 = vpack.c.b16 %v2728, %v2724
  %v3757 = vpack.c.b16 %v2733, %v2729
  %v3758 = vpack.c.b16 %v2734, %v2730
  %v3759 = vpack.c.b16 %v2735, %v2731
  %v3760 = vpack.c.b16 %v2736, %v2732
  %v3761 = vpack.c.b16 %v2741, %v2737
  %v3762 = vpack.c.b16 %v2742, %v2738
  %v3763 = vpack.c.b16 %v2743, %v2739
  %v3764 = vpack.c.b16 %v2744, %v2740
  %v3765 = vpack.c.b16 %v2749, %v2745
  %v3766 = vpack.c.b16 %v2750, %v2746
  %v3767 = vpack.c.b16 %v2751, %v2747
  %v3768 = vpack.c.b16 %v2752, %v2748
  %v3769 = vpack.c.b16 %v2757, %v2753
  %v3770 = vpack.c.b16 %v2758, %v2754
  %v3771 = vpack.c.b16 %v2759, %v2755
  %v3772 = vpack.c.b16 %v2760, %v2756
  %v3773 = vpack.c.b16 %v2765, %v2761
  %v3774 = vpack.c.b16 %v2766, %v2762
  %v3775 = vpack.c.b16 %v2767, %v2763
  %v3776 = vpack.c.b16 %v2768, %v2764
  %v3777 = vpack.c.b16 %v2773, %v2769
  %v3778 = vpack.c.b16 %v2774, %v2770
  %v3779 = vpack.c.b16 %v2775, %v2771
  %v3780 = vpack.c.b16 %v2776, %v2772
  %v3781 = vpack.c.b16 %v2781, %v2777
  %v3782 = vpack.c.b16 %v2782, %v2778
  %v3783 = vpack.c.b16 %v2783, %v2779
  %v3784 = vpack.c.b16 %v2784, %v2780
  %v3785 = vpack.c.b16 %v2789, %v2785
  %v3786 = vpack.c.b16 %v2790, %v2786
  %v3787 = vpack.c.b16 %v2791, %v2787
  %v3788 = vpack.c.b16 %v2792, %v2788
  %v3789 = vpack.c.b16 %v2797, %v2793
  %v3790 = vpack.c.b16 %v2798, %v2794
  %v3791 = vpack.c.b16 %v2799, %v2795
  %v3792 = vpack.c.b16 %v2800, %v2796
  %v3793 = vpack.c.b16 %v2805, %v2801
  %v3794 = vpack.c.b16 %v2806, %v2802
  %v3795 = vpack.c.b16 %v2807, %v2803
  %v3796 = vpack.c.b16 %v2808, %v2804
  %v3797 = vpack.c.b16 %v2813, %v2809
  %v3798 = vpack.c.b16 %v2814, %v2810
  %v3799 = vpack.c.b16 %v2815, %v2811
  %v3800 = vpack.c.b16 %v2816, %v2812
  %v3801 = vpack.c.b16 %v2821, %v2817
  %v3802 = vpack.c.b16 %v2822, %v2818
  %v3803 = vpack.c.b16 %v2823, %v2819
  %v3804 = vpack.c.b16 %v2824, %v2820
  %v3805 = vpack.c.b16 %v2829, %v2825
  %v3806 = vpack.c.b16 %v2830, %v2826
  %v3807 = vpack.c.b16 %v2831, %v2827
  %v3808 = vpack.c.b16 %v2832, %v2828
  %v3809 = vpack.c.b16 %v2837, %v2833
  %v3810 = vpack.c.b16 %v2838, %v2834
  %v3811 = vpack.c.b16 %v2839, %v2835
  %v3812 = vpack.c.b16 %v2840, %v2836
  %v3813 = vpack.c.b16 %v2845, %v2841
  %v3814 = vpack.c.b16 %v2846, %v2842
  %v3815 = vpack.c.b16 %v2847, %v2843
  %v3816 = vpack.c.b16 %v2848, %v2844
  %v3817 = vpack.c.b16 %v2853, %v2849
  %v3818 = vpack.c.b16 %v2854, %v2850
  %v3819 = vpack.c.b16 %v2855, %v2851
  %v3820 = vpack.c.b16 %v2856, %v2852
  %v3821 = vpack.c.b16 %v2861, %v2857
  %v3822 = vpack.c.b16 %v2862, %v2858
  %v3823 = vpack.c.b16 %v2863, %v2859
  %v3824 = vpack.c.b16 %v2864, %v2860
  %v3825 = vpack.c.b16 %v2869, %v2865
  %v3826 = vpack.c.b16 %v2870, %v2866
  %v3827 = vpack.c.b16 %v2871, %v2867
  %v3828 = vpack.c.b16 %v2872, %v2868
  %v3829 = vpack.c.b16 %v2877, %v2873
  %v3830 = vpack.c.b16 %v2878, %v2874
  %v3831 = vpack.c.b16 %v2879, %v2875
  %v3832 = vpack.c.b16 %v2880, %v2876
  %v3833 = vpack.c.b16 %v2885, %v2881
  %v3834 = vpack.c.b16 %v2886, %v2882
  %v3835 = vpack.c.b16 %v2887, %v2883
  %v3836 = vpack.c.b16 %v2888, %v2884
  %v3837 = vpack.c.b16 %v2893, %v2889
  %v3838 = vpack.c.b16 %v2894, %v2890
  %v3839 = vpack.c.b16 %v2895, %v2891
  %v3840 = vpack.c.b16 %v2896, %v2892
  %v3841 = vpack.c.b16 %v2901, %v2897
  %v3842 = vpack.c.b16 %v2902, %v2898
  %v3843 = vpack.c.b16 %v2903, %v2899
  %v3844 = vpack.c.b16 %v2904, %v2900
  %v3845 = vpack.c.b16 %v2909, %v2905
  %v3846 = vpack.c.b16 %v2910, %v2906
  %v3847 = vpack.c.b16 %v2911, %v2907
  %v3848 = vpack.c.b16 %v2912, %v2908
  %v3849 = vpack.c.b16 %v2917, %v2913
  %v3850 = vpack.c.b16 %v2918, %v2914
  %v3851 = vpack.c.b16 %v2919, %v2915
  %v3852 = vpack.c.b16 %v2920, %v2916
  %v3853 = vpack.c.b16 %v2925, %v2921
  %v3854 = vpack.c.b16 %v2926, %v2922
  %v3855 = vpack.c.b16 %v2927, %v2923
  %v3856 = vpack.c.b16 %v2928, %v2924
  %v3857 = vpack.c.b16 %v2933, %v2929
  %v3858 = vpack.c.b16 %v2934, %v2930
  %v3859 = vpack.c.b16 %v2935, %v2931
  %v3860 = vpack.c.b16 %v2936, %v2932
  %v3861 = vpack.c.b16 %v2941, %v2937
  %v3862 = vpack.c.b16 %v2942, %v2938
  %v3863 = vpack.c.b16 %v2943, %v2939
  %v3864 = vpack.c.b16 %v2944, %v2940
  %v3865 = vpack.c.b16 %v2949, %v2945
  %v3866 = vpack.c.b16 %v2950, %v2946
  %v3867 = vpack.c.b16 %v2951, %v2947
  %v3868 = vpack.c.b16 %v2952, %v2948
  %v3869 = vpack.c.b16 %v2957, %v2953
  %v3870 = vpack.c.b16 %v2958, %v2954
  %v3871 = vpack.c.b16 %v2959, %v2955
  %v3872 = vpack.c.b16 %v2960, %v2956
  %v3873 = vpack.c.b16 %v2965, %v2961
  %v3874 = vpack.c.b16 %v2966, %v2962
  %v3875 = vpack.c.b16 %v2967, %v2963
  %v3876 = vpack.c.b16 %v2968, %v2964
  %v3877 = vpack.c.b16 %v2973, %v2969
  %v3878 = vpack.c.b16 %v2974, %v2970
  %v3879 = vpack.c.b16 %v2975, %v2971
  %v3880 = vpack.c.b16 %v2976, %v2972
  %v3881 = vpack.c.b16 %v2981, %v2977
  %v3882 = vpack.c.b16 %v2982, %v2978
  %v3883 = vpack.c.b16 %v2983, %v2979
  %v3884 = vpack.c.b16 %v2984, %v2980
  %v3885 = vpack.c.b16 %v2989, %v2985
  %v3886 = vpack.c.b16 %v2990, %v2986
  %v3887 = vpack.c.b16 %v2991, %v2987
  %v3888 = vpack.c.b16 %v2992, %v2988
  %v3889 = vpack.c.b16 %v2997, %v2993
  %v3890 = vpack.c.b16 %v2998, %v2994
  %v3891 = vpack.c.b16 %v2999, %v2995
  %v3892 = vpack.c.b16 %v3000, %v2996
  %v3893 = vpack.c.b16 %v3005, %v3001
  %v3894 = vpack.c.b16 %v3006, %v3002
  %v3895 = vpack.c.b16 %v3007, %v3003
  %v3896 = vpack.c.b16 %v3008, %v3004
  %v3897 = vpack.c.b16 %v3013, %v3009
  %v3898 = vpack.c.b16 %v3014, %v3010
  %v3899 = vpack.c.b16 %v3015, %v3011
  %v3900 = vpack.c.b16 %v3016, %v3012
  %v3901 = vpack.c.b16 %v3021, %v3017
  %v3902 = vpack.c.b16 %v3022, %v3018
  %v3903 = vpack.c.b16 %v3023, %v3019
  %v3904 = vpack.c.b16 %v3024, %v3020
  %v3905 = vpack.c.b16 %v3029, %v3025
  %v3906 = vpack.c.b16 %v3030, %v3026
  %v3907 = vpack.c.b16 %v3031, %v3027
  %v3908 = vpack.c.b16 %v3032, %v3028
  %v3909 = vpack.c.b16 %v3037, %v3033
  %v3910 = vpack.c.b16 %v3038, %v3034
  %v3911 = vpack.c.b16 %v3039, %v3035
  %v3912 = vpack.c.b16 %v3040, %v3036
  %v3913 = vpack.c.b16 %v3045, %v3041
  %v3914 = vpack.c.b16 %v3046, %v3042
  %v3915 = vpack.c.b16 %v3047, %v3043
  %v3916 = vpack.c.b16 %v3048, %v3044
  %v3917 = vpack.c.b16 %v3053, %v3049
  %v3918 = vpack.c.b16 %v3054, %v3050
  %v3919 = vpack.c.b16 %v3055, %v3051
  %v3920 = vpack.c.b16 %v3056, %v3052
  %v3921 = vpack.c.b16 %v3061, %v3057
  %v3922 = vpack.c.b16 %v3062, %v3058
  %v3923 = vpack.c.b16 %v3063, %v3059
  %v3924 = vpack.c.b16 %v3064, %v3060
  %v3925 = vpack.c.b16 %v3069, %v3065
  %v3926 = vpack.c.b16 %v3070, %v3066
  %v3927 = vpack.c.b16 %v3071, %v3067
  %v3928 = vpack.c.b16 %v3072, %v3068
  %v3929 = vpack.c.b16 %v3077, %v3073
  %v3930 = vpack.c.b16 %v3078, %v3074
  %v3931 = vpack.c.b16 %v3079, %v3075
  %v3932 = vpack.c.b16 %v3080, %v3076
  %v3933 = vpack.c.b16 %v3085, %v3081
  %v3934 = vpack.c.b16 %v3086, %v3082
  %v3935 = vpack.c.b16 %v3087, %v3083
  %v3936 = vpack.c.b16 %v3088, %v3084
  %v3937 = vpack.c.b16 %v3093, %v3089
  %v3938 = vpack.c.b16 %v3094, %v3090
  %v3939 = vpack.c.b16 %v3095, %v3091
  %v3940 = vpack.c.b16 %v3096, %v3092
  %v3941 = vpack.c.b16 %v3101, %v3097
  %v3942 = vpack.c.b16 %v3102, %v3098
  %v3943 = vpack.c.b16 %v3103, %v3099
  %v3944 = vpack.c.b16 %v3104, %v3100
  %v3945 = vpack.c.b16 %v3109, %v3105
  %v3946 = vpack.c.b16 %v3110, %v3106
  %v3947 = vpack.c.b16 %v3111, %v3107
  %v3948 = vpack.c.b16 %v3112, %v3108
  %v3949 = vpack.c.b16 %v3117, %v3113
  %v3950 = vpack.c.b16 %v3118, %v3114
  %v3951 = vpack.c.b16 %v3119, %v3115
  %v3952 = vpack.c.b16 %v3120, %v3116
  %v3953 = vpack.c.b16 %v3125, %v3121
  %v3954 = vpack.c.b16 %v3126, %v3122
  %v3955 = vpack.c.b16 %v3127, %v3123
  %v3956 = vpack.c.b16 %v3128, %v3124
  %v3957 = vpack.c.b16 %v3133, %v3129
  %v3958 = vpack.c.b16 %v3134, %v3130
  %v3959 = vpack.c.b16 %v3135, %v3131
  %v3960 = vpack.c.b16 %v3136, %v3132
  %v3961 = vpack.c.b16 %v3141, %v3137
  %v3962 = vpack.c.b16 %v3142, %v3138
  %v3963 = vpack.c.b16 %v3143, %v3139
  %v3964 = vpack.c.b16 %v3144, %v3140
  %v3965 = vpack.c.b16 %v3149, %v3145
  %v3966 = vpack.c.b16 %v3150, %v3146
  %v3967 = vpack.c.b16 %v3151, %v3147
  %v3968 = vpack.c.b16 %v3152, %v3148
  %v3969 = vpack.c.b16 %v3157, %v3153
  %v3970 = vpack.c.b16 %v3158, %v3154
  %v3971 = vpack.c.b16 %v3159, %v3155
  %v3972 = vpack.c.b16 %v3160, %v3156
  %v3973 = vpack.c.b16 %v3165, %v3161
  %v3974 = vpack.c.b16 %v3166, %v3162
  %v3975 = vpack.c.b16 %v3167, %v3163
  %v3976 = vpack.c.b16 %v3168, %v3164
  %v3977 = vpack.c.b16 %v3173, %v3169
  %v3978 = vpack.c.b16 %v3174, %v3170
  %v3979 = vpack.c.b16 %v3175, %v3171
  %v3980 = vpack.c.b16 %v3176, %v3172
  %v3981 = vpack.c.b16 %v3181, %v3177
  %v3982 = vpack.c.b16 %v3182, %v3178
  %v3983 = vpack.c.b16 %v3183, %v3179
  %v3984 = vpack.c.b16 %v3184, %v3180
  %v3985 = vpack.c.b16 %v3189, %v3185
  %v3986 = vpack.c.b16 %v3190, %v3186
  %v3987 = vpack.c.b16 %v3191, %v3187
  %v3988 = vpack.c.b16 %v3192, %v3188
  %v3989 = vpack.c.b16 %v3197, %v3193
  %v3990 = vpack.c.b16 %v3198, %v3194
  %v3991 = vpack.c.b16 %v3199, %v3195
  %v3992 = vpack.c.b16 %v3200, %v3196
  %v3993 = vpack.c.b16 %v3205, %v3201
  %v3994 = vpack.c.b16 %v3206, %v3202
  %v3995 = vpack.c.b16 %v3207, %v3203
  %v3996 = vpack.c.b16 %v3208, %v3204
  %v3997 = vpack.c.b16 %v3213, %v3209
  %v3998 = vpack.c.b16 %v3214, %v3210
  %v3999 = vpack.c.b16 %v3215, %v3211
  %v4000 = vpack.c.b16 %v3216, %v3212
  %vm4785 = vcmask 523264
  %v4787 = vsel %vm4785, %v70, 0
  %4789 = vmatpush.bf16.msra.mxu0 %v3245
  %4790 = vmatpush.bf16.msra.mxu0 %v3241
  %4791 = vmatpush.bf16.msra.mxu0 %v3237
  %4792 = vmatpush.bf16.msra.mxu0 %v3233
  %4793 = vmatpush.bf16.msra.mxu0 %v3229
  %4794 = vmatpush.bf16.msra.mxu0 %v3225
  %4795 = vmatpush.bf16.msra.mxu0 %v3221
  %4796 = vmatpush.bf16.msra.mxu0 %v3217
  %4797 = vmatmul.bf16.gmra.mxu0 %v46
  %v4798 = vpop.f32.mrf.mxu0
  %v4799 = vadd.f32 %v857, %v4798
  %v4800 = vpop.f32.mrf.mxu0
  %4801 = vdwg.mxu0
  %4802 = vmatpush.bf16.msra.mxu0 %v3277
  %4803 = vmatpush.bf16.msra.mxu0 %v3273
  %4804 = vmatpush.bf16.msra.mxu0 %v3269
  %4805 = vmatpush.bf16.msra.mxu0 %v3265
  %4806 = vmatpush.bf16.msra.mxu0 %v3261
  %4807 = vmatpush.bf16.msra.mxu0 %v3257
  %4808 = vmatpush.bf16.msra.mxu0 %v3253
  %4809 = vmatpush.bf16.msra.mxu0 %v3249
  %4810 = vmatmul.bf16.gmra.mxu0 %v47
  %v4811 = vpop.f32.mrf.mxu0
  %v4812 = vadd.f32 %v4799, %v4811
  %v4813 = vpop.f32.mrf.mxu0
  %4814 = vdwg.mxu0
  %4815 = vmatpush.bf16.msra.mxu0 %v3309
  %4816 = vmatpush.bf16.msra.mxu0 %v3305
  %4817 = vmatpush.bf16.msra.mxu0 %v3301
  %4818 = vmatpush.bf16.msra.mxu0 %v3297
  %4819 = vmatpush.bf16.msra.mxu0 %v3293
  %4820 = vmatpush.bf16.msra.mxu0 %v3289
  %4821 = vmatpush.bf16.msra.mxu0 %v3285
  %4822 = vmatpush.bf16.msra.mxu0 %v3281
  %4823 = vmatmul.bf16.gmra.mxu0 %v48
  %v4824 = vpop.f32.mrf.mxu0
  %v4825 = vadd.f32 %v4812, %v4824
  %v4826 = vpop.f32.mrf.mxu0
  %4827 = vdwg.mxu0
  %4828 = vmatpush.bf16.msra.mxu0 %v3341
  %4829 = vmatpush.bf16.msra.mxu0 %v3337
  %4830 = vmatpush.bf16.msra.mxu0 %v3333
  %4831 = vmatpush.bf16.msra.mxu0 %v3329
  %4832 = vmatpush.bf16.msra.mxu0 %v3325
  %4833 = vmatpush.bf16.msra.mxu0 %v3321
  %4834 = vmatpush.bf16.msra.mxu0 %v3317
  %4835 = vmatpush.bf16.msra.mxu0 %v3313
  %4836 = vmatmul.bf16.gmra.mxu0 %v49
  %v4837 = vpop.f32.mrf.mxu0
  %v4838 = vadd.f32 %v4825, %v4837
  %v4839 = vpop.f32.mrf.mxu0
  %4840 = vdwg.mxu0
  %4841 = vmatpush.bf16.msra.mxu0 %v3373
  %4842 = vmatpush.bf16.msra.mxu0 %v3369
  %4843 = vmatpush.bf16.msra.mxu0 %v3365
  %4844 = vmatpush.bf16.msra.mxu0 %v3361
  %4845 = vmatpush.bf16.msra.mxu0 %v3357
  %4846 = vmatpush.bf16.msra.mxu0 %v3353
  %4847 = vmatpush.bf16.msra.mxu0 %v3349
  %4848 = vmatpush.bf16.msra.mxu0 %v3345
  %4849 = vmatmul.bf16.gmra.mxu0 %v50
  %v4850 = vpop.f32.mrf.mxu0
  %v4851 = vadd.f32 %v4838, %v4850
  %v4852 = vpop.f32.mrf.mxu0
  %4853 = vdwg.mxu0
  %4854 = vmatpush.bf16.msra.mxu0 %v3405
  %4855 = vmatpush.bf16.msra.mxu0 %v3401
  %4856 = vmatpush.bf16.msra.mxu0 %v3397
  %4857 = vmatpush.bf16.msra.mxu0 %v3393
  %4858 = vmatpush.bf16.msra.mxu0 %v3389
  %4859 = vmatpush.bf16.msra.mxu0 %v3385
  %4860 = vmatpush.bf16.msra.mxu0 %v3381
  %4861 = vmatpush.bf16.msra.mxu0 %v3377
  %4862 = vmatmul.bf16.gmra.mxu0 %v51
  %v4863 = vpop.f32.mrf.mxu0
  %v4864 = vadd.f32 %v4851, %v4863
  %v4865 = vpop.f32.mrf.mxu0
  %4866 = vdwg.mxu0
  %4867 = vmatpush.bf16.msra.mxu0 %v3437
  %4868 = vmatpush.bf16.msra.mxu0 %v3433
  %4869 = vmatpush.bf16.msra.mxu0 %v3429
  %4870 = vmatpush.bf16.msra.mxu0 %v3425
  %4871 = vmatpush.bf16.msra.mxu0 %v3421
  %4872 = vmatpush.bf16.msra.mxu0 %v3417
  %4873 = vmatpush.bf16.msra.mxu0 %v3413
  %4874 = vmatpush.bf16.msra.mxu0 %v3409
  %4875 = vmatmul.bf16.gmra.mxu0 %v52
  %v4876 = vpop.f32.mrf.mxu0
  %v4877 = vadd.f32 %v4864, %v4876
  %v4878 = vpop.f32.mrf.mxu0
  %4879 = vdwg.mxu0
  %4880 = vmatpush.bf16.msra.mxu0 %v3469
  %4881 = vmatpush.bf16.msra.mxu0 %v3465
  %4882 = vmatpush.bf16.msra.mxu0 %v3461
  %4883 = vmatpush.bf16.msra.mxu0 %v3457
  %4884 = vmatpush.bf16.msra.mxu0 %v3453
  %4885 = vmatpush.bf16.msra.mxu0 %v3449
  %4886 = vmatpush.bf16.msra.mxu0 %v3445
  %4887 = vmatpush.bf16.msra.mxu0 %v3441
  %4888 = vmatmul.bf16.gmra.mxu0 %v53
  %v4889 = vpop.f32.mrf.mxu0
  %v4890 = vadd.f32 %v4877, %v4889
  %v4891 = vpop.f32.mrf.mxu0
  %4892 = vdwg.mxu0
  %4893 = vmatpush.bf16.msra.mxu0 %v3501
  %4894 = vmatpush.bf16.msra.mxu0 %v3497
  %4895 = vmatpush.bf16.msra.mxu0 %v3493
  %4896 = vmatpush.bf16.msra.mxu0 %v3489
  %4897 = vmatpush.bf16.msra.mxu0 %v3485
  %4898 = vmatpush.bf16.msra.mxu0 %v3481
  %4899 = vmatpush.bf16.msra.mxu0 %v3477
  %4900 = vmatpush.bf16.msra.mxu0 %v3473
  %4901 = vmatmul.bf16.gmra.mxu0 %v54
  %v4902 = vpop.f32.mrf.mxu0
  %v4903 = vadd.f32 %v4890, %v4902
  %v4904 = vpop.f32.mrf.mxu0
  %4905 = vdwg.mxu0
  %4906 = vmatpush.bf16.msra.mxu0 %v3533
  %4907 = vmatpush.bf16.msra.mxu0 %v3529
  %4908 = vmatpush.bf16.msra.mxu0 %v3525
  %4909 = vmatpush.bf16.msra.mxu0 %v3521
  %4910 = vmatpush.bf16.msra.mxu0 %v3517
  %4911 = vmatpush.bf16.msra.mxu0 %v3513
  %4912 = vmatpush.bf16.msra.mxu0 %v3509
  %4913 = vmatpush.bf16.msra.mxu0 %v3505
  %4914 = vmatmul.bf16.gmra.mxu0 %v55
  %v4915 = vpop.f32.mrf.mxu0
  %v4916 = vadd.f32 %v4903, %v4915
  %v4917 = vpop.f32.mrf.mxu0
  %4918 = vdwg.mxu0
  %4919 = vmatpush.bf16.msra.mxu0 %v3565
  %4920 = vmatpush.bf16.msra.mxu0 %v3561
  %4921 = vmatpush.bf16.msra.mxu0 %v3557
  %4922 = vmatpush.bf16.msra.mxu0 %v3553
  %4923 = vmatpush.bf16.msra.mxu0 %v3549
  %4924 = vmatpush.bf16.msra.mxu0 %v3545
  %4925 = vmatpush.bf16.msra.mxu0 %v3541
  %4926 = vmatpush.bf16.msra.mxu0 %v3537
  %4927 = vmatmul.bf16.gmra.mxu0 %v56
  %v4928 = vpop.f32.mrf.mxu0
  %v4929 = vadd.f32 %v4916, %v4928
  %v4930 = vpop.f32.mrf.mxu0
  %4931 = vdwg.mxu0
  %4932 = vmatpush.bf16.msra.mxu0 %v3597
  %4933 = vmatpush.bf16.msra.mxu0 %v3593
  %4934 = vmatpush.bf16.msra.mxu0 %v3589
  %4935 = vmatpush.bf16.msra.mxu0 %v3585
  %4936 = vmatpush.bf16.msra.mxu0 %v3581
  %4937 = vmatpush.bf16.msra.mxu0 %v3577
  %4938 = vmatpush.bf16.msra.mxu0 %v3573
  %4939 = vmatpush.bf16.msra.mxu0 %v3569
  %4940 = vmatmul.bf16.gmra.mxu0 %v57
  %v4941 = vpop.f32.mrf.mxu0
  %v4942 = vadd.f32 %v4929, %v4941
  %v4943 = vpop.f32.mrf.mxu0
  %4944 = vdwg.mxu0
  %4945 = vmatpush.bf16.msra.mxu0 %v3629
  %4946 = vmatpush.bf16.msra.mxu0 %v3625
  %4947 = vmatpush.bf16.msra.mxu0 %v3621
  %4948 = vmatpush.bf16.msra.mxu0 %v3617
  %4949 = vmatpush.bf16.msra.mxu0 %v3613
  %4950 = vmatpush.bf16.msra.mxu0 %v3609
  %4951 = vmatpush.bf16.msra.mxu0 %v3605
  %4952 = vmatpush.bf16.msra.mxu0 %v3601
  %4953 = vmatmul.bf16.gmra.mxu0 %v58
  %v4954 = vpop.f32.mrf.mxu0
  %v4955 = vadd.f32 %v4942, %v4954
  %v4956 = vpop.f32.mrf.mxu0
  %4957 = vdwg.mxu0
  %4958 = vmatpush.bf16.msra.mxu0 %v3661
  %4959 = vmatpush.bf16.msra.mxu0 %v3657
  %4960 = vmatpush.bf16.msra.mxu0 %v3653
  %4961 = vmatpush.bf16.msra.mxu0 %v3649
  %4962 = vmatpush.bf16.msra.mxu0 %v3645
  %4963 = vmatpush.bf16.msra.mxu0 %v3641
  %4964 = vmatpush.bf16.msra.mxu0 %v3637
  %4965 = vmatpush.bf16.msra.mxu0 %v3633
  %4966 = vmatmul.bf16.gmra.mxu0 %v59
  %v4967 = vpop.f32.mrf.mxu0
  %v4968 = vadd.f32 %v4955, %v4967
  %v4969 = vpop.f32.mrf.mxu0
  %4970 = vdwg.mxu0
  %4971 = vmatpush.bf16.msra.mxu0 %v3693
  %4972 = vmatpush.bf16.msra.mxu0 %v3689
  %4973 = vmatpush.bf16.msra.mxu0 %v3685
  %4974 = vmatpush.bf16.msra.mxu0 %v3681
  %4975 = vmatpush.bf16.msra.mxu0 %v3677
  %4976 = vmatpush.bf16.msra.mxu0 %v3673
  %4977 = vmatpush.bf16.msra.mxu0 %v3669
  %4978 = vmatpush.bf16.msra.mxu0 %v3665
  %4979 = vmatmul.bf16.gmra.mxu0 %v60
  %v4980 = vpop.f32.mrf.mxu0
  %v4981 = vadd.f32 %v4968, %v4980
  %v4982 = vpop.f32.mrf.mxu0
  %4983 = vdwg.mxu0
  %4984 = vmatpush.bf16.msra.mxu0 %v3725
  %4985 = vmatpush.bf16.msra.mxu0 %v3721
  %4986 = vmatpush.bf16.msra.mxu0 %v3717
  %4987 = vmatpush.bf16.msra.mxu0 %v3713
  %4988 = vmatpush.bf16.msra.mxu0 %v3709
  %4989 = vmatpush.bf16.msra.mxu0 %v3705
  %4990 = vmatpush.bf16.msra.mxu0 %v3701
  %4991 = vmatpush.bf16.msra.mxu0 %v3697
  %4992 = vmatmul.bf16.gmra.mxu0 %v61
  %v4993 = vpop.f32.mrf.mxu0
  %v4994 = vadd.f32 %v4981, %v4993
  %v4995 = vpop.f32.mrf.mxu0
  %4996 = vdwg.mxu0
  %4997 = vmatpush.bf16.msra.mxu0 %v3757
  %4998 = vmatpush.bf16.msra.mxu0 %v3753
  %4999 = vmatpush.bf16.msra.mxu0 %v3749
  %5000 = vmatpush.bf16.msra.mxu0 %v3745
  %5001 = vmatpush.bf16.msra.mxu0 %v3741
  %5002 = vmatpush.bf16.msra.mxu0 %v3737
  %5003 = vmatpush.bf16.msra.mxu0 %v3733
  %5004 = vmatpush.bf16.msra.mxu0 %v3729
  %5005 = vmatmul.bf16.gmra.mxu0 %v62
  %v5006 = vpop.f32.mrf.mxu0
  %v5007 = vadd.f32 %v4994, %v5006
  %v5008 = vpop.f32.mrf.mxu0
  %5009 = vdwg.mxu0
  %5010 = vmatpush.bf16.msra.mxu0 %v3789
  %5011 = vmatpush.bf16.msra.mxu0 %v3785
  %5012 = vmatpush.bf16.msra.mxu0 %v3781
  %5013 = vmatpush.bf16.msra.mxu0 %v3777
  %5014 = vmatpush.bf16.msra.mxu0 %v3773
  %5015 = vmatpush.bf16.msra.mxu0 %v3769
  %5016 = vmatpush.bf16.msra.mxu0 %v3765
  %5017 = vmatpush.bf16.msra.mxu0 %v3761
  %5018 = vmatmul.bf16.gmra.mxu0 %v63
  %v5019 = vpop.f32.mrf.mxu0
  %v5020 = vadd.f32 %v5007, %v5019
  %v5021 = vpop.f32.mrf.mxu0
  %5022 = vdwg.mxu0
  %5023 = vmatpush.bf16.msra.mxu0 %v3821
  %5024 = vmatpush.bf16.msra.mxu0 %v3817
  %5025 = vmatpush.bf16.msra.mxu0 %v3813
  %5026 = vmatpush.bf16.msra.mxu0 %v3809
  %5027 = vmatpush.bf16.msra.mxu0 %v3805
  %5028 = vmatpush.bf16.msra.mxu0 %v3801
  %5029 = vmatpush.bf16.msra.mxu0 %v3797
  %5030 = vmatpush.bf16.msra.mxu0 %v3793
  %5031 = vmatmul.bf16.gmra.mxu0 %v64
  %v5032 = vpop.f32.mrf.mxu0
  %v5033 = vadd.f32 %v5020, %v5032
  %v5034 = vpop.f32.mrf.mxu0
  %5035 = vdwg.mxu0
  %5036 = vmatpush.bf16.msra.mxu0 %v3853
  %5037 = vmatpush.bf16.msra.mxu0 %v3849
  %5038 = vmatpush.bf16.msra.mxu0 %v3845
  %5039 = vmatpush.bf16.msra.mxu0 %v3841
  %5040 = vmatpush.bf16.msra.mxu0 %v3837
  %5041 = vmatpush.bf16.msra.mxu0 %v3833
  %5042 = vmatpush.bf16.msra.mxu0 %v3829
  %5043 = vmatpush.bf16.msra.mxu0 %v3825
  %5044 = vmatmul.bf16.gmra.mxu0 %v65
  %v5045 = vpop.f32.mrf.mxu0
  %v5046 = vadd.f32 %v5033, %v5045
  %v5047 = vpop.f32.mrf.mxu0
  %5048 = vdwg.mxu0
  %5049 = vmatpush.bf16.msra.mxu0 %v3885
  %5050 = vmatpush.bf16.msra.mxu0 %v3881
  %5051 = vmatpush.bf16.msra.mxu0 %v3877
  %5052 = vmatpush.bf16.msra.mxu0 %v3873
  %5053 = vmatpush.bf16.msra.mxu0 %v3869
  %5054 = vmatpush.bf16.msra.mxu0 %v3865
  %5055 = vmatpush.bf16.msra.mxu0 %v3861
  %5056 = vmatpush.bf16.msra.mxu0 %v3857
  %5057 = vmatmul.bf16.gmra.mxu0 %v66
  %v5058 = vpop.f32.mrf.mxu0
  %v5059 = vadd.f32 %v5046, %v5058
  %v5060 = vpop.f32.mrf.mxu0
  %5061 = vdwg.mxu0
  %5062 = vmatpush.bf16.msra.mxu0 %v3917
  %5063 = vmatpush.bf16.msra.mxu0 %v3913
  %5064 = vmatpush.bf16.msra.mxu0 %v3909
  %5065 = vmatpush.bf16.msra.mxu0 %v3905
  %5066 = vmatpush.bf16.msra.mxu0 %v3901
  %5067 = vmatpush.bf16.msra.mxu0 %v3897
  %5068 = vmatpush.bf16.msra.mxu0 %v3893
  %5069 = vmatpush.bf16.msra.mxu0 %v3889
  %5070 = vmatmul.bf16.gmra.mxu0 %v67
  %v5071 = vpop.f32.mrf.mxu0
  %v5072 = vadd.f32 %v5059, %v5071
  %v5073 = vpop.f32.mrf.mxu0
  %5074 = vdwg.mxu0
  %5075 = vmatpush.bf16.msra.mxu0 %v3949
  %5076 = vmatpush.bf16.msra.mxu0 %v3945
  %5077 = vmatpush.bf16.msra.mxu0 %v3941
  %5078 = vmatpush.bf16.msra.mxu0 %v3937
  %5079 = vmatpush.bf16.msra.mxu0 %v3933
  %5080 = vmatpush.bf16.msra.mxu0 %v3929
  %5081 = vmatpush.bf16.msra.mxu0 %v3925
  %5082 = vmatpush.bf16.msra.mxu0 %v3921
  %5083 = vmatmul.bf16.gmra.mxu0 %v68
  %v5084 = vpop.f32.mrf.mxu0
  %v5085 = vadd.f32 %v5072, %v5084
  %v5086 = vpop.f32.mrf.mxu0
  %5087 = vdwg.mxu0
  %5088 = vmatpush.bf16.msra.mxu0 %v3981
  %5089 = vmatpush.bf16.msra.mxu0 %v3977
  %5090 = vmatpush.bf16.msra.mxu0 %v3973
  %5091 = vmatpush.bf16.msra.mxu0 %v3969
  %5092 = vmatpush.bf16.msra.mxu0 %v3965
  %5093 = vmatpush.bf16.msra.mxu0 %v3961
  %5094 = vmatpush.bf16.msra.mxu0 %v3957
  %5095 = vmatpush.bf16.msra.mxu0 %v3953
  %5096 = vmatmul.bf16.gmra.mxu0 %v69
  %v5097 = vpop.f32.mrf.mxu0
  %v5098 = vadd.f32 %v5085, %v5097
  %v5099 = vpop.f32.mrf.mxu0
  %5100 = vdwg.mxu0
  %5101 = vmatpush.bf16.msra.mxu0 0
  %5102 = vmatpush.bf16.msra.mxu0 0
  %5103 = vmatpush.bf16.msra.mxu0 0
  %5104 = vmatpush.bf16.msra.mxu0 0
  %5105 = vmatpush.bf16.msra.mxu0 %v3997
  %5106 = vmatpush.bf16.msra.mxu0 %v3993
  %5107 = vmatpush.bf16.msra.mxu0 %v3989
  %5108 = vmatpush.bf16.msra.mxu0 %v3985
  %5109 = vmatmul.bf16.gmra.mxu0 %v4787
  %v5110 = vpop.f32.mrf.mxu0
  %v5111 = vadd.f32 %v5098, %v5110
  %v5112 = vpop.f32.mrf.mxu0
  %5113 = vdwg.mxu0
  %5114 = vmatpush.bf16.msra.mxu0 %v3246
  %5115 = vmatpush.bf16.msra.mxu0 %v3242
  %5116 = vmatpush.bf16.msra.mxu0 %v3238
  %5117 = vmatpush.bf16.msra.mxu0 %v3234
  %5118 = vmatpush.bf16.msra.mxu0 %v3230
  %5119 = vmatpush.bf16.msra.mxu0 %v3226
  %5120 = vmatpush.bf16.msra.mxu0 %v3222
  %5121 = vmatpush.bf16.msra.mxu0 %v3218
  %5122 = vmatmul.bf16.gmra.mxu0 %v46
  %v5123 = vpop.f32.mrf.mxu0
  %v5124 = vadd.f32 %v858, %v5123
  %v5125 = vpop.f32.mrf.mxu0
  %5126 = vdwg.mxu0
  %5127 = vmatpush.bf16.msra.mxu0 %v3278
  %5128 = vmatpush.bf16.msra.mxu0 %v3274
  %5129 = vmatpush.bf16.msra.mxu0 %v3270
  %5130 = vmatpush.bf16.msra.mxu0 %v3266
  %5131 = vmatpush.bf16.msra.mxu0 %v3262
  %5132 = vmatpush.bf16.msra.mxu0 %v3258
  %5133 = vmatpush.bf16.msra.mxu0 %v3254
  %5134 = vmatpush.bf16.msra.mxu0 %v3250
  %5135 = vmatmul.bf16.gmra.mxu0 %v47
  %v5136 = vpop.f32.mrf.mxu0
  %v5137 = vadd.f32 %v5124, %v5136
  %v5138 = vpop.f32.mrf.mxu0
  %5139 = vdwg.mxu0
  %5140 = vmatpush.bf16.msra.mxu0 %v3310
  %5141 = vmatpush.bf16.msra.mxu0 %v3306
  %5142 = vmatpush.bf16.msra.mxu0 %v3302
  %5143 = vmatpush.bf16.msra.mxu0 %v3298
  %5144 = vmatpush.bf16.msra.mxu0 %v3294
  %5145 = vmatpush.bf16.msra.mxu0 %v3290
  %5146 = vmatpush.bf16.msra.mxu0 %v3286
  %5147 = vmatpush.bf16.msra.mxu0 %v3282
  %5148 = vmatmul.bf16.gmra.mxu0 %v48
  %v5149 = vpop.f32.mrf.mxu0
  %v5150 = vadd.f32 %v5137, %v5149
  %v5151 = vpop.f32.mrf.mxu0
  %5152 = vdwg.mxu0
  %5153 = vmatpush.bf16.msra.mxu0 %v3342
  %5154 = vmatpush.bf16.msra.mxu0 %v3338
  %5155 = vmatpush.bf16.msra.mxu0 %v3334
  %5156 = vmatpush.bf16.msra.mxu0 %v3330
  %5157 = vmatpush.bf16.msra.mxu0 %v3326
  %5158 = vmatpush.bf16.msra.mxu0 %v3322
  %5159 = vmatpush.bf16.msra.mxu0 %v3318
  %5160 = vmatpush.bf16.msra.mxu0 %v3314
  %5161 = vmatmul.bf16.gmra.mxu0 %v49
  %v5162 = vpop.f32.mrf.mxu0
  %v5163 = vadd.f32 %v5150, %v5162
  %v5164 = vpop.f32.mrf.mxu0
  %5165 = vdwg.mxu0
  %5166 = vmatpush.bf16.msra.mxu0 %v3374
  %5167 = vmatpush.bf16.msra.mxu0 %v3370
  %5168 = vmatpush.bf16.msra.mxu0 %v3366
  %5169 = vmatpush.bf16.msra.mxu0 %v3362
  %5170 = vmatpush.bf16.msra.mxu0 %v3358
  %5171 = vmatpush.bf16.msra.mxu0 %v3354
  %5172 = vmatpush.bf16.msra.mxu0 %v3350
  %5173 = vmatpush.bf16.msra.mxu0 %v3346
  %5174 = vmatmul.bf16.gmra.mxu0 %v50
  %v5175 = vpop.f32.mrf.mxu0
  %v5176 = vadd.f32 %v5163, %v5175
  %v5177 = vpop.f32.mrf.mxu0
  %5178 = vdwg.mxu0
  %5179 = vmatpush.bf16.msra.mxu0 %v3406
  %5180 = vmatpush.bf16.msra.mxu0 %v3402
  %5181 = vmatpush.bf16.msra.mxu0 %v3398
  %5182 = vmatpush.bf16.msra.mxu0 %v3394
  %5183 = vmatpush.bf16.msra.mxu0 %v3390
  %5184 = vmatpush.bf16.msra.mxu0 %v3386
  %5185 = vmatpush.bf16.msra.mxu0 %v3382
  %5186 = vmatpush.bf16.msra.mxu0 %v3378
  %5187 = vmatmul.bf16.gmra.mxu0 %v51
  %v5188 = vpop.f32.mrf.mxu0
  %v5189 = vadd.f32 %v5176, %v5188
  %v5190 = vpop.f32.mrf.mxu0
  %5191 = vdwg.mxu0
  %5192 = vmatpush.bf16.msra.mxu0 %v3438
  %5193 = vmatpush.bf16.msra.mxu0 %v3434
  %5194 = vmatpush.bf16.msra.mxu0 %v3430
  %5195 = vmatpush.bf16.msra.mxu0 %v3426
  %5196 = vmatpush.bf16.msra.mxu0 %v3422
  %5197 = vmatpush.bf16.msra.mxu0 %v3418
  %5198 = vmatpush.bf16.msra.mxu0 %v3414
  %5199 = vmatpush.bf16.msra.mxu0 %v3410
  %5200 = vmatmul.bf16.gmra.mxu0 %v52
  %v5201 = vpop.f32.mrf.mxu0
  %v5202 = vadd.f32 %v5189, %v5201
  %v5203 = vpop.f32.mrf.mxu0
  %5204 = vdwg.mxu0
  %5205 = vmatpush.bf16.msra.mxu0 %v3470
  %5206 = vmatpush.bf16.msra.mxu0 %v3466
  %5207 = vmatpush.bf16.msra.mxu0 %v3462
  %5208 = vmatpush.bf16.msra.mxu0 %v3458
  %5209 = vmatpush.bf16.msra.mxu0 %v3454
  %5210 = vmatpush.bf16.msra.mxu0 %v3450
  %5211 = vmatpush.bf16.msra.mxu0 %v3446
  %5212 = vmatpush.bf16.msra.mxu0 %v3442
  %5213 = vmatmul.bf16.gmra.mxu0 %v53
  %v5214 = vpop.f32.mrf.mxu0
  %v5215 = vadd.f32 %v5202, %v5214
  %v5216 = vpop.f32.mrf.mxu0
  %5217 = vdwg.mxu0
  %5218 = vmatpush.bf16.msra.mxu0 %v3502
  %5219 = vmatpush.bf16.msra.mxu0 %v3498
  %5220 = vmatpush.bf16.msra.mxu0 %v3494
  %5221 = vmatpush.bf16.msra.mxu0 %v3490
  %5222 = vmatpush.bf16.msra.mxu0 %v3486
  %5223 = vmatpush.bf16.msra.mxu0 %v3482
  %5224 = vmatpush.bf16.msra.mxu0 %v3478
  %5225 = vmatpush.bf16.msra.mxu0 %v3474
  %5226 = vmatmul.bf16.gmra.mxu0 %v54
  %v5227 = vpop.f32.mrf.mxu0
  %v5228 = vadd.f32 %v5215, %v5227
  %v5229 = vpop.f32.mrf.mxu0
  %5230 = vdwg.mxu0
  %5231 = vmatpush.bf16.msra.mxu0 %v3534
  %5232 = vmatpush.bf16.msra.mxu0 %v3530
  %5233 = vmatpush.bf16.msra.mxu0 %v3526
  %5234 = vmatpush.bf16.msra.mxu0 %v3522
  %5235 = vmatpush.bf16.msra.mxu0 %v3518
  %5236 = vmatpush.bf16.msra.mxu0 %v3514
  %5237 = vmatpush.bf16.msra.mxu0 %v3510
  %5238 = vmatpush.bf16.msra.mxu0 %v3506
  %5239 = vmatmul.bf16.gmra.mxu0 %v55
  %v5240 = vpop.f32.mrf.mxu0
  %v5241 = vadd.f32 %v5228, %v5240
  %v5242 = vpop.f32.mrf.mxu0
  %5243 = vdwg.mxu0
  %5244 = vmatpush.bf16.msra.mxu0 %v3566
  %5245 = vmatpush.bf16.msra.mxu0 %v3562
  %5246 = vmatpush.bf16.msra.mxu0 %v3558
  %5247 = vmatpush.bf16.msra.mxu0 %v3554
  %5248 = vmatpush.bf16.msra.mxu0 %v3550
  %5249 = vmatpush.bf16.msra.mxu0 %v3546
  %5250 = vmatpush.bf16.msra.mxu0 %v3542
  %5251 = vmatpush.bf16.msra.mxu0 %v3538
  %5252 = vmatmul.bf16.gmra.mxu0 %v56
  %v5253 = vpop.f32.mrf.mxu0
  %v5254 = vadd.f32 %v5241, %v5253
  %v5255 = vpop.f32.mrf.mxu0
  %5256 = vdwg.mxu0
  %5257 = vmatpush.bf16.msra.mxu0 %v3598
  %5258 = vmatpush.bf16.msra.mxu0 %v3594
  %5259 = vmatpush.bf16.msra.mxu0 %v3590
  %5260 = vmatpush.bf16.msra.mxu0 %v3586
  %5261 = vmatpush.bf16.msra.mxu0 %v3582
  %5262 = vmatpush.bf16.msra.mxu0 %v3578
  %5263 = vmatpush.bf16.msra.mxu0 %v3574
  %5264 = vmatpush.bf16.msra.mxu0 %v3570
  %5265 = vmatmul.bf16.gmra.mxu0 %v57
  %v5266 = vpop.f32.mrf.mxu0
  %v5267 = vadd.f32 %v5254, %v5266
  %v5268 = vpop.f32.mrf.mxu0
  %5269 = vdwg.mxu0
  %5270 = vmatpush.bf16.msra.mxu0 %v3630
  %5271 = vmatpush.bf16.msra.mxu0 %v3626
  %5272 = vmatpush.bf16.msra.mxu0 %v3622
  %5273 = vmatpush.bf16.msra.mxu0 %v3618
  %5274 = vmatpush.bf16.msra.mxu0 %v3614
  %5275 = vmatpush.bf16.msra.mxu0 %v3610
  %5276 = vmatpush.bf16.msra.mxu0 %v3606
  %5277 = vmatpush.bf16.msra.mxu0 %v3602
  %5278 = vmatmul.bf16.gmra.mxu0 %v58
  %v5279 = vpop.f32.mrf.mxu0
  %v5280 = vadd.f32 %v5267, %v5279
  %v5281 = vpop.f32.mrf.mxu0
  %5282 = vdwg.mxu0
  %5283 = vmatpush.bf16.msra.mxu0 %v3662
  %5284 = vmatpush.bf16.msra.mxu0 %v3658
  %5285 = vmatpush.bf16.msra.mxu0 %v3654
  %5286 = vmatpush.bf16.msra.mxu0 %v3650
  %5287 = vmatpush.bf16.msra.mxu0 %v3646
  %5288 = vmatpush.bf16.msra.mxu0 %v3642
  %5289 = vmatpush.bf16.msra.mxu0 %v3638
  %5290 = vmatpush.bf16.msra.mxu0 %v3634
  %5291 = vmatmul.bf16.gmra.mxu0 %v59
  %v5292 = vpop.f32.mrf.mxu0
  %v5293 = vadd.f32 %v5280, %v5292
  %v5294 = vpop.f32.mrf.mxu0
  %5295 = vdwg.mxu0
  %5296 = vmatpush.bf16.msra.mxu0 %v3694
  %5297 = vmatpush.bf16.msra.mxu0 %v3690
  %5298 = vmatpush.bf16.msra.mxu0 %v3686
  %5299 = vmatpush.bf16.msra.mxu0 %v3682
  %5300 = vmatpush.bf16.msra.mxu0 %v3678
  %5301 = vmatpush.bf16.msra.mxu0 %v3674
  %5302 = vmatpush.bf16.msra.mxu0 %v3670
  %5303 = vmatpush.bf16.msra.mxu0 %v3666
  %5304 = vmatmul.bf16.gmra.mxu0 %v60
  %v5305 = vpop.f32.mrf.mxu0
  %v5306 = vadd.f32 %v5293, %v5305
  %v5307 = vpop.f32.mrf.mxu0
  %5308 = vdwg.mxu0
  %5309 = vmatpush.bf16.msra.mxu0 %v3726
  %5310 = vmatpush.bf16.msra.mxu0 %v3722
  %5311 = vmatpush.bf16.msra.mxu0 %v3718
  %5312 = vmatpush.bf16.msra.mxu0 %v3714
  %5313 = vmatpush.bf16.msra.mxu0 %v3710
  %5314 = vmatpush.bf16.msra.mxu0 %v3706
  %5315 = vmatpush.bf16.msra.mxu0 %v3702
  %5316 = vmatpush.bf16.msra.mxu0 %v3698
  %5317 = vmatmul.bf16.gmra.mxu0 %v61
  %v5318 = vpop.f32.mrf.mxu0
  %v5319 = vadd.f32 %v5306, %v5318
  %v5320 = vpop.f32.mrf.mxu0
  %5321 = vdwg.mxu0
  %5322 = vmatpush.bf16.msra.mxu0 %v3758
  %5323 = vmatpush.bf16.msra.mxu0 %v3754
  %5324 = vmatpush.bf16.msra.mxu0 %v3750
  %5325 = vmatpush.bf16.msra.mxu0 %v3746
  %5326 = vmatpush.bf16.msra.mxu0 %v3742
  %5327 = vmatpush.bf16.msra.mxu0 %v3738
  %5328 = vmatpush.bf16.msra.mxu0 %v3734
  %5329 = vmatpush.bf16.msra.mxu0 %v3730
  %5330 = vmatmul.bf16.gmra.mxu0 %v62
  %v5331 = vpop.f32.mrf.mxu0
  %v5332 = vadd.f32 %v5319, %v5331
  %v5333 = vpop.f32.mrf.mxu0
  %5334 = vdwg.mxu0
  %5335 = vmatpush.bf16.msra.mxu0 %v3790
  %5336 = vmatpush.bf16.msra.mxu0 %v3786
  %5337 = vmatpush.bf16.msra.mxu0 %v3782
  %5338 = vmatpush.bf16.msra.mxu0 %v3778
  %5339 = vmatpush.bf16.msra.mxu0 %v3774
  %5340 = vmatpush.bf16.msra.mxu0 %v3770
  %5341 = vmatpush.bf16.msra.mxu0 %v3766
  %5342 = vmatpush.bf16.msra.mxu0 %v3762
  %5343 = vmatmul.bf16.gmra.mxu0 %v63
  %v5344 = vpop.f32.mrf.mxu0
  %v5345 = vadd.f32 %v5332, %v5344
  %v5346 = vpop.f32.mrf.mxu0
  %5347 = vdwg.mxu0
  %5348 = vmatpush.bf16.msra.mxu0 %v3822
  %5349 = vmatpush.bf16.msra.mxu0 %v3818
  %5350 = vmatpush.bf16.msra.mxu0 %v3814
  %5351 = vmatpush.bf16.msra.mxu0 %v3810
  %5352 = vmatpush.bf16.msra.mxu0 %v3806
  %5353 = vmatpush.bf16.msra.mxu0 %v3802
  %5354 = vmatpush.bf16.msra.mxu0 %v3798
  %5355 = vmatpush.bf16.msra.mxu0 %v3794
  %5356 = vmatmul.bf16.gmra.mxu0 %v64
  %v5357 = vpop.f32.mrf.mxu0
  %v5358 = vadd.f32 %v5345, %v5357
  %v5359 = vpop.f32.mrf.mxu0
  %5360 = vdwg.mxu0
  %5361 = vmatpush.bf16.msra.mxu0 %v3854
  %5362 = vmatpush.bf16.msra.mxu0 %v3850
  %5363 = vmatpush.bf16.msra.mxu0 %v3846
  %5364 = vmatpush.bf16.msra.mxu0 %v3842
  %5365 = vmatpush.bf16.msra.mxu0 %v3838
  %5366 = vmatpush.bf16.msra.mxu0 %v3834
  %5367 = vmatpush.bf16.msra.mxu0 %v3830
  %5368 = vmatpush.bf16.msra.mxu0 %v3826
  %5369 = vmatmul.bf16.gmra.mxu0 %v65
  %v5370 = vpop.f32.mrf.mxu0
  %v5371 = vadd.f32 %v5358, %v5370
  %v5372 = vpop.f32.mrf.mxu0
  %5373 = vdwg.mxu0
  %5374 = vmatpush.bf16.msra.mxu0 %v3886
  %5375 = vmatpush.bf16.msra.mxu0 %v3882
  %5376 = vmatpush.bf16.msra.mxu0 %v3878
  %5377 = vmatpush.bf16.msra.mxu0 %v3874
  %5378 = vmatpush.bf16.msra.mxu0 %v3870
  %5379 = vmatpush.bf16.msra.mxu0 %v3866
  %5380 = vmatpush.bf16.msra.mxu0 %v3862
  %5381 = vmatpush.bf16.msra.mxu0 %v3858
  %5382 = vmatmul.bf16.gmra.mxu0 %v66
  %v5383 = vpop.f32.mrf.mxu0
  %v5384 = vadd.f32 %v5371, %v5383
  %v5385 = vpop.f32.mrf.mxu0
  %5386 = vdwg.mxu0
  %5387 = vmatpush.bf16.msra.mxu0 %v3918
  %5388 = vmatpush.bf16.msra.mxu0 %v3914
  %5389 = vmatpush.bf16.msra.mxu0 %v3910
  %5390 = vmatpush.bf16.msra.mxu0 %v3906
  %5391 = vmatpush.bf16.msra.mxu0 %v3902
  %5392 = vmatpush.bf16.msra.mxu0 %v3898
  %5393 = vmatpush.bf16.msra.mxu0 %v3894
  %5394 = vmatpush.bf16.msra.mxu0 %v3890
  %5395 = vmatmul.bf16.gmra.mxu0 %v67
  %v5396 = vpop.f32.mrf.mxu0
  %v5397 = vadd.f32 %v5384, %v5396
  %v5398 = vpop.f32.mrf.mxu0
  %5399 = vdwg.mxu0
  %5400 = vmatpush.bf16.msra.mxu0 %v3950
  %5401 = vmatpush.bf16.msra.mxu0 %v3946
  %5402 = vmatpush.bf16.msra.mxu0 %v3942
  %5403 = vmatpush.bf16.msra.mxu0 %v3938
  %5404 = vmatpush.bf16.msra.mxu0 %v3934
  %5405 = vmatpush.bf16.msra.mxu0 %v3930
  %5406 = vmatpush.bf16.msra.mxu0 %v3926
  %5407 = vmatpush.bf16.msra.mxu0 %v3922
  %5408 = vmatmul.bf16.gmra.mxu0 %v68
  %v5409 = vpop.f32.mrf.mxu0
  %v5410 = vadd.f32 %v5397, %v5409
  %v5411 = vpop.f32.mrf.mxu0
  %5412 = vdwg.mxu0
  %5413 = vmatpush.bf16.msra.mxu0 %v3982
  %5414 = vmatpush.bf16.msra.mxu0 %v3978
  %5415 = vmatpush.bf16.msra.mxu0 %v3974
  %5416 = vmatpush.bf16.msra.mxu0 %v3970
  %5417 = vmatpush.bf16.msra.mxu0 %v3966
  %5418 = vmatpush.bf16.msra.mxu0 %v3962
  %5419 = vmatpush.bf16.msra.mxu0 %v3958
  %5420 = vmatpush.bf16.msra.mxu0 %v3954
  %5421 = vmatmul.bf16.gmra.mxu0 %v69
  %v5422 = vpop.f32.mrf.mxu0
  %v5423 = vadd.f32 %v5410, %v5422
  %v5424 = vpop.f32.mrf.mxu0
  %5425 = vdwg.mxu0
  %5426 = vmatpush.bf16.msra.mxu0 0
  %5427 = vmatpush.bf16.msra.mxu0 0
  %5428 = vmatpush.bf16.msra.mxu0 0
  %5429 = vmatpush.bf16.msra.mxu0 0
  %5430 = vmatpush.bf16.msra.mxu0 %v3998
  %5431 = vmatpush.bf16.msra.mxu0 %v3994
  %5432 = vmatpush.bf16.msra.mxu0 %v3990
  %5433 = vmatpush.bf16.msra.mxu0 %v3986
  %5434 = vmatmul.bf16.gmra.mxu0 %v4787
  %v5435 = vpop.f32.mrf.mxu0
  %v5436 = vadd.f32 %v5423, %v5435
  %v5437 = vpop.f32.mrf.mxu0
  %5438 = vdwg.mxu0
  %5439 = vmatpush.bf16.msra.mxu0 %v3247
  %5440 = vmatpush.bf16.msra.mxu0 %v3243
  %5441 = vmatpush.bf16.msra.mxu0 %v3239
  %5442 = vmatpush.bf16.msra.mxu0 %v3235
  %5443 = vmatpush.bf16.msra.mxu0 %v3231
  %5444 = vmatpush.bf16.msra.mxu0 %v3227
  %5445 = vmatpush.bf16.msra.mxu0 %v3223
  %5446 = vmatpush.bf16.msra.mxu0 %v3219
  %5447 = vmatmul.bf16.gmra.mxu0 %v46
  %v5448 = vpop.f32.mrf.mxu0
  %v5449 = vadd.f32 %v859, %v5448
  %v5450 = vpop.f32.mrf.mxu0
  %5451 = vdwg.mxu0
  %5452 = vmatpush.bf16.msra.mxu0 %v3279
  %5453 = vmatpush.bf16.msra.mxu0 %v3275
  %5454 = vmatpush.bf16.msra.mxu0 %v3271
  %5455 = vmatpush.bf16.msra.mxu0 %v3267
  %5456 = vmatpush.bf16.msra.mxu0 %v3263
  %5457 = vmatpush.bf16.msra.mxu0 %v3259
  %5458 = vmatpush.bf16.msra.mxu0 %v3255
  %5459 = vmatpush.bf16.msra.mxu0 %v3251
  %5460 = vmatmul.bf16.gmra.mxu0 %v47
  %v5461 = vpop.f32.mrf.mxu0
  %v5462 = vadd.f32 %v5449, %v5461
  %v5463 = vpop.f32.mrf.mxu0
  %5464 = vdwg.mxu0
  %5465 = vmatpush.bf16.msra.mxu0 %v3311
  %5466 = vmatpush.bf16.msra.mxu0 %v3307
  %5467 = vmatpush.bf16.msra.mxu0 %v3303
  %5468 = vmatpush.bf16.msra.mxu0 %v3299
  %5469 = vmatpush.bf16.msra.mxu0 %v3295
  %5470 = vmatpush.bf16.msra.mxu0 %v3291
  %5471 = vmatpush.bf16.msra.mxu0 %v3287
  %5472 = vmatpush.bf16.msra.mxu0 %v3283
  %5473 = vmatmul.bf16.gmra.mxu0 %v48
  %v5474 = vpop.f32.mrf.mxu0
  %v5475 = vadd.f32 %v5462, %v5474
  %v5476 = vpop.f32.mrf.mxu0
  %5477 = vdwg.mxu0
  %5478 = vmatpush.bf16.msra.mxu0 %v3343
  %5479 = vmatpush.bf16.msra.mxu0 %v3339
  %5480 = vmatpush.bf16.msra.mxu0 %v3335
  %5481 = vmatpush.bf16.msra.mxu0 %v3331
  %5482 = vmatpush.bf16.msra.mxu0 %v3327
  %5483 = vmatpush.bf16.msra.mxu0 %v3323
  %5484 = vmatpush.bf16.msra.mxu0 %v3319
  %5485 = vmatpush.bf16.msra.mxu0 %v3315
  %5486 = vmatmul.bf16.gmra.mxu0 %v49
  %v5487 = vpop.f32.mrf.mxu0
  %v5488 = vadd.f32 %v5475, %v5487
  %v5489 = vpop.f32.mrf.mxu0
  %5490 = vdwg.mxu0
  %5491 = vmatpush.bf16.msra.mxu0 %v3375
  %5492 = vmatpush.bf16.msra.mxu0 %v3371
  %5493 = vmatpush.bf16.msra.mxu0 %v3367
  %5494 = vmatpush.bf16.msra.mxu0 %v3363
  %5495 = vmatpush.bf16.msra.mxu0 %v3359
  %5496 = vmatpush.bf16.msra.mxu0 %v3355
  %5497 = vmatpush.bf16.msra.mxu0 %v3351
  %5498 = vmatpush.bf16.msra.mxu0 %v3347
  %5499 = vmatmul.bf16.gmra.mxu0 %v50
  %v5500 = vpop.f32.mrf.mxu0
  %v5501 = vadd.f32 %v5488, %v5500
  %v5502 = vpop.f32.mrf.mxu0
  %5503 = vdwg.mxu0
  %5504 = vmatpush.bf16.msra.mxu0 %v3407
  %5505 = vmatpush.bf16.msra.mxu0 %v3403
  %5506 = vmatpush.bf16.msra.mxu0 %v3399
  %5507 = vmatpush.bf16.msra.mxu0 %v3395
  %5508 = vmatpush.bf16.msra.mxu0 %v3391
  %5509 = vmatpush.bf16.msra.mxu0 %v3387
  %5510 = vmatpush.bf16.msra.mxu0 %v3383
  %5511 = vmatpush.bf16.msra.mxu0 %v3379
  %5512 = vmatmul.bf16.gmra.mxu0 %v51
  %v5513 = vpop.f32.mrf.mxu0
  %v5514 = vadd.f32 %v5501, %v5513
  %v5515 = vpop.f32.mrf.mxu0
  %5516 = vdwg.mxu0
  %5517 = vmatpush.bf16.msra.mxu0 %v3439
  %5518 = vmatpush.bf16.msra.mxu0 %v3435
  %5519 = vmatpush.bf16.msra.mxu0 %v3431
  %5520 = vmatpush.bf16.msra.mxu0 %v3427
  %5521 = vmatpush.bf16.msra.mxu0 %v3423
  %5522 = vmatpush.bf16.msra.mxu0 %v3419
  %5523 = vmatpush.bf16.msra.mxu0 %v3415
  %5524 = vmatpush.bf16.msra.mxu0 %v3411
  %5525 = vmatmul.bf16.gmra.mxu0 %v52
  %v5526 = vpop.f32.mrf.mxu0
  %v5527 = vadd.f32 %v5514, %v5526
  %v5528 = vpop.f32.mrf.mxu0
  %5529 = vdwg.mxu0
  %5530 = vmatpush.bf16.msra.mxu0 %v3471
  %5531 = vmatpush.bf16.msra.mxu0 %v3467
  %5532 = vmatpush.bf16.msra.mxu0 %v3463
  %5533 = vmatpush.bf16.msra.mxu0 %v3459
  %5534 = vmatpush.bf16.msra.mxu0 %v3455
  %5535 = vmatpush.bf16.msra.mxu0 %v3451
  %5536 = vmatpush.bf16.msra.mxu0 %v3447
  %5537 = vmatpush.bf16.msra.mxu0 %v3443
  %5538 = vmatmul.bf16.gmra.mxu0 %v53
  %v5539 = vpop.f32.mrf.mxu0
  %v5540 = vadd.f32 %v5527, %v5539
  %v5541 = vpop.f32.mrf.mxu0
  %5542 = vdwg.mxu0
  %5543 = vmatpush.bf16.msra.mxu0 %v3503
  %5544 = vmatpush.bf16.msra.mxu0 %v3499
  %5545 = vmatpush.bf16.msra.mxu0 %v3495
  %5546 = vmatpush.bf16.msra.mxu0 %v3491
  %5547 = vmatpush.bf16.msra.mxu0 %v3487
  %5548 = vmatpush.bf16.msra.mxu0 %v3483
  %5549 = vmatpush.bf16.msra.mxu0 %v3479
  %5550 = vmatpush.bf16.msra.mxu0 %v3475
  %5551 = vmatmul.bf16.gmra.mxu0 %v54
  %v5552 = vpop.f32.mrf.mxu0
  %v5553 = vadd.f32 %v5540, %v5552
  %v5554 = vpop.f32.mrf.mxu0
  %5555 = vdwg.mxu0
  %5556 = vmatpush.bf16.msra.mxu0 %v3535
  %5557 = vmatpush.bf16.msra.mxu0 %v3531
  %5558 = vmatpush.bf16.msra.mxu0 %v3527
  %5559 = vmatpush.bf16.msra.mxu0 %v3523
  %5560 = vmatpush.bf16.msra.mxu0 %v3519
  %5561 = vmatpush.bf16.msra.mxu0 %v3515
  %5562 = vmatpush.bf16.msra.mxu0 %v3511
  %5563 = vmatpush.bf16.msra.mxu0 %v3507
  %5564 = vmatmul.bf16.gmra.mxu0 %v55
  %v5565 = vpop.f32.mrf.mxu0
  %v5566 = vadd.f32 %v5553, %v5565
  %v5567 = vpop.f32.mrf.mxu0
  %5568 = vdwg.mxu0
  %5569 = vmatpush.bf16.msra.mxu0 %v3567
  %5570 = vmatpush.bf16.msra.mxu0 %v3563
  %5571 = vmatpush.bf16.msra.mxu0 %v3559
  %5572 = vmatpush.bf16.msra.mxu0 %v3555
  %5573 = vmatpush.bf16.msra.mxu0 %v3551
  %5574 = vmatpush.bf16.msra.mxu0 %v3547
  %5575 = vmatpush.bf16.msra.mxu0 %v3543
  %5576 = vmatpush.bf16.msra.mxu0 %v3539
  %5577 = vmatmul.bf16.gmra.mxu0 %v56
  %v5578 = vpop.f32.mrf.mxu0
  %v5579 = vadd.f32 %v5566, %v5578
  %v5580 = vpop.f32.mrf.mxu0
  %5581 = vdwg.mxu0
  %5582 = vmatpush.bf16.msra.mxu0 %v3599
  %5583 = vmatpush.bf16.msra.mxu0 %v3595
  %5584 = vmatpush.bf16.msra.mxu0 %v3591
  %5585 = vmatpush.bf16.msra.mxu0 %v3587
  %5586 = vmatpush.bf16.msra.mxu0 %v3583
  %5587 = vmatpush.bf16.msra.mxu0 %v3579
  %5588 = vmatpush.bf16.msra.mxu0 %v3575
  %5589 = vmatpush.bf16.msra.mxu0 %v3571
  %5590 = vmatmul.bf16.gmra.mxu0 %v57
  %v5591 = vpop.f32.mrf.mxu0
  %v5592 = vadd.f32 %v5579, %v5591
  %v5593 = vpop.f32.mrf.mxu0
  %5594 = vdwg.mxu0
  %5595 = vmatpush.bf16.msra.mxu0 %v3631
  %5596 = vmatpush.bf16.msra.mxu0 %v3627
  %5597 = vmatpush.bf16.msra.mxu0 %v3623
  %5598 = vmatpush.bf16.msra.mxu0 %v3619
  %5599 = vmatpush.bf16.msra.mxu0 %v3615
  %5600 = vmatpush.bf16.msra.mxu0 %v3611
  %5601 = vmatpush.bf16.msra.mxu0 %v3607
  %5602 = vmatpush.bf16.msra.mxu0 %v3603
  %5603 = vmatmul.bf16.gmra.mxu0 %v58
  %v5604 = vpop.f32.mrf.mxu0
  %v5605 = vadd.f32 %v5592, %v5604
  %v5606 = vpop.f32.mrf.mxu0
  %5607 = vdwg.mxu0
  %5608 = vmatpush.bf16.msra.mxu0 %v3663
  %5609 = vmatpush.bf16.msra.mxu0 %v3659
  %5610 = vmatpush.bf16.msra.mxu0 %v3655
  %5611 = vmatpush.bf16.msra.mxu0 %v3651
  %5612 = vmatpush.bf16.msra.mxu0 %v3647
  %5613 = vmatpush.bf16.msra.mxu0 %v3643
  %5614 = vmatpush.bf16.msra.mxu0 %v3639
  %5615 = vmatpush.bf16.msra.mxu0 %v3635
  %5616 = vmatmul.bf16.gmra.mxu0 %v59
  %v5617 = vpop.f32.mrf.mxu0
  %v5618 = vadd.f32 %v5605, %v5617
  %v5619 = vpop.f32.mrf.mxu0
  %5620 = vdwg.mxu0
  %5621 = vmatpush.bf16.msra.mxu0 %v3695
  %5622 = vmatpush.bf16.msra.mxu0 %v3691
  %5623 = vmatpush.bf16.msra.mxu0 %v3687
  %5624 = vmatpush.bf16.msra.mxu0 %v3683
  %5625 = vmatpush.bf16.msra.mxu0 %v3679
  %5626 = vmatpush.bf16.msra.mxu0 %v3675
  %5627 = vmatpush.bf16.msra.mxu0 %v3671
  %5628 = vmatpush.bf16.msra.mxu0 %v3667
  %5629 = vmatmul.bf16.gmra.mxu0 %v60
  %v5630 = vpop.f32.mrf.mxu0
  %v5631 = vadd.f32 %v5618, %v5630
  %v5632 = vpop.f32.mrf.mxu0
  %5633 = vdwg.mxu0
  %5634 = vmatpush.bf16.msra.mxu0 %v3727
  %5635 = vmatpush.bf16.msra.mxu0 %v3723
  %5636 = vmatpush.bf16.msra.mxu0 %v3719
  %5637 = vmatpush.bf16.msra.mxu0 %v3715
  %5638 = vmatpush.bf16.msra.mxu0 %v3711
  %5639 = vmatpush.bf16.msra.mxu0 %v3707
  %5640 = vmatpush.bf16.msra.mxu0 %v3703
  %5641 = vmatpush.bf16.msra.mxu0 %v3699
  %5642 = vmatmul.bf16.gmra.mxu0 %v61
  %v5643 = vpop.f32.mrf.mxu0
  %v5644 = vadd.f32 %v5631, %v5643
  %v5645 = vpop.f32.mrf.mxu0
  %5646 = vdwg.mxu0
  %5647 = vmatpush.bf16.msra.mxu0 %v3759
  %5648 = vmatpush.bf16.msra.mxu0 %v3755
  %5649 = vmatpush.bf16.msra.mxu0 %v3751
  %5650 = vmatpush.bf16.msra.mxu0 %v3747
  %5651 = vmatpush.bf16.msra.mxu0 %v3743
  %5652 = vmatpush.bf16.msra.mxu0 %v3739
  %5653 = vmatpush.bf16.msra.mxu0 %v3735
  %5654 = vmatpush.bf16.msra.mxu0 %v3731
  %5655 = vmatmul.bf16.gmra.mxu0 %v62
  %v5656 = vpop.f32.mrf.mxu0
  %v5657 = vadd.f32 %v5644, %v5656
  %v5658 = vpop.f32.mrf.mxu0
  %5659 = vdwg.mxu0
  %5660 = vmatpush.bf16.msra.mxu0 %v3791
  %5661 = vmatpush.bf16.msra.mxu0 %v3787
  %5662 = vmatpush.bf16.msra.mxu0 %v3783
  %5663 = vmatpush.bf16.msra.mxu0 %v3779
  %5664 = vmatpush.bf16.msra.mxu0 %v3775
  %5665 = vmatpush.bf16.msra.mxu0 %v3771
  %5666 = vmatpush.bf16.msra.mxu0 %v3767
  %5667 = vmatpush.bf16.msra.mxu0 %v3763
  %5668 = vmatmul.bf16.gmra.mxu0 %v63
  %v5669 = vpop.f32.mrf.mxu0
  %v5670 = vadd.f32 %v5657, %v5669
  %v5671 = vpop.f32.mrf.mxu0
  %5672 = vdwg.mxu0
  %5673 = vmatpush.bf16.msra.mxu0 %v3823
  %5674 = vmatpush.bf16.msra.mxu0 %v3819
  %5675 = vmatpush.bf16.msra.mxu0 %v3815
  %5676 = vmatpush.bf16.msra.mxu0 %v3811
  %5677 = vmatpush.bf16.msra.mxu0 %v3807
  %5678 = vmatpush.bf16.msra.mxu0 %v3803
  %5679 = vmatpush.bf16.msra.mxu0 %v3799
  %5680 = vmatpush.bf16.msra.mxu0 %v3795
  %5681 = vmatmul.bf16.gmra.mxu0 %v64
  %v5682 = vpop.f32.mrf.mxu0
  %v5683 = vadd.f32 %v5670, %v5682
  %v5684 = vpop.f32.mrf.mxu0
  %5685 = vdwg.mxu0
  %5686 = vmatpush.bf16.msra.mxu0 %v3855
  %5687 = vmatpush.bf16.msra.mxu0 %v3851
  %5688 = vmatpush.bf16.msra.mxu0 %v3847
  %5689 = vmatpush.bf16.msra.mxu0 %v3843
  %5690 = vmatpush.bf16.msra.mxu0 %v3839
  %5691 = vmatpush.bf16.msra.mxu0 %v3835
  %5692 = vmatpush.bf16.msra.mxu0 %v3831
  %5693 = vmatpush.bf16.msra.mxu0 %v3827
  %5694 = vmatmul.bf16.gmra.mxu0 %v65
  %v5695 = vpop.f32.mrf.mxu0
  %v5696 = vadd.f32 %v5683, %v5695
  %v5697 = vpop.f32.mrf.mxu0
  %5698 = vdwg.mxu0
  %5699 = vmatpush.bf16.msra.mxu0 %v3887
  %5700 = vmatpush.bf16.msra.mxu0 %v3883
  %5701 = vmatpush.bf16.msra.mxu0 %v3879
  %5702 = vmatpush.bf16.msra.mxu0 %v3875
  %5703 = vmatpush.bf16.msra.mxu0 %v3871
  %5704 = vmatpush.bf16.msra.mxu0 %v3867
  %5705 = vmatpush.bf16.msra.mxu0 %v3863
  %5706 = vmatpush.bf16.msra.mxu0 %v3859
  %5707 = vmatmul.bf16.gmra.mxu0 %v66
  %v5708 = vpop.f32.mrf.mxu0
  %v5709 = vadd.f32 %v5696, %v5708
  %v5710 = vpop.f32.mrf.mxu0
  %5711 = vdwg.mxu0
  %5712 = vmatpush.bf16.msra.mxu0 %v3919
  %5713 = vmatpush.bf16.msra.mxu0 %v3915
  %5714 = vmatpush.bf16.msra.mxu0 %v3911
  %5715 = vmatpush.bf16.msra.mxu0 %v3907
  %5716 = vmatpush.bf16.msra.mxu0 %v3903
  %5717 = vmatpush.bf16.msra.mxu0 %v3899
  %5718 = vmatpush.bf16.msra.mxu0 %v3895
  %5719 = vmatpush.bf16.msra.mxu0 %v3891
  %5720 = vmatmul.bf16.gmra.mxu0 %v67
  %v5721 = vpop.f32.mrf.mxu0
  %v5722 = vadd.f32 %v5709, %v5721
  %v5723 = vpop.f32.mrf.mxu0
  %5724 = vdwg.mxu0
  %5725 = vmatpush.bf16.msra.mxu0 %v3951
  %5726 = vmatpush.bf16.msra.mxu0 %v3947
  %5727 = vmatpush.bf16.msra.mxu0 %v3943
  %5728 = vmatpush.bf16.msra.mxu0 %v3939
  %5729 = vmatpush.bf16.msra.mxu0 %v3935
  %5730 = vmatpush.bf16.msra.mxu0 %v3931
  %5731 = vmatpush.bf16.msra.mxu0 %v3927
  %5732 = vmatpush.bf16.msra.mxu0 %v3923
  %5733 = vmatmul.bf16.gmra.mxu0 %v68
  %v5734 = vpop.f32.mrf.mxu0
  %v5735 = vadd.f32 %v5722, %v5734
  %v5736 = vpop.f32.mrf.mxu0
  %5737 = vdwg.mxu0
  %5738 = vmatpush.bf16.msra.mxu0 %v3983
  %5739 = vmatpush.bf16.msra.mxu0 %v3979
  %5740 = vmatpush.bf16.msra.mxu0 %v3975
  %5741 = vmatpush.bf16.msra.mxu0 %v3971
  %5742 = vmatpush.bf16.msra.mxu0 %v3967
  %5743 = vmatpush.bf16.msra.mxu0 %v3963
  %5744 = vmatpush.bf16.msra.mxu0 %v3959
  %5745 = vmatpush.bf16.msra.mxu0 %v3955
  %5746 = vmatmul.bf16.gmra.mxu0 %v69
  %v5747 = vpop.f32.mrf.mxu0
  %v5748 = vadd.f32 %v5735, %v5747
  %v5749 = vpop.f32.mrf.mxu0
  %5750 = vdwg.mxu0
  %5751 = vmatpush.bf16.msra.mxu0 0
  %5752 = vmatpush.bf16.msra.mxu0 0
  %5753 = vmatpush.bf16.msra.mxu0 0
  %5754 = vmatpush.bf16.msra.mxu0 0
  %5755 = vmatpush.bf16.msra.mxu0 %v3999
  %5756 = vmatpush.bf16.msra.mxu0 %v3995
  %5757 = vmatpush.bf16.msra.mxu0 %v3991
  %5758 = vmatpush.bf16.msra.mxu0 %v3987
  %5759 = vmatmul.bf16.gmra.mxu0 %v4787
  %v5760 = vpop.f32.mrf.mxu0
  %v5761 = vadd.f32 %v5748, %v5760
  %v5762 = vpop.f32.mrf.mxu0
  %5763 = vdwg.mxu0
  %5764 = vmatpush.bf16.msra.mxu0 %v3248
  %5765 = vmatpush.bf16.msra.mxu0 %v3244
  %5766 = vmatpush.bf16.msra.mxu0 %v3240
  %5767 = vmatpush.bf16.msra.mxu0 %v3236
  %5768 = vmatpush.bf16.msra.mxu0 %v3232
  %5769 = vmatpush.bf16.msra.mxu0 %v3228
  %5770 = vmatpush.bf16.msra.mxu0 %v3224
  %5771 = vmatpush.bf16.msra.mxu0 %v3220
  %5772 = vmatmul.bf16.gmra.mxu0 %v46
  %v5773 = vpop.f32.mrf.mxu0
  %v5774 = vadd.f32 %v860, %v5773
  %v5775 = vpop.f32.mrf.mxu0
  %5776 = vdwg.mxu0
  %5777 = vmatpush.bf16.msra.mxu0 %v3280
  %5778 = vmatpush.bf16.msra.mxu0 %v3276
  %5779 = vmatpush.bf16.msra.mxu0 %v3272
  %5780 = vmatpush.bf16.msra.mxu0 %v3268
  %5781 = vmatpush.bf16.msra.mxu0 %v3264
  %5782 = vmatpush.bf16.msra.mxu0 %v3260
  %5783 = vmatpush.bf16.msra.mxu0 %v3256
  %5784 = vmatpush.bf16.msra.mxu0 %v3252
  %5785 = vmatmul.bf16.gmra.mxu0 %v47
  %v5786 = vpop.f32.mrf.mxu0
  %v5787 = vadd.f32 %v5774, %v5786
  %v5788 = vpop.f32.mrf.mxu0
  %5789 = vdwg.mxu0
  %5790 = vmatpush.bf16.msra.mxu0 %v3312
  %5791 = vmatpush.bf16.msra.mxu0 %v3308
  %5792 = vmatpush.bf16.msra.mxu0 %v3304
  %5793 = vmatpush.bf16.msra.mxu0 %v3300
  %5794 = vmatpush.bf16.msra.mxu0 %v3296
  %5795 = vmatpush.bf16.msra.mxu0 %v3292
  %5796 = vmatpush.bf16.msra.mxu0 %v3288
  %5797 = vmatpush.bf16.msra.mxu0 %v3284
  %5798 = vmatmul.bf16.gmra.mxu0 %v48
  %v5799 = vpop.f32.mrf.mxu0
  %v5800 = vadd.f32 %v5787, %v5799
  %v5801 = vpop.f32.mrf.mxu0
  %5802 = vdwg.mxu0
  %5803 = vmatpush.bf16.msra.mxu0 %v3344
  %5804 = vmatpush.bf16.msra.mxu0 %v3340
  %5805 = vmatpush.bf16.msra.mxu0 %v3336
  %5806 = vmatpush.bf16.msra.mxu0 %v3332
  %5807 = vmatpush.bf16.msra.mxu0 %v3328
  %5808 = vmatpush.bf16.msra.mxu0 %v3324
  %5809 = vmatpush.bf16.msra.mxu0 %v3320
  %5810 = vmatpush.bf16.msra.mxu0 %v3316
  %5811 = vmatmul.bf16.gmra.mxu0 %v49
  %v5812 = vpop.f32.mrf.mxu0
  %v5813 = vadd.f32 %v5800, %v5812
  %v5814 = vpop.f32.mrf.mxu0
  %5815 = vdwg.mxu0
  %5816 = vmatpush.bf16.msra.mxu0 %v3376
  %5817 = vmatpush.bf16.msra.mxu0 %v3372
  %5818 = vmatpush.bf16.msra.mxu0 %v3368
  %5819 = vmatpush.bf16.msra.mxu0 %v3364
  %5820 = vmatpush.bf16.msra.mxu0 %v3360
  %5821 = vmatpush.bf16.msra.mxu0 %v3356
  %5822 = vmatpush.bf16.msra.mxu0 %v3352
  %5823 = vmatpush.bf16.msra.mxu0 %v3348
  %5824 = vmatmul.bf16.gmra.mxu0 %v50
  %v5825 = vpop.f32.mrf.mxu0
  %v5826 = vadd.f32 %v5813, %v5825
  %v5827 = vpop.f32.mrf.mxu0
  %5828 = vdwg.mxu0
  %5829 = vmatpush.bf16.msra.mxu0 %v3408
  %5830 = vmatpush.bf16.msra.mxu0 %v3404
  %5831 = vmatpush.bf16.msra.mxu0 %v3400
  %5832 = vmatpush.bf16.msra.mxu0 %v3396
  %5833 = vmatpush.bf16.msra.mxu0 %v3392
  %5834 = vmatpush.bf16.msra.mxu0 %v3388
  %5835 = vmatpush.bf16.msra.mxu0 %v3384
  %5836 = vmatpush.bf16.msra.mxu0 %v3380
  %5837 = vmatmul.bf16.gmra.mxu0 %v51
  %v5838 = vpop.f32.mrf.mxu0
  %v5839 = vadd.f32 %v5826, %v5838
  %v5840 = vpop.f32.mrf.mxu0
  %5841 = vdwg.mxu0
  %5842 = vmatpush.bf16.msra.mxu0 %v3440
  %5843 = vmatpush.bf16.msra.mxu0 %v3436
  %5844 = vmatpush.bf16.msra.mxu0 %v3432
  %5845 = vmatpush.bf16.msra.mxu0 %v3428
  %5846 = vmatpush.bf16.msra.mxu0 %v3424
  %5847 = vmatpush.bf16.msra.mxu0 %v3420
  %5848 = vmatpush.bf16.msra.mxu0 %v3416
  %5849 = vmatpush.bf16.msra.mxu0 %v3412
  %5850 = vmatmul.bf16.gmra.mxu0 %v52
  %v5851 = vpop.f32.mrf.mxu0
  %v5852 = vadd.f32 %v5839, %v5851
  %v5853 = vpop.f32.mrf.mxu0
  %5854 = vdwg.mxu0
  %5855 = vmatpush.bf16.msra.mxu0 %v3472
  %5856 = vmatpush.bf16.msra.mxu0 %v3468
  %5857 = vmatpush.bf16.msra.mxu0 %v3464
  %5858 = vmatpush.bf16.msra.mxu0 %v3460
  %5859 = vmatpush.bf16.msra.mxu0 %v3456
  %5860 = vmatpush.bf16.msra.mxu0 %v3452
  %5861 = vmatpush.bf16.msra.mxu0 %v3448
  %5862 = vmatpush.bf16.msra.mxu0 %v3444
  %5863 = vmatmul.bf16.gmra.mxu0 %v53
  %v5864 = vpop.f32.mrf.mxu0
  %v5865 = vadd.f32 %v5852, %v5864
  %v5866 = vpop.f32.mrf.mxu0
  %5867 = vdwg.mxu0
  %5868 = vmatpush.bf16.msra.mxu0 %v3504
  %5869 = vmatpush.bf16.msra.mxu0 %v3500
  %5870 = vmatpush.bf16.msra.mxu0 %v3496
  %5871 = vmatpush.bf16.msra.mxu0 %v3492
  %5872 = vmatpush.bf16.msra.mxu0 %v3488
  %5873 = vmatpush.bf16.msra.mxu0 %v3484
  %5874 = vmatpush.bf16.msra.mxu0 %v3480
  %5875 = vmatpush.bf16.msra.mxu0 %v3476
  %5876 = vmatmul.bf16.gmra.mxu0 %v54
  %v5877 = vpop.f32.mrf.mxu0
  %v5878 = vadd.f32 %v5865, %v5877
  %v5879 = vpop.f32.mrf.mxu0
  %5880 = vdwg.mxu0
  %5881 = vmatpush.bf16.msra.mxu0 %v3536
  %5882 = vmatpush.bf16.msra.mxu0 %v3532
  %5883 = vmatpush.bf16.msra.mxu0 %v3528
  %5884 = vmatpush.bf16.msra.mxu0 %v3524
  %5885 = vmatpush.bf16.msra.mxu0 %v3520
  %5886 = vmatpush.bf16.msra.mxu0 %v3516
  %5887 = vmatpush.bf16.msra.mxu0 %v3512
  %5888 = vmatpush.bf16.msra.mxu0 %v3508
  %5889 = vmatmul.bf16.gmra.mxu0 %v55
  %v5890 = vpop.f32.mrf.mxu0
  %v5891 = vadd.f32 %v5878, %v5890
  %v5892 = vpop.f32.mrf.mxu0
  %5893 = vdwg.mxu0
  %5894 = vmatpush.bf16.msra.mxu0 %v3568
  %5895 = vmatpush.bf16.msra.mxu0 %v3564
  %5896 = vmatpush.bf16.msra.mxu0 %v3560
  %5897 = vmatpush.bf16.msra.mxu0 %v3556
  %5898 = vmatpush.bf16.msra.mxu0 %v3552
  %5899 = vmatpush.bf16.msra.mxu0 %v3548
  %5900 = vmatpush.bf16.msra.mxu0 %v3544
  %5901 = vmatpush.bf16.msra.mxu0 %v3540
  %5902 = vmatmul.bf16.gmra.mxu0 %v56
  %v5903 = vpop.f32.mrf.mxu0
  %v5904 = vadd.f32 %v5891, %v5903
  %v5905 = vpop.f32.mrf.mxu0
  %5906 = vdwg.mxu0
  %5907 = vmatpush.bf16.msra.mxu0 %v3600
  %5908 = vmatpush.bf16.msra.mxu0 %v3596
  %5909 = vmatpush.bf16.msra.mxu0 %v3592
  %5910 = vmatpush.bf16.msra.mxu0 %v3588
  %5911 = vmatpush.bf16.msra.mxu0 %v3584
  %5912 = vmatpush.bf16.msra.mxu0 %v3580
  %5913 = vmatpush.bf16.msra.mxu0 %v3576
  %5914 = vmatpush.bf16.msra.mxu0 %v3572
  %5915 = vmatmul.bf16.gmra.mxu0 %v57
  %v5916 = vpop.f32.mrf.mxu0
  %v5917 = vadd.f32 %v5904, %v5916
  %v5918 = vpop.f32.mrf.mxu0
  %5919 = vdwg.mxu0
  %5920 = vmatpush.bf16.msra.mxu0 %v3632
  %5921 = vmatpush.bf16.msra.mxu0 %v3628
  %5922 = vmatpush.bf16.msra.mxu0 %v3624
  %5923 = vmatpush.bf16.msra.mxu0 %v3620
  %5924 = vmatpush.bf16.msra.mxu0 %v3616
  %5925 = vmatpush.bf16.msra.mxu0 %v3612
  %5926 = vmatpush.bf16.msra.mxu0 %v3608
  %5927 = vmatpush.bf16.msra.mxu0 %v3604
  %5928 = vmatmul.bf16.gmra.mxu0 %v58
  %v5929 = vpop.f32.mrf.mxu0
  %v5930 = vadd.f32 %v5917, %v5929
  %v5931 = vpop.f32.mrf.mxu0
  %5932 = vdwg.mxu0
  %5933 = vmatpush.bf16.msra.mxu0 %v3664
  %5934 = vmatpush.bf16.msra.mxu0 %v3660
  %5935 = vmatpush.bf16.msra.mxu0 %v3656
  %5936 = vmatpush.bf16.msra.mxu0 %v3652
  %5937 = vmatpush.bf16.msra.mxu0 %v3648
  %5938 = vmatpush.bf16.msra.mxu0 %v3644
  %5939 = vmatpush.bf16.msra.mxu0 %v3640
  %5940 = vmatpush.bf16.msra.mxu0 %v3636
  %5941 = vmatmul.bf16.gmra.mxu0 %v59
  %v5942 = vpop.f32.mrf.mxu0
  %v5943 = vadd.f32 %v5930, %v5942
  %v5944 = vpop.f32.mrf.mxu0
  %5945 = vdwg.mxu0
  %5946 = vmatpush.bf16.msra.mxu0 %v3696
  %5947 = vmatpush.bf16.msra.mxu0 %v3692
  %5948 = vmatpush.bf16.msra.mxu0 %v3688
  %5949 = vmatpush.bf16.msra.mxu0 %v3684
  %5950 = vmatpush.bf16.msra.mxu0 %v3680
  %5951 = vmatpush.bf16.msra.mxu0 %v3676
  %5952 = vmatpush.bf16.msra.mxu0 %v3672
  %5953 = vmatpush.bf16.msra.mxu0 %v3668
  %5954 = vmatmul.bf16.gmra.mxu0 %v60
  %v5955 = vpop.f32.mrf.mxu0
  %v5956 = vadd.f32 %v5943, %v5955
  %v5957 = vpop.f32.mrf.mxu0
  %5958 = vdwg.mxu0
  %5959 = vmatpush.bf16.msra.mxu0 %v3728
  %5960 = vmatpush.bf16.msra.mxu0 %v3724
  %5961 = vmatpush.bf16.msra.mxu0 %v3720
  %5962 = vmatpush.bf16.msra.mxu0 %v3716
  %5963 = vmatpush.bf16.msra.mxu0 %v3712
  %5964 = vmatpush.bf16.msra.mxu0 %v3708
  %5965 = vmatpush.bf16.msra.mxu0 %v3704
  %5966 = vmatpush.bf16.msra.mxu0 %v3700
  %5967 = vmatmul.bf16.gmra.mxu0 %v61
  %v5968 = vpop.f32.mrf.mxu0
  %v5969 = vadd.f32 %v5956, %v5968
  %v5970 = vpop.f32.mrf.mxu0
  %5971 = vdwg.mxu0
  %5972 = vmatpush.bf16.msra.mxu0 %v3760
  %5973 = vmatpush.bf16.msra.mxu0 %v3756
  %5974 = vmatpush.bf16.msra.mxu0 %v3752
  %5975 = vmatpush.bf16.msra.mxu0 %v3748
  %5976 = vmatpush.bf16.msra.mxu0 %v3744
  %5977 = vmatpush.bf16.msra.mxu0 %v3740
  %5978 = vmatpush.bf16.msra.mxu0 %v3736
  %5979 = vmatpush.bf16.msra.mxu0 %v3732
  %5980 = vmatmul.bf16.gmra.mxu0 %v62
  %v5981 = vpop.f32.mrf.mxu0
  %v5982 = vadd.f32 %v5969, %v5981
  %v5983 = vpop.f32.mrf.mxu0
  %5984 = vdwg.mxu0
  %5985 = vmatpush.bf16.msra.mxu0 %v3792
  %5986 = vmatpush.bf16.msra.mxu0 %v3788
  %5987 = vmatpush.bf16.msra.mxu0 %v3784
  %5988 = vmatpush.bf16.msra.mxu0 %v3780
  %5989 = vmatpush.bf16.msra.mxu0 %v3776
  %5990 = vmatpush.bf16.msra.mxu0 %v3772
  %5991 = vmatpush.bf16.msra.mxu0 %v3768
  %5992 = vmatpush.bf16.msra.mxu0 %v3764
  %5993 = vmatmul.bf16.gmra.mxu0 %v63
  %v5994 = vpop.f32.mrf.mxu0
  %v5995 = vadd.f32 %v5982, %v5994
  %v5996 = vpop.f32.mrf.mxu0
  %5997 = vdwg.mxu0
  %5998 = vmatpush.bf16.msra.mxu0 %v3824
  %5999 = vmatpush.bf16.msra.mxu0 %v3820
  %6000 = vmatpush.bf16.msra.mxu0 %v3816
  %6001 = vmatpush.bf16.msra.mxu0 %v3812
  %6002 = vmatpush.bf16.msra.mxu0 %v3808
  %6003 = vmatpush.bf16.msra.mxu0 %v3804
  %6004 = vmatpush.bf16.msra.mxu0 %v3800
  %6005 = vmatpush.bf16.msra.mxu0 %v3796
  %6006 = vmatmul.bf16.gmra.mxu0 %v64
  %v6007 = vpop.f32.mrf.mxu0
  %v6008 = vadd.f32 %v5995, %v6007
  %v6009 = vpop.f32.mrf.mxu0
  %6010 = vdwg.mxu0
  %6011 = vmatpush.bf16.msra.mxu0 %v3856
  %6012 = vmatpush.bf16.msra.mxu0 %v3852
  %6013 = vmatpush.bf16.msra.mxu0 %v3848
  %6014 = vmatpush.bf16.msra.mxu0 %v3844
  %6015 = vmatpush.bf16.msra.mxu0 %v3840
  %6016 = vmatpush.bf16.msra.mxu0 %v3836
  %6017 = vmatpush.bf16.msra.mxu0 %v3832
  %6018 = vmatpush.bf16.msra.mxu0 %v3828
  %6019 = vmatmul.bf16.gmra.mxu0 %v65
  %v6020 = vpop.f32.mrf.mxu0
  %v6021 = vadd.f32 %v6008, %v6020
  %v6022 = vpop.f32.mrf.mxu0
  %6023 = vdwg.mxu0
  %6024 = vmatpush.bf16.msra.mxu0 %v3888
  %6025 = vmatpush.bf16.msra.mxu0 %v3884
  %6026 = vmatpush.bf16.msra.mxu0 %v3880
  %6027 = vmatpush.bf16.msra.mxu0 %v3876
  %6028 = vmatpush.bf16.msra.mxu0 %v3872
  %6029 = vmatpush.bf16.msra.mxu0 %v3868
  %6030 = vmatpush.bf16.msra.mxu0 %v3864
  %6031 = vmatpush.bf16.msra.mxu0 %v3860
  %6032 = vmatmul.bf16.gmra.mxu0 %v66
  %v6033 = vpop.f32.mrf.mxu0
  %v6034 = vadd.f32 %v6021, %v6033
  %v6035 = vpop.f32.mrf.mxu0
  %6036 = vdwg.mxu0
  %6037 = vmatpush.bf16.msra.mxu0 %v3920
  %6038 = vmatpush.bf16.msra.mxu0 %v3916
  %6039 = vmatpush.bf16.msra.mxu0 %v3912
  %6040 = vmatpush.bf16.msra.mxu0 %v3908
  %6041 = vmatpush.bf16.msra.mxu0 %v3904
  %6042 = vmatpush.bf16.msra.mxu0 %v3900
  %6043 = vmatpush.bf16.msra.mxu0 %v3896
  %6044 = vmatpush.bf16.msra.mxu0 %v3892
  %6045 = vmatmul.bf16.gmra.mxu0 %v67
  %v6046 = vpop.f32.mrf.mxu0
  %v6047 = vadd.f32 %v6034, %v6046
  %v6048 = vpop.f32.mrf.mxu0
  %6049 = vdwg.mxu0
  %6050 = vmatpush.bf16.msra.mxu0 %v3952
  %6051 = vmatpush.bf16.msra.mxu0 %v3948
  %6052 = vmatpush.bf16.msra.mxu0 %v3944
  %6053 = vmatpush.bf16.msra.mxu0 %v3940
  %6054 = vmatpush.bf16.msra.mxu0 %v3936
  %6055 = vmatpush.bf16.msra.mxu0 %v3932
  %6056 = vmatpush.bf16.msra.mxu0 %v3928
  %6057 = vmatpush.bf16.msra.mxu0 %v3924
  %6058 = vmatmul.bf16.gmra.mxu0 %v68
  %v6059 = vpop.f32.mrf.mxu0
  %v6060 = vadd.f32 %v6047, %v6059
  %v6061 = vpop.f32.mrf.mxu0
  %6062 = vdwg.mxu0
  %6063 = vmatpush.bf16.msra.mxu0 %v3984
  %6064 = vmatpush.bf16.msra.mxu0 %v3980
  %6065 = vmatpush.bf16.msra.mxu0 %v3976
  %6066 = vmatpush.bf16.msra.mxu0 %v3972
  %6067 = vmatpush.bf16.msra.mxu0 %v3968
  %6068 = vmatpush.bf16.msra.mxu0 %v3964
  %6069 = vmatpush.bf16.msra.mxu0 %v3960
  %6070 = vmatpush.bf16.msra.mxu0 %v3956
  %6071 = vmatmul.bf16.gmra.mxu0 %v69
  %v6072 = vpop.f32.mrf.mxu0
  %v6073 = vadd.f32 %v6060, %v6072
  %v6074 = vpop.f32.mrf.mxu0
  %6075 = vdwg.mxu0
  %6076 = vmatpush.bf16.msra.mxu0 0
  %6077 = vmatpush.bf16.msra.mxu0 0
  %6078 = vmatpush.bf16.msra.mxu0 0
  %6079 = vmatpush.bf16.msra.mxu0 0
  %6080 = vmatpush.bf16.msra.mxu0 %v4000
  %6081 = vmatpush.bf16.msra.mxu0 %v3996
  %6082 = vmatpush.bf16.msra.mxu0 %v3992
  %6083 = vmatpush.bf16.msra.mxu0 %v3988
  %6084 = vmatmul.bf16.gmra.mxu0 %v4787
  %v6085 = vpop.f32.mrf.mxu0
  %v6086 = vadd.f32 %v6073, %v6085
  %v6087 = vpop.f32.mrf.mxu0
  %6088 = vdwg.mxu0
  %v6089 = vmax.f32 %v5111, 0.0
  %v6090 = vmax.f32 %v5436, 0.0
  %v6091 = vmax.f32 %v5761, 0.0
  %v6092 = vmax.f32 %v6086, 0.0
  %v6093 = vpack.c.bf16 %v6089, %v6089
  %v6094 = vpack.c.bf16 %v6090, %v6090
  %v6095 = vpack.c.bf16 %v6091, %v6091
  %v6096 = vpack.c.bf16 %v6092, %v6092
  %v6097 = vld [vmem:[%s3] sm:$0xf]
  %v6098 = vld [vmem:[%s3 + $0x4] sm:$0xf]
  %v6099 = vld [vmem:[%s3 + $0x8] sm:$0xf]
  %v6100 = vld [vmem:[%s3 + $0xc] sm:$0xf]
  %v6101 = vld [vmem:[%s3 + $0x10] sm:$0xf]
  %v6102 = vld [vmem:[%s3 + $0x14] sm:$0xf]
  %v6103 = vld [vmem:[%s3 + $0x18] sm:$0xf]
  %v6104 = vld [vmem:[%s3 + $0x1c] sm:$0xf]
  %v6105 = vld [vmem:[%s3 + $0x20] sm:$0xf]
  %v6106 = vld [vmem:[%s3 + $0x24] sm:$0xf]
  %v6107 = vld [vmem:[%s3 + $0x28] sm:$0xf]
  %v6108 = vld [vmem:[%s3 + $0x2c] sm:$0xf]
  %v6109 = vld [vmem:[%s3 + $0x30] sm:$0xf]
  %v6110 = vld [vmem:[%s3 + $0x34] sm:$0xf]
  %v6111 = vld [vmem:[%s3 + $0x38] sm:$0xf]
  %v6112 = vld [vmem:[%s3 + $0x3c] sm:$0xf]
  %v6113 = vld [vmem:[%s3 + $0x40] sm:$0xf]
  %v6114 = vld [vmem:[%s3 + $0x44] sm:$0xf]
  %v6115 = vld [vmem:[%s3 + $0x48] sm:$0xf]
  %v6116 = vld [vmem:[%s3 + $0x4c] sm:$0xf]
  %v6117 = vld [vmem:[%s3 + $0x50] sm:$0xf]
  %v6118 = vld [vmem:[%s3 + $0x54] sm:$0xf]
  %v6119 = vld [vmem:[%s3 + $0x58] sm:$0xf]
  %v6120 = vld [vmem:[%s3 + $0x5c] sm:$0xf]
  %v6121 = vld [vmem:[%s3 + $0x60] sm:$0xf]
  %v6122 = vld [vmem:[%s3 + $0x64] sm:$0xf]
  %v6123 = vld [vmem:[%s3 + $0x68] sm:$0xf]
  %v6124 = vld [vmem:[%s3 + $0x6c] sm:$0xf]
  %v6125 = vld [vmem:[%s3 + $0x70] sm:$0xf]
  %v6126 = vld [vmem:[%s3 + $0x74] sm:$0xf]
  %v6127 = vld [vmem:[%s3 + $0x78] sm:$0xf]
  %v6128 = vld [vmem:[%s3 + $0x7c] sm:$0xf]
  %v6129 = vld [vmem:[%s3 + $0x80] sm:$0xf]
  %v6130 = vld [vmem:[%s3 + $0x84] sm:$0xf]
  %v6131 = vld [vmem:[%s3 + $0x88] sm:$0xf]
  %v6132 = vld [vmem:[%s3 + $0x8c] sm:$0xf]
  %v6133 = vld [vmem:[%s3 + $0x90] sm:$0xf]
  %v6134 = vld [vmem:[%s3 + $0x94] sm:$0xf]
  %v6135 = vld [vmem:[%s3 + $0x98] sm:$0xf]
  %v6136 = vld [vmem:[%s3 + $0x9c] sm:$0xf]
  %v6137 = vld [vmem:[%s3 + $0xa0] sm:$0xf]
  %v6138 = vld [vmem:[%s3 + $0xa4] sm:$0xf]
  %v6139 = vld [vmem:[%s3 + $0xa8] sm:$0xf]
  %v6140 = vld [vmem:[%s3 + $0xac] sm:$0xf]
  %v6141 = vld [vmem:[%s3 + $0xb0] sm:$0xf]
  %v6142 = vld [vmem:[%s3 + $0xb4] sm:$0xf]
  %v6143 = vld [vmem:[%s3 + $0xb8] sm:$0xf]
  %v6144 = vld [vmem:[%s3 + $0xbc] sm:$0xf]
  %v6145 = vld [vmem:[%s3 + $0xc0] sm:$0xf]
  %v6146 = vld [vmem:[%s3 + $0xc4] sm:$0xf]
  %v6147 = vld [vmem:[%s3 + $0xc8] sm:$0xf]
  %v6148 = vld [vmem:[%s3 + $0xcc] sm:$0xf]
  %v6149 = vld [vmem:[%s3 + $0xd0] sm:$0xf]
  %v6150 = vld [vmem:[%s3 + $0xd4] sm:$0xf]
  %v6151 = vld [vmem:[%s3 + $0xd8] sm:$0xf]
  %v6152 = vld [vmem:[%s3 + $0xdc] sm:$0xf]
  %v6153 = vld [vmem:[%s3 + $0xe0] sm:$0xf]
  %v6154 = vld [vmem:[%s3 + $0xe4] sm:$0xf]
  %v6155 = vld [vmem:[%s3 + $0xe8] sm:$0xf]
  %v6156 = vld [vmem:[%s3 + $0xec] sm:$0xf]
  %v6157 = vld [vmem:[%s3 + $0xf0] sm:$0xf]
  %v6158 = vld [vmem:[%s3 + $0xf4] sm:$0xf]
  %v6159 = vld [vmem:[%s3 + $0xf8] sm:$0xf]
  %v6160 = vld [vmem:[%s3 + $0xfc] sm:$0xf]
  %v6161 = vld [vmem:[%s4] sm:$0x1]
  %v6163 = vperm.slane %v6161, 0
  %v6229 = vunpack.c.l.b16 %v6097
  %v6230 = vunpack.c.l.b16 %v6098
  %v6231 = vunpack.c.l.b16 %v6099
  %v6232 = vunpack.c.l.b16 %v6100
  %v6233 = vunpack.c.l.b16 %v6101
  %v6234 = vunpack.c.l.b16 %v6102
  %v6235 = vunpack.c.l.b16 %v6103
  %v6236 = vunpack.c.l.b16 %v6104
  %v6237 = vunpack.c.l.b16 %v6105
  %v6238 = vunpack.c.l.b16 %v6106
  %v6239 = vunpack.c.l.b16 %v6107
  %v6240 = vunpack.c.l.b16 %v6108
  %v6241 = vunpack.c.l.b16 %v6109
  %v6242 = vunpack.c.l.b16 %v6110
  %v6243 = vunpack.c.l.b16 %v6111
  %v6244 = vunpack.c.l.b16 %v6112
  %v6245 = vunpack.c.l.b16 %v6113
  %v6246 = vunpack.c.l.b16 %v6114
  %v6247 = vunpack.c.l.b16 %v6115
  %v6248 = vunpack.c.l.b16 %v6116
  %v6249 = vunpack.c.l.b16 %v6117
  %v6250 = vunpack.c.l.b16 %v6118
  %v6251 = vunpack.c.l.b16 %v6119
  %v6252 = vunpack.c.l.b16 %v6120
  %v6253 = vunpack.c.l.b16 %v6121
  %v6254 = vunpack.c.l.b16 %v6122
  %v6255 = vunpack.c.l.b16 %v6123
  %v6256 = vunpack.c.l.b16 %v6124
  %v6257 = vunpack.c.l.b16 %v6125
  %v6258 = vunpack.c.l.b16 %v6126
  %v6259 = vunpack.c.l.b16 %v6127
  %v6260 = vunpack.c.l.b16 %v6128
  %v6261 = vunpack.c.l.b16 %v6129
  %v6262 = vunpack.c.l.b16 %v6130
  %v6263 = vunpack.c.l.b16 %v6131
  %v6264 = vunpack.c.l.b16 %v6132
  %v6265 = vunpack.c.l.b16 %v6133
  %v6266 = vunpack.c.l.b16 %v6134
  %v6267 = vunpack.c.l.b16 %v6135
  %v6268 = vunpack.c.l.b16 %v6136
  %v6269 = vunpack.c.l.b16 %v6137
  %v6270 = vunpack.c.l.b16 %v6138
  %v6271 = vunpack.c.l.b16 %v6139
  %v6272 = vunpack.c.l.b16 %v6140
  %v6273 = vunpack.c.l.b16 %v6141
  %v6274 = vunpack.c.l.b16 %v6142
  %v6275 = vunpack.c.l.b16 %v6143
  %v6276 = vunpack.c.l.b16 %v6144
  %v6277 = vunpack.c.l.b16 %v6145
  %v6278 = vunpack.c.l.b16 %v6146
  %v6279 = vunpack.c.l.b16 %v6147
  %v6280 = vunpack.c.l.b16 %v6148
  %v6281 = vunpack.c.l.b16 %v6149
  %v6282 = vunpack.c.l.b16 %v6150
  %v6283 = vunpack.c.l.b16 %v6151
  %v6284 = vunpack.c.l.b16 %v6152
  %v6285 = vunpack.c.l.b16 %v6153
  %v6286 = vunpack.c.l.b16 %v6154
  %v6287 = vunpack.c.l.b16 %v6155
  %v6288 = vunpack.c.l.b16 %v6156
  %v6289 = vunpack.c.l.b16 %v6157
  %v6290 = vunpack.c.l.b16 %v6158
  %v6291 = vunpack.c.l.b16 %v6159
  %v6292 = vunpack.c.l.b16 %v6160
  %v6293 = vpack.c.b16 %v6230, %v6229
  %v6294 = vpack.c.b16 %v6232, %v6231
  %v6295 = vpack.c.b16 %v6234, %v6233
  %v6296 = vpack.c.b16 %v6236, %v6235
  %v6297 = vpack.c.b16 %v6238, %v6237
  %v6298 = vpack.c.b16 %v6240, %v6239
  %v6299 = vpack.c.b16 %v6242, %v6241
  %v6300 = vpack.c.b16 %v6244, %v6243
  %v6301 = vpack.c.b16 %v6246, %v6245
  %v6302 = vpack.c.b16 %v6248, %v6247
  %v6303 = vpack.c.b16 %v6250, %v6249
  %v6304 = vpack.c.b16 %v6252, %v6251
  %v6305 = vpack.c.b16 %v6254, %v6253
  %v6306 = vpack.c.b16 %v6256, %v6255
  %v6307 = vpack.c.b16 %v6258, %v6257
  %v6308 = vpack.c.b16 %v6260, %v6259
  %v6309 = vpack.c.b16 %v6262, %v6261
  %v6310 = vpack.c.b16 %v6264, %v6263
  %v6311 = vpack.c.b16 %v6266, %v6265
  %v6312 = vpack.c.b16 %v6268, %v6267
  %v6313 = vpack.c.b16 %v6270, %v6269
  %v6314 = vpack.c.b16 %v6272, %v6271
  %v6315 = vpack.c.b16 %v6274, %v6273
  %v6316 = vpack.c.b16 %v6276, %v6275
  %v6317 = vpack.c.b16 %v6278, %v6277
  %v6318 = vpack.c.b16 %v6280, %v6279
  %v6319 = vpack.c.b16 %v6282, %v6281
  %v6320 = vpack.c.b16 %v6284, %v6283
  %v6321 = vpack.c.b16 %v6286, %v6285
  %v6322 = vpack.c.b16 %v6288, %v6287
  %v6323 = vpack.c.b16 %v6290, %v6289
  %v6324 = vpack.c.b16 %v6292, %v6291
  %6357 = vmatpush.bf16.msra.mxu0 %v6300
  %6358 = vmatpush.bf16.msra.mxu0 %v6299
  %6359 = vmatpush.bf16.msra.mxu0 %v6298
  %6360 = vmatpush.bf16.msra.mxu0 %v6297
  %6361 = vmatpush.bf16.msra.mxu0 %v6296
  %6362 = vmatpush.bf16.msra.mxu0 %v6295
  %6363 = vmatpush.bf16.msra.mxu0 %v6294
  %6364 = vmatpush.bf16.msra.mxu0 %v6293
  %6365 = vmatmul.bf16.gmra.mxu0 %v6093
  %v6366 = vpop.f32.mrf.mxu0
  %v6367 = vadd.f32 %v6163, %v6366
  %v6368 = vpop.f32.mrf.mxu0
  %6369 = vdwg.mxu0
  %6370 = vmatpush.bf16.msra.mxu0 %v6308
  %6371 = vmatpush.bf16.msra.mxu0 %v6307
  %6372 = vmatpush.bf16.msra.mxu0 %v6306
  %6373 = vmatpush.bf16.msra.mxu0 %v6305
  %6374 = vmatpush.bf16.msra.mxu0 %v6304
  %6375 = vmatpush.bf16.msra.mxu0 %v6303
  %6376 = vmatpush.bf16.msra.mxu0 %v6302
  %6377 = vmatpush.bf16.msra.mxu0 %v6301
  %6378 = vmatmul.bf16.gmra.mxu0 %v6094
  %v6379 = vpop.f32.mrf.mxu0
  %v6380 = vadd.f32 %v6367, %v6379
  %v6381 = vpop.f32.mrf.mxu0
  %6382 = vdwg.mxu0
  %6383 = vmatpush.bf16.msra.mxu0 %v6316
  %6384 = vmatpush.bf16.msra.mxu0 %v6315
  %6385 = vmatpush.bf16.msra.mxu0 %v6314
  %6386 = vmatpush.bf16.msra.mxu0 %v6313
  %6387 = vmatpush.bf16.msra.mxu0 %v6312
  %6388 = vmatpush.bf16.msra.mxu0 %v6311
  %6389 = vmatpush.bf16.msra.mxu0 %v6310
  %6390 = vmatpush.bf16.msra.mxu0 %v6309
  %6391 = vmatmul.bf16.gmra.mxu0 %v6095
  %v6392 = vpop.f32.mrf.mxu0
  %v6393 = vadd.f32 %v6380, %v6392
  %v6394 = vpop.f32.mrf.mxu0
  %6395 = vdwg.mxu0
  %6396 = vmatpush.bf16.msra.mxu0 %v6324
  %6397 = vmatpush.bf16.msra.mxu0 %v6323
  %6398 = vmatpush.bf16.msra.mxu0 %v6322
  %6399 = vmatpush.bf16.msra.mxu0 %v6321
  %6400 = vmatpush.bf16.msra.mxu0 %v6320
  %6401 = vmatpush.bf16.msra.mxu0 %v6319
  %6402 = vmatpush.bf16.msra.mxu0 %v6318
  %6403 = vmatpush.bf16.msra.mxu0 %v6317
  %6404 = vmatmul.bf16.gmra.mxu0 %v6096
  %v6405 = vpop.f32.mrf.mxu0
  %v6406 = vadd.f32 %v6393, %v6405
  %v6407 = vpop.f32.mrf.mxu0
  %6408 = vdwg.mxu0
  %6409 = vst [vmem:[%s5] sm:$0xff] %v6406
  // Predicated region
  $region22: #{dqn_forward.7} parent=0 // pred_check
    _
  $region23: #{dqn_forward.7} parent=0 // pred_check_branch
    %6411 = sbr.rel (0) target = $region25
  $region24: #{dqn_forward.7} parent=0 // pred_region
    _
  $region25: #{dqn_forward.7} parent=0 // pred_fallthru
    _
  // Predicated region
  $region26: #{dqn_forward.7} parent=0 // pred_check
    _
  $region27: #{dqn_forward.7} parent=0 // pred_check_branch
    %6413 = sbr.rel (0) target = $region29
  $region28: #{dqn_forward.7} parent=0 // pred_region
    _
  $region29: #{dqn_forward.7} parent=0 // pred_fallthru
    _

</llo_original>
